<compile_context>
chip_gen: v7x
topology: tpu7x:2x2x1
jax: 0.10.0
libtpu: 0.0.40
codegen_flags: <defaults>
</compile_context>

<pallas_src>
import functools

import jax
import jax.numpy as jnp
from jax import lax
from jax.experimental import pallas as pl
from jax.experimental.pallas import tpu as pltpu

_TILE_CAP = 256  # max rows per grid step; keeps grid >= 2 on the larger layers


# ----------------------------------------------------------------------------
# Pallas kernels
# ----------------------------------------------------------------------------
def _mm_bias_act_kernel(x_ref, w_ref, b_ref, o_ref, *, act):
    acc = jnp.dot(x_ref[...], w_ref[...], preferred_element_type=jnp.float32)
    acc = acc + b_ref[...]
    if act == "relu":
        acc = jnp.maximum(acc, 0.0)
    o_ref[...] = acc.astype(o_ref.dtype)


def _bottleneck_kernel(x_ref, we_ref, be_ref, wd_ref, bd_ref, o_ref):
    # enc FC -> (dropout: identity, eval) -> dec FC; latent stays in vregs.
    z = jnp.dot(x_ref[...], we_ref[...], preferred_element_type=jnp.float32)
    z = z + be_ref[...]
    d = jnp.dot(z.astype(wd_ref.dtype), wd_ref[...],
                preferred_element_type=jnp.float32)
    o_ref[...] = (d + bd_ref[...]).astype(o_ref.dtype)


def _ct3_final_kernel(x_ref, w_ref, b_ref, wf_ref, bf_ref, o_ref):
    # convT3 (4-phase matmul) + ReLU, then fused 1x1 conv + sigmoid epilogue.
    acc = jnp.dot(x_ref[...], w_ref[...], preferred_element_type=jnp.float32)
    acc = jnp.maximum(acc + b_ref[...], 0.0)
    y = jnp.dot(acc.astype(wf_ref.dtype), wf_ref[...],
                preferred_element_type=jnp.float32)
    o_ref[...] = jax.nn.sigmoid(y + bf_ref[...]).astype(o_ref.dtype)


# ----------------------------------------------------------------------------
# pallas_call wrappers
# ----------------------------------------------------------------------------
def _tiles(M):
    if M <= _TILE_CAP:
        return M, M                      # single tile, no padding
    tm = _TILE_CAP
    return tm, pl.cdiv(M, tm) * tm


def matmul_bias_act(x, w, b, act="none", out_dtype=jnp.bfloat16):
    """x:(M,K) bf16, w:(K,N) bf16, b:(1,N) f32 -> (M,N) out_dtype."""
    M, K = x.shape
    N = w.shape[1]
    tm, Mp = _tiles(M)
    if Mp != M:
        x = jnp.pad(x, ((0, Mp - M), (0, 0)))
    out = pl.pallas_call(
        functools.partial(_mm_bias_act_kernel, act=act),
        out_shape=jax.ShapeDtypeStruct((Mp, N), out_dtype),
        grid=(Mp // tm,),
        in_specs=[
            pl.BlockSpec((tm, K), lambda i: (i, 0)),
            pl.BlockSpec((K, N), lambda i: (0, 0)),
            pl.BlockSpec((1, N), lambda i: (0, 0)),
        ],
        out_specs=pl.BlockSpec((tm, N), lambda i: (i, 0)),
        compiler_params=pltpu.CompilerParams(dimension_semantics=("parallel",)),
    )(x, w, b)
    return out if Mp == M else out[:M]


def bottleneck(flat, we, be, wd, bd):
    """Fused enc_fc -> dec_fc.  flat:(B,2048) bf16 -> (B,2048) bf16."""
    B, K = flat.shape
    H = we.shape[1]
    N = wd.shape[1]
    return pl.pallas_call(
        _bottleneck_kernel,
        out_shape=jax.ShapeDtypeStruct((B, N), jnp.bfloat16),
        grid=(1,),
        in_specs=[
            pl.BlockSpec((B, K), lambda i: (0, 0)),
            pl.BlockSpec((K, H), lambda i: (0, 0)),
            pl.BlockSpec((1, H), lambda i: (0, 0)),
            pl.BlockSpec((H, N), lambda i: (0, 0)),
            pl.BlockSpec((1, N), lambda i: (0, 0)),
        ],
        out_specs=pl.BlockSpec((B, N), lambda i: (0, 0)),
    )(flat, we, be, wd, bd)


def convt3_final(x, w, b, wf, bf_):
    """Fused convT3 + ReLU + 1x1 conv + sigmoid.  Output (M, 4) f32 (4 phases)."""
    M, K = x.shape
    N1 = w.shape[1]
    N2 = wf.shape[1]
    tm, Mp = _tiles(M)
    if Mp != M:
        x = jnp.pad(x, ((0, Mp - M), (0, 0)))
    out = pl.pallas_call(
        _ct3_final_kernel,
        out_shape=jax.ShapeDtypeStruct((Mp, N2), jnp.float32),
        grid=(Mp // tm,),
        in_specs=[
            pl.BlockSpec((tm, K), lambda i: (i, 0)),
            pl.BlockSpec((K, N1), lambda i: (0, 0)),
            pl.BlockSpec((1, N1), lambda i: (0, 0)),
            pl.BlockSpec((N1, N2), lambda i: (0, 0)),
            pl.BlockSpec((1, N2), lambda i: (0, 0)),
        ],
        out_specs=pl.BlockSpec((tm, N2), lambda i: (i, 0)),
        compiler_params=pltpu.CompilerParams(dimension_semantics=("parallel",)),
    )(x, w, b, wf, bf_)
    return out if Mp == M else out[:M]


# ----------------------------------------------------------------------------
# Thin JAX glue: patch extraction / phase interleave.
# ----------------------------------------------------------------------------
def im2col_s2(x, pad_k_to=None):
    """3x3 / stride-2 / pad-1 patches.  x:(B,H,W,C) -> (B*(H/2)*(W/2), 9*C).

    Optionally zero-pads the feature (K) axis up to `pad_k_to` so the first
    conv's K=9 becomes an aligned 16 without a separate XLA pad op."""
    B, H, W, C = x.shape
    Ho, Wo = H // 2, W // 2
    xp = jnp.pad(x, ((0, 0), (1, 1), (1, 1), (0, 0)))
    cols = [xp[:, dy:dy + 2 * Ho:2, dx:dx + 2 * Wo:2, :]
            for dy in range(3) for dx in range(3)]
    if pad_k_to is not None and pad_k_to > 9 * C:
        cols.append(jnp.zeros((B, Ho, Wo, pad_k_to - 9 * C), x.dtype))
        return jnp.concatenate(cols, axis=-1).reshape(B * Ho * Wo, pad_k_to)
    return jnp.concatenate(cols, axis=-1).reshape(B * Ho * Wo, 9 * C)


def patches_2x2(x):
    """2x2 patches (pad bottom/right by 1) for phase-decomposed convT.

    x:(B,H,W,C) -> (B*H*W, 4*C), feature order (dy, dx, C)."""
    B, H, W, C = x.shape
    xp = jnp.pad(x, ((0, 0), (0, 1), (0, 1), (0, 0)))
    cols = [xp[:, dy:dy + H, dx:dx + W, :] for dy in (0, 1) for dx in (0, 1)]
    return jnp.concatenate(cols, axis=-1).reshape(B * H * W, 4 * C)


def phase_interleave(y, B, H, W, Cout):
    """y:(B*H*W, 4*Cout) with columns (py, px, co) -> (B, 2H, 2W, Cout)."""
    y = y.reshape(B, H, W, 2, 2, Cout)
    y = jnp.transpose(y, (0, 1, 3, 2, 4, 5))
    return y.reshape(B, 2 * H, 2 * W, Cout)


# ----------------------------------------------------------------------------
# Parameters: PyTorch-layout synthetic init + one-time kernel-layout prep.
# ----------------------------------------------------------------------------
def init_params(key):
    ks = jax.random.split(key, 16)
    scale = 0.05
    p = {}
    # Encoder
    p["enc_conv1_w"] = scale * jax.random.normal(ks[0], (32, 1, 3, 3), jnp.float32)
    p["enc_conv1_b"] = scale * jax.random.normal(ks[1], (32,), jnp.float32)
    p["enc_conv2_w"] = scale * jax.random.normal(ks[2], (64, 32, 3, 3), jnp.float32)
    p["enc_conv2_b"] = scale * jax.random.normal(ks[3], (64,), jnp.float32)
    p["enc_conv3_w"] = scale * jax.random.normal(ks[4], (128, 64, 3, 3), jnp.float32)
    p["enc_conv3_b"] = scale * jax.random.normal(ks[5], (128,), jnp.float32)
    p["enc_fc_w"] = scale * jax.random.normal(ks[6], (4 * 4 * 128, 2), jnp.float32)  # (in,out)
    p["enc_fc_b"] = scale * jax.random.normal(ks[7], (2,), jnp.float32)
    # Decoder
    p["dec_fc_w"] = scale * jax.random.normal(ks[8], (2, 4 * 4 * 128), jnp.float32)  # (in,out)
    p["dec_fc_b"] = scale * jax.random.normal(ks[9], (4 * 4 * 128,), jnp.float32)
    p["dec_ct1_w"] = scale * jax.random.normal(ks[10], (128, 128, 3, 3), jnp.float32)
    p["dec_ct1_b"] = scale * jax.random.normal(ks[11], (128,), jnp.float32)
    p["dec_ct2_w"] = scale * jax.random.normal(ks[12], (128, 64, 3, 3), jnp.float32)
    p["dec_ct2_b"] = scale * jax.random.normal(ks[13], (64,), jnp.float32)
    p["dec_ct3_w"] = scale * jax.random.normal(ks[14], (64, 32, 3, 3), jnp.float32)
    p["dec_ct3_b"] = scale * jax.random.normal(ks[15], (32,), jnp.float32)
    k2 = jax.random.split(ks[15], 2)
    p["dec_conv_w"] = scale * jax.random.normal(k2[0], (1, 32, 1, 1), jnp.float32)
    p["dec_conv_b"] = scale * jax.random.normal(k2[1], (1,), jnp.float32)
    return p


def _conv_weight_mat(w_pt):
    """PyTorch Conv2d weight (Cout,Cin,3,3) -> (9*Cin, Cout), order (dy,dx,ci)."""
    Cout, Cin, k, _ = w_pt.shape
    return jnp.transpose(w_pt, (2, 3, 1, 0)).reshape(k * k * Cin, Cout)


def _convt_phase_weight(w_pt):
    """ConvTranspose2d weight (Cin,Cout,3,3) (stride 2, pad 1, out_pad 1)
    -> combined 4-phase matrix (4*Cin, 4*Cout).
    Rows: (dy,dx,ci) of the 2x2 input patch; cols: (py,px,co) output phase."""
    Cin, Cout, _, _ = w_pt.shape
    blocks = []
    for dy in (0, 1):
        for dx in (0, 1):
            cols = []
            for py in (0, 1):
                for px in (0, 1):
                    ky, kx = py + 1 - 2 * dy, px + 1 - 2 * dx
                    if 0 <= ky <= 2 and 0 <= kx <= 2:
                        cols.append(w_pt[:, :, ky, kx])          # (Cin, Cout)
                    else:
                        cols.append(jnp.zeros((Cin, Cout), w_pt.dtype))
            blocks.append(jnp.concatenate(cols, axis=1))          # (Cin, 4*Cout)
    return jnp.concatenate(blocks, axis=0)                        # (4*Cin, 4*Cout)


def prepare_params(p):
    """One-time transform of PyTorch-layout params into kernel-ready layout."""
    bf16, f32 = jnp.bfloat16, jnp.float32
    f = {}
    # Encoder convs (im2col matmul weights); pad conv1 K 9 -> 16.
    w1 = _conv_weight_mat(p["enc_conv1_w"])
    f["c1_w"] = jnp.pad(w1, ((0, 16 - w1.shape[0]), (0, 0))).astype(bf16)
    f["c1_b"] = p["enc_conv1_b"].reshape(1, -1).astype(f32)
    f["c2_w"] = _conv_weight_mat(p["enc_conv2_w"]).astype(bf16)
    f["c2_b"] = p["enc_conv2_b"].reshape(1, -1).astype(f32)
    f["c3_w"] = _conv_weight_mat(p["enc_conv3_w"]).astype(bf16)
    f["c3_b"] = p["enc_conv3_b"].reshape(1, -1).astype(f32)
    # FC weights with PyTorch NCHW-flatten permutation baked in (NHWC in/out).
    f["fce_w"] = (p["enc_fc_w"].reshape(128, 4, 4, 2)
                  .transpose(1, 2, 0, 3).reshape(2048, 2).astype(bf16))
    f["fce_b"] = p["enc_fc_b"].reshape(1, 2).astype(f32)
    f["fcd_w"] = (p["dec_fc_w"].reshape(2, 128, 4, 4)
                  .transpose(0, 2, 3, 1).reshape(2, 2048).astype(bf16))
    f["fcd_b"] = (p["dec_fc_b"].reshape(128, 4, 4)
                  .transpose(1, 2, 0).reshape(1, 2048).astype(f32))
    # ConvTranspose layers: combined 4-phase weights, tiled biases.
    for name, wk, bk in (("ct1", "dec_ct1_w", "dec_ct1_b"),
                         ("ct2", "dec_ct2_w", "dec_ct2_b"),
                         ("ct3", "dec_ct3_w", "dec_ct3_b")):
        f[name + "_w"] = _convt_phase_weight(p[wk]).astype(bf16)
        f[name + "_b"] = jnp.tile(p[bk], 4).reshape(1, -1).astype(f32)
    # Final 1x1 conv + sigmoid, folded into the ct3 epilogue: block-diagonal
    # (4*32, 4) so each phase block maps its 32 channels to its scalar output.
    w1col = p["dec_conv_w"].reshape(32, 1)
    f["fin_w"] = jnp.kron(jnp.eye(4, dtype=f32), w1col).astype(bf16)
    f["fin_b"] = jnp.tile(p["dec_conv_b"], 4).reshape(1, 4).astype(f32)
    return f


# ----------------------------------------------------------------------------
# Forward pass (kernel path).
# ----------------------------------------------------------------------------
def autoencoder_forward(fp, x_nchw):
    B = x_nchw.shape[0]
    x = jnp.transpose(x_nchw, (0, 2, 3, 1)).astype(jnp.bfloat16)   # NHWC bf16

    # ---------- Encoder ----------
    p1 = im2col_s2(x, pad_k_to=16)                                 # (B*256, 16)
    h1 = matmul_bias_act(p1, fp["c1_w"], fp["c1_b"], "relu").reshape(B, 16, 16, 32)
    h2 = matmul_bias_act(im2col_s2(h1), fp["c2_w"], fp["c2_b"], "relu").reshape(B, 8, 8, 64)
    h3 = matmul_bias_act(im2col_s2(h2), fp["c3_w"], fp["c3_b"], "relu").reshape(B, 4, 4, 128)

    flat = h3.reshape(B, 4 * 4 * 128)          # NHWC flatten; permutation baked into fce_w
    # TODO(synk): Dropout(0.5) -> identity (eval mode).
    d = bottleneck(flat, fp["fce_w"], fp["fce_b"], fp["fcd_w"], fp["fcd_b"])
    d = d.reshape(B, 4, 4, 128)                # already NHWC order via fcd_w permutation

    # ---------- Decoder (phase-decomposed conv transposes) ----------
    y1 = matmul_bias_act(patches_2x2(d), fp["ct1_w"], fp["ct1_b"], "relu")
    u1 = phase_interleave(y1, B, 4, 4, 128)                        # (B, 8, 8, 128)
    y2 = matmul_bias_act(patches_2x2(u1), fp["ct2_w"], fp["ct2_b"], "relu")
    u2 = phase_interleave(y2, B, 8, 8, 64)                         # (B, 16, 16, 64)
    # convT3 + ReLU + 1x1 conv + sigmoid, fused: output (B*256, 4) f32 phases.
    y3 = convt3_final(patches_2x2(u2), fp["ct3_w"], fp["ct3_b"],
                      fp["fin_w"], fp["fin_b"])
    out = y3.reshape(B, 16, 16, 2, 2)
    out = jnp.transpose(out, (0, 1, 3, 2, 4)).reshape(B, 32, 32)
    return out[:, None, :, :]                                      # (B, 1, 32, 32) f32


# ----------------------------------------------------------------------------
# Pure-JAX reference (f32) for correctness validation.
# ----------------------------------------------------------------------------
def reference_forward(p, x):
    def conv(x, w, b, stride, pad):
        y = lax.conv_general_dilated(x, w, (stride, stride), [(pad, pad)] * 2,
                                     dimension_numbers=("NCHW", "OIHW", "NCHW"))
        return y + b.reshape(1, -1, 1, 1)

    def convT(x, w, b, stride, pad, out_pad):
        wf = jnp.transpose(w[:, :, ::-1, ::-1], (1, 0, 2, 3))
        k = w.shape[2]
        lo, hi = k - 1 - pad, k - 1 - pad + out_pad
        y = lax.conv_general_dilated(x, wf, (1, 1), [(lo, hi)] * 2,
                                     lhs_dilation=(stride, stride),
                                     dimension_numbers=("NCHW", "OIHW", "NCHW"))
        return y + b.reshape(1, -1, 1, 1)

    relu = lambda v: jnp.maximum(v, 0.0)
    B = x.shape[0]
    h = relu(conv(x, p["enc_conv1_w"], p["enc_conv1_b"], 2, 1))
    h = relu(conv(h, p["enc_conv2_w"], p["enc_conv2_b"], 2, 1))
    h = relu(conv(h, p["enc_conv3_w"], p["enc_conv3_b"], 2, 1))
    z = h.reshape(B, -1) @ p["enc_fc_w"] + p["enc_fc_b"]
    d = (z @ p["dec_fc_w"] + p["dec_fc_b"]).reshape(B, 128, 4, 4)
    d = relu(convT(d, p["dec_ct1_w"], p["dec_ct1_b"], 2, 1, 1))
    d = relu(convT(d, p["dec_ct2_w"], p["dec_ct2_b"], 2, 1, 1))
    d = relu(convT(d, p["dec_ct3_w"], p["dec_ct3_b"], 2, 1, 1))
    return jax.nn.sigmoid(conv(d, p["dec_conv_w"], p["dec_conv_b"], 1, 0))


if __name__ == "__main__":
    key = jax.random.PRNGKey(0)
    pkey, xkey = jax.random.split(key)
    params = init_params(pkey)
    fp = prepare_params(params)          # one-time layout / dtype transform
    x = jax.random.normal(xkey, (2, 1, 32, 32), jnp.float32)  # NCHW 32x32 images

    fwd = jax.jit(autoencoder_forward)
    out = fwd(fp, x)
    jax.block_until_ready(out)

    assert out.shape == (2, 1, 32, 32), out.shape
    assert out.dtype == jnp.float32
    assert bool(jnp.all(jnp.isfinite(out)))
    assert bool(jnp.all((out >= 0.0) & (out <= 1.0)))          # sigmoid range

    ref = jax.jit(reference_forward)(params, x)
    max_err = float(jnp.max(jnp.abs(out - ref)))
    assert max_err < 3e-2, f"kernel vs reference max abs err {max_err}"

    print("KERNEL_OK")
</pallas_src>

<mosaic_0001>
module attributes {stable_mosaic.version = 11 : i64} {
  func.func @_mm_bias_act_kernel(%arg0: i32, %arg1: memref<256x16xbf16, #tpu.memory_space<vmem>>, %arg2: memref<16x32xbf16, #tpu.memory_space<vmem>>, %arg3: memref<1x32xf32, #tpu.memory_space<vmem>>, %arg4: memref<256x32xbf16, #tpu.memory_space<vmem>>) attributes {dimension_semantics = [#tpu.dimension_semantics<parallel>], iteration_bounds = array<i64: 2>, scalar_prefetch = 0 : i64, scratch_operands = 0 : i64, tpu.core_type = #tpu.core_type<tc>, window_params = [{transform_indices = @transform_0, window_bounds = array<i64: 256, 16>}, {pipeline_mode = #tpu.pipeline_mode<synchronous>, transform_indices = @transform_1, window_bounds = array<i64: 16, 32>}, {pipeline_mode = #tpu.pipeline_mode<synchronous>, transform_indices = @transform_2, window_bounds = array<i64: 1, 32>}, {transform_indices = @transform_3, window_bounds = array<i64: 256, 32>}]} {
    %c0 = arith.constant 0 : index
    %c0_0 = arith.constant 0 : index
    %0 = vector.load %arg1[%c0, %c0_0] : memref<256x16xbf16, #tpu.memory_space<vmem>>, vector<256x16xbf16>
    %c0_1 = arith.constant 0 : index
    %c0_2 = arith.constant 0 : index
    %1 = vector.load %arg2[%c0_1, %c0_2] : memref<16x32xbf16, #tpu.memory_space<vmem>>, vector<16x32xbf16>
    %cst = arith.constant dense<0.000000e+00> : vector<256x32xf32>
    %2 = tpu.matmul %0, %1, %cst {dimension_numbers = #tpu.dot_dimension_numbers<[1], [0], [0], [1], [0, 0, 1, 1], [], []>} : vector<256x16xbf16>, vector<16x32xbf16>, vector<256x32xf32> -> vector<256x32xf32>
    %c0_3 = arith.constant 0 : index
    %c0_4 = arith.constant 0 : index
    %3 = vector.load %arg3[%c0_3, %c0_4] : memref<1x32xf32, #tpu.memory_space<vmem>>, vector<1x32xf32>
    %4 = vector.broadcast %3 : vector<1x32xf32> to vector<256x32xf32>
    %5 = arith.addf %2, %4 : vector<256x32xf32>
    %cst_5 = arith.constant 0.000000e+00 : f32
    %6 = vector.broadcast %cst_5 : f32 to vector<256x32xf32>
    %7 = arith.maximumf %5, %6 : vector<256x32xf32>
    %8 = arith.truncf %7 : vector<256x32xf32> to vector<256x32xbf16>
    %c0_6 = arith.constant 0 : index
    %c0_7 = arith.constant 0 : index
    %9 = vector.load %arg4[%c0_6, %c0_7] : memref<256x32xbf16, #tpu.memory_space<vmem>>, vector<256x32xbf16>
    tpu.vector_store %arg4[%c0_6, %c0_7], %8 {strides = array<i32>} : memref<256x32xbf16, #tpu.memory_space<vmem>>, vector<256x32xbf16>,
    return
  }
  func.func @transform_0(%arg0: i32) -> (i32, i32) {
    %c0_i32 = arith.constant 0 : i32
    %c0_i32_0 = arith.constant 0 : i32
    return %arg0, %c0_i32 : i32, i32
  }
  func.func @transform_1(%arg0: i32) -> (i32, i32) {
    %c0_i32 = arith.constant 0 : i32
    %c0_i32_0 = arith.constant 0 : i32
    %c0_i32_1 = arith.constant 0 : i32
    return %c0_i32, %c0_i32_0 : i32, i32
  }
  func.func @transform_2(%arg0: i32) -> (i32, i32) {
    %c0_i32 = arith.constant 0 : i32
    %c0_i32_0 = arith.constant 0 : i32
    %c0_i32_1 = arith.constant 0 : i32
    return %c0_i32, %c0_i32_0 : i32, i32
  }
  func.func @transform_3(%arg0: i32) -> (i32, i32) {
    %c0_i32 = arith.constant 0 : i32
    %c0_i32_0 = arith.constant 0 : i32
    return %arg0, %c0_i32 : i32, i32
  }
}

module attributes {stable_mosaic.version = 11 : i64} {
  func.func @_mm_bias_act_kernel(%arg0: i32, %arg1: memref<128x288xbf16, #tpu.memory_space<vmem>>, %arg2: memref<288x64xbf16, #tpu.memory_space<vmem>>, %arg3: memref<1x64xf32, #tpu.memory_space<vmem>>, %arg4: memref<128x64xbf16, #tpu.memory_space<vmem>>) attributes {dimension_semantics = [#tpu.dimension_semantics<parallel>], iteration_bounds = array<i64: 1>, scalar_prefetch = 0 : i64, scratch_operands = 0 : i64, tpu.core_type = #tpu.core_type<tc>, window_params = [{transform_indices = @transform_0, window_bounds = array<i64: 128, 288>}, {pipeline_mode = #tpu.pipeline_mode<synchronous>, transform_indices = @transform_1, window_bounds = array<i64: 288, 64>}, {pipeline_mode = #tpu.pipeline_mode<synchronous>, transform_indices = @transform_2, window_bounds = array<i64: 1, 64>}, {transform_indices = @transform_3, window_bounds = array<i64: 128, 64>}]} {
    %c0 = arith.constant 0 : index
    %c0_0 = arith.constant 0 : index
    %0 = vector.load %arg1[%c0, %c0_0] : memref<128x288xbf16, #tpu.memory_space<vmem>>, vector<128x288xbf16>
    %c0_1 = arith.constant 0 : index
    %c0_2 = arith.constant 0 : index
    %1 = vector.load %arg2[%c0_1, %c0_2] : memref<288x64xbf16, #tpu.memory_space<vmem>>, vector<288x64xbf16>
    %cst = arith.constant dense<0.000000e+00> : vector<128x64xf32>
    %2 = tpu.matmul %0, %1, %cst {dimension_numbers = #tpu.dot_dimension_numbers<[1], [0], [0], [1], [0, 0, 1, 1], [], []>} : vector<128x288xbf16>, vector<288x64xbf16>, vector<128x64xf32> -> vector<128x64xf32>
    %c0_3 = arith.constant 0 : index
    %c0_4 = arith.constant 0 : index
    %3 = vector.load %arg3[%c0_3, %c0_4] : memref<1x64xf32, #tpu.memory_space<vmem>>, vector<1x64xf32>
    %4 = vector.broadcast %3 : vector<1x64xf32> to vector<128x64xf32>
    %5 = arith.addf %2, %4 : vector<128x64xf32>
    %cst_5 = arith.constant 0.000000e+00 : f32
    %6 = vector.broadcast %cst_5 : f32 to vector<128x64xf32>
    %7 = arith.maximumf %5, %6 : vector<128x64xf32>
    %8 = arith.truncf %7 : vector<128x64xf32> to vector<128x64xbf16>
    %c0_6 = arith.constant 0 : index
    %c0_7 = arith.constant 0 : index
    %9 = vector.load %arg4[%c0_6, %c0_7] : memref<128x64xbf16, #tpu.memory_space<vmem>>, vector<128x64xbf16>
    tpu.vector_store %arg4[%c0_6, %c0_7], %8 {strides = array<i32>} : memref<128x64xbf16, #tpu.memory_space<vmem>>, vector<128x64xbf16>,
    return
  }
  func.func @transform_0(%arg0: i32) -> (i32, i32) {
    %c0_i32 = arith.constant 0 : i32
    %c0_i32_0 = arith.constant 0 : i32
    return %arg0, %c0_i32 : i32, i32
  }
  func.func @transform_1(%arg0: i32) -> (i32, i32) {
    %c0_i32 = arith.constant 0 : i32
    %c0_i32_0 = arith.constant 0 : i32
    %c0_i32_1 = arith.constant 0 : i32
    return %c0_i32, %c0_i32_0 : i32, i32
  }
  func.func @transform_2(%arg0: i32) -> (i32, i32) {
    %c0_i32 = arith.constant 0 : i32
    %c0_i32_0 = arith.constant 0 : i32
    %c0_i32_1 = arith.constant 0 : i32
    return %c0_i32, %c0_i32_0 : i32, i32
  }
  func.func @transform_3(%arg0: i32) -> (i32, i32) {
    %c0_i32 = arith.constant 0 : i32
    %c0_i32_0 = arith.constant 0 : i32
    return %arg0, %c0_i32 : i32, i32
  }
}

module attributes {stable_mosaic.version = 11 : i64} {
  func.func @_mm_bias_act_kernel(%arg0: i32, %arg1: memref<32x576xbf16, #tpu.memory_space<vmem>>, %arg2: memref<576x128xbf16, #tpu.memory_space<vmem>>, %arg3: memref<1x128xf32, #tpu.memory_space<vmem>>, %arg4: memref<32x128xbf16, #tpu.memory_space<vmem>>) attributes {dimension_semantics = [#tpu.dimension_semantics<parallel>], iteration_bounds = array<i64: 1>, scalar_prefetch = 0 : i64, scratch_operands = 0 : i64, tpu.core_type = #tpu.core_type<tc>, window_params = [{transform_indices = @transform_0, window_bounds = array<i64: 32, 576>}, {pipeline_mode = #tpu.pipeline_mode<synchronous>, transform_indices = @transform_1, window_bounds = array<i64: 576, 128>}, {pipeline_mode = #tpu.pipeline_mode<synchronous>, transform_indices = @transform_2, window_bounds = array<i64: 1, 128>}, {transform_indices = @transform_3, window_bounds = array<i64: 32, 128>}]} {
    %c0 = arith.constant 0 : index
    %c0_0 = arith.constant 0 : index
    %0 = vector.load %arg1[%c0, %c0_0] : memref<32x576xbf16, #tpu.memory_space<vmem>>, vector<32x576xbf16>
    %c0_1 = arith.constant 0 : index
    %c0_2 = arith.constant 0 : index
    %1 = vector.load %arg2[%c0_1, %c0_2] : memref<576x128xbf16, #tpu.memory_space<vmem>>, vector<576x128xbf16>
    %cst = arith.constant dense<0.000000e+00> : vector<32x128xf32>
    %2 = tpu.matmul %0, %1, %cst {dimension_numbers = #tpu.dot_dimension_numbers<[1], [0], [0], [1], [0, 0, 1, 1], [], []>} : vector<32x576xbf16>, vector<576x128xbf16>, vector<32x128xf32> -> vector<32x128xf32>
    %c0_3 = arith.constant 0 : index
    %c0_4 = arith.constant 0 : index
    %3 = vector.load %arg3[%c0_3, %c0_4] : memref<1x128xf32, #tpu.memory_space<vmem>>, vector<1x128xf32>
    %4 = vector.broadcast %3 : vector<1x128xf32> to vector<32x128xf32>
    %5 = arith.addf %2, %4 : vector<32x128xf32>
    %cst_5 = arith.constant 0.000000e+00 : f32
    %6 = vector.broadcast %cst_5 : f32 to vector<32x128xf32>
    %7 = arith.maximumf %5, %6 : vector<32x128xf32>
    %8 = arith.truncf %7 : vector<32x128xf32> to vector<32x128xbf16>
    %c0_6 = arith.constant 0 : index
    %c0_7 = arith.constant 0 : index
    %9 = vector.load %arg4[%c0_6, %c0_7] : memref<32x128xbf16, #tpu.memory_space<vmem>>, vector<32x128xbf16>
    tpu.vector_store %arg4[%c0_6, %c0_7], %8 {strides = array<i32>} : memref<32x128xbf16, #tpu.memory_space<vmem>>, vector<32x128xbf16>,
    return
  }
  func.func @transform_0(%arg0: i32) -> (i32, i32) {
    %c0_i32 = arith.constant 0 : i32
    %c0_i32_0 = arith.constant 0 : i32
    return %arg0, %c0_i32 : i32, i32
  }
  func.func @transform_1(%arg0: i32) -> (i32, i32) {
    %c0_i32 = arith.constant 0 : i32
    %c0_i32_0 = arith.constant 0 : i32
    %c0_i32_1 = arith.constant 0 : i32
    return %c0_i32, %c0_i32_0 : i32, i32
  }
  func.func @transform_2(%arg0: i32) -> (i32, i32) {
    %c0_i32 = arith.constant 0 : i32
    %c0_i32_0 = arith.constant 0 : i32
    %c0_i32_1 = arith.constant 0 : i32
    return %c0_i32, %c0_i32_0 : i32, i32
  }
  func.func @transform_3(%arg0: i32) -> (i32, i32) {
    %c0_i32 = arith.constant 0 : i32
    %c0_i32_0 = arith.constant 0 : i32
    return %arg0, %c0_i32 : i32, i32
  }
}

module attributes {stable_mosaic.version = 11 : i64} {
  func.func @_bottleneck_kernel(%arg0: i32, %arg1: memref<2x2048xbf16, #tpu.memory_space<vmem>>, %arg2: memref<2048x2xbf16, #tpu.memory_space<vmem>>, %arg3: memref<1x2xf32, #tpu.memory_space<vmem>>, %arg4: memref<2x2048xbf16, #tpu.memory_space<vmem>>, %arg5: memref<1x2048xf32, #tpu.memory_space<vmem>>, %arg6: memref<2x2048xbf16, #tpu.memory_space<vmem>>) attributes {dimension_semantics = [#tpu.dimension_semantics<arbitrary>], iteration_bounds = array<i64: 1>, scalar_prefetch = 0 : i64, scratch_operands = 0 : i64, tpu.core_type = #tpu.core_type<tc>, window_params = [{pipeline_mode = #tpu.pipeline_mode<synchronous>, transform_indices = @transform_0, window_bounds = array<i64: 2, 2048>}, {pipeline_mode = #tpu.pipeline_mode<synchronous>, transform_indices = @transform_1, window_bounds = array<i64: 2048, 2>}, {pipeline_mode = #tpu.pipeline_mode<synchronous>, transform_indices = @transform_2, window_bounds = array<i64: 1, 2>}, {pipeline_mode = #tpu.pipeline_mode<synchronous>, transform_indices = @transform_3, window_bounds = array<i64: 2, 2048>}, {pipeline_mode = #tpu.pipeline_mode<synchronous>, transform_indices = @transform_4, window_bounds = array<i64: 1, 2048>}, {pipeline_mode = #tpu.pipeline_mode<synchronous>, transform_indices = @transform_5, window_bounds = array<i64: 2, 2048>}]} {
    %c0 = arith.constant 0 : index
    %c0_0 = arith.constant 0 : index
    %0 = vector.load %arg1[%c0, %c0_0] : memref<2x2048xbf16, #tpu.memory_space<vmem>>, vector<2x2048xbf16>
    %c0_1 = arith.constant 0 : index
    %c0_2 = arith.constant 0 : index
    %1 = vector.load %arg2[%c0_1, %c0_2] : memref<2048x2xbf16, #tpu.memory_space<vmem>>, vector<2048x2xbf16>
    %cst = arith.constant dense<0.000000e+00> : vector<2x2xf32>
    %2 = tpu.matmul %0, %1, %cst {dimension_numbers = #tpu.dot_dimension_numbers<[1], [0], [0], [1], [0, 0, 1, 1], [], []>} : vector<2x2048xbf16>, vector<2048x2xbf16>, vector<2x2xf32> -> vector<2x2xf32>
    %c0_3 = arith.constant 0 : index
    %c0_4 = arith.constant 0 : index
    %3 = vector.load %arg3[%c0_3, %c0_4] : memref<1x2xf32, #tpu.memory_space<vmem>>, vector<1x2xf32>
    %4 = vector.broadcast %3 : vector<1x2xf32> to vector<2x2xf32>
    %5 = arith.addf %2, %4 : vector<2x2xf32>
    %6 = arith.truncf %5 : vector<2x2xf32> to vector<2x2xbf16>
    %c0_5 = arith.constant 0 : index
    %c0_6 = arith.constant 0 : index
    %7 = vector.load %arg4[%c0_5, %c0_6] : memref<2x2048xbf16, #tpu.memory_space<vmem>>, vector<2x2048xbf16>
    %cst_7 = arith.constant dense<0.000000e+00> : vector<2x2048xf32>
    %8 = tpu.matmul %6, %7, %cst_7 {dimension_numbers = #tpu.dot_dimension_numbers<[1], [0], [0], [1], [0, 0, 1, 1], [], []>} : vector<2x2xbf16>, vector<2x2048xbf16>, vector<2x2048xf32> -> vector<2x2048xf32>
    %c0_8 = arith.constant 0 : index
    %c0_9 = arith.constant 0 : index
    %9 = vector.load %arg5[%c0_8, %c0_9] : memref<1x2048xf32, #tpu.memory_space<vmem>>, vector<1x2048xf32>
    %10 = vector.broadcast %9 : vector<1x2048xf32> to vector<2x2048xf32>
    %11 = arith.addf %8, %10 : vector<2x2048xf32>
    %12 = arith.truncf %11 : vector<2x2048xf32> to vector<2x2048xbf16>
    %c0_10 = arith.constant 0 : index
    %c0_11 = arith.constant 0 : index
    %13 = vector.load %arg6[%c0_10, %c0_11] : memref<2x2048xbf16, #tpu.memory_space<vmem>>, vector<2x2048xbf16>
    tpu.vector_store %arg6[%c0_10, %c0_11], %12 {strides = array<i32>} : memref<2x2048xbf16, #tpu.memory_space<vmem>>, vector<2x2048xbf16>,
    return
  }
  func.func @transform_0(%arg0: i32) -> (i32, i32) {
    %c0_i32 = arith.constant 0 : i32
    %c0_i32_0 = arith.constant 0 : i32
    %c0_i32_1 = arith.constant 0 : i32
    return %c0_i32, %c0_i32_0 : i32, i32
  }
  func.func @transform_1(%arg0: i32) -> (i32, i32) {
    %c0_i32 = arith.constant 0 : i32
    %c0_i32_0 = arith.constant 0 : i32
    %c0_i32_1 = arith.constant 0 : i32
    return %c0_i32, %c0_i32_0 : i32, i32
  }
  func.func @transform_2(%arg0: i32) -> (i32, i32) {
    %c0_i32 = arith.constant 0 : i32
    %c0_i32_0 = arith.constant 0 : i32
    %c0_i32_1 = arith.constant 0 : i32
    return %c0_i32, %c0_i32_0 : i32, i32
  }
  func.func @transform_3(%arg0: i32) -> (i32, i32) {
    %c0_i32 = arith.constant 0 : i32
    %c0_i32_0 = arith.constant 0 : i32
    %c0_i32_1 = arith.constant 0 : i32
    return %c0_i32, %c0_i32_0 : i32, i32
  }
  func.func @transform_4(%arg0: i32) -> (i32, i32) {
    %c0_i32 = arith.constant 0 : i32
    %c0_i32_0 = arith.constant 0 : i32
    %c0_i32_1 = arith.constant 0 : i32
    return %c0_i32, %c0_i32_0 : i32, i32
  }
  func.func @transform_5(%arg0: i32) -> (i32, i32) {
    %c0_i32 = arith.constant 0 : i32
    %c0_i32_0 = arith.constant 0 : i32
    %c0_i32_1 = arith.constant 0 : i32
    return %c0_i32, %c0_i32_0 : i32, i32
  }
}

module attributes {stable_mosaic.version = 11 : i64} {
  func.func @_mm_bias_act_kernel(%arg0: i32, %arg1: memref<32x512xbf16, #tpu.memory_space<vmem>>, %arg2: memref<512x512xbf16, #tpu.memory_space<vmem>>, %arg3: memref<1x512xf32, #tpu.memory_space<vmem>>, %arg4: memref<32x512xbf16, #tpu.memory_space<vmem>>) attributes {dimension_semantics = [#tpu.dimension_semantics<parallel>], iteration_bounds = array<i64: 1>, scalar_prefetch = 0 : i64, scratch_operands = 0 : i64, tpu.core_type = #tpu.core_type<tc>, window_params = [{transform_indices = @transform_0, window_bounds = array<i64: 32, 512>}, {pipeline_mode = #tpu.pipeline_mode<synchronous>, transform_indices = @transform_1, window_bounds = array<i64: 512, 512>}, {pipeline_mode = #tpu.pipeline_mode<synchronous>, transform_indices = @transform_2, window_bounds = array<i64: 1, 512>}, {transform_indices = @transform_3, window_bounds = array<i64: 32, 512>}]} {
    %c0 = arith.constant 0 : index
    %c0_0 = arith.constant 0 : index
    %0 = vector.load %arg1[%c0, %c0_0] : memref<32x512xbf16, #tpu.memory_space<vmem>>, vector<32x512xbf16>
    %c0_1 = arith.constant 0 : index
    %c0_2 = arith.constant 0 : index
    %1 = vector.load %arg2[%c0_1, %c0_2] : memref<512x512xbf16, #tpu.memory_space<vmem>>, vector<512x512xbf16>
    %cst = arith.constant dense<0.000000e+00> : vector<32x512xf32>
    %2 = tpu.matmul %0, %1, %cst {dimension_numbers = #tpu.dot_dimension_numbers<[1], [0], [0], [1], [0, 0, 1, 1], [], []>} : vector<32x512xbf16>, vector<512x512xbf16>, vector<32x512xf32> -> vector<32x512xf32>
    %c0_3 = arith.constant 0 : index
    %c0_4 = arith.constant 0 : index
    %3 = vector.load %arg3[%c0_3, %c0_4] : memref<1x512xf32, #tpu.memory_space<vmem>>, vector<1x512xf32>
    %4 = vector.broadcast %3 : vector<1x512xf32> to vector<32x512xf32>
    %5 = arith.addf %2, %4 : vector<32x512xf32>
    %cst_5 = arith.constant 0.000000e+00 : f32
    %6 = vector.broadcast %cst_5 : f32 to vector<32x512xf32>
    %7 = arith.maximumf %5, %6 : vector<32x512xf32>
    %8 = arith.truncf %7 : vector<32x512xf32> to vector<32x512xbf16>
    %c0_6 = arith.constant 0 : index
    %c0_7 = arith.constant 0 : index
    %9 = vector.load %arg4[%c0_6, %c0_7] : memref<32x512xbf16, #tpu.memory_space<vmem>>, vector<32x512xbf16>
    tpu.vector_store %arg4[%c0_6, %c0_7], %8 {strides = array<i32>} : memref<32x512xbf16, #tpu.memory_space<vmem>>, vector<32x512xbf16>,
    return
  }
  func.func @transform_0(%arg0: i32) -> (i32, i32) {
    %c0_i32 = arith.constant 0 : i32
    %c0_i32_0 = arith.constant 0 : i32
    return %arg0, %c0_i32 : i32, i32
  }
  func.func @transform_1(%arg0: i32) -> (i32, i32) {
    %c0_i32 = arith.constant 0 : i32
    %c0_i32_0 = arith.constant 0 : i32
    %c0_i32_1 = arith.constant 0 : i32
    return %c0_i32, %c0_i32_0 : i32, i32
  }
  func.func @transform_2(%arg0: i32) -> (i32, i32) {
    %c0_i32 = arith.constant 0 : i32
    %c0_i32_0 = arith.constant 0 : i32
    %c0_i32_1 = arith.constant 0 : i32
    return %c0_i32, %c0_i32_0 : i32, i32
  }
  func.func @transform_3(%arg0: i32) -> (i32, i32) {
    %c0_i32 = arith.constant 0 : i32
    %c0_i32_0 = arith.constant 0 : i32
    return %arg0, %c0_i32 : i32, i32
  }
}

module attributes {stable_mosaic.version = 11 : i64} {
  func.func @_mm_bias_act_kernel(%arg0: i32, %arg1: memref<128x512xbf16, #tpu.memory_space<vmem>>, %arg2: memref<512x256xbf16, #tpu.memory_space<vmem>>, %arg3: memref<1x256xf32, #tpu.memory_space<vmem>>, %arg4: memref<128x256xbf16, #tpu.memory_space<vmem>>) attributes {dimension_semantics = [#tpu.dimension_semantics<parallel>], iteration_bounds = array<i64: 1>, scalar_prefetch = 0 : i64, scratch_operands = 0 : i64, tpu.core_type = #tpu.core_type<tc>, window_params = [{transform_indices = @transform_0, window_bounds = array<i64: 128, 512>}, {pipeline_mode = #tpu.pipeline_mode<synchronous>, transform_indices = @transform_1, window_bounds = array<i64: 512, 256>}, {pipeline_mode = #tpu.pipeline_mode<synchronous>, transform_indices = @transform_2, window_bounds = array<i64: 1, 256>}, {transform_indices = @transform_3, window_bounds = array<i64: 128, 256>}]} {
    %c0 = arith.constant 0 : index
    %c0_0 = arith.constant 0 : index
    %0 = vector.load %arg1[%c0, %c0_0] : memref<128x512xbf16, #tpu.memory_space<vmem>>, vector<128x512xbf16>
    %c0_1 = arith.constant 0 : index
    %c0_2 = arith.constant 0 : index
    %1 = vector.load %arg2[%c0_1, %c0_2] : memref<512x256xbf16, #tpu.memory_space<vmem>>, vector<512x256xbf16>
    %cst = arith.constant dense<0.000000e+00> : vector<128x256xf32>
    %2 = tpu.matmul %0, %1, %cst {dimension_numbers = #tpu.dot_dimension_numbers<[1], [0], [0], [1], [0, 0, 1, 1], [], []>} : vector<128x512xbf16>, vector<512x256xbf16>, vector<128x256xf32> -> vector<128x256xf32>
    %c0_3 = arith.constant 0 : index
    %c0_4 = arith.constant 0 : index
    %3 = vector.load %arg3[%c0_3, %c0_4] : memref<1x256xf32, #tpu.memory_space<vmem>>, vector<1x256xf32>
    %4 = vector.broadcast %3 : vector<1x256xf32> to vector<128x256xf32>
    %5 = arith.addf %2, %4 : vector<128x256xf32>
    %cst_5 = arith.constant 0.000000e+00 : f32
    %6 = vector.broadcast %cst_5 : f32 to vector<128x256xf32>
    %7 = arith.maximumf %5, %6 : vector<128x256xf32>
    %8 = arith.truncf %7 : vector<128x256xf32> to vector<128x256xbf16>
    %c0_6 = arith.constant 0 : index
    %c0_7 = arith.constant 0 : index
    %9 = vector.load %arg4[%c0_6, %c0_7] : memref<128x256xbf16, #tpu.memory_space<vmem>>, vector<128x256xbf16>
    tpu.vector_store %arg4[%c0_6, %c0_7], %8 {strides = array<i32>} : memref<128x256xbf16, #tpu.memory_space<vmem>>, vector<128x256xbf16>,
    return
  }
  func.func @transform_0(%arg0: i32) -> (i32, i32) {
    %c0_i32 = arith.constant 0 : i32
    %c0_i32_0 = arith.constant 0 : i32
    return %arg0, %c0_i32 : i32, i32
  }
  func.func @transform_1(%arg0: i32) -> (i32, i32) {
    %c0_i32 = arith.constant 0 : i32
    %c0_i32_0 = arith.constant 0 : i32
    %c0_i32_1 = arith.constant 0 : i32
    return %c0_i32, %c0_i32_0 : i32, i32
  }
  func.func @transform_2(%arg0: i32) -> (i32, i32) {
    %c0_i32 = arith.constant 0 : i32
    %c0_i32_0 = arith.constant 0 : i32
    %c0_i32_1 = arith.constant 0 : i32
    return %c0_i32, %c0_i32_0 : i32, i32
  }
  func.func @transform_3(%arg0: i32) -> (i32, i32) {
    %c0_i32 = arith.constant 0 : i32
    %c0_i32_0 = arith.constant 0 : i32
    return %arg0, %c0_i32 : i32, i32
  }
}

module attributes {stable_mosaic.version = 11 : i64} {
  func.func @_ct3_final_kernel(%arg0: i32, %arg1: memref<256x256xbf16, #tpu.memory_space<vmem>>, %arg2: memref<256x128xbf16, #tpu.memory_space<vmem>>, %arg3: memref<1x128xf32, #tpu.memory_space<vmem>>, %arg4: memref<128x4xbf16, #tpu.memory_space<vmem>>, %arg5: memref<1x4xf32, #tpu.memory_space<vmem>>, %arg6: memref<256x4xf32, #tpu.memory_space<vmem>>) attributes {dimension_semantics = [#tpu.dimension_semantics<parallel>], iteration_bounds = array<i64: 2>, scalar_prefetch = 0 : i64, scratch_operands = 0 : i64, tpu.core_type = #tpu.core_type<tc>, window_params = [{transform_indices = @transform_0, window_bounds = array<i64: 256, 256>}, {pipeline_mode = #tpu.pipeline_mode<synchronous>, transform_indices = @transform_1, window_bounds = array<i64: 256, 128>}, {pipeline_mode = #tpu.pipeline_mode<synchronous>, transform_indices = @transform_2, window_bounds = array<i64: 1, 128>}, {pipeline_mode = #tpu.pipeline_mode<synchronous>, transform_indices = @transform_3, window_bounds = array<i64: 128, 4>}, {pipeline_mode = #tpu.pipeline_mode<synchronous>, transform_indices = @transform_4, window_bounds = array<i64: 1, 4>}, {transform_indices = @transform_5, window_bounds = array<i64: 256, 4>}]} {
    %c0 = arith.constant 0 : index
    %c0_0 = arith.constant 0 : index
    %0 = vector.load %arg1[%c0, %c0_0] : memref<256x256xbf16, #tpu.memory_space<vmem>>, vector<256x256xbf16>
    %c0_1 = arith.constant 0 : index
    %c0_2 = arith.constant 0 : index
    %1 = vector.load %arg2[%c0_1, %c0_2] : memref<256x128xbf16, #tpu.memory_space<vmem>>, vector<256x128xbf16>
    %cst = arith.constant dense<0.000000e+00> : vector<256x128xf32>
    %2 = tpu.matmul %0, %1, %cst {dimension_numbers = #tpu.dot_dimension_numbers<[1], [0], [0], [1], [0, 0, 1, 1], [], []>} : vector<256x256xbf16>, vector<256x128xbf16>, vector<256x128xf32> -> vector<256x128xf32>
    %c0_3 = arith.constant 0 : index
    %c0_4 = arith.constant 0 : index
    %3 = vector.load %arg3[%c0_3, %c0_4] : memref<1x128xf32, #tpu.memory_space<vmem>>, vector<1x128xf32>
    %4 = vector.broadcast %3 : vector<1x128xf32> to vector<256x128xf32>
    %5 = arith.addf %2, %4 : vector<256x128xf32>
    %cst_5 = arith.constant 0.000000e+00 : f32
    %6 = vector.broadcast %cst_5 : f32 to vector<256x128xf32>
    %7 = arith.maximumf %5, %6 : vector<256x128xf32>
    %8 = arith.truncf %7 : vector<256x128xf32> to vector<256x128xbf16>
    %c0_6 = arith.constant 0 : index
    %c0_7 = arith.constant 0 : index
    %9 = vector.load %arg4[%c0_6, %c0_7] : memref<128x4xbf16, #tpu.memory_space<vmem>>, vector<128x4xbf16>
    %cst_8 = arith.constant dense<0.000000e+00> : vector<256x4xf32>
    %10 = tpu.matmul %8, %9, %cst_8 {dimension_numbers = #tpu.dot_dimension_numbers<[1], [0], [0], [1], [0, 0, 1, 1], [], []>} : vector<256x128xbf16>, vector<128x4xbf16>, vector<256x4xf32> -> vector<256x4xf32>
    %c0_9 = arith.constant 0 : index
    %c0_10 = arith.constant 0 : index
    %11 = vector.load %arg5[%c0_9, %c0_10] : memref<1x4xf32, #tpu.memory_space<vmem>>, vector<1x4xf32>
    %12 = vector.broadcast %11 : vector<1x4xf32> to vector<256x4xf32>
    %13 = arith.addf %10, %12 : vector<256x4xf32>
    %14 = arith.negf %13 : vector<256x4xf32>
    %15 = math.exp %14 : vector<256x4xf32>
    %cst_11 = arith.constant 1.000000e+00 : f32
    %16 = vector.broadcast %cst_11 : f32 to vector<256x4xf32>
    %17 = arith.addf %16, %15 : vector<256x4xf32>
    %18 = arith.divf %16, %17 : vector<256x4xf32>
    %c0_12 = arith.constant 0 : index
    %c0_13 = arith.constant 0 : index
    %19 = vector.load %arg6[%c0_12, %c0_13] : memref<256x4xf32, #tpu.memory_space<vmem>>, vector<256x4xf32>
    tpu.vector_store %arg6[%c0_12, %c0_13], %18 {strides = array<i32>} : memref<256x4xf32, #tpu.memory_space<vmem>>, vector<256x4xf32>,
    return
  }
  func.func @transform_0(%arg0: i32) -> (i32, i32) {
    %c0_i32 = arith.constant 0 : i32
    %c0_i32_0 = arith.constant 0 : i32
    return %arg0, %c0_i32 : i32, i32
  }
  func.func @transform_1(%arg0: i32) -> (i32, i32) {
    %c0_i32 = arith.constant 0 : i32
    %c0_i32_0 = arith.constant 0 : i32
    %c0_i32_1 = arith.constant 0 : i32
    return %c0_i32, %c0_i32_0 : i32, i32
  }
  func.func @transform_2(%arg0: i32) -> (i32, i32) {
    %c0_i32 = arith.constant 0 : i32
    %c0_i32_0 = arith.constant 0 : i32
    %c0_i32_1 = arith.constant 0 : i32
    return %c0_i32, %c0_i32_0 : i32, i32
  }
  func.func @transform_3(%arg0: i32) -> (i32, i32) {
    %c0_i32 = arith.constant 0 : i32
    %c0_i32_0 = arith.constant 0 : i32
    %c0_i32_1 = arith.constant 0 : i32
    return %c0_i32, %c0_i32_0 : i32, i32
  }
  func.func @transform_4(%arg0: i32) -> (i32, i32) {
    %c0_i32 = arith.constant 0 : i32
    %c0_i32_0 = arith.constant 0 : i32
    %c0_i32_1 = arith.constant 0 : i32
    return %c0_i32, %c0_i32_0 : i32, i32
  }
  func.func @transform_5(%arg0: i32) -> (i32, i32) {
    %c0_i32 = arith.constant 0 : i32
    %c0_i32_0 = arith.constant 0 : i32
    return %arg0, %c0_i32 : i32, i32
  }
}

</mosaic_0001>

<llo_original>
// kernel: autoencoder_forward.7
$region0: #{autoencoder_forward.7}
  #allocation0 [shape = 'u32[]', space=smem, size = 0x4, offset = 0x4, fixed_abs, tag = 'smem constant byte address 0x4 - core index']
  #allocation1 [shape = 'u32[144,128]{1,0:T(1,128)}', space=vmem, size = 0x12000, scoped, tag = 'internal scratch']
  %s0 = inlined_call_operand.vmem [shape: bf16[512,16], index: 0, kind: input, shape index: {}]
  %s1 = inlined_call_operand.vmem [shape: bf16[16,32], index: 1, kind: input, shape index: {}]
  %s2 = inlined_call_operand.vmem [shape: f32[1,32], index: 2, kind: input, shape index: {}]
  %s3 = inlined_call_operand.vmem [shape: bf16[512,32], index: 3, kind: output, shape index: {}]
  %s4 = sld [smem:[#allocation0]]
  $region45: #{autoencoder_forward.7} parent=0
    _
  %s6 = ssub.s32 1, %s4
  %s7 = scalar_select 0, %s6, %s4
  loop: start=0, step=1, limit=4
  $region2: #{autoencoder_forward.7} parent=0 // loop_pre_header
    _
  $region3: #{autoencoder_forward.7} parent=0 // loop_header
    %s9 = sphi 0, %s13
    %p10 = scmp.ge.s32.totalorder %s9, 4
    %s19 = sphi 0, %s21
    %s22 = sphi 0, %s19
    %s23 = sphi 0, %s22
    %s39 = sphi 0, %s23
    %s43 = sphi 0, %s43
    %s45 = sphi 0, %s43
    %s46 = sphi 0, %s45
    %s60 = sphi 0, %s46
    %s64 = sphi 0, %s64
    %s66 = sphi 0, %s64
    %s67 = sphi 0, %s66
    %s81 = sphi 0, %s67
    %s87 = sphi 0, %s89
    %s90 = sphi 0, %s87
    %s91 = sphi 0, %s90
    %s107 = sphi 0, %s91
  $region4: #{autoencoder_forward.7} parent=0 // loop_header_branch
    %12 = sbr.rel (%p10) target = $region8
  $region5: #{autoencoder_forward.7} parent=0 // loop_body
    %s14 = ssub.s32 %s9, 1
    %s15 = ssub.s32 %s9, 2
    %s16 = sadd.s32 %s9, 1
    %s17 = ssub.s32 %s9, %s16
    %p18 = scmp.eq.s32.totalorder %s17, 0
    %s20 = sadd.s32 %s19, 1
    %s21 = scalar_select %p18, %s19, %s20
    %p24 = pneg %p18
    %p25 = scmp.eq.s32.totalorder %s9, 1
    %p26 = por %p24, %p25
    %p27 = scmp.ne.s32.totalorder %s19, %s22
    %p28 = scmp.eq.s32.totalorder %s9, 0
    %p29 = por %p27, %p28
    %p30 = scmp.ne.s32.totalorder %s19, %s22
    %p31 = scmp.eq.s32.totalorder %s14, 1
    %p32 = por %p30, %p31
    %p33 = scmp.ne.s32.totalorder %s22, %s23
    %p34 = scmp.eq.s32.totalorder %s14, 0
    %p35 = por %p33, %p34
    %p36 = scmp.ne.s32.totalorder %s22, %s23
    %p37 = scmp.eq.s32.totalorder %s15, 1
    %p38 = por %p36, %p37
    %p40 = scmp.ne.s32.totalorder %s23, %s39
    %p41 = scmp.eq.s32.totalorder %s15, 0
    %p42 = por %p40, %p41
    %s44 = sadd.s32 %s43, 1
    %p47 = scmp.eq.s32.totalorder %s9, 1
    %p48 = scmp.ne.s32.totalorder %s43, %s45
    %p49 = scmp.eq.s32.totalorder %s9, 0
    %p50 = por %p48, %p49
    %p51 = scmp.ne.s32.totalorder %s43, %s45
    %p52 = scmp.eq.s32.totalorder %s14, 1
    %p53 = por %p51, %p52
    %p54 = scmp.ne.s32.totalorder %s45, %s46
    %p55 = scmp.eq.s32.totalorder %s14, 0
    %p56 = por %p54, %p55
    %p57 = scmp.ne.s32.totalorder %s45, %s46
    %p58 = scmp.eq.s32.totalorder %s15, 1
    %p59 = por %p57, %p58
    %p61 = scmp.ne.s32.totalorder %s46, %s60
    %p62 = scmp.eq.s32.totalorder %s15, 0
    %p63 = por %p61, %p62
    %s65 = sadd.s32 %s64, 1
    %p68 = scmp.eq.s32.totalorder %s9, 1
    %p69 = scmp.ne.s32.totalorder %s64, %s66
    %p70 = scmp.eq.s32.totalorder %s9, 0
    %p71 = por %p69, %p70
    %p72 = scmp.ne.s32.totalorder %s64, %s66
    %p73 = scmp.eq.s32.totalorder %s14, 1
    %p74 = por %p72, %p73
    %p75 = scmp.ne.s32.totalorder %s66, %s67
    %p76 = scmp.eq.s32.totalorder %s14, 0
    %p77 = por %p75, %p76
    %p78 = scmp.ne.s32.totalorder %s66, %s67
    %p79 = scmp.eq.s32.totalorder %s15, 1
    %p80 = por %p78, %p79
    %p82 = scmp.ne.s32.totalorder %s67, %s81
    %p83 = scmp.eq.s32.totalorder %s15, 0
    %p84 = por %p82, %p83
    %s85 = ssub.s32 %s9, %s16
    %p86 = scmp.eq.s32.totalorder %s85, 0
    %s88 = sadd.s32 %s87, 1
    %s89 = scalar_select %p86, %s87, %s88
    %p92 = pneg %p86
    %p93 = scmp.eq.s32.totalorder %s9, 1
    %p94 = por %p92, %p93
    %p95 = scmp.ne.s32.totalorder %s87, %s90
    %p96 = scmp.eq.s32.totalorder %s9, 0
    %p97 = por %p95, %p96
    %p98 = scmp.ne.s32.totalorder %s87, %s90
    %p99 = scmp.eq.s32.totalorder %s14, 1
    %p100 = por %p98, %p99
    %p101 = scmp.ne.s32.totalorder %s90, %s91
    %p102 = scmp.eq.s32.totalorder %s14, 0
    %p103 = por %p101, %p102
    %p104 = scmp.ne.s32.totalorder %s90, %s91
    %p105 = scmp.eq.s32.totalorder %s15, 1
    %p106 = por %p104, %p105
    %p108 = scmp.ne.s32.totalorder %s91, %s107
    %p109 = scmp.eq.s32.totalorder %s15, 0
    %p110 = por %p108, %p109
    %p111 = scmp.le.s32.totalorder 1, %s9
    %p112 = scmp.lt.s32.totalorder %s9, 3
    %p113 = pnand %p111, %p112
    %p114 = pneg %p113
    // Predicated region
    $region9: #{autoencoder_forward.7} parent=5 // pred_check
      _
    $region10: #{autoencoder_forward.7} parent=5 // pred_check_branch
      %116 = sbr.rel (%p113) target = $region12
    $region11: #{autoencoder_forward.7} parent=5 // pred_region
      %s117 = ssub.s32 %s9, 1
      // Predicated region
      $region13: #{autoencoder_forward.7} parent=11 // pred_check
        %p118 = pneg %p56
      $region14: #{autoencoder_forward.7} parent=11 // pred_check_branch
        %120 = sbr.rel (%p118) target = $region16
      $region15: #{autoencoder_forward.7} parent=11 // pred_region
        _
      $region16: #{autoencoder_forward.7} parent=11 // pred_fallthru
        _
      // Predicated region
      $region17: #{autoencoder_forward.7} parent=11 // pred_check
        %p121 = pneg %p77
      $region18: #{autoencoder_forward.7} parent=11 // pred_check_branch
        %123 = sbr.rel (%p121) target = $region20
      $region19: #{autoencoder_forward.7} parent=11 // pred_region
        _
      $region20: #{autoencoder_forward.7} parent=11 // pred_fallthru
        _
    $region12: #{autoencoder_forward.7} parent=5 // pred_fallthru
      _
    %p124 = scmp.lt.s32.totalorder %s9, 2
    // Predicated region
    $region21: #{autoencoder_forward.7} parent=5 // pred_check
      %p125 = pneg %p124
    $region22: #{autoencoder_forward.7} parent=5 // pred_check_branch
      %127 = sbr.rel (%p125) target = $region24
    $region23: #{autoencoder_forward.7} parent=5 // pred_region
      // Predicated region
      $region25: #{autoencoder_forward.7} parent=23 // pred_check
        %p128 = pneg %p29
      $region26: #{autoencoder_forward.7} parent=23 // pred_check_branch
        %130 = sbr.rel (%p128) target = $region28
      $region27: #{autoencoder_forward.7} parent=23 // pred_region
        %s131 = smul.u32 32, %s9
        %p132 = scmp.lt.s32.totalorder %s131, 63
        %s133 = scalar_select %p132, %s131, 63
        %s134 = smul.addr %s133, 4
        %s135 = scalar_lea.vmem %s0, %s134
        %s136 = smul.u32 32, %s9
      $region28: #{autoencoder_forward.7} parent=23 // pred_fallthru
        _
    $region24: #{autoencoder_forward.7} parent=5 // pred_fallthru
      _
    %p137 = scmp.le.s32.totalorder 1, %s9
    %p138 = scmp.lt.s32.totalorder %s9, 3
    %p139 = pnand %p137, %p138
    %p140 = pneg %p139
    // Predicated region
    $region29: #{autoencoder_forward.7} parent=5 // pred_check
      _
    $region30: #{autoencoder_forward.7} parent=5 // pred_check_branch
      %142 = sbr.rel (%p139) target = $region32
    $region31: #{autoencoder_forward.7} parent=5 // pred_region
      %s143 = ssub.s32 %s9, 1
      %s144 = smul.u32 32, %s14
      %p145 = scmp.lt.s32.totalorder %s144, 63
      %s146 = scalar_select %p145, %s144, 63
      %s147 = smul.addr %s146, 4
      %s148 = scalar_lea.vmem %s0, %s147
      %p149 = pneg %p35
      %p150 = pneg %p32
      %p151 = pneg %p56
      %p152 = pneg %p53
      %p153 = pneg %p77
      %p154 = pneg %p74
      %p155 = pneg %p103
      %p156 = pneg %p100
      %s157 = smul.u32 32, %s14
      %p158 = scmp.lt.s32.totalorder %s157, 63
      %s159 = scalar_select %p158, %s157, 63
      %s160 = smul.addr %s159, 4
      %s161 = scalar_lea.vmem %s3, %s160
      %s162 = smul.u32 32, %s14
      %p163 = scmp.lt.s32.totalorder %s162, 63
      %s164 = scalar_select %p163, %s162, 63
      %s165 = smul.addr %s164, 4
      %s166 = scalar_lea.vmem %s0, %s165
      %s167 = smul.u32 32, %s14
      %s168 = smul.u32 32, %s14
      %p169 = scmp.lt.s32.totalorder %s168, 63
      %s170 = scalar_select %p169, %s168, 63
      %s171 = smul.addr %s170, 4
      %s172 = scalar_lea.vmem %s3, %s171
      %s173 = smul.u32 32, %s14
      %v175 = vld [vmem:[%s166] sm:$0xf]
      %v176 = vld [vmem:[%s166 + $0x4] sm:$0xf]
      %v177 = vld [vmem:[%s166 + $0x8] sm:$0xf]
      %v178 = vld [vmem:[%s166 + $0xc] sm:$0xf]
      %v179 = vld [vmem:[%s166 + $0x10] sm:$0xf]
      %v180 = vld [vmem:[%s166 + $0x14] sm:$0xf]
      %v181 = vld [vmem:[%s166 + $0x18] sm:$0xf]
      %v182 = vld [vmem:[%s166 + $0x1c] sm:$0xf]
      %v183 = vld [vmem:[%s166 + $0x20] sm:$0xf]
      %v184 = vld [vmem:[%s166 + $0x24] sm:$0xf]
      %v185 = vld [vmem:[%s166 + $0x28] sm:$0xf]
      %v186 = vld [vmem:[%s166 + $0x2c] sm:$0xf]
      %v187 = vld [vmem:[%s166 + $0x30] sm:$0xf]
      %v188 = vld [vmem:[%s166 + $0x34] sm:$0xf]
      %v189 = vld [vmem:[%s166 + $0x38] sm:$0xf]
      %v190 = vld [vmem:[%s166 + $0x3c] sm:$0xf]
      %v191 = vld [vmem:[%s166 + $0x40] sm:$0xf]
      %v192 = vld [vmem:[%s166 + $0x44] sm:$0xf]
      %v193 = vld [vmem:[%s166 + $0x48] sm:$0xf]
      %v194 = vld [vmem:[%s166 + $0x4c] sm:$0xf]
      %v195 = vld [vmem:[%s166 + $0x50] sm:$0xf]
      %v196 = vld [vmem:[%s166 + $0x54] sm:$0xf]
      %v197 = vld [vmem:[%s166 + $0x58] sm:$0xf]
      %v198 = vld [vmem:[%s166 + $0x5c] sm:$0xf]
      %v199 = vld [vmem:[%s166 + $0x60] sm:$0xf]
      %v200 = vld [vmem:[%s166 + $0x64] sm:$0xf]
      %v201 = vld [vmem:[%s166 + $0x68] sm:$0xf]
      %v202 = vld [vmem:[%s166 + $0x6c] sm:$0xf]
      %v203 = vld [vmem:[%s166 + $0x70] sm:$0xf]
      %v204 = vld [vmem:[%s166 + $0x74] sm:$0xf]
      %v205 = vld [vmem:[%s166 + $0x78] sm:$0xf]
      %v206 = vld [vmem:[%s166 + $0x7c] sm:$0xf]
      %v207 = vld [vmem:[%s1] sm:$0xf]
      %v208 = vld [vmem:[%s1 + $0x4] sm:$0xf]
      %v209 = vld [vmem:[%s2] sm:$0x1]
      %v211 = vlaneseq
      %v212 = vshrl.u32 %v211, 7
      %v213 = vsub.s32 0, %v212
      %v214 = vrot.slane %v209, %v213
      %v248 = vunpack.c.l.b16 %v175
      %v249 = vunpack.c.l.b16 %v176
      %v250 = vunpack.c.l.b16 %v177
      %v251 = vunpack.c.l.b16 %v178
      %v252 = vunpack.c.l.b16 %v179
      %v253 = vunpack.c.l.b16 %v180
      %v254 = vunpack.c.l.b16 %v181
      %v255 = vunpack.c.l.b16 %v182
      %v256 = vunpack.c.l.b16 %v183
      %v257 = vunpack.c.l.b16 %v184
      %v258 = vunpack.c.l.b16 %v185
      %v259 = vunpack.c.l.b16 %v186
      %v260 = vunpack.c.l.b16 %v187
      %v261 = vunpack.c.l.b16 %v188
      %v262 = vunpack.c.l.b16 %v189
      %v263 = vunpack.c.l.b16 %v190
      %v264 = vunpack.c.l.b16 %v191
      %v265 = vunpack.c.l.b16 %v192
      %v266 = vunpack.c.l.b16 %v193
      %v267 = vunpack.c.l.b16 %v194
      %v268 = vunpack.c.l.b16 %v195
      %v269 = vunpack.c.l.b16 %v196
      %v270 = vunpack.c.l.b16 %v197
      %v271 = vunpack.c.l.b16 %v198
      %v272 = vunpack.c.l.b16 %v199
      %v273 = vunpack.c.l.b16 %v200
      %v274 = vunpack.c.l.b16 %v201
      %v275 = vunpack.c.l.b16 %v202
      %v276 = vunpack.c.l.b16 %v203
      %v277 = vunpack.c.l.b16 %v204
      %v278 = vunpack.c.l.b16 %v205
      %v279 = vunpack.c.l.b16 %v206
      %v280 = vpack.c.b16 %v249, %v248
      %v281 = vpack.c.b16 %v251, %v250
      %v282 = vpack.c.b16 %v253, %v252
      %v283 = vpack.c.b16 %v255, %v254
      %v284 = vpack.c.b16 %v257, %v256
      %v285 = vpack.c.b16 %v259, %v258
      %v286 = vpack.c.b16 %v261, %v260
      %v287 = vpack.c.b16 %v263, %v262
      %v288 = vpack.c.b16 %v265, %v264
      %v289 = vpack.c.b16 %v267, %v266
      %v290 = vpack.c.b16 %v269, %v268
      %v291 = vpack.c.b16 %v271, %v270
      %v292 = vpack.c.b16 %v273, %v272
      %v293 = vpack.c.b16 %v275, %v274
      %v294 = vpack.c.b16 %v277, %v276
      %v295 = vpack.c.b16 %v279, %v278
      %v298 = vunpack.c.l.b16 %v207
      %v299 = vunpack.c.l.b16 %v208
      %v300 = vpack.c.b16 %v299, %v298
      %vm302 = vcmask 130048
      %v304 = vsel %vm302, %v280, 0
      %v307 = vsel %vm302, %v281, 0
      %v310 = vsel %vm302, %v282, 0
      %v313 = vsel %vm302, %v283, 0
      %v316 = vsel %vm302, %v284, 0
      %v319 = vsel %vm302, %v285, 0
      %v322 = vsel %vm302, %v286, 0
      %v325 = vsel %vm302, %v287, 0
      %v328 = vsel %vm302, %v288, 0
      %v331 = vsel %vm302, %v289, 0
      %v334 = vsel %vm302, %v290, 0
      %v337 = vsel %vm302, %v291, 0
      %v340 = vsel %vm302, %v292, 0
      %v343 = vsel %vm302, %v293, 0
      %v346 = vsel %vm302, %v294, 0
      %v349 = vsel %vm302, %v295, 0
      %351 = vmatprep.subr.bf16.mxu0 0
      %352 = vmatpush1.bf16.msra.mxu0 %v300
      %353 = vmatprep.subr.bf16.mxu0 0
      %354 = vmatpush1.bf16.msra.mxu0 0
      %355 = vmatprep.subr.bf16.mxu0 0
      %356 = vmatpush1.bf16.msra.mxu0 0
      %357 = vmatprep.subr.bf16.mxu0 0
      %358 = vmatpush1.bf16.msra.mxu0 0
      %359 = vmatprep.subr.bf16.mxu0 0
      %360 = vmatpush1.bf16.msra.mxu0 0
      %361 = vmatprep.subr.bf16.mxu0 0
      %362 = vmatpush1.bf16.msra.mxu0 0
      %363 = vmatprep.subr.bf16.mxu0 0
      %364 = vmatpush1.bf16.msra.mxu0 0
      %365 = vmatprep.subr.bf16.mxu0 0
      %366 = vmatpush1.bf16.msra.mxu0 0
      %367 = vmatprep.subr.bf16.mxu0 0
      %368 = vmatpush1.bf16.msra.mxu0 0
      %369 = vmatprep.subr.bf16.mxu0 0
      %370 = vmatpush1.bf16.msra.mxu0 0
      %371 = vmatprep.subr.bf16.mxu0 0
      %372 = vmatpush1.bf16.msra.mxu0 0
      %373 = vmatprep.subr.bf16.mxu0 0
      %374 = vmatpush1.bf16.msra.mxu0 0
      %375 = vmatprep.subr.bf16.mxu0 0
      %376 = vmatpush1.bf16.msra.mxu0 0
      %377 = vmatprep.subr.bf16.mxu0 0
      %378 = vmatpush1.bf16.msra.mxu0 0
      %379 = vmatprep.subr.bf16.mxu0 0
      %380 = vmatpush1.bf16.msra.mxu0 0
      %381 = vmatprep.subr.bf16.mxu0 0
      %382 = vmatpush1.bf16.msra.mxu0 0
      %383 = vmatprep.mubr.bf16.mxu0 0
      %384 = vmatmul.mubr.bf16.gmra.mrb[0].mxu0 %v304
      %v385 = vpop.f32.mrb[0].mxu0
      %v386 = vadd.f32 %v214, %v385
      %v387 = vpop.f32.mrb[0].mxu0
      %v388 = vpop.f32.mrb[0].mxu0
      %v389 = vadd.f32 %v214, %v388
      %v390 = vpop.f32.mrb[0].mxu0
      %391 = vmatprep.mubr.bf16.mxu0 0
      %392 = vmatmul.mubr.bf16.gmra.mrb[0].mxu0 %v307
      %v393 = vpop.f32.mrb[0].mxu0
      %v394 = vadd.f32 %v214, %v393
      %v395 = vpop.f32.mrb[0].mxu0
      %v396 = vpop.f32.mrb[0].mxu0
      %v397 = vadd.f32 %v214, %v396
      %v398 = vpop.f32.mrb[0].mxu0
      %399 = vmatprep.mubr.bf16.mxu0 0
      %400 = vmatmul.mubr.bf16.gmra.mrb[0].mxu0 %v310
      %v401 = vpop.f32.mrb[0].mxu0
      %v402 = vadd.f32 %v214, %v401
      %v403 = vpop.f32.mrb[0].mxu0
      %v404 = vpop.f32.mrb[0].mxu0
      %v405 = vadd.f32 %v214, %v404
      %v406 = vpop.f32.mrb[0].mxu0
      %407 = vmatprep.mubr.bf16.mxu0 0
      %408 = vmatmul.mubr.bf16.gmra.mrb[0].mxu0 %v313
      %v409 = vpop.f32.mrb[0].mxu0
      %v410 = vadd.f32 %v214, %v409
      %v411 = vpop.f32.mrb[0].mxu0
      %v412 = vpop.f32.mrb[0].mxu0
      %v413 = vadd.f32 %v214, %v412
      %v414 = vpop.f32.mrb[0].mxu0
      %415 = vmatprep.mubr.bf16.mxu0 0
      %416 = vmatmul.mubr.bf16.gmra.mrb[0].mxu0 %v316
      %v417 = vpop.f32.mrb[0].mxu0
      %v418 = vadd.f32 %v214, %v417
      %v419 = vpop.f32.mrb[0].mxu0
      %v420 = vpop.f32.mrb[0].mxu0
      %v421 = vadd.f32 %v214, %v420
      %v422 = vpop.f32.mrb[0].mxu0
      %423 = vmatprep.mubr.bf16.mxu0 0
      %424 = vmatmul.mubr.bf16.gmra.mrb[0].mxu0 %v319
      %v425 = vpop.f32.mrb[0].mxu0
      %v426 = vadd.f32 %v214, %v425
      %v427 = vpop.f32.mrb[0].mxu0
      %v428 = vpop.f32.mrb[0].mxu0
      %v429 = vadd.f32 %v214, %v428
      %v430 = vpop.f32.mrb[0].mxu0
      %431 = vmatprep.mubr.bf16.mxu0 0
      %432 = vmatmul.mubr.bf16.gmra.mrb[0].mxu0 %v322
      %v433 = vpop.f32.mrb[0].mxu0
      %v434 = vadd.f32 %v214, %v433
      %v435 = vpop.f32.mrb[0].mxu0
      %v436 = vpop.f32.mrb[0].mxu0
      %v437 = vadd.f32 %v214, %v436
      %v438 = vpop.f32.mrb[0].mxu0
      %439 = vmatprep.mubr.bf16.mxu0 0
      %440 = vmatmul.mubr.bf16.gmra.mrb[0].mxu0 %v325
      %v441 = vpop.f32.mrb[0].mxu0
      %v442 = vadd.f32 %v214, %v441
      %v443 = vpop.f32.mrb[0].mxu0
      %v444 = vpop.f32.mrb[0].mxu0
      %v445 = vadd.f32 %v214, %v444
      %v446 = vpop.f32.mrb[0].mxu0
      %447 = vmatprep.mubr.bf16.mxu0 0
      %448 = vmatmul.mubr.bf16.gmra.mrb[0].mxu0 %v328
      %v449 = vpop.f32.mrb[0].mxu0
      %v450 = vadd.f32 %v214, %v449
      %v451 = vpop.f32.mrb[0].mxu0
      %v452 = vpop.f32.mrb[0].mxu0
      %v453 = vadd.f32 %v214, %v452
      %v454 = vpop.f32.mrb[0].mxu0
      %455 = vmatprep.mubr.bf16.mxu0 0
      %456 = vmatmul.mubr.bf16.gmra.mrb[0].mxu0 %v331
      %v457 = vpop.f32.mrb[0].mxu0
      %v458 = vadd.f32 %v214, %v457
      %v459 = vpop.f32.mrb[0].mxu0
      %v460 = vpop.f32.mrb[0].mxu0
      %v461 = vadd.f32 %v214, %v460
      %v462 = vpop.f32.mrb[0].mxu0
      %463 = vmatprep.mubr.bf16.mxu0 0
      %464 = vmatmul.mubr.bf16.gmra.mrb[0].mxu0 %v334
      %v465 = vpop.f32.mrb[0].mxu0
      %v466 = vadd.f32 %v214, %v465
      %v467 = vpop.f32.mrb[0].mxu0
      %v468 = vpop.f32.mrb[0].mxu0
      %v469 = vadd.f32 %v214, %v468
      %v470 = vpop.f32.mrb[0].mxu0
      %471 = vmatprep.mubr.bf16.mxu0 0
      %472 = vmatmul.mubr.bf16.gmra.mrb[0].mxu0 %v337
      %v473 = vpop.f32.mrb[0].mxu0
      %v474 = vadd.f32 %v214, %v473
      %v475 = vpop.f32.mrb[0].mxu0
      %v476 = vpop.f32.mrb[0].mxu0
      %v477 = vadd.f32 %v214, %v476
      %v478 = vpop.f32.mrb[0].mxu0
      %479 = vmatprep.mubr.bf16.mxu0 0
      %480 = vmatmul.mubr.bf16.gmra.mrb[0].mxu0 %v340
      %v481 = vpop.f32.mrb[0].mxu0
      %v482 = vadd.f32 %v214, %v481
      %v483 = vpop.f32.mrb[0].mxu0
      %v484 = vpop.f32.mrb[0].mxu0
      %v485 = vadd.f32 %v214, %v484
      %v486 = vpop.f32.mrb[0].mxu0
      %487 = vmatprep.mubr.bf16.mxu0 0
      %488 = vmatmul.mubr.bf16.gmra.mrb[0].mxu0 %v343
      %v489 = vpop.f32.mrb[0].mxu0
      %v490 = vadd.f32 %v214, %v489
      %v491 = vpop.f32.mrb[0].mxu0
      %v492 = vpop.f32.mrb[0].mxu0
      %v493 = vadd.f32 %v214, %v492
      %v494 = vpop.f32.mrb[0].mxu0
      %495 = vmatprep.mubr.bf16.mxu0 0
      %496 = vmatmul.mubr.bf16.gmra.mrb[0].mxu0 %v346
      %v497 = vpop.f32.mrb[0].mxu0
      %v498 = vadd.f32 %v214, %v497
      %v499 = vpop.f32.mrb[0].mxu0
      %v500 = vpop.f32.mrb[0].mxu0
      %v501 = vadd.f32 %v214, %v500
      %v502 = vpop.f32.mrb[0].mxu0
      %503 = vmatprep.mubr.bf16.mxu0 0
      %504 = vmatmul.mubr.bf16.gmra.mrb[0].mxu0 %v349
      %v505 = vpop.f32.mrb[0].mxu0
      %v506 = vadd.f32 %v214, %v505
      %v507 = vpop.f32.mrb[0].mxu0
      %v508 = vpop.f32.mrb[0].mxu0
      %v509 = vadd.f32 %v214, %v508
      %v510 = vpop.f32.mrb[0].mxu0
      %511 = vdwg.mxu0
      %v512 = vmax.f32 %v386, 0.0
      %v513 = vmax.f32 %v389, 0.0
      %v514 = vmax.f32 %v394, 0.0
      %v515 = vmax.f32 %v397, 0.0
      %v516 = vmax.f32 %v402, 0.0
      %v517 = vmax.f32 %v405, 0.0
      %v518 = vmax.f32 %v410, 0.0
      %v519 = vmax.f32 %v413, 0.0
      %v520 = vmax.f32 %v418, 0.0
      %v521 = vmax.f32 %v421, 0.0
      %v522 = vmax.f32 %v426, 0.0
      %v523 = vmax.f32 %v429, 0.0
      %v524 = vmax.f32 %v434, 0.0
      %v525 = vmax.f32 %v437, 0.0
      %v526 = vmax.f32 %v442, 0.0
      %v527 = vmax.f32 %v445, 0.0
      %v528 = vmax.f32 %v450, 0.0
      %v529 = vmax.f32 %v453, 0.0
      %v530 = vmax.f32 %v458, 0.0
      %v531 = vmax.f32 %v461, 0.0
      %v532 = vmax.f32 %v466, 0.0
      %v533 = vmax.f32 %v469, 0.0
      %v534 = vmax.f32 %v474, 0.0
      %v535 = vmax.f32 %v477, 0.0
      %v536 = vmax.f32 %v482, 0.0
      %v537 = vmax.f32 %v485, 0.0
      %v538 = vmax.f32 %v490, 0.0
      %v539 = vmax.f32 %v493, 0.0
      %v540 = vmax.f32 %v498, 0.0
      %v541 = vmax.f32 %v501, 0.0
      %v542 = vmax.f32 %v506, 0.0
      %v543 = vmax.f32 %v509, 0.0
      %v544 = vpack.c.bf16 %v513, %v512
      %v545 = vpack.c.bf16 %v515, %v514
      %v546 = vpack.c.bf16 %v517, %v516
      %v547 = vpack.c.bf16 %v519, %v518
      %v548 = vpack.c.bf16 %v521, %v520
      %v549 = vpack.c.bf16 %v523, %v522
      %v550 = vpack.c.bf16 %v525, %v524
      %v551 = vpack.c.bf16 %v527, %v526
      %v552 = vpack.c.bf16 %v529, %v528
      %v553 = vpack.c.bf16 %v531, %v530
      %v554 = vpack.c.bf16 %v533, %v532
      %v555 = vpack.c.bf16 %v535, %v534
      %v556 = vpack.c.bf16 %v537, %v536
      %v557 = vpack.c.bf16 %v539, %v538
      %v558 = vpack.c.bf16 %v541, %v540
      %v559 = vpack.c.bf16 %v543, %v542
      %v576 = vunpack.c.l.b16 %v544
      %v577 = vunpack.c.h.b16 %v544
      %v578 = vunpack.c.l.b16 %v545
      %v579 = vunpack.c.h.b16 %v545
      %v580 = vunpack.c.l.b16 %v546
      %v581 = vunpack.c.h.b16 %v546
      %v582 = vunpack.c.l.b16 %v547
      %v583 = vunpack.c.h.b16 %v547
      %v584 = vunpack.c.l.b16 %v548
      %v585 = vunpack.c.h.b16 %v548
      %v586 = vunpack.c.l.b16 %v549
      %v587 = vunpack.c.h.b16 %v549
      %v588 = vunpack.c.l.b16 %v550
      %v589 = vunpack.c.h.b16 %v550
      %v590 = vunpack.c.l.b16 %v551
      %v591 = vunpack.c.h.b16 %v551
      %v592 = vunpack.c.l.b16 %v552
      %v593 = vunpack.c.h.b16 %v552
      %v594 = vunpack.c.l.b16 %v553
      %v595 = vunpack.c.h.b16 %v553
      %v596 = vunpack.c.l.b16 %v554
      %v597 = vunpack.c.h.b16 %v554
      %v598 = vunpack.c.l.b16 %v555
      %v599 = vunpack.c.h.b16 %v555
      %v600 = vunpack.c.l.b16 %v556
      %v601 = vunpack.c.h.b16 %v556
      %v602 = vunpack.c.l.b16 %v557
      %v603 = vunpack.c.h.b16 %v557
      %v604 = vunpack.c.l.b16 %v558
      %v605 = vunpack.c.h.b16 %v558
      %v606 = vunpack.c.l.b16 %v559
      %v607 = vunpack.c.h.b16 %v559
      %v608 = vpack.c.b16 %v576, %v576
      %v609 = vpack.c.b16 %v577, %v577
      %v610 = vpack.c.b16 %v578, %v578
      %v611 = vpack.c.b16 %v579, %v579
      %v612 = vpack.c.b16 %v580, %v580
      %v613 = vpack.c.b16 %v581, %v581
      %v614 = vpack.c.b16 %v582, %v582
      %v615 = vpack.c.b16 %v583, %v583
      %v616 = vpack.c.b16 %v584, %v584
      %v617 = vpack.c.b16 %v585, %v585
      %v618 = vpack.c.b16 %v586, %v586
      %v619 = vpack.c.b16 %v587, %v587
      %v620 = vpack.c.b16 %v588, %v588
      %v621 = vpack.c.b16 %v589, %v589
      %v622 = vpack.c.b16 %v590, %v590
      %v623 = vpack.c.b16 %v591, %v591
      %v624 = vpack.c.b16 %v592, %v592
      %v625 = vpack.c.b16 %v593, %v593
      %v626 = vpack.c.b16 %v594, %v594
      %v627 = vpack.c.b16 %v595, %v595
      %v628 = vpack.c.b16 %v596, %v596
      %v629 = vpack.c.b16 %v597, %v597
      %v630 = vpack.c.b16 %v598, %v598
      %v631 = vpack.c.b16 %v599, %v599
      %v632 = vpack.c.b16 %v600, %v600
      %v633 = vpack.c.b16 %v601, %v601
      %v634 = vpack.c.b16 %v602, %v602
      %v635 = vpack.c.b16 %v603, %v603
      %v636 = vpack.c.b16 %v604, %v604
      %v637 = vpack.c.b16 %v605, %v605
      %v638 = vpack.c.b16 %v606, %v606
      %v639 = vpack.c.b16 %v607, %v607
      %vm672 = vcmask 257024
      %673 = vst.msk [vmem:[%s172] sm:$0xf] %vm672, %v608
      %674 = vst.msk [vmem:[%s172 + $0x4] sm:$0xf] %vm672, %v609
      %675 = vst.msk [vmem:[%s172 + $0x8] sm:$0xf] %vm672, %v610
      %676 = vst.msk [vmem:[%s172 + $0xc] sm:$0xf] %vm672, %v611
      %677 = vst.msk [vmem:[%s172 + $0x10] sm:$0xf] %vm672, %v612
      %678 = vst.msk [vmem:[%s172 + $0x14] sm:$0xf] %vm672, %v613
      %679 = vst.msk [vmem:[%s172 + $0x18] sm:$0xf] %vm672, %v614
      %680 = vst.msk [vmem:[%s172 + $0x1c] sm:$0xf] %vm672, %v615
      %681 = vst.msk [vmem:[%s172 + $0x20] sm:$0xf] %vm672, %v616
      %682 = vst.msk [vmem:[%s172 + $0x24] sm:$0xf] %vm672, %v617
      %683 = vst.msk [vmem:[%s172 + $0x28] sm:$0xf] %vm672, %v618
      %684 = vst.msk [vmem:[%s172 + $0x2c] sm:$0xf] %vm672, %v619
      %685 = vst.msk [vmem:[%s172 + $0x30] sm:$0xf] %vm672, %v620
      %686 = vst.msk [vmem:[%s172 + $0x34] sm:$0xf] %vm672, %v621
      %687 = vst.msk [vmem:[%s172 + $0x38] sm:$0xf] %vm672, %v622
      %688 = vst.msk [vmem:[%s172 + $0x3c] sm:$0xf] %vm672, %v623
      %689 = vst.msk [vmem:[%s172 + $0x40] sm:$0xf] %vm672, %v624
      %690 = vst.msk [vmem:[%s172 + $0x44] sm:$0xf] %vm672, %v625
      %691 = vst.msk [vmem:[%s172 + $0x48] sm:$0xf] %vm672, %v626
      %692 = vst.msk [vmem:[%s172 + $0x4c] sm:$0xf] %vm672, %v627
      %693 = vst.msk [vmem:[%s172 + $0x50] sm:$0xf] %vm672, %v628
      %694 = vst.msk [vmem:[%s172 + $0x54] sm:$0xf] %vm672, %v629
      %695 = vst.msk [vmem:[%s172 + $0x58] sm:$0xf] %vm672, %v630
      %696 = vst.msk [vmem:[%s172 + $0x5c] sm:$0xf] %vm672, %v631
      %697 = vst.msk [vmem:[%s172 + $0x60] sm:$0xf] %vm672, %v632
      %698 = vst.msk [vmem:[%s172 + $0x64] sm:$0xf] %vm672, %v633
      %699 = vst.msk [vmem:[%s172 + $0x68] sm:$0xf] %vm672, %v634
      %700 = vst.msk [vmem:[%s172 + $0x6c] sm:$0xf] %vm672, %v635
      %701 = vst.msk [vmem:[%s172 + $0x70] sm:$0xf] %vm672, %v636
      %702 = vst.msk [vmem:[%s172 + $0x74] sm:$0xf] %vm672, %v637
      %703 = vst.msk [vmem:[%s172 + $0x78] sm:$0xf] %vm672, %v638
      %704 = vst.msk [vmem:[%s172 + $0x7c] sm:$0xf] %vm672, %v639
      %s705 = smul.u32 32, %s14
      %p706 = scmp.lt.s32.totalorder %s705, 63
      %s707 = scalar_select %p706, %s705, 63
      %s708 = smul.addr %s707, 4
      %s709 = scalar_lea.vmem %s3, %s708
      // Predicated region
      $region33: #{autoencoder_forward.7} parent=31 // pred_check
        %p710 = pneg %p100
      $region34: #{autoencoder_forward.7} parent=31 // pred_check_branch
        %712 = sbr.rel (%p710) target = $region36
      $region35: #{autoencoder_forward.7} parent=31 // pred_region
        %s713 = smul.u32 32, %s14
      $region36: #{autoencoder_forward.7} parent=31 // pred_fallthru
        _
    $region32: #{autoencoder_forward.7} parent=5 // pred_fallthru
      _
    %p714 = scmp.le.s32.totalorder 2, %s9
    // Predicated region
    $region37: #{autoencoder_forward.7} parent=5 // pred_check
      %p715 = pneg %p714
    $region38: #{autoencoder_forward.7} parent=5 // pred_check_branch
      %717 = sbr.rel (%p715) target = $region40
    $region39: #{autoencoder_forward.7} parent=5 // pred_region
      %s718 = ssub.s32 %s9, 2
      // Predicated region
      $region41: #{autoencoder_forward.7} parent=39 // pred_check
        %p719 = pneg %p106
      $region42: #{autoencoder_forward.7} parent=39 // pred_check_branch
        %721 = sbr.rel (%p719) target = $region44
      $region43: #{autoencoder_forward.7} parent=39 // pred_region
        %s722 = smul.u32 32, %s15
        %p723 = scmp.lt.s32.totalorder %s722, 63
        %s724 = scalar_select %p723, %s722, 63
        %s725 = smul.addr %s724, 4
        %s726 = scalar_lea.vmem %s3, %s725
      $region44: #{autoencoder_forward.7} parent=39 // pred_fallthru
        _
    $region40: #{autoencoder_forward.7} parent=5 // pred_fallthru
      _
  $region6: #{autoencoder_forward.7} parent=0 // loop_footer
    %s13 = sadd.s32 1, %s9
  $region7: #{autoencoder_forward.7} parent=0 // loop_footer_branch
    %8 = sbr.rel target = $region3
  $region8: #{autoencoder_forward.7} parent=0 // loop_exit
    _

// kernel: autoencoder_forward.8
$region0: #{autoencoder_forward.8}
  #allocation0 [shape = 'u32[]', space=smem, size = 0x4, offset = 0x4, fixed_abs, tag = 'smem constant byte address 0x4 - core index']
  #allocation1 [shape = 'u32[144,128]{1,0:T(1,128)}', space=vmem, size = 0x12000, scoped, tag = 'internal scratch']
  %s0 = inlined_call_operand.vmem [shape: bf16[128,288], index: 0, kind: input, shape index: {}]
  %s1 = inlined_call_operand.vmem [shape: bf16[288,64], index: 1, kind: input, shape index: {}]
  %s2 = inlined_call_operand.vmem [shape: f32[1,64], index: 2, kind: input, shape index: {}]
  %s3 = inlined_call_operand.vmem [shape: bf16[128,64], index: 3, kind: output, shape index: {}]
  %s4 = sld [smem:[#allocation0]]
  $region22: #{autoencoder_forward.8} parent=0
    _
  %s6 = ssub.s32 1, %s4
  %s7 = scalar_select 0, %s6, %s4
  // Predicated region
  $region2: #{autoencoder_forward.8} parent=0 // pred_check
    _
  $region3: #{autoencoder_forward.8} parent=0 // pred_check_branch
    %9 = sbr.rel (0) target = $region5
  $region4: #{autoencoder_forward.8} parent=0 // pred_region
    _
  $region5: #{autoencoder_forward.8} parent=0 // pred_fallthru
    _
  // Predicated region
  $region6: #{autoencoder_forward.8} parent=0 // pred_check
    _
  $region7: #{autoencoder_forward.8} parent=0 // pred_check_branch
    %11 = sbr.rel (0) target = $region9
  $region8: #{autoencoder_forward.8} parent=0 // pred_region
    _
  $region9: #{autoencoder_forward.8} parent=0 // pred_fallthru
    _
  // Predicated region
  $region10: #{autoencoder_forward.8} parent=0 // pred_check
    _
  $region11: #{autoencoder_forward.8} parent=0 // pred_check_branch
    %13 = sbr.rel (0) target = $region13
  $region12: #{autoencoder_forward.8} parent=0 // pred_region
    _
  $region13: #{autoencoder_forward.8} parent=0 // pred_fallthru
    _
  %v15 = vld [vmem:[%s0] sm:$0xff]
  %v16 = vld [vmem:[%s0 + $0x8] sm:$0xf]
  %v17 = vld [vmem:[%s0 + $0xc] sm:$0xff]
  %v18 = vld [vmem:[%s0 + $0x14] sm:$0xf]
  %v19 = vld [vmem:[%s0 + $0x18] sm:$0xff]
  %v20 = vld [vmem:[%s0 + $0x20] sm:$0xf]
  %v21 = vld [vmem:[%s0 + $0x24] sm:$0xff]
  %v22 = vld [vmem:[%s0 + $0x2c] sm:$0xf]
  %v23 = vld [vmem:[%s0 + $0x30] sm:$0xff]
  %v24 = vld [vmem:[%s0 + $0x38] sm:$0xf]
  %v25 = vld [vmem:[%s0 + $0x3c] sm:$0xff]
  %v26 = vld [vmem:[%s0 + $0x44] sm:$0xf]
  %v27 = vld [vmem:[%s0 + $0x48] sm:$0xff]
  %v28 = vld [vmem:[%s0 + $0x50] sm:$0xf]
  %v29 = vld [vmem:[%s0 + $0x54] sm:$0xff]
  %v30 = vld [vmem:[%s0 + $0x5c] sm:$0xf]
  %v31 = vld [vmem:[%s0 + $0x60] sm:$0xff]
  %v32 = vld [vmem:[%s0 + $0x68] sm:$0xf]
  %v33 = vld [vmem:[%s0 + $0x6c] sm:$0xff]
  %v34 = vld [vmem:[%s0 + $0x74] sm:$0xf]
  %v35 = vld [vmem:[%s0 + $0x78] sm:$0xff]
  %v36 = vld [vmem:[%s0 + $0x80] sm:$0xf]
  %v37 = vld [vmem:[%s0 + $0x84] sm:$0xff]
  %v38 = vld [vmem:[%s0 + $0x8c] sm:$0xf]
  %v39 = vld [vmem:[%s0 + $0x90] sm:$0xff]
  %v40 = vld [vmem:[%s0 + $0x98] sm:$0xf]
  %v41 = vld [vmem:[%s0 + $0x9c] sm:$0xff]
  %v42 = vld [vmem:[%s0 + $0xa4] sm:$0xf]
  %v43 = vld [vmem:[%s0 + $0xa8] sm:$0xff]
  %v44 = vld [vmem:[%s0 + $0xb0] sm:$0xf]
  %v45 = vld [vmem:[%s0 + $0xb4] sm:$0xff]
  %v46 = vld [vmem:[%s0 + $0xbc] sm:$0xf]
  %v47 = vld [vmem:[%s1] sm:$0xf]
  %v48 = vld [vmem:[%s1 + $0x4] sm:$0xf]
  %v49 = vld [vmem:[%s1 + $0x8] sm:$0xf]
  %v50 = vld [vmem:[%s1 + $0xc] sm:$0xf]
  %v51 = vld [vmem:[%s1 + $0x10] sm:$0xf]
  %v52 = vld [vmem:[%s1 + $0x14] sm:$0xf]
  %v53 = vld [vmem:[%s1 + $0x18] sm:$0xf]
  %v54 = vld [vmem:[%s1 + $0x1c] sm:$0xf]
  %v55 = vld [vmem:[%s1 + $0x20] sm:$0xf]
  %v56 = vld [vmem:[%s1 + $0x24] sm:$0xf]
  %v57 = vld [vmem:[%s1 + $0x28] sm:$0xf]
  %v58 = vld [vmem:[%s1 + $0x2c] sm:$0xf]
  %v59 = vld [vmem:[%s1 + $0x30] sm:$0xf]
  %v60 = vld [vmem:[%s1 + $0x34] sm:$0xf]
  %v61 = vld [vmem:[%s1 + $0x38] sm:$0xf]
  %v62 = vld [vmem:[%s1 + $0x3c] sm:$0xf]
  %v63 = vld [vmem:[%s1 + $0x40] sm:$0xf]
  %v64 = vld [vmem:[%s1 + $0x44] sm:$0xf]
  %v65 = vld [vmem:[%s1 + $0x48] sm:$0xf]
  %v66 = vld [vmem:[%s1 + $0x4c] sm:$0xf]
  %v67 = vld [vmem:[%s1 + $0x50] sm:$0xf]
  %v68 = vld [vmem:[%s1 + $0x54] sm:$0xf]
  %v69 = vld [vmem:[%s1 + $0x58] sm:$0xf]
  %v70 = vld [vmem:[%s1 + $0x5c] sm:$0xf]
  %v71 = vld [vmem:[%s1 + $0x60] sm:$0xf]
  %v72 = vld [vmem:[%s1 + $0x64] sm:$0xf]
  %v73 = vld [vmem:[%s1 + $0x68] sm:$0xf]
  %v74 = vld [vmem:[%s1 + $0x6c] sm:$0xf]
  %v75 = vld [vmem:[%s1 + $0x70] sm:$0xf]
  %v76 = vld [vmem:[%s1 + $0x74] sm:$0xf]
  %v77 = vld [vmem:[%s1 + $0x78] sm:$0xf]
  %v78 = vld [vmem:[%s1 + $0x7c] sm:$0xf]
  %v79 = vld [vmem:[%s1 + $0x80] sm:$0xf]
  %v80 = vld [vmem:[%s1 + $0x84] sm:$0xf]
  %v81 = vld [vmem:[%s1 + $0x88] sm:$0xf]
  %v82 = vld [vmem:[%s1 + $0x8c] sm:$0xf]
  %v83 = vld [vmem:[%s2] sm:$0x1]
  %v85 = vlaneseq
  %v86 = vshrl.u32 %v85, 7
  %v87 = vsub.s32 0, %v86
  %v88 = vrot.slane %v83, %v87
  %v122 = vunpack.c.l.b16 %v15
  %v123 = vunpack.c.h.b16 %v15
  %v124 = vunpack.c.l.b16 %v16
  %v125 = vunpack.c.l.b16 %v17
  %v126 = vunpack.c.h.b16 %v17
  %v127 = vunpack.c.l.b16 %v18
  %v128 = vunpack.c.l.b16 %v19
  %v129 = vunpack.c.h.b16 %v19
  %v130 = vunpack.c.l.b16 %v20
  %v131 = vunpack.c.l.b16 %v21
  %v132 = vunpack.c.h.b16 %v21
  %v133 = vunpack.c.l.b16 %v22
  %v134 = vunpack.c.l.b16 %v23
  %v135 = vunpack.c.h.b16 %v23
  %v136 = vunpack.c.l.b16 %v24
  %v137 = vunpack.c.l.b16 %v25
  %v138 = vunpack.c.h.b16 %v25
  %v139 = vunpack.c.l.b16 %v26
  %v140 = vunpack.c.l.b16 %v27
  %v141 = vunpack.c.h.b16 %v27
  %v142 = vunpack.c.l.b16 %v28
  %v143 = vunpack.c.l.b16 %v29
  %v144 = vunpack.c.h.b16 %v29
  %v145 = vunpack.c.l.b16 %v30
  %v146 = vunpack.c.l.b16 %v31
  %v147 = vunpack.c.h.b16 %v31
  %v148 = vunpack.c.l.b16 %v32
  %v149 = vunpack.c.l.b16 %v33
  %v150 = vunpack.c.h.b16 %v33
  %v151 = vunpack.c.l.b16 %v34
  %v152 = vunpack.c.l.b16 %v35
  %v153 = vunpack.c.h.b16 %v35
  %v154 = vunpack.c.l.b16 %v36
  %v155 = vunpack.c.l.b16 %v37
  %v156 = vunpack.c.h.b16 %v37
  %v157 = vunpack.c.l.b16 %v38
  %v158 = vunpack.c.l.b16 %v39
  %v159 = vunpack.c.h.b16 %v39
  %v160 = vunpack.c.l.b16 %v40
  %v161 = vunpack.c.l.b16 %v41
  %v162 = vunpack.c.h.b16 %v41
  %v163 = vunpack.c.l.b16 %v42
  %v164 = vunpack.c.l.b16 %v43
  %v165 = vunpack.c.h.b16 %v43
  %v166 = vunpack.c.l.b16 %v44
  %v167 = vunpack.c.l.b16 %v45
  %v168 = vunpack.c.h.b16 %v45
  %v169 = vunpack.c.l.b16 %v46
  %v170 = vpack.c.b16 %v125, %v122
  %v171 = vpack.c.b16 %v126, %v123
  %v172 = vpack.c.b16 %v127, %v124
  %v173 = vpack.c.b16 %v131, %v128
  %v174 = vpack.c.b16 %v132, %v129
  %v175 = vpack.c.b16 %v133, %v130
  %v176 = vpack.c.b16 %v137, %v134
  %v177 = vpack.c.b16 %v138, %v135
  %v178 = vpack.c.b16 %v139, %v136
  %v179 = vpack.c.b16 %v143, %v140
  %v180 = vpack.c.b16 %v144, %v141
  %v181 = vpack.c.b16 %v145, %v142
  %v182 = vpack.c.b16 %v149, %v146
  %v183 = vpack.c.b16 %v150, %v147
  %v184 = vpack.c.b16 %v151, %v148
  %v185 = vpack.c.b16 %v155, %v152
  %v186 = vpack.c.b16 %v156, %v153
  %v187 = vpack.c.b16 %v157, %v154
  %v188 = vpack.c.b16 %v161, %v158
  %v189 = vpack.c.b16 %v162, %v159
  %v190 = vpack.c.b16 %v163, %v160
  %v191 = vpack.c.b16 %v167, %v164
  %v192 = vpack.c.b16 %v168, %v165
  %v193 = vpack.c.b16 %v169, %v166
  %v246 = vunpack.c.l.b16 %v47
  %v247 = vunpack.c.l.b16 %v48
  %v248 = vunpack.c.l.b16 %v49
  %v249 = vunpack.c.l.b16 %v50
  %v250 = vunpack.c.l.b16 %v51
  %v251 = vunpack.c.l.b16 %v52
  %v252 = vunpack.c.l.b16 %v53
  %v253 = vunpack.c.l.b16 %v54
  %v254 = vunpack.c.l.b16 %v55
  %v255 = vunpack.c.l.b16 %v56
  %v256 = vunpack.c.l.b16 %v57
  %v257 = vunpack.c.l.b16 %v58
  %v258 = vunpack.c.l.b16 %v59
  %v259 = vunpack.c.l.b16 %v60
  %v260 = vunpack.c.l.b16 %v61
  %v261 = vunpack.c.l.b16 %v62
  %v262 = vunpack.c.l.b16 %v63
  %v263 = vunpack.c.l.b16 %v64
  %v264 = vunpack.c.l.b16 %v65
  %v265 = vunpack.c.l.b16 %v66
  %v266 = vunpack.c.l.b16 %v67
  %v267 = vunpack.c.l.b16 %v68
  %v268 = vunpack.c.l.b16 %v69
  %v269 = vunpack.c.l.b16 %v70
  %v270 = vunpack.c.l.b16 %v71
  %v271 = vunpack.c.l.b16 %v72
  %v272 = vunpack.c.l.b16 %v73
  %v273 = vunpack.c.l.b16 %v74
  %v274 = vunpack.c.l.b16 %v75
  %v275 = vunpack.c.l.b16 %v76
  %v276 = vunpack.c.l.b16 %v77
  %v277 = vunpack.c.l.b16 %v78
  %v278 = vunpack.c.l.b16 %v79
  %v279 = vunpack.c.l.b16 %v80
  %v280 = vunpack.c.l.b16 %v81
  %v281 = vunpack.c.l.b16 %v82
  %v282 = vpack.c.b16 %v247, %v246
  %v283 = vpack.c.b16 %v249, %v248
  %v284 = vpack.c.b16 %v251, %v250
  %v285 = vpack.c.b16 %v253, %v252
  %v286 = vpack.c.b16 %v255, %v254
  %v287 = vpack.c.b16 %v257, %v256
  %v288 = vpack.c.b16 %v259, %v258
  %v289 = vpack.c.b16 %v261, %v260
  %v290 = vpack.c.b16 %v263, %v262
  %v291 = vpack.c.b16 %v265, %v264
  %v292 = vpack.c.b16 %v267, %v266
  %v293 = vpack.c.b16 %v269, %v268
  %v294 = vpack.c.b16 %v271, %v270
  %v295 = vpack.c.b16 %v273, %v272
  %v296 = vpack.c.b16 %v275, %v274
  %v297 = vpack.c.b16 %v277, %v276
  %v298 = vpack.c.b16 %v279, %v278
  %v299 = vpack.c.b16 %v281, %v280
  %vm318 = vcmask 261120
  %v320 = vsel %vm318, %v172, 0
  %v323 = vsel %vm318, %v175, 0
  %v326 = vsel %vm318, %v178, 0
  %v329 = vsel %vm318, %v181, 0
  %v332 = vsel %vm318, %v184, 0
  %v335 = vsel %vm318, %v187, 0
  %v338 = vsel %vm318, %v190, 0
  %v341 = vsel %vm318, %v193, 0
  %343 = vmatprep.subr.bf16.mxu0 0
  %344 = vmatpush1.bf16.msra.mxu0 %v282
  %345 = vmatprep.subr.bf16.mxu0 0
  %346 = vmatpush1.bf16.msra.mxu0 %v283
  %347 = vmatprep.subr.bf16.mxu0 0
  %348 = vmatpush1.bf16.msra.mxu0 %v284
  %349 = vmatprep.subr.bf16.mxu0 0
  %350 = vmatpush1.bf16.msra.mxu0 %v285
  %351 = vmatprep.subr.bf16.mxu0 0
  %352 = vmatpush1.bf16.msra.mxu0 %v286
  %353 = vmatprep.subr.bf16.mxu0 0
  %354 = vmatpush1.bf16.msra.mxu0 %v287
  %355 = vmatprep.subr.bf16.mxu0 0
  %356 = vmatpush1.bf16.msra.mxu0 %v288
  %357 = vmatprep.subr.bf16.mxu0 0
  %358 = vmatpush1.bf16.msra.mxu0 %v289
  %359 = vmatprep.subr.bf16.mxu0 0
  %360 = vmatpush1.bf16.msra.mxu0 %v290
  %361 = vmatprep.subr.bf16.mxu0 0
  %362 = vmatpush1.bf16.msra.mxu0 %v291
  %363 = vmatprep.subr.bf16.mxu0 0
  %364 = vmatpush1.bf16.msra.mxu0 %v292
  %365 = vmatprep.subr.bf16.mxu0 0
  %366 = vmatpush1.bf16.msra.mxu0 %v293
  %367 = vmatprep.subr.bf16.mxu0 0
  %368 = vmatpush1.bf16.msra.mxu0 %v294
  %369 = vmatprep.subr.bf16.mxu0 0
  %370 = vmatpush1.bf16.msra.mxu0 %v295
  %371 = vmatprep.subr.bf16.mxu0 0
  %372 = vmatpush1.bf16.msra.mxu0 %v296
  %373 = vmatprep.subr.bf16.mxu0 0
  %374 = vmatpush1.bf16.msra.mxu0 %v297
  %375 = vmatprep.mubr.bf16.mxu0 %v171
  %376 = vmatmul.mubr.bf16.gmra.mrb[0].mxu0 %v170
  %v377 = vpop.f32.mrb[0].mxu0
  %v378 = vadd.f32 %v88, %v377
  %v379 = vpop.f32.mrb[0].mxu0
  %v380 = vpop.f32.mrb[0].mxu0
  %v381 = vadd.f32 %v88, %v380
  %v382 = vpop.f32.mrb[0].mxu0
  %383 = vmatprep.mubr.bf16.mxu0 %v174
  %384 = vmatmul.mubr.bf16.gmra.mrb[0].mxu0 %v173
  %v385 = vpop.f32.mrb[0].mxu0
  %v386 = vadd.f32 %v88, %v385
  %v387 = vpop.f32.mrb[0].mxu0
  %v388 = vpop.f32.mrb[0].mxu0
  %v389 = vadd.f32 %v88, %v388
  %v390 = vpop.f32.mrb[0].mxu0
  %391 = vmatprep.mubr.bf16.mxu0 %v177
  %392 = vmatmul.mubr.bf16.gmra.mrb[0].mxu0 %v176
  %v393 = vpop.f32.mrb[0].mxu0
  %v394 = vadd.f32 %v88, %v393
  %v395 = vpop.f32.mrb[0].mxu0
  %v396 = vpop.f32.mrb[0].mxu0
  %v397 = vadd.f32 %v88, %v396
  %v398 = vpop.f32.mrb[0].mxu0
  %399 = vmatprep.mubr.bf16.mxu0 %v180
  %400 = vmatmul.mubr.bf16.gmra.mrb[0].mxu0 %v179
  %v401 = vpop.f32.mrb[0].mxu0
  %v402 = vadd.f32 %v88, %v401
  %v403 = vpop.f32.mrb[0].mxu0
  %v404 = vpop.f32.mrb[0].mxu0
  %v405 = vadd.f32 %v88, %v404
  %v406 = vpop.f32.mrb[0].mxu0
  %407 = vmatprep.mubr.bf16.mxu0 %v183
  %408 = vmatmul.mubr.bf16.gmra.mrb[0].mxu0 %v182
  %v409 = vpop.f32.mrb[0].mxu0
  %v410 = vadd.f32 %v88, %v409
  %v411 = vpop.f32.mrb[0].mxu0
  %v412 = vpop.f32.mrb[0].mxu0
  %v413 = vadd.f32 %v88, %v412
  %v414 = vpop.f32.mrb[0].mxu0
  %415 = vmatprep.mubr.bf16.mxu0 %v186
  %416 = vmatmul.mubr.bf16.gmra.mrb[0].mxu0 %v185
  %v417 = vpop.f32.mrb[0].mxu0
  %v418 = vadd.f32 %v88, %v417
  %v419 = vpop.f32.mrb[0].mxu0
  %v420 = vpop.f32.mrb[0].mxu0
  %v421 = vadd.f32 %v88, %v420
  %v422 = vpop.f32.mrb[0].mxu0
  %423 = vmatprep.mubr.bf16.mxu0 %v189
  %424 = vmatmul.mubr.bf16.gmra.mrb[0].mxu0 %v188
  %v425 = vpop.f32.mrb[0].mxu0
  %v426 = vadd.f32 %v88, %v425
  %v427 = vpop.f32.mrb[0].mxu0
  %v428 = vpop.f32.mrb[0].mxu0
  %v429 = vadd.f32 %v88, %v428
  %v430 = vpop.f32.mrb[0].mxu0
  %431 = vmatprep.mubr.bf16.mxu0 %v192
  %432 = vmatmul.mubr.bf16.gmra.mrb[0].mxu0 %v191
  %v433 = vpop.f32.mrb[0].mxu0
  %v434 = vadd.f32 %v88, %v433
  %v435 = vpop.f32.mrb[0].mxu0
  %v436 = vpop.f32.mrb[0].mxu0
  %v437 = vadd.f32 %v88, %v436
  %v438 = vpop.f32.mrb[0].mxu0
  %439 = vdwg.mxu0
  %440 = vmatprep.subr.bf16.mxu0 0
  %441 = vmatpush1.bf16.msra.mxu0 %v298
  %442 = vmatprep.subr.bf16.mxu0 0
  %443 = vmatpush1.bf16.msra.mxu0 %v299
  %444 = vmatprep.subr.bf16.mxu0 0
  %445 = vmatpush1.bf16.msra.mxu0 0
  %446 = vmatprep.subr.bf16.mxu0 0
  %447 = vmatpush1.bf16.msra.mxu0 0
  %448 = vmatprep.subr.bf16.mxu0 0
  %449 = vmatpush1.bf16.msra.mxu0 0
  %450 = vmatprep.subr.bf16.mxu0 0
  %451 = vmatpush1.bf16.msra.mxu0 0
  %452 = vmatprep.subr.bf16.mxu0 0
  %453 = vmatpush1.bf16.msra.mxu0 0
  %454 = vmatprep.subr.bf16.mxu0 0
  %455 = vmatpush1.bf16.msra.mxu0 0
  %456 = vmatprep.subr.bf16.mxu0 0
  %457 = vmatpush1.bf16.msra.mxu0 0
  %458 = vmatprep.subr.bf16.mxu0 0
  %459 = vmatpush1.bf16.msra.mxu0 0
  %460 = vmatprep.subr.bf16.mxu0 0
  %461 = vmatpush1.bf16.msra.mxu0 0
  %462 = vmatprep.subr.bf16.mxu0 0
  %463 = vmatpush1.bf16.msra.mxu0 0
  %464 = vmatprep.subr.bf16.mxu0 0
  %465 = vmatpush1.bf16.msra.mxu0 0
  %466 = vmatprep.subr.bf16.mxu0 0
  %467 = vmatpush1.bf16.msra.mxu0 0
  %468 = vmatprep.subr.bf16.mxu0 0
  %469 = vmatpush1.bf16.msra.mxu0 0
  %470 = vmatprep.subr.bf16.mxu0 0
  %471 = vmatpush1.bf16.msra.mxu0 0
  %472 = vmatprep.mubr.bf16.mxu0 0
  %473 = vmatmul.mubr.bf16.gmra.mrb[0].mxu0 %v320
  %v474 = vpop.f32.mrb[0].mxu0
  %v475 = vadd.f32 %v378, %v474
  %v476 = vpop.f32.mrb[0].mxu0
  %v477 = vpop.f32.mrb[0].mxu0
  %v478 = vadd.f32 %v381, %v477
  %v479 = vpop.f32.mrb[0].mxu0
  %480 = vmatprep.mubr.bf16.mxu0 0
  %481 = vmatmul.mubr.bf16.gmra.mrb[0].mxu0 %v323
  %v482 = vpop.f32.mrb[0].mxu0
  %v483 = vadd.f32 %v386, %v482
  %v484 = vpop.f32.mrb[0].mxu0
  %v485 = vpop.f32.mrb[0].mxu0
  %v486 = vadd.f32 %v389, %v485
  %v487 = vpop.f32.mrb[0].mxu0
  %488 = vmatprep.mubr.bf16.mxu0 0
  %489 = vmatmul.mubr.bf16.gmra.mrb[0].mxu0 %v326
  %v490 = vpop.f32.mrb[0].mxu0
  %v491 = vadd.f32 %v394, %v490
  %v492 = vpop.f32.mrb[0].mxu0
  %v493 = vpop.f32.mrb[0].mxu0
  %v494 = vadd.f32 %v397, %v493
  %v495 = vpop.f32.mrb[0].mxu0
  %496 = vmatprep.mubr.bf16.mxu0 0
  %497 = vmatmul.mubr.bf16.gmra.mrb[0].mxu0 %v329
  %v498 = vpop.f32.mrb[0].mxu0
  %v499 = vadd.f32 %v402, %v498
  %v500 = vpop.f32.mrb[0].mxu0
  %v501 = vpop.f32.mrb[0].mxu0
  %v502 = vadd.f32 %v405, %v501
  %v503 = vpop.f32.mrb[0].mxu0
  %504 = vmatprep.mubr.bf16.mxu0 0
  %505 = vmatmul.mubr.bf16.gmra.mrb[0].mxu0 %v332
  %v506 = vpop.f32.mrb[0].mxu0
  %v507 = vadd.f32 %v410, %v506
  %v508 = vpop.f32.mrb[0].mxu0
  %v509 = vpop.f32.mrb[0].mxu0
  %v510 = vadd.f32 %v413, %v509
  %v511 = vpop.f32.mrb[0].mxu0
  %512 = vmatprep.mubr.bf16.mxu0 0
  %513 = vmatmul.mubr.bf16.gmra.mrb[0].mxu0 %v335
  %v514 = vpop.f32.mrb[0].mxu0
  %v515 = vadd.f32 %v418, %v514
  %v516 = vpop.f32.mrb[0].mxu0
  %v517 = vpop.f32.mrb[0].mxu0
  %v518 = vadd.f32 %v421, %v517
  %v519 = vpop.f32.mrb[0].mxu0
  %520 = vmatprep.mubr.bf16.mxu0 0
  %521 = vmatmul.mubr.bf16.gmra.mrb[0].mxu0 %v338
  %v522 = vpop.f32.mrb[0].mxu0
  %v523 = vadd.f32 %v426, %v522
  %v524 = vpop.f32.mrb[0].mxu0
  %v525 = vpop.f32.mrb[0].mxu0
  %v526 = vadd.f32 %v429, %v525
  %v527 = vpop.f32.mrb[0].mxu0
  %528 = vmatprep.mubr.bf16.mxu0 0
  %529 = vmatmul.mubr.bf16.gmra.mrb[0].mxu0 %v341
  %v530 = vpop.f32.mrb[0].mxu0
  %v531 = vadd.f32 %v434, %v530
  %v532 = vpop.f32.mrb[0].mxu0
  %v533 = vpop.f32.mrb[0].mxu0
  %v534 = vadd.f32 %v437, %v533
  %v535 = vpop.f32.mrb[0].mxu0
  %536 = vdwg.mxu0
  %v537 = vmax.f32 %v475, 0.0
  %v538 = vmax.f32 %v478, 0.0
  %v539 = vmax.f32 %v483, 0.0
  %v540 = vmax.f32 %v486, 0.0
  %v541 = vmax.f32 %v491, 0.0
  %v542 = vmax.f32 %v494, 0.0
  %v543 = vmax.f32 %v499, 0.0
  %v544 = vmax.f32 %v502, 0.0
  %v545 = vmax.f32 %v507, 0.0
  %v546 = vmax.f32 %v510, 0.0
  %v547 = vmax.f32 %v515, 0.0
  %v548 = vmax.f32 %v518, 0.0
  %v549 = vmax.f32 %v523, 0.0
  %v550 = vmax.f32 %v526, 0.0
  %v551 = vmax.f32 %v531, 0.0
  %v552 = vmax.f32 %v534, 0.0
  %v553 = vpack.c.bf16 %v538, %v537
  %v554 = vpack.c.bf16 %v540, %v539
  %v555 = vpack.c.bf16 %v542, %v541
  %v556 = vpack.c.bf16 %v544, %v543
  %v557 = vpack.c.bf16 %v546, %v545
  %v558 = vpack.c.bf16 %v548, %v547
  %v559 = vpack.c.bf16 %v550, %v549
  %v560 = vpack.c.bf16 %v552, %v551
  %v569 = vunpack.c.l.b16 %v553
  %v570 = vunpack.c.h.b16 %v553
  %v571 = vunpack.c.l.b16 %v554
  %v572 = vunpack.c.h.b16 %v554
  %v573 = vunpack.c.l.b16 %v555
  %v574 = vunpack.c.h.b16 %v555
  %v575 = vunpack.c.l.b16 %v556
  %v576 = vunpack.c.h.b16 %v556
  %v577 = vunpack.c.l.b16 %v557
  %v578 = vunpack.c.h.b16 %v557
  %v579 = vunpack.c.l.b16 %v558
  %v580 = vunpack.c.h.b16 %v558
  %v581 = vunpack.c.l.b16 %v559
  %v582 = vunpack.c.h.b16 %v559
  %v583 = vunpack.c.l.b16 %v560
  %v584 = vunpack.c.h.b16 %v560
  %v585 = vpack.c.b16 %v569, %v569
  %v586 = vpack.c.b16 %v570, %v570
  %v587 = vpack.c.b16 %v571, %v571
  %v588 = vpack.c.b16 %v572, %v572
  %v589 = vpack.c.b16 %v573, %v573
  %v590 = vpack.c.b16 %v574, %v574
  %v591 = vpack.c.b16 %v575, %v575
  %v592 = vpack.c.b16 %v576, %v576
  %v593 = vpack.c.b16 %v577, %v577
  %v594 = vpack.c.b16 %v578, %v578
  %v595 = vpack.c.b16 %v579, %v579
  %v596 = vpack.c.b16 %v580, %v580
  %v597 = vpack.c.b16 %v581, %v581
  %v598 = vpack.c.b16 %v582, %v582
  %v599 = vpack.c.b16 %v583, %v583
  %v600 = vpack.c.b16 %v584, %v584
  %vm617 = vcmask 519168
  %618 = vst.msk [vmem:[%s3] sm:$0xf] %vm617, %v585
  %619 = vst.msk [vmem:[%s3 + $0x4] sm:$0xf] %vm617, %v586
  %620 = vst.msk [vmem:[%s3 + $0x8] sm:$0xf] %vm617, %v587
  %621 = vst.msk [vmem:[%s3 + $0xc] sm:$0xf] %vm617, %v588
  %622 = vst.msk [vmem:[%s3 + $0x10] sm:$0xf] %vm617, %v589
  %623 = vst.msk [vmem:[%s3 + $0x14] sm:$0xf] %vm617, %v590
  %624 = vst.msk [vmem:[%s3 + $0x18] sm:$0xf] %vm617, %v591
  %625 = vst.msk [vmem:[%s3 + $0x1c] sm:$0xf] %vm617, %v592
  %626 = vst.msk [vmem:[%s3 + $0x20] sm:$0xf] %vm617, %v593
  %627 = vst.msk [vmem:[%s3 + $0x24] sm:$0xf] %vm617, %v594
  %628 = vst.msk [vmem:[%s3 + $0x28] sm:$0xf] %vm617, %v595
  %629 = vst.msk [vmem:[%s3 + $0x2c] sm:$0xf] %vm617, %v596
  %630 = vst.msk [vmem:[%s3 + $0x30] sm:$0xf] %vm617, %v597
  %631 = vst.msk [vmem:[%s3 + $0x34] sm:$0xf] %vm617, %v598
  %632 = vst.msk [vmem:[%s3 + $0x38] sm:$0xf] %vm617, %v599
  %633 = vst.msk [vmem:[%s3 + $0x3c] sm:$0xf] %vm617, %v600
  // Predicated region
  $region14: #{autoencoder_forward.8} parent=0 // pred_check
    _
  $region15: #{autoencoder_forward.8} parent=0 // pred_check_branch
    %635 = sbr.rel (0) target = $region17
  $region16: #{autoencoder_forward.8} parent=0 // pred_region
    _
  $region17: #{autoencoder_forward.8} parent=0 // pred_fallthru
    _
  // Predicated region
  $region18: #{autoencoder_forward.8} parent=0 // pred_check
    _
  $region19: #{autoencoder_forward.8} parent=0 // pred_check_branch
    %637 = sbr.rel (0) target = $region21
  $region20: #{autoencoder_forward.8} parent=0 // pred_region
    _
  $region21: #{autoencoder_forward.8} parent=0 // pred_fallthru
    _

// kernel: autoencoder_forward.9
$region0: #{autoencoder_forward.9}
  #allocation0 [shape = 'u32[]', space=smem, size = 0x4, offset = 0x4, fixed_abs, tag = 'smem constant byte address 0x4 - core index']
  #allocation1 [shape = 'u32[144,128]{1,0:T(1,128)}', space=vmem, size = 0x12000, scoped, tag = 'internal scratch']
  %s0 = inlined_call_operand.vmem [shape: bf16[32,576], index: 0, kind: input, shape index: {}]
  %s1 = inlined_call_operand.vmem [shape: bf16[576,128], index: 1, kind: input, shape index: {}]
  %s2 = inlined_call_operand.vmem [shape: f32[1,128], index: 2, kind: input, shape index: {}]
  %s3 = inlined_call_operand.vmem [shape: bf16[32,128], index: 3, kind: output, shape index: {}]
  %s4 = sld [smem:[#allocation0]]
  $region22: #{autoencoder_forward.9} parent=0
    _
  %s6 = ssub.s32 1, %s4
  %s7 = scalar_select 0, %s6, %s4
  // Predicated region
  $region2: #{autoencoder_forward.9} parent=0 // pred_check
    _
  $region3: #{autoencoder_forward.9} parent=0 // pred_check_branch
    %9 = sbr.rel (0) target = $region5
  $region4: #{autoencoder_forward.9} parent=0 // pred_region
    _
  $region5: #{autoencoder_forward.9} parent=0 // pred_fallthru
    _
  // Predicated region
  $region6: #{autoencoder_forward.9} parent=0 // pred_check
    _
  $region7: #{autoencoder_forward.9} parent=0 // pred_check_branch
    %11 = sbr.rel (0) target = $region9
  $region8: #{autoencoder_forward.9} parent=0 // pred_region
    _
  $region9: #{autoencoder_forward.9} parent=0 // pred_fallthru
    _
  // Predicated region
  $region10: #{autoencoder_forward.9} parent=0 // pred_check
    _
  $region11: #{autoencoder_forward.9} parent=0 // pred_check_branch
    %13 = sbr.rel (0) target = $region13
  $region12: #{autoencoder_forward.9} parent=0 // pred_region
    _
  $region13: #{autoencoder_forward.9} parent=0 // pred_fallthru
    _
  %v15 = vld [vmem:[%s0] sm:$0xff]
  %v16 = vld [vmem:[%s0 + $0x8] sm:$0xff]
  %v17 = vld [vmem:[%s0 + $0x10] sm:$0xf]
  %v18 = vld [vmem:[%s0 + $0x14] sm:$0xff]
  %v19 = vld [vmem:[%s0 + $0x1c] sm:$0xff]
  %v20 = vld [vmem:[%s0 + $0x24] sm:$0xf]
  %v21 = vld [vmem:[%s0 + $0x28] sm:$0xff]
  %v22 = vld [vmem:[%s0 + $0x30] sm:$0xff]
  %v23 = vld [vmem:[%s0 + $0x38] sm:$0xf]
  %v24 = vld [vmem:[%s0 + $0x3c] sm:$0xff]
  %v25 = vld [vmem:[%s0 + $0x44] sm:$0xff]
  %v26 = vld [vmem:[%s0 + $0x4c] sm:$0xf]
  %v27 = vld [vmem:[%s1] sm:$0xf]
  %v28 = vld [vmem:[%s1 + $0x4] sm:$0xf]
  %v29 = vld [vmem:[%s1 + $0x8] sm:$0xf]
  %v30 = vld [vmem:[%s1 + $0xc] sm:$0xf]
  %v31 = vld [vmem:[%s1 + $0x10] sm:$0xf]
  %v32 = vld [vmem:[%s1 + $0x14] sm:$0xf]
  %v33 = vld [vmem:[%s1 + $0x18] sm:$0xf]
  %v34 = vld [vmem:[%s1 + $0x1c] sm:$0xf]
  %v35 = vld [vmem:[%s1 + $0x20] sm:$0xf]
  %v36 = vld [vmem:[%s1 + $0x24] sm:$0xf]
  %v37 = vld [vmem:[%s1 + $0x28] sm:$0xf]
  %v38 = vld [vmem:[%s1 + $0x2c] sm:$0xf]
  %v39 = vld [vmem:[%s1 + $0x30] sm:$0xf]
  %v40 = vld [vmem:[%s1 + $0x34] sm:$0xf]
  %v41 = vld [vmem:[%s1 + $0x38] sm:$0xf]
  %v42 = vld [vmem:[%s1 + $0x3c] sm:$0xf]
  %v43 = vld [vmem:[%s1 + $0x40] sm:$0xf]
  %v44 = vld [vmem:[%s1 + $0x44] sm:$0xf]
  %v45 = vld [vmem:[%s1 + $0x48] sm:$0xf]
  %v46 = vld [vmem:[%s1 + $0x4c] sm:$0xf]
  %v47 = vld [vmem:[%s1 + $0x50] sm:$0xf]
  %v48 = vld [vmem:[%s1 + $0x54] sm:$0xf]
  %v49 = vld [vmem:[%s1 + $0x58] sm:$0xf]
  %v50 = vld [vmem:[%s1 + $0x5c] sm:$0xf]
  %v51 = vld [vmem:[%s1 + $0x60] sm:$0xf]
  %v52 = vld [vmem:[%s1 + $0x64] sm:$0xf]
  %v53 = vld [vmem:[%s1 + $0x68] sm:$0xf]
  %v54 = vld [vmem:[%s1 + $0x6c] sm:$0xf]
  %v55 = vld [vmem:[%s1 + $0x70] sm:$0xf]
  %v56 = vld [vmem:[%s1 + $0x74] sm:$0xf]
  %v57 = vld [vmem:[%s1 + $0x78] sm:$0xf]
  %v58 = vld [vmem:[%s1 + $0x7c] sm:$0xf]
  %v59 = vld [vmem:[%s1 + $0x80] sm:$0xf]
  %v60 = vld [vmem:[%s1 + $0x84] sm:$0xf]
  %v61 = vld [vmem:[%s1 + $0x88] sm:$0xf]
  %v62 = vld [vmem:[%s1 + $0x8c] sm:$0xf]
  %v63 = vld [vmem:[%s1 + $0x90] sm:$0xf]
  %v64 = vld [vmem:[%s1 + $0x94] sm:$0xf]
  %v65 = vld [vmem:[%s1 + $0x98] sm:$0xf]
  %v66 = vld [vmem:[%s1 + $0x9c] sm:$0xf]
  %v67 = vld [vmem:[%s1 + $0xa0] sm:$0xf]
  %v68 = vld [vmem:[%s1 + $0xa4] sm:$0xf]
  %v69 = vld [vmem:[%s1 + $0xa8] sm:$0xf]
  %v70 = vld [vmem:[%s1 + $0xac] sm:$0xf]
  %v71 = vld [vmem:[%s1 + $0xb0] sm:$0xf]
  %v72 = vld [vmem:[%s1 + $0xb4] sm:$0xf]
  %v73 = vld [vmem:[%s1 + $0xb8] sm:$0xf]
  %v74 = vld [vmem:[%s1 + $0xbc] sm:$0xf]
  %v75 = vld [vmem:[%s1 + $0xc0] sm:$0xf]
  %v76 = vld [vmem:[%s1 + $0xc4] sm:$0xf]
  %v77 = vld [vmem:[%s1 + $0xc8] sm:$0xf]
  %v78 = vld [vmem:[%s1 + $0xcc] sm:$0xf]
  %v79 = vld [vmem:[%s1 + $0xd0] sm:$0xf]
  %v80 = vld [vmem:[%s1 + $0xd4] sm:$0xf]
  %v81 = vld [vmem:[%s1 + $0xd8] sm:$0xf]
  %v82 = vld [vmem:[%s1 + $0xdc] sm:$0xf]
  %v83 = vld [vmem:[%s1 + $0xe0] sm:$0xf]
  %v84 = vld [vmem:[%s1 + $0xe4] sm:$0xf]
  %v85 = vld [vmem:[%s1 + $0xe8] sm:$0xf]
  %v86 = vld [vmem:[%s1 + $0xec] sm:$0xf]
  %v87 = vld [vmem:[%s1 + $0xf0] sm:$0xf]
  %v88 = vld [vmem:[%s1 + $0xf4] sm:$0xf]
  %v89 = vld [vmem:[%s1 + $0xf8] sm:$0xf]
  %v90 = vld [vmem:[%s1 + $0xfc] sm:$0xf]
  %v91 = vld [vmem:[%s1 + $0x100] sm:$0xf]
  %v92 = vld [vmem:[%s1 + $0x104] sm:$0xf]
  %v93 = vld [vmem:[%s1 + $0x108] sm:$0xf]
  %v94 = vld [vmem:[%s1 + $0x10c] sm:$0xf]
  %v95 = vld [vmem:[%s1 + $0x110] sm:$0xf]
  %v96 = vld [vmem:[%s1 + $0x114] sm:$0xf]
  %v97 = vld [vmem:[%s1 + $0x118] sm:$0xf]
  %v98 = vld [vmem:[%s1 + $0x11c] sm:$0xf]
  %v99 = vld [vmem:[%s2] sm:$0x1]
  %v101 = vlaneseq
  %v102 = vshrl.u32 %v101, 7
  %v103 = vsub.s32 0, %v102
  %v104 = vrot.slane %v99, %v103
  %v118 = vunpack.c.l.b16 %v15
  %v119 = vunpack.c.h.b16 %v15
  %v120 = vunpack.c.l.b16 %v16
  %v121 = vunpack.c.h.b16 %v16
  %v122 = vunpack.c.l.b16 %v17
  %v123 = vunpack.c.l.b16 %v18
  %v124 = vunpack.c.h.b16 %v18
  %v125 = vunpack.c.l.b16 %v19
  %v126 = vunpack.c.h.b16 %v19
  %v127 = vunpack.c.l.b16 %v20
  %v128 = vunpack.c.l.b16 %v21
  %v129 = vunpack.c.h.b16 %v21
  %v130 = vunpack.c.l.b16 %v22
  %v131 = vunpack.c.h.b16 %v22
  %v132 = vunpack.c.l.b16 %v23
  %v133 = vunpack.c.l.b16 %v24
  %v134 = vunpack.c.h.b16 %v24
  %v135 = vunpack.c.l.b16 %v25
  %v136 = vunpack.c.h.b16 %v25
  %v137 = vunpack.c.l.b16 %v26
  %v138 = vpack.c.b16 %v123, %v118
  %v139 = vpack.c.b16 %v124, %v119
  %v140 = vpack.c.b16 %v125, %v120
  %v141 = vpack.c.b16 %v126, %v121
  %v142 = vpack.c.b16 %v127, %v122
  %v143 = vpack.c.b16 %v133, %v128
  %v144 = vpack.c.b16 %v134, %v129
  %v145 = vpack.c.b16 %v135, %v130
  %v146 = vpack.c.b16 %v136, %v131
  %v147 = vpack.c.b16 %v137, %v132
  %v228 = vunpack.c.l.b16 %v27
  %v229 = vunpack.c.l.b16 %v28
  %v230 = vunpack.c.l.b16 %v29
  %v231 = vunpack.c.l.b16 %v30
  %v232 = vunpack.c.l.b16 %v31
  %v233 = vunpack.c.l.b16 %v32
  %v234 = vunpack.c.l.b16 %v33
  %v235 = vunpack.c.l.b16 %v34
  %v236 = vunpack.c.l.b16 %v35
  %v237 = vunpack.c.l.b16 %v36
  %v238 = vunpack.c.l.b16 %v37
  %v239 = vunpack.c.l.b16 %v38
  %v240 = vunpack.c.l.b16 %v39
  %v241 = vunpack.c.l.b16 %v40
  %v242 = vunpack.c.l.b16 %v41
  %v243 = vunpack.c.l.b16 %v42
  %v244 = vunpack.c.l.b16 %v43
  %v245 = vunpack.c.l.b16 %v44
  %v246 = vunpack.c.l.b16 %v45
  %v247 = vunpack.c.l.b16 %v46
  %v248 = vunpack.c.l.b16 %v47
  %v249 = vunpack.c.l.b16 %v48
  %v250 = vunpack.c.l.b16 %v49
  %v251 = vunpack.c.l.b16 %v50
  %v252 = vunpack.c.l.b16 %v51
  %v253 = vunpack.c.l.b16 %v52
  %v254 = vunpack.c.l.b16 %v53
  %v255 = vunpack.c.l.b16 %v54
  %v256 = vunpack.c.l.b16 %v55
  %v257 = vunpack.c.l.b16 %v56
  %v258 = vunpack.c.l.b16 %v57
  %v259 = vunpack.c.l.b16 %v58
  %v260 = vunpack.c.l.b16 %v59
  %v261 = vunpack.c.l.b16 %v60
  %v262 = vunpack.c.l.b16 %v61
  %v263 = vunpack.c.l.b16 %v62
  %v264 = vunpack.c.l.b16 %v63
  %v265 = vunpack.c.l.b16 %v64
  %v266 = vunpack.c.l.b16 %v65
  %v267 = vunpack.c.l.b16 %v66
  %v268 = vunpack.c.l.b16 %v67
  %v269 = vunpack.c.l.b16 %v68
  %v270 = vunpack.c.l.b16 %v69
  %v271 = vunpack.c.l.b16 %v70
  %v272 = vunpack.c.l.b16 %v71
  %v273 = vunpack.c.l.b16 %v72
  %v274 = vunpack.c.l.b16 %v73
  %v275 = vunpack.c.l.b16 %v74
  %v276 = vunpack.c.l.b16 %v75
  %v277 = vunpack.c.l.b16 %v76
  %v278 = vunpack.c.l.b16 %v77
  %v279 = vunpack.c.l.b16 %v78
  %v280 = vunpack.c.l.b16 %v79
  %v281 = vunpack.c.l.b16 %v80
  %v282 = vunpack.c.l.b16 %v81
  %v283 = vunpack.c.l.b16 %v82
  %v284 = vunpack.c.l.b16 %v83
  %v285 = vunpack.c.l.b16 %v84
  %v286 = vunpack.c.l.b16 %v85
  %v287 = vunpack.c.l.b16 %v86
  %v288 = vunpack.c.l.b16 %v87
  %v289 = vunpack.c.l.b16 %v88
  %v290 = vunpack.c.l.b16 %v89
  %v291 = vunpack.c.l.b16 %v90
  %v292 = vunpack.c.l.b16 %v91
  %v293 = vunpack.c.l.b16 %v92
  %v294 = vunpack.c.l.b16 %v93
  %v295 = vunpack.c.l.b16 %v94
  %v296 = vunpack.c.l.b16 %v95
  %v297 = vunpack.c.l.b16 %v96
  %v298 = vunpack.c.l.b16 %v97
  %v299 = vunpack.c.l.b16 %v98
  %v300 = vpack.c.b16 %v229, %v228
  %v301 = vpack.c.b16 %v231, %v230
  %v302 = vpack.c.b16 %v233, %v232
  %v303 = vpack.c.b16 %v235, %v234
  %v304 = vpack.c.b16 %v237, %v236
  %v305 = vpack.c.b16 %v239, %v238
  %v306 = vpack.c.b16 %v241, %v240
  %v307 = vpack.c.b16 %v243, %v242
  %v308 = vpack.c.b16 %v245, %v244
  %v309 = vpack.c.b16 %v247, %v246
  %v310 = vpack.c.b16 %v249, %v248
  %v311 = vpack.c.b16 %v251, %v250
  %v312 = vpack.c.b16 %v253, %v252
  %v313 = vpack.c.b16 %v255, %v254
  %v314 = vpack.c.b16 %v257, %v256
  %v315 = vpack.c.b16 %v259, %v258
  %v316 = vpack.c.b16 %v261, %v260
  %v317 = vpack.c.b16 %v263, %v262
  %v318 = vpack.c.b16 %v265, %v264
  %v319 = vpack.c.b16 %v267, %v266
  %v320 = vpack.c.b16 %v269, %v268
  %v321 = vpack.c.b16 %v271, %v270
  %v322 = vpack.c.b16 %v273, %v272
  %v323 = vpack.c.b16 %v275, %v274
  %v324 = vpack.c.b16 %v277, %v276
  %v325 = vpack.c.b16 %v279, %v278
  %v326 = vpack.c.b16 %v281, %v280
  %v327 = vpack.c.b16 %v283, %v282
  %v328 = vpack.c.b16 %v285, %v284
  %v329 = vpack.c.b16 %v287, %v286
  %v330 = vpack.c.b16 %v289, %v288
  %v331 = vpack.c.b16 %v291, %v290
  %v332 = vpack.c.b16 %v293, %v292
  %v333 = vpack.c.b16 %v295, %v294
  %v334 = vpack.c.b16 %v297, %v296
  %v335 = vpack.c.b16 %v299, %v298
  %vm372 = vcmask 523264
  %v374 = vsel %vm372, %v142, 0
  %v377 = vsel %vm372, %v147, 0
  %379 = vmatprep.subr.bf16.mxu0 0
  %380 = vmatpush1.bf16.msra.mxu0 %v300
  %381 = vmatprep.subr.bf16.mxu0 0
  %382 = vmatpush1.bf16.msra.mxu0 %v301
  %383 = vmatprep.subr.bf16.mxu0 0
  %384 = vmatpush1.bf16.msra.mxu0 %v302
  %385 = vmatprep.subr.bf16.mxu0 0
  %386 = vmatpush1.bf16.msra.mxu0 %v303
  %387 = vmatprep.subr.bf16.mxu0 0
  %388 = vmatpush1.bf16.msra.mxu0 %v304
  %389 = vmatprep.subr.bf16.mxu0 0
  %390 = vmatpush1.bf16.msra.mxu0 %v305
  %391 = vmatprep.subr.bf16.mxu0 0
  %392 = vmatpush1.bf16.msra.mxu0 %v306
  %393 = vmatprep.subr.bf16.mxu0 0
  %394 = vmatpush1.bf16.msra.mxu0 %v307
  %395 = vmatprep.subr.bf16.mxu0 0
  %396 = vmatpush1.bf16.msra.mxu0 %v308
  %397 = vmatprep.subr.bf16.mxu0 0
  %398 = vmatpush1.bf16.msra.mxu0 %v309
  %399 = vmatprep.subr.bf16.mxu0 0
  %400 = vmatpush1.bf16.msra.mxu0 %v310
  %401 = vmatprep.subr.bf16.mxu0 0
  %402 = vmatpush1.bf16.msra.mxu0 %v311
  %403 = vmatprep.subr.bf16.mxu0 0
  %404 = vmatpush1.bf16.msra.mxu0 %v312
  %405 = vmatprep.subr.bf16.mxu0 0
  %406 = vmatpush1.bf16.msra.mxu0 %v313
  %407 = vmatprep.subr.bf16.mxu0 0
  %408 = vmatpush1.bf16.msra.mxu0 %v314
  %409 = vmatprep.subr.bf16.mxu0 0
  %410 = vmatpush1.bf16.msra.mxu0 %v315
  %411 = vmatprep.mubr.bf16.mxu0 %v139
  %412 = vmatmul.mubr.bf16.gmra.mrb[0].mxu0 %v138
  %v413 = vpop.f32.mrb[0].mxu0
  %v414 = vadd.f32 %v104, %v413
  %v415 = vpop.f32.mrb[0].mxu0
  %v416 = vpop.f32.mrb[0].mxu0
  %v417 = vadd.f32 %v104, %v416
  %v418 = vpop.f32.mrb[0].mxu0
  %419 = vmatprep.mubr.bf16.mxu0 %v144
  %420 = vmatmul.mubr.bf16.gmra.mrb[0].mxu0 %v143
  %v421 = vpop.f32.mrb[0].mxu0
  %v422 = vadd.f32 %v104, %v421
  %v423 = vpop.f32.mrb[0].mxu0
  %v424 = vpop.f32.mrb[0].mxu0
  %v425 = vadd.f32 %v104, %v424
  %v426 = vpop.f32.mrb[0].mxu0
  %427 = vdwg.mxu0
  %428 = vmatprep.subr.bf16.mxu0 0
  %429 = vmatpush1.bf16.msra.mxu0 %v316
  %430 = vmatprep.subr.bf16.mxu0 0
  %431 = vmatpush1.bf16.msra.mxu0 %v317
  %432 = vmatprep.subr.bf16.mxu0 0
  %433 = vmatpush1.bf16.msra.mxu0 %v318
  %434 = vmatprep.subr.bf16.mxu0 0
  %435 = vmatpush1.bf16.msra.mxu0 %v319
  %436 = vmatprep.subr.bf16.mxu0 0
  %437 = vmatpush1.bf16.msra.mxu0 %v320
  %438 = vmatprep.subr.bf16.mxu0 0
  %439 = vmatpush1.bf16.msra.mxu0 %v321
  %440 = vmatprep.subr.bf16.mxu0 0
  %441 = vmatpush1.bf16.msra.mxu0 %v322
  %442 = vmatprep.subr.bf16.mxu0 0
  %443 = vmatpush1.bf16.msra.mxu0 %v323
  %444 = vmatprep.subr.bf16.mxu0 0
  %445 = vmatpush1.bf16.msra.mxu0 %v324
  %446 = vmatprep.subr.bf16.mxu0 0
  %447 = vmatpush1.bf16.msra.mxu0 %v325
  %448 = vmatprep.subr.bf16.mxu0 0
  %449 = vmatpush1.bf16.msra.mxu0 %v326
  %450 = vmatprep.subr.bf16.mxu0 0
  %451 = vmatpush1.bf16.msra.mxu0 %v327
  %452 = vmatprep.subr.bf16.mxu0 0
  %453 = vmatpush1.bf16.msra.mxu0 %v328
  %454 = vmatprep.subr.bf16.mxu0 0
  %455 = vmatpush1.bf16.msra.mxu0 %v329
  %456 = vmatprep.subr.bf16.mxu0 0
  %457 = vmatpush1.bf16.msra.mxu0 %v330
  %458 = vmatprep.subr.bf16.mxu0 0
  %459 = vmatpush1.bf16.msra.mxu0 %v331
  %460 = vmatprep.mubr.bf16.mxu0 %v141
  %461 = vmatmul.mubr.bf16.gmra.mrb[0].mxu0 %v140
  %v462 = vpop.f32.mrb[0].mxu0
  %v463 = vadd.f32 %v414, %v462
  %v464 = vpop.f32.mrb[0].mxu0
  %v465 = vpop.f32.mrb[0].mxu0
  %v466 = vadd.f32 %v417, %v465
  %v467 = vpop.f32.mrb[0].mxu0
  %468 = vmatprep.mubr.bf16.mxu0 %v146
  %469 = vmatmul.mubr.bf16.gmra.mrb[0].mxu0 %v145
  %v470 = vpop.f32.mrb[0].mxu0
  %v471 = vadd.f32 %v422, %v470
  %v472 = vpop.f32.mrb[0].mxu0
  %v473 = vpop.f32.mrb[0].mxu0
  %v474 = vadd.f32 %v425, %v473
  %v475 = vpop.f32.mrb[0].mxu0
  %476 = vdwg.mxu0
  %477 = vmatprep.subr.bf16.mxu0 0
  %478 = vmatpush1.bf16.msra.mxu0 %v332
  %479 = vmatprep.subr.bf16.mxu0 0
  %480 = vmatpush1.bf16.msra.mxu0 %v333
  %481 = vmatprep.subr.bf16.mxu0 0
  %482 = vmatpush1.bf16.msra.mxu0 %v334
  %483 = vmatprep.subr.bf16.mxu0 0
  %484 = vmatpush1.bf16.msra.mxu0 %v335
  %485 = vmatprep.subr.bf16.mxu0 0
  %486 = vmatpush1.bf16.msra.mxu0 0
  %487 = vmatprep.subr.bf16.mxu0 0
  %488 = vmatpush1.bf16.msra.mxu0 0
  %489 = vmatprep.subr.bf16.mxu0 0
  %490 = vmatpush1.bf16.msra.mxu0 0
  %491 = vmatprep.subr.bf16.mxu0 0
  %492 = vmatpush1.bf16.msra.mxu0 0
  %493 = vmatprep.subr.bf16.mxu0 0
  %494 = vmatpush1.bf16.msra.mxu0 0
  %495 = vmatprep.subr.bf16.mxu0 0
  %496 = vmatpush1.bf16.msra.mxu0 0
  %497 = vmatprep.subr.bf16.mxu0 0
  %498 = vmatpush1.bf16.msra.mxu0 0
  %499 = vmatprep.subr.bf16.mxu0 0
  %500 = vmatpush1.bf16.msra.mxu0 0
  %501 = vmatprep.subr.bf16.mxu0 0
  %502 = vmatpush1.bf16.msra.mxu0 0
  %503 = vmatprep.subr.bf16.mxu0 0
  %504 = vmatpush1.bf16.msra.mxu0 0
  %505 = vmatprep.subr.bf16.mxu0 0
  %506 = vmatpush1.bf16.msra.mxu0 0
  %507 = vmatprep.subr.bf16.mxu0 0
  %508 = vmatpush1.bf16.msra.mxu0 0
  %509 = vmatprep.mubr.bf16.mxu0 0
  %510 = vmatmul.mubr.bf16.gmra.mrb[0].mxu0 %v374
  %v511 = vpop.f32.mrb[0].mxu0
  %v512 = vadd.f32 %v463, %v511
  %v513 = vpop.f32.mrb[0].mxu0
  %v514 = vpop.f32.mrb[0].mxu0
  %v515 = vadd.f32 %v466, %v514
  %v516 = vpop.f32.mrb[0].mxu0
  %517 = vmatprep.mubr.bf16.mxu0 0
  %518 = vmatmul.mubr.bf16.gmra.mrb[0].mxu0 %v377
  %v519 = vpop.f32.mrb[0].mxu0
  %v520 = vadd.f32 %v471, %v519
  %v521 = vpop.f32.mrb[0].mxu0
  %v522 = vpop.f32.mrb[0].mxu0
  %v523 = vadd.f32 %v474, %v522
  %v524 = vpop.f32.mrb[0].mxu0
  %525 = vdwg.mxu0
  %v526 = vmax.f32 %v512, 0.0
  %v527 = vmax.f32 %v515, 0.0
  %v528 = vmax.f32 %v520, 0.0
  %v529 = vmax.f32 %v523, 0.0
  %v530 = vpack.c.bf16 %v527, %v526
  %v531 = vpack.c.bf16 %v529, %v528
  %v534 = vunpack.c.l.b16 %v530
  %v535 = vunpack.c.h.b16 %v530
  %v536 = vunpack.c.l.b16 %v531
  %v537 = vunpack.c.h.b16 %v531
  %v538 = vpack.c.b16 %v534, %v534
  %v539 = vpack.c.b16 %v535, %v535
  %v540 = vpack.c.b16 %v536, %v536
  %v541 = vpack.c.b16 %v537, %v537
  %546 = vst [vmem:[%s3] sm:$0xf] %v538
  %547 = vst [vmem:[%s3 + $0x4] sm:$0xf] %v539
  %548 = vst [vmem:[%s3 + $0x8] sm:$0xf] %v540
  %549 = vst [vmem:[%s3 + $0xc] sm:$0xf] %v541
  // Predicated region
  $region14: #{autoencoder_forward.9} parent=0 // pred_check
    _
  $region15: #{autoencoder_forward.9} parent=0 // pred_check_branch
    %551 = sbr.rel (0) target = $region17
  $region16: #{autoencoder_forward.9} parent=0 // pred_region
    _
  $region17: #{autoencoder_forward.9} parent=0 // pred_fallthru
    _
  // Predicated region
  $region18: #{autoencoder_forward.9} parent=0 // pred_check
    _
  $region19: #{autoencoder_forward.9} parent=0 // pred_check_branch
    %553 = sbr.rel (0) target = $region21
  $region20: #{autoencoder_forward.9} parent=0 // pred_region
    _
  $region21: #{autoencoder_forward.9} parent=0 // pred_fallthru
    _

// kernel: autoencoder_forward.11
$region0: #{autoencoder_forward.11}
  #allocation0 [shape = 'u32[]', space=smem, size = 0x4, offset = 0x4, fixed_abs, tag = 'smem constant byte address 0x4 - core index']
  #allocation1 [shape = 'u32[144,128]{1,0:T(1,128)}', space=vmem, size = 0x12000, scoped, tag = 'internal scratch']
  %s0 = inlined_call_operand.vmem [shape: bf16[32,512], index: 0, kind: input, shape index: {}]
  %s1 = inlined_call_operand.vmem [shape: bf16[512,512], index: 1, kind: input, shape index: {}]
  %s2 = inlined_call_operand.vmem [shape: f32[1,512], index: 2, kind: input, shape index: {}]
  %s3 = inlined_call_operand.vmem [shape: bf16[32,512], index: 3, kind: output, shape index: {}]
  %s4 = sld [smem:[#allocation0]]
  $region22: #{autoencoder_forward.11} parent=0
    _
  %s6 = ssub.s32 1, %s4
  %s7 = scalar_select 0, %s6, %s4
  // Predicated region
  $region2: #{autoencoder_forward.11} parent=0 // pred_check
    _
  $region3: #{autoencoder_forward.11} parent=0 // pred_check_branch
    %9 = sbr.rel (0) target = $region5
  $region4: #{autoencoder_forward.11} parent=0 // pred_region
    _
  $region5: #{autoencoder_forward.11} parent=0 // pred_fallthru
    _
  // Predicated region
  $region6: #{autoencoder_forward.11} parent=0 // pred_check
    _
  $region7: #{autoencoder_forward.11} parent=0 // pred_check_branch
    %11 = sbr.rel (0) target = $region9
  $region8: #{autoencoder_forward.11} parent=0 // pred_region
    _
  $region9: #{autoencoder_forward.11} parent=0 // pred_fallthru
    _
  // Predicated region
  $region10: #{autoencoder_forward.11} parent=0 // pred_check
    _
  $region11: #{autoencoder_forward.11} parent=0 // pred_check_branch
    %13 = sbr.rel (0) target = $region13
  $region12: #{autoencoder_forward.11} parent=0 // pred_region
    _
  $region13: #{autoencoder_forward.11} parent=0 // pred_fallthru
    _
  %v14 = vld [vmem:[%s0] sm:$0xff]
  %v15 = vld [vmem:[%s0 + $0x8] sm:$0xff]
  %v16 = vld [vmem:[%s0 + $0x10] sm:$0xff]
  %v17 = vld [vmem:[%s0 + $0x18] sm:$0xff]
  %v18 = vld [vmem:[%s0 + $0x20] sm:$0xff]
  %v19 = vld [vmem:[%s0 + $0x28] sm:$0xff]
  %v20 = vld [vmem:[%s0 + $0x30] sm:$0xff]
  %v21 = vld [vmem:[%s0 + $0x38] sm:$0xff]
  %v22 = vld [vmem:[%s1] sm:$0xff]
  %v23 = vld [vmem:[%s1 + $0x8] sm:$0xff]
  %v24 = vld [vmem:[%s1 + $0x10] sm:$0xff]
  %v25 = vld [vmem:[%s1 + $0x18] sm:$0xff]
  %v26 = vld [vmem:[%s1 + $0x20] sm:$0xff]
  %v27 = vld [vmem:[%s1 + $0x28] sm:$0xff]
  %v28 = vld [vmem:[%s1 + $0x30] sm:$0xff]
  %v29 = vld [vmem:[%s1 + $0x38] sm:$0xff]
  %v30 = vld [vmem:[%s1 + $0x40] sm:$0xff]
  %v31 = vld [vmem:[%s1 + $0x48] sm:$0xff]
  %v32 = vld [vmem:[%s1 + $0x50] sm:$0xff]
  %v33 = vld [vmem:[%s1 + $0x58] sm:$0xff]
  %v34 = vld [vmem:[%s1 + $0x60] sm:$0xff]
  %v35 = vld [vmem:[%s1 + $0x68] sm:$0xff]
  %v36 = vld [vmem:[%s1 + $0x70] sm:$0xff]
  %v37 = vld [vmem:[%s1 + $0x78] sm:$0xff]
  %v38 = vld [vmem:[%s1 + $0x80] sm:$0xff]
  %v39 = vld [vmem:[%s1 + $0x88] sm:$0xff]
  %v40 = vld [vmem:[%s1 + $0x90] sm:$0xff]
  %v41 = vld [vmem:[%s1 + $0x98] sm:$0xff]
  %v42 = vld [vmem:[%s1 + $0xa0] sm:$0xff]
  %v43 = vld [vmem:[%s1 + $0xa8] sm:$0xff]
  %v44 = vld [vmem:[%s1 + $0xb0] sm:$0xff]
  %v45 = vld [vmem:[%s1 + $0xb8] sm:$0xff]
  %v46 = vld [vmem:[%s1 + $0xc0] sm:$0xff]
  %v47 = vld [vmem:[%s1 + $0xc8] sm:$0xff]
  %v48 = vld [vmem:[%s1 + $0xd0] sm:$0xff]
  %v49 = vld [vmem:[%s1 + $0xd8] sm:$0xff]
  %v50 = vld [vmem:[%s1 + $0xe0] sm:$0xff]
  %v51 = vld [vmem:[%s1 + $0xe8] sm:$0xff]
  %v52 = vld [vmem:[%s1 + $0xf0] sm:$0xff]
  %v53 = vld [vmem:[%s1 + $0xf8] sm:$0xff]
  %v54 = vld [vmem:[%s1 + $0x100] sm:$0xff]
  %v55 = vld [vmem:[%s1 + $0x108] sm:$0xff]
  %v56 = vld [vmem:[%s1 + $0x110] sm:$0xff]
  %v57 = vld [vmem:[%s1 + $0x118] sm:$0xff]
  %v58 = vld [vmem:[%s1 + $0x120] sm:$0xff]
  %v59 = vld [vmem:[%s1 + $0x128] sm:$0xff]
  %v60 = vld [vmem:[%s1 + $0x130] sm:$0xff]
  %v61 = vld [vmem:[%s1 + $0x138] sm:$0xff]
  %v62 = vld [vmem:[%s1 + $0x140] sm:$0xff]
  %v63 = vld [vmem:[%s1 + $0x148] sm:$0xff]
  %v64 = vld [vmem:[%s1 + $0x150] sm:$0xff]
  %v65 = vld [vmem:[%s1 + $0x158] sm:$0xff]
  %v66 = vld [vmem:[%s1 + $0x160] sm:$0xff]
  %v67 = vld [vmem:[%s1 + $0x168] sm:$0xff]
  %v68 = vld [vmem:[%s1 + $0x170] sm:$0xff]
  %v69 = vld [vmem:[%s1 + $0x178] sm:$0xff]
  %v70 = vld [vmem:[%s1 + $0x180] sm:$0xff]
  %v71 = vld [vmem:[%s1 + $0x188] sm:$0xff]
  %v72 = vld [vmem:[%s1 + $0x190] sm:$0xff]
  %v73 = vld [vmem:[%s1 + $0x198] sm:$0xff]
  %v74 = vld [vmem:[%s1 + $0x1a0] sm:$0xff]
  %v75 = vld [vmem:[%s1 + $0x1a8] sm:$0xff]
  %v76 = vld [vmem:[%s1 + $0x1b0] sm:$0xff]
  %v77 = vld [vmem:[%s1 + $0x1b8] sm:$0xff]
  %v78 = vld [vmem:[%s1 + $0x1c0] sm:$0xff]
  %v79 = vld [vmem:[%s1 + $0x1c8] sm:$0xff]
  %v80 = vld [vmem:[%s1 + $0x1d0] sm:$0xff]
  %v81 = vld [vmem:[%s1 + $0x1d8] sm:$0xff]
  %v82 = vld [vmem:[%s1 + $0x1e0] sm:$0xff]
  %v83 = vld [vmem:[%s1 + $0x1e8] sm:$0xff]
  %v84 = vld [vmem:[%s1 + $0x1f0] sm:$0xff]
  %v85 = vld [vmem:[%s1 + $0x1f8] sm:$0xff]
  %v86 = vld [vmem:[%s1 + $0x200] sm:$0xff]
  %v87 = vld [vmem:[%s1 + $0x208] sm:$0xff]
  %v88 = vld [vmem:[%s1 + $0x210] sm:$0xff]
  %v89 = vld [vmem:[%s1 + $0x218] sm:$0xff]
  %v90 = vld [vmem:[%s1 + $0x220] sm:$0xff]
  %v91 = vld [vmem:[%s1 + $0x228] sm:$0xff]
  %v92 = vld [vmem:[%s1 + $0x230] sm:$0xff]
  %v93 = vld [vmem:[%s1 + $0x238] sm:$0xff]
  %v94 = vld [vmem:[%s1 + $0x240] sm:$0xff]
  %v95 = vld [vmem:[%s1 + $0x248] sm:$0xff]
  %v96 = vld [vmem:[%s1 + $0x250] sm:$0xff]
  %v97 = vld [vmem:[%s1 + $0x258] sm:$0xff]
  %v98 = vld [vmem:[%s1 + $0x260] sm:$0xff]
  %v99 = vld [vmem:[%s1 + $0x268] sm:$0xff]
  %v100 = vld [vmem:[%s1 + $0x270] sm:$0xff]
  %v101 = vld [vmem:[%s1 + $0x278] sm:$0xff]
  %v102 = vld [vmem:[%s1 + $0x280] sm:$0xff]
  %v103 = vld [vmem:[%s1 + $0x288] sm:$0xff]
  %v104 = vld [vmem:[%s1 + $0x290] sm:$0xff]
  %v105 = vld [vmem:[%s1 + $0x298] sm:$0xff]
  %v106 = vld [vmem:[%s1 + $0x2a0] sm:$0xff]
  %v107 = vld [vmem:[%s1 + $0x2a8] sm:$0xff]
  %v108 = vld [vmem:[%s1 + $0x2b0] sm:$0xff]
  %v109 = vld [vmem:[%s1 + $0x2b8] sm:$0xff]
  %v110 = vld [vmem:[%s1 + $0x2c0] sm:$0xff]
  %v111 = vld [vmem:[%s1 + $0x2c8] sm:$0xff]
  %v112 = vld [vmem:[%s1 + $0x2d0] sm:$0xff]
  %v113 = vld [vmem:[%s1 + $0x2d8] sm:$0xff]
  %v114 = vld [vmem:[%s1 + $0x2e0] sm:$0xff]
  %v115 = vld [vmem:[%s1 + $0x2e8] sm:$0xff]
  %v116 = vld [vmem:[%s1 + $0x2f0] sm:$0xff]
  %v117 = vld [vmem:[%s1 + $0x2f8] sm:$0xff]
  %v118 = vld [vmem:[%s1 + $0x300] sm:$0xff]
  %v119 = vld [vmem:[%s1 + $0x308] sm:$0xff]
  %v120 = vld [vmem:[%s1 + $0x310] sm:$0xff]
  %v121 = vld [vmem:[%s1 + $0x318] sm:$0xff]
  %v122 = vld [vmem:[%s1 + $0x320] sm:$0xff]
  %v123 = vld [vmem:[%s1 + $0x328] sm:$0xff]
  %v124 = vld [vmem:[%s1 + $0x330] sm:$0xff]
  %v125 = vld [vmem:[%s1 + $0x338] sm:$0xff]
  %v126 = vld [vmem:[%s1 + $0x340] sm:$0xff]
  %v127 = vld [vmem:[%s1 + $0x348] sm:$0xff]
  %v128 = vld [vmem:[%s1 + $0x350] sm:$0xff]
  %v129 = vld [vmem:[%s1 + $0x358] sm:$0xff]
  %v130 = vld [vmem:[%s1 + $0x360] sm:$0xff]
  %v131 = vld [vmem:[%s1 + $0x368] sm:$0xff]
  %v132 = vld [vmem:[%s1 + $0x370] sm:$0xff]
  %v133 = vld [vmem:[%s1 + $0x378] sm:$0xff]
  %v134 = vld [vmem:[%s1 + $0x380] sm:$0xff]
  %v135 = vld [vmem:[%s1 + $0x388] sm:$0xff]
  %v136 = vld [vmem:[%s1 + $0x390] sm:$0xff]
  %v137 = vld [vmem:[%s1 + $0x398] sm:$0xff]
  %v138 = vld [vmem:[%s1 + $0x3a0] sm:$0xff]
  %v139 = vld [vmem:[%s1 + $0x3a8] sm:$0xff]
  %v140 = vld [vmem:[%s1 + $0x3b0] sm:$0xff]
  %v141 = vld [vmem:[%s1 + $0x3b8] sm:$0xff]
  %v142 = vld [vmem:[%s1 + $0x3c0] sm:$0xff]
  %v143 = vld [vmem:[%s1 + $0x3c8] sm:$0xff]
  %v144 = vld [vmem:[%s1 + $0x3d0] sm:$0xff]
  %v145 = vld [vmem:[%s1 + $0x3d8] sm:$0xff]
  %v146 = vld [vmem:[%s1 + $0x3e0] sm:$0xff]
  %v147 = vld [vmem:[%s1 + $0x3e8] sm:$0xff]
  %v148 = vld [vmem:[%s1 + $0x3f0] sm:$0xff]
  %v149 = vld [vmem:[%s1 + $0x3f8] sm:$0xff]
  %v150 = vld [vmem:[%s2] sm:$0xf]
  %v152 = vlaneseq
  %v153 = vshrl.u32 %v152, 7
  %v154 = vsub.s32 0, %v153
  %v155 = vrot.slane %v150, %v154
  %v156 = vlaneseq
  %v157 = vshrl.u32 %v156, 7
  %v158 = vsub.s32 1, %v157
  %v159 = vrot.slane %v150, %v158
  %v160 = vlaneseq
  %v161 = vshrl.u32 %v160, 7
  %v162 = vsub.s32 2, %v161
  %v163 = vrot.slane %v150, %v162
  %v164 = vlaneseq
  %v165 = vshrl.u32 %v164, 7
  %v166 = vsub.s32 3, %v165
  %v167 = vrot.slane %v150, %v166
  %v180 = vunpack.c.l.b16 %v14
  %v181 = vunpack.c.h.b16 %v14
  %v182 = vunpack.c.l.b16 %v15
  %v183 = vunpack.c.h.b16 %v15
  %v184 = vunpack.c.l.b16 %v16
  %v185 = vunpack.c.h.b16 %v16
  %v186 = vunpack.c.l.b16 %v17
  %v187 = vunpack.c.h.b16 %v17
  %v188 = vunpack.c.l.b16 %v18
  %v189 = vunpack.c.h.b16 %v18
  %v190 = vunpack.c.l.b16 %v19
  %v191 = vunpack.c.h.b16 %v19
  %v192 = vunpack.c.l.b16 %v20
  %v193 = vunpack.c.h.b16 %v20
  %v194 = vunpack.c.l.b16 %v21
  %v195 = vunpack.c.h.b16 %v21
  %v196 = vpack.c.b16 %v184, %v180
  %v197 = vpack.c.b16 %v185, %v181
  %v198 = vpack.c.b16 %v186, %v182
  %v199 = vpack.c.b16 %v187, %v183
  %v200 = vpack.c.b16 %v192, %v188
  %v201 = vpack.c.b16 %v193, %v189
  %v202 = vpack.c.b16 %v194, %v190
  %v203 = vpack.c.b16 %v195, %v191
  %v340 = vunpack.c.l.b16 %v22
  %v341 = vunpack.c.h.b16 %v22
  %v342 = vunpack.c.l.b16 %v23
  %v343 = vunpack.c.h.b16 %v23
  %v344 = vunpack.c.l.b16 %v24
  %v345 = vunpack.c.h.b16 %v24
  %v346 = vunpack.c.l.b16 %v25
  %v347 = vunpack.c.h.b16 %v25
  %v348 = vunpack.c.l.b16 %v26
  %v349 = vunpack.c.h.b16 %v26
  %v350 = vunpack.c.l.b16 %v27
  %v351 = vunpack.c.h.b16 %v27
  %v352 = vunpack.c.l.b16 %v28
  %v353 = vunpack.c.h.b16 %v28
  %v354 = vunpack.c.l.b16 %v29
  %v355 = vunpack.c.h.b16 %v29
  %v356 = vunpack.c.l.b16 %v30
  %v357 = vunpack.c.h.b16 %v30
  %v358 = vunpack.c.l.b16 %v31
  %v359 = vunpack.c.h.b16 %v31
  %v360 = vunpack.c.l.b16 %v32
  %v361 = vunpack.c.h.b16 %v32
  %v362 = vunpack.c.l.b16 %v33
  %v363 = vunpack.c.h.b16 %v33
  %v364 = vunpack.c.l.b16 %v34
  %v365 = vunpack.c.h.b16 %v34
  %v366 = vunpack.c.l.b16 %v35
  %v367 = vunpack.c.h.b16 %v35
  %v368 = vunpack.c.l.b16 %v36
  %v369 = vunpack.c.h.b16 %v36
  %v370 = vunpack.c.l.b16 %v37
  %v371 = vunpack.c.h.b16 %v37
  %v372 = vunpack.c.l.b16 %v38
  %v373 = vunpack.c.h.b16 %v38
  %v374 = vunpack.c.l.b16 %v39
  %v375 = vunpack.c.h.b16 %v39
  %v376 = vunpack.c.l.b16 %v40
  %v377 = vunpack.c.h.b16 %v40
  %v378 = vunpack.c.l.b16 %v41
  %v379 = vunpack.c.h.b16 %v41
  %v380 = vunpack.c.l.b16 %v42
  %v381 = vunpack.c.h.b16 %v42
  %v382 = vunpack.c.l.b16 %v43
  %v383 = vunpack.c.h.b16 %v43
  %v384 = vunpack.c.l.b16 %v44
  %v385 = vunpack.c.h.b16 %v44
  %v386 = vunpack.c.l.b16 %v45
  %v387 = vunpack.c.h.b16 %v45
  %v388 = vunpack.c.l.b16 %v46
  %v389 = vunpack.c.h.b16 %v46
  %v390 = vunpack.c.l.b16 %v47
  %v391 = vunpack.c.h.b16 %v47
  %v392 = vunpack.c.l.b16 %v48
  %v393 = vunpack.c.h.b16 %v48
  %v394 = vunpack.c.l.b16 %v49
  %v395 = vunpack.c.h.b16 %v49
  %v396 = vunpack.c.l.b16 %v50
  %v397 = vunpack.c.h.b16 %v50
  %v398 = vunpack.c.l.b16 %v51
  %v399 = vunpack.c.h.b16 %v51
  %v400 = vunpack.c.l.b16 %v52
  %v401 = vunpack.c.h.b16 %v52
  %v402 = vunpack.c.l.b16 %v53
  %v403 = vunpack.c.h.b16 %v53
  %v404 = vunpack.c.l.b16 %v54
  %v405 = vunpack.c.h.b16 %v54
  %v406 = vunpack.c.l.b16 %v55
  %v407 = vunpack.c.h.b16 %v55
  %v408 = vunpack.c.l.b16 %v56
  %v409 = vunpack.c.h.b16 %v56
  %v410 = vunpack.c.l.b16 %v57
  %v411 = vunpack.c.h.b16 %v57
  %v412 = vunpack.c.l.b16 %v58
  %v413 = vunpack.c.h.b16 %v58
  %v414 = vunpack.c.l.b16 %v59
  %v415 = vunpack.c.h.b16 %v59
  %v416 = vunpack.c.l.b16 %v60
  %v417 = vunpack.c.h.b16 %v60
  %v418 = vunpack.c.l.b16 %v61
  %v419 = vunpack.c.h.b16 %v61
  %v420 = vunpack.c.l.b16 %v62
  %v421 = vunpack.c.h.b16 %v62
  %v422 = vunpack.c.l.b16 %v63
  %v423 = vunpack.c.h.b16 %v63
  %v424 = vunpack.c.l.b16 %v64
  %v425 = vunpack.c.h.b16 %v64
  %v426 = vunpack.c.l.b16 %v65
  %v427 = vunpack.c.h.b16 %v65
  %v428 = vunpack.c.l.b16 %v66
  %v429 = vunpack.c.h.b16 %v66
  %v430 = vunpack.c.l.b16 %v67
  %v431 = vunpack.c.h.b16 %v67
  %v432 = vunpack.c.l.b16 %v68
  %v433 = vunpack.c.h.b16 %v68
  %v434 = vunpack.c.l.b16 %v69
  %v435 = vunpack.c.h.b16 %v69
  %v436 = vunpack.c.l.b16 %v70
  %v437 = vunpack.c.h.b16 %v70
  %v438 = vunpack.c.l.b16 %v71
  %v439 = vunpack.c.h.b16 %v71
  %v440 = vunpack.c.l.b16 %v72
  %v441 = vunpack.c.h.b16 %v72
  %v442 = vunpack.c.l.b16 %v73
  %v443 = vunpack.c.h.b16 %v73
  %v444 = vunpack.c.l.b16 %v74
  %v445 = vunpack.c.h.b16 %v74
  %v446 = vunpack.c.l.b16 %v75
  %v447 = vunpack.c.h.b16 %v75
  %v448 = vunpack.c.l.b16 %v76
  %v449 = vunpack.c.h.b16 %v76
  %v450 = vunpack.c.l.b16 %v77
  %v451 = vunpack.c.h.b16 %v77
  %v452 = vunpack.c.l.b16 %v78
  %v453 = vunpack.c.h.b16 %v78
  %v454 = vunpack.c.l.b16 %v79
  %v455 = vunpack.c.h.b16 %v79
  %v456 = vunpack.c.l.b16 %v80
  %v457 = vunpack.c.h.b16 %v80
  %v458 = vunpack.c.l.b16 %v81
  %v459 = vunpack.c.h.b16 %v81
  %v460 = vunpack.c.l.b16 %v82
  %v461 = vunpack.c.h.b16 %v82
  %v462 = vunpack.c.l.b16 %v83
  %v463 = vunpack.c.h.b16 %v83
  %v464 = vunpack.c.l.b16 %v84
  %v465 = vunpack.c.h.b16 %v84
  %v466 = vunpack.c.l.b16 %v85
  %v467 = vunpack.c.h.b16 %v85
  %v468 = vunpack.c.l.b16 %v86
  %v469 = vunpack.c.h.b16 %v86
  %v470 = vunpack.c.l.b16 %v87
  %v471 = vunpack.c.h.b16 %v87
  %v472 = vunpack.c.l.b16 %v88
  %v473 = vunpack.c.h.b16 %v88
  %v474 = vunpack.c.l.b16 %v89
  %v475 = vunpack.c.h.b16 %v89
  %v476 = vunpack.c.l.b16 %v90
  %v477 = vunpack.c.h.b16 %v90
  %v478 = vunpack.c.l.b16 %v91
  %v479 = vunpack.c.h.b16 %v91
  %v480 = vunpack.c.l.b16 %v92
  %v481 = vunpack.c.h.b16 %v92
  %v482 = vunpack.c.l.b16 %v93
  %v483 = vunpack.c.h.b16 %v93
  %v484 = vunpack.c.l.b16 %v94
  %v485 = vunpack.c.h.b16 %v94
  %v486 = vunpack.c.l.b16 %v95
  %v487 = vunpack.c.h.b16 %v95
  %v488 = vunpack.c.l.b16 %v96
  %v489 = vunpack.c.h.b16 %v96
  %v490 = vunpack.c.l.b16 %v97
  %v491 = vunpack.c.h.b16 %v97
  %v492 = vunpack.c.l.b16 %v98
  %v493 = vunpack.c.h.b16 %v98
  %v494 = vunpack.c.l.b16 %v99
  %v495 = vunpack.c.h.b16 %v99
  %v496 = vunpack.c.l.b16 %v100
  %v497 = vunpack.c.h.b16 %v100
  %v498 = vunpack.c.l.b16 %v101
  %v499 = vunpack.c.h.b16 %v101
  %v500 = vunpack.c.l.b16 %v102
  %v501 = vunpack.c.h.b16 %v102
  %v502 = vunpack.c.l.b16 %v103
  %v503 = vunpack.c.h.b16 %v103
  %v504 = vunpack.c.l.b16 %v104
  %v505 = vunpack.c.h.b16 %v104
  %v506 = vunpack.c.l.b16 %v105
  %v507 = vunpack.c.h.b16 %v105
  %v508 = vunpack.c.l.b16 %v106
  %v509 = vunpack.c.h.b16 %v106
  %v510 = vunpack.c.l.b16 %v107
  %v511 = vunpack.c.h.b16 %v107
  %v512 = vunpack.c.l.b16 %v108
  %v513 = vunpack.c.h.b16 %v108
  %v514 = vunpack.c.l.b16 %v109
  %v515 = vunpack.c.h.b16 %v109
  %v516 = vunpack.c.l.b16 %v110
  %v517 = vunpack.c.h.b16 %v110
  %v518 = vunpack.c.l.b16 %v111
  %v519 = vunpack.c.h.b16 %v111
  %v520 = vunpack.c.l.b16 %v112
  %v521 = vunpack.c.h.b16 %v112
  %v522 = vunpack.c.l.b16 %v113
  %v523 = vunpack.c.h.b16 %v113
  %v524 = vunpack.c.l.b16 %v114
  %v525 = vunpack.c.h.b16 %v114
  %v526 = vunpack.c.l.b16 %v115
  %v527 = vunpack.c.h.b16 %v115
  %v528 = vunpack.c.l.b16 %v116
  %v529 = vunpack.c.h.b16 %v116
  %v530 = vunpack.c.l.b16 %v117
  %v531 = vunpack.c.h.b16 %v117
  %v532 = vunpack.c.l.b16 %v118
  %v533 = vunpack.c.h.b16 %v118
  %v534 = vunpack.c.l.b16 %v119
  %v535 = vunpack.c.h.b16 %v119
  %v536 = vunpack.c.l.b16 %v120
  %v537 = vunpack.c.h.b16 %v120
  %v538 = vunpack.c.l.b16 %v121
  %v539 = vunpack.c.h.b16 %v121
  %v540 = vunpack.c.l.b16 %v122
  %v541 = vunpack.c.h.b16 %v122
  %v542 = vunpack.c.l.b16 %v123
  %v543 = vunpack.c.h.b16 %v123
  %v544 = vunpack.c.l.b16 %v124
  %v545 = vunpack.c.h.b16 %v124
  %v546 = vunpack.c.l.b16 %v125
  %v547 = vunpack.c.h.b16 %v125
  %v548 = vunpack.c.l.b16 %v126
  %v549 = vunpack.c.h.b16 %v126
  %v550 = vunpack.c.l.b16 %v127
  %v551 = vunpack.c.h.b16 %v127
  %v552 = vunpack.c.l.b16 %v128
  %v553 = vunpack.c.h.b16 %v128
  %v554 = vunpack.c.l.b16 %v129
  %v555 = vunpack.c.h.b16 %v129
  %v556 = vunpack.c.l.b16 %v130
  %v557 = vunpack.c.h.b16 %v130
  %v558 = vunpack.c.l.b16 %v131
  %v559 = vunpack.c.h.b16 %v131
  %v560 = vunpack.c.l.b16 %v132
  %v561 = vunpack.c.h.b16 %v132
  %v562 = vunpack.c.l.b16 %v133
  %v563 = vunpack.c.h.b16 %v133
  %v564 = vunpack.c.l.b16 %v134
  %v565 = vunpack.c.h.b16 %v134
  %v566 = vunpack.c.l.b16 %v135
  %v567 = vunpack.c.h.b16 %v135
  %v568 = vunpack.c.l.b16 %v136
  %v569 = vunpack.c.h.b16 %v136
  %v570 = vunpack.c.l.b16 %v137
  %v571 = vunpack.c.h.b16 %v137
  %v572 = vunpack.c.l.b16 %v138
  %v573 = vunpack.c.h.b16 %v138
  %v574 = vunpack.c.l.b16 %v139
  %v575 = vunpack.c.h.b16 %v139
  %v576 = vunpack.c.l.b16 %v140
  %v577 = vunpack.c.h.b16 %v140
  %v578 = vunpack.c.l.b16 %v141
  %v579 = vunpack.c.h.b16 %v141
  %v580 = vunpack.c.l.b16 %v142
  %v581 = vunpack.c.h.b16 %v142
  %v582 = vunpack.c.l.b16 %v143
  %v583 = vunpack.c.h.b16 %v143
  %v584 = vunpack.c.l.b16 %v144
  %v585 = vunpack.c.h.b16 %v144
  %v586 = vunpack.c.l.b16 %v145
  %v587 = vunpack.c.h.b16 %v145
  %v588 = vunpack.c.l.b16 %v146
  %v589 = vunpack.c.h.b16 %v146
  %v590 = vunpack.c.l.b16 %v147
  %v591 = vunpack.c.h.b16 %v147
  %v592 = vunpack.c.l.b16 %v148
  %v593 = vunpack.c.h.b16 %v148
  %v594 = vunpack.c.l.b16 %v149
  %v595 = vunpack.c.h.b16 %v149
  %v596 = vpack.c.b16 %v344, %v340
  %v597 = vpack.c.b16 %v345, %v341
  %v598 = vpack.c.b16 %v346, %v342
  %v599 = vpack.c.b16 %v347, %v343
  %v600 = vpack.c.b16 %v352, %v348
  %v601 = vpack.c.b16 %v353, %v349
  %v602 = vpack.c.b16 %v354, %v350
  %v603 = vpack.c.b16 %v355, %v351
  %v604 = vpack.c.b16 %v360, %v356
  %v605 = vpack.c.b16 %v361, %v357
  %v606 = vpack.c.b16 %v362, %v358
  %v607 = vpack.c.b16 %v363, %v359
  %v608 = vpack.c.b16 %v368, %v364
  %v609 = vpack.c.b16 %v369, %v365
  %v610 = vpack.c.b16 %v370, %v366
  %v611 = vpack.c.b16 %v371, %v367
  %v612 = vpack.c.b16 %v376, %v372
  %v613 = vpack.c.b16 %v377, %v373
  %v614 = vpack.c.b16 %v378, %v374
  %v615 = vpack.c.b16 %v379, %v375
  %v616 = vpack.c.b16 %v384, %v380
  %v617 = vpack.c.b16 %v385, %v381
  %v618 = vpack.c.b16 %v386, %v382
  %v619 = vpack.c.b16 %v387, %v383
  %v620 = vpack.c.b16 %v392, %v388
  %v621 = vpack.c.b16 %v393, %v389
  %v622 = vpack.c.b16 %v394, %v390
  %v623 = vpack.c.b16 %v395, %v391
  %v624 = vpack.c.b16 %v400, %v396
  %v625 = vpack.c.b16 %v401, %v397
  %v626 = vpack.c.b16 %v402, %v398
  %v627 = vpack.c.b16 %v403, %v399
  %v628 = vpack.c.b16 %v408, %v404
  %v629 = vpack.c.b16 %v409, %v405
  %v630 = vpack.c.b16 %v410, %v406
  %v631 = vpack.c.b16 %v411, %v407
  %v632 = vpack.c.b16 %v416, %v412
  %v633 = vpack.c.b16 %v417, %v413
  %v634 = vpack.c.b16 %v418, %v414
  %v635 = vpack.c.b16 %v419, %v415
  %v636 = vpack.c.b16 %v424, %v420
  %v637 = vpack.c.b16 %v425, %v421
  %v638 = vpack.c.b16 %v426, %v422
  %v639 = vpack.c.b16 %v427, %v423
  %v640 = vpack.c.b16 %v432, %v428
  %v641 = vpack.c.b16 %v433, %v429
  %v642 = vpack.c.b16 %v434, %v430
  %v643 = vpack.c.b16 %v435, %v431
  %v644 = vpack.c.b16 %v440, %v436
  %v645 = vpack.c.b16 %v441, %v437
  %v646 = vpack.c.b16 %v442, %v438
  %v647 = vpack.c.b16 %v443, %v439
  %v648 = vpack.c.b16 %v448, %v444
  %v649 = vpack.c.b16 %v449, %v445
  %v650 = vpack.c.b16 %v450, %v446
  %v651 = vpack.c.b16 %v451, %v447
  %v652 = vpack.c.b16 %v456, %v452
  %v653 = vpack.c.b16 %v457, %v453
  %v654 = vpack.c.b16 %v458, %v454
  %v655 = vpack.c.b16 %v459, %v455
  %v656 = vpack.c.b16 %v464, %v460
  %v657 = vpack.c.b16 %v465, %v461
  %v658 = vpack.c.b16 %v466, %v462
  %v659 = vpack.c.b16 %v467, %v463
  %v660 = vpack.c.b16 %v472, %v468
  %v661 = vpack.c.b16 %v473, %v469
  %v662 = vpack.c.b16 %v474, %v470
  %v663 = vpack.c.b16 %v475, %v471
  %v664 = vpack.c.b16 %v480, %v476
  %v665 = vpack.c.b16 %v481, %v477
  %v666 = vpack.c.b16 %v482, %v478
  %v667 = vpack.c.b16 %v483, %v479
  %v668 = vpack.c.b16 %v488, %v484
  %v669 = vpack.c.b16 %v489, %v485
  %v670 = vpack.c.b16 %v490, %v486
  %v671 = vpack.c.b16 %v491, %v487
  %v672 = vpack.c.b16 %v496, %v492
  %v673 = vpack.c.b16 %v497, %v493
  %v674 = vpack.c.b16 %v498, %v494
  %v675 = vpack.c.b16 %v499, %v495
  %v676 = vpack.c.b16 %v504, %v500
  %v677 = vpack.c.b16 %v505, %v501
  %v678 = vpack.c.b16 %v506, %v502
  %v679 = vpack.c.b16 %v507, %v503
  %v680 = vpack.c.b16 %v512, %v508
  %v681 = vpack.c.b16 %v513, %v509
  %v682 = vpack.c.b16 %v514, %v510
  %v683 = vpack.c.b16 %v515, %v511
  %v684 = vpack.c.b16 %v520, %v516
  %v685 = vpack.c.b16 %v521, %v517
  %v686 = vpack.c.b16 %v522, %v518
  %v687 = vpack.c.b16 %v523, %v519
  %v688 = vpack.c.b16 %v528, %v524
  %v689 = vpack.c.b16 %v529, %v525
  %v690 = vpack.c.b16 %v530, %v526
  %v691 = vpack.c.b16 %v531, %v527
  %v692 = vpack.c.b16 %v536, %v532
  %v693 = vpack.c.b16 %v537, %v533
  %v694 = vpack.c.b16 %v538, %v534
  %v695 = vpack.c.b16 %v539, %v535
  %v696 = vpack.c.b16 %v544, %v540
  %v697 = vpack.c.b16 %v545, %v541
  %v698 = vpack.c.b16 %v546, %v542
  %v699 = vpack.c.b16 %v547, %v543
  %v700 = vpack.c.b16 %v552, %v548
  %v701 = vpack.c.b16 %v553, %v549
  %v702 = vpack.c.b16 %v554, %v550
  %v703 = vpack.c.b16 %v555, %v551
  %v704 = vpack.c.b16 %v560, %v556
  %v705 = vpack.c.b16 %v561, %v557
  %v706 = vpack.c.b16 %v562, %v558
  %v707 = vpack.c.b16 %v563, %v559
  %v708 = vpack.c.b16 %v568, %v564
  %v709 = vpack.c.b16 %v569, %v565
  %v710 = vpack.c.b16 %v570, %v566
  %v711 = vpack.c.b16 %v571, %v567
  %v712 = vpack.c.b16 %v576, %v572
  %v713 = vpack.c.b16 %v577, %v573
  %v714 = vpack.c.b16 %v578, %v574
  %v715 = vpack.c.b16 %v579, %v575
  %v716 = vpack.c.b16 %v584, %v580
  %v717 = vpack.c.b16 %v585, %v581
  %v718 = vpack.c.b16 %v586, %v582
  %v719 = vpack.c.b16 %v587, %v583
  %v720 = vpack.c.b16 %v592, %v588
  %v721 = vpack.c.b16 %v593, %v589
  %v722 = vpack.c.b16 %v594, %v590
  %v723 = vpack.c.b16 %v595, %v591
  %852 = vmatprep.subr.bf16.mxu0 %v597
  %853 = vmatpush1.bf16.msra.mxu0 %v596
  %854 = vmatprep.subr.bf16.mxu0 %v601
  %855 = vmatpush1.bf16.msra.mxu0 %v600
  %856 = vmatprep.subr.bf16.mxu0 %v605
  %857 = vmatpush1.bf16.msra.mxu0 %v604
  %858 = vmatprep.subr.bf16.mxu0 %v609
  %859 = vmatpush1.bf16.msra.mxu0 %v608
  %860 = vmatprep.subr.bf16.mxu0 %v613
  %861 = vmatpush1.bf16.msra.mxu0 %v612
  %862 = vmatprep.subr.bf16.mxu0 %v617
  %863 = vmatpush1.bf16.msra.mxu0 %v616
  %864 = vmatprep.subr.bf16.mxu0 %v621
  %865 = vmatpush1.bf16.msra.mxu0 %v620
  %866 = vmatprep.subr.bf16.mxu0 %v625
  %867 = vmatpush1.bf16.msra.mxu0 %v624
  %868 = vmatprep.subr.bf16.mxu0 %v629
  %869 = vmatpush1.bf16.msra.mxu0 %v628
  %870 = vmatprep.subr.bf16.mxu0 %v633
  %871 = vmatpush1.bf16.msra.mxu0 %v632
  %872 = vmatprep.subr.bf16.mxu0 %v637
  %873 = vmatpush1.bf16.msra.mxu0 %v636
  %874 = vmatprep.subr.bf16.mxu0 %v641
  %875 = vmatpush1.bf16.msra.mxu0 %v640
  %876 = vmatprep.subr.bf16.mxu0 %v645
  %877 = vmatpush1.bf16.msra.mxu0 %v644
  %878 = vmatprep.subr.bf16.mxu0 %v649
  %879 = vmatpush1.bf16.msra.mxu0 %v648
  %880 = vmatprep.subr.bf16.mxu0 %v653
  %881 = vmatpush1.bf16.msra.mxu0 %v652
  %882 = vmatprep.subr.bf16.mxu0 %v657
  %883 = vmatpush1.bf16.msra.mxu0 %v656
  %884 = vmatprep.mubr.bf16.mxu0 %v197
  %885 = vmatmul.mubr.bf16.gmra.mrb[0].mxu0 %v196
  %v886 = vpop.f32.mrb[0].mxu0
  %v887 = vadd.f32 %v155, %v886
  %v888 = vpop.f32.mrb[0].mxu0
  %v889 = vadd.f32 %v159, %v888
  %v890 = vpop.f32.mrb[0].mxu0
  %v891 = vadd.f32 %v155, %v890
  %v892 = vpop.f32.mrb[0].mxu0
  %v893 = vadd.f32 %v159, %v892
  %894 = vmatprep.mubr.bf16.mxu0 %v201
  %895 = vmatmul.mubr.bf16.gmra.mrb[0].mxu0 %v200
  %v896 = vpop.f32.mrb[0].mxu0
  %v897 = vadd.f32 %v155, %v896
  %v898 = vpop.f32.mrb[0].mxu0
  %v899 = vadd.f32 %v159, %v898
  %v900 = vpop.f32.mrb[0].mxu0
  %v901 = vadd.f32 %v155, %v900
  %v902 = vpop.f32.mrb[0].mxu0
  %v903 = vadd.f32 %v159, %v902
  %904 = vdwg.mxu0
  %905 = vmatprep.subr.bf16.mxu0 %v661
  %906 = vmatpush1.bf16.msra.mxu0 %v660
  %907 = vmatprep.subr.bf16.mxu0 %v665
  %908 = vmatpush1.bf16.msra.mxu0 %v664
  %909 = vmatprep.subr.bf16.mxu0 %v669
  %910 = vmatpush1.bf16.msra.mxu0 %v668
  %911 = vmatprep.subr.bf16.mxu0 %v673
  %912 = vmatpush1.bf16.msra.mxu0 %v672
  %913 = vmatprep.subr.bf16.mxu0 %v677
  %914 = vmatpush1.bf16.msra.mxu0 %v676
  %915 = vmatprep.subr.bf16.mxu0 %v681
  %916 = vmatpush1.bf16.msra.mxu0 %v680
  %917 = vmatprep.subr.bf16.mxu0 %v685
  %918 = vmatpush1.bf16.msra.mxu0 %v684
  %919 = vmatprep.subr.bf16.mxu0 %v689
  %920 = vmatpush1.bf16.msra.mxu0 %v688
  %921 = vmatprep.subr.bf16.mxu0 %v693
  %922 = vmatpush1.bf16.msra.mxu0 %v692
  %923 = vmatprep.subr.bf16.mxu0 %v697
  %924 = vmatpush1.bf16.msra.mxu0 %v696
  %925 = vmatprep.subr.bf16.mxu0 %v701
  %926 = vmatpush1.bf16.msra.mxu0 %v700
  %927 = vmatprep.subr.bf16.mxu0 %v705
  %928 = vmatpush1.bf16.msra.mxu0 %v704
  %929 = vmatprep.subr.bf16.mxu0 %v709
  %930 = vmatpush1.bf16.msra.mxu0 %v708
  %931 = vmatprep.subr.bf16.mxu0 %v713
  %932 = vmatpush1.bf16.msra.mxu0 %v712
  %933 = vmatprep.subr.bf16.mxu0 %v717
  %934 = vmatpush1.bf16.msra.mxu0 %v716
  %935 = vmatprep.subr.bf16.mxu0 %v721
  %936 = vmatpush1.bf16.msra.mxu0 %v720
  %937 = vmatprep.mubr.bf16.mxu0 %v199
  %938 = vmatmul.mubr.bf16.gmra.mrb[0].mxu0 %v198
  %v939 = vpop.f32.mrb[0].mxu0
  %v940 = vadd.f32 %v887, %v939
  %v941 = vpop.f32.mrb[0].mxu0
  %v942 = vadd.f32 %v889, %v941
  %v943 = vpop.f32.mrb[0].mxu0
  %v944 = vadd.f32 %v891, %v943
  %v945 = vpop.f32.mrb[0].mxu0
  %v946 = vadd.f32 %v893, %v945
  %947 = vmatprep.mubr.bf16.mxu0 %v203
  %948 = vmatmul.mubr.bf16.gmra.mrb[0].mxu0 %v202
  %v949 = vpop.f32.mrb[0].mxu0
  %v950 = vadd.f32 %v897, %v949
  %v951 = vpop.f32.mrb[0].mxu0
  %v952 = vadd.f32 %v899, %v951
  %v953 = vpop.f32.mrb[0].mxu0
  %v954 = vadd.f32 %v901, %v953
  %v955 = vpop.f32.mrb[0].mxu0
  %v956 = vadd.f32 %v903, %v955
  %957 = vdwg.mxu0
  %958 = vmatprep.subr.bf16.mxu0 %v599
  %959 = vmatpush1.bf16.msra.mxu0 %v598
  %960 = vmatprep.subr.bf16.mxu0 %v603
  %961 = vmatpush1.bf16.msra.mxu0 %v602
  %962 = vmatprep.subr.bf16.mxu0 %v607
  %963 = vmatpush1.bf16.msra.mxu0 %v606
  %964 = vmatprep.subr.bf16.mxu0 %v611
  %965 = vmatpush1.bf16.msra.mxu0 %v610
  %966 = vmatprep.subr.bf16.mxu0 %v615
  %967 = vmatpush1.bf16.msra.mxu0 %v614
  %968 = vmatprep.subr.bf16.mxu0 %v619
  %969 = vmatpush1.bf16.msra.mxu0 %v618
  %970 = vmatprep.subr.bf16.mxu0 %v623
  %971 = vmatpush1.bf16.msra.mxu0 %v622
  %972 = vmatprep.subr.bf16.mxu0 %v627
  %973 = vmatpush1.bf16.msra.mxu0 %v626
  %974 = vmatprep.subr.bf16.mxu0 %v631
  %975 = vmatpush1.bf16.msra.mxu0 %v630
  %976 = vmatprep.subr.bf16.mxu0 %v635
  %977 = vmatpush1.bf16.msra.mxu0 %v634
  %978 = vmatprep.subr.bf16.mxu0 %v639
  %979 = vmatpush1.bf16.msra.mxu0 %v638
  %980 = vmatprep.subr.bf16.mxu0 %v643
  %981 = vmatpush1.bf16.msra.mxu0 %v642
  %982 = vmatprep.subr.bf16.mxu0 %v647
  %983 = vmatpush1.bf16.msra.mxu0 %v646
  %984 = vmatprep.subr.bf16.mxu0 %v651
  %985 = vmatpush1.bf16.msra.mxu0 %v650
  %986 = vmatprep.subr.bf16.mxu0 %v655
  %987 = vmatpush1.bf16.msra.mxu0 %v654
  %988 = vmatprep.subr.bf16.mxu0 %v659
  %989 = vmatpush1.bf16.msra.mxu0 %v658
  %990 = vmatprep.mubr.bf16.mxu0 %v197
  %991 = vmatmul.mubr.bf16.gmra.mrb[0].mxu0 %v196
  %v992 = vpop.f32.mrb[0].mxu0
  %v993 = vadd.f32 %v163, %v992
  %v994 = vpop.f32.mrb[0].mxu0
  %v995 = vadd.f32 %v167, %v994
  %v996 = vpop.f32.mrb[0].mxu0
  %v997 = vadd.f32 %v163, %v996
  %v998 = vpop.f32.mrb[0].mxu0
  %v999 = vadd.f32 %v167, %v998
  %1000 = vmatprep.mubr.bf16.mxu0 %v201
  %1001 = vmatmul.mubr.bf16.gmra.mrb[0].mxu0 %v200
  %v1002 = vpop.f32.mrb[0].mxu0
  %v1003 = vadd.f32 %v163, %v1002
  %v1004 = vpop.f32.mrb[0].mxu0
  %v1005 = vadd.f32 %v167, %v1004
  %v1006 = vpop.f32.mrb[0].mxu0
  %v1007 = vadd.f32 %v163, %v1006
  %v1008 = vpop.f32.mrb[0].mxu0
  %v1009 = vadd.f32 %v167, %v1008
  %1010 = vdwg.mxu0
  %1011 = vmatprep.subr.bf16.mxu0 %v663
  %1012 = vmatpush1.bf16.msra.mxu0 %v662
  %1013 = vmatprep.subr.bf16.mxu0 %v667
  %1014 = vmatpush1.bf16.msra.mxu0 %v666
  %1015 = vmatprep.subr.bf16.mxu0 %v671
  %1016 = vmatpush1.bf16.msra.mxu0 %v670
  %1017 = vmatprep.subr.bf16.mxu0 %v675
  %1018 = vmatpush1.bf16.msra.mxu0 %v674
  %1019 = vmatprep.subr.bf16.mxu0 %v679
  %1020 = vmatpush1.bf16.msra.mxu0 %v678
  %1021 = vmatprep.subr.bf16.mxu0 %v683
  %1022 = vmatpush1.bf16.msra.mxu0 %v682
  %1023 = vmatprep.subr.bf16.mxu0 %v687
  %1024 = vmatpush1.bf16.msra.mxu0 %v686
  %1025 = vmatprep.subr.bf16.mxu0 %v691
  %1026 = vmatpush1.bf16.msra.mxu0 %v690
  %1027 = vmatprep.subr.bf16.mxu0 %v695
  %1028 = vmatpush1.bf16.msra.mxu0 %v694
  %1029 = vmatprep.subr.bf16.mxu0 %v699
  %1030 = vmatpush1.bf16.msra.mxu0 %v698
  %1031 = vmatprep.subr.bf16.mxu0 %v703
  %1032 = vmatpush1.bf16.msra.mxu0 %v702
  %1033 = vmatprep.subr.bf16.mxu0 %v707
  %1034 = vmatpush1.bf16.msra.mxu0 %v706
  %1035 = vmatprep.subr.bf16.mxu0 %v711
  %1036 = vmatpush1.bf16.msra.mxu0 %v710
  %1037 = vmatprep.subr.bf16.mxu0 %v715
  %1038 = vmatpush1.bf16.msra.mxu0 %v714
  %1039 = vmatprep.subr.bf16.mxu0 %v719
  %1040 = vmatpush1.bf16.msra.mxu0 %v718
  %1041 = vmatprep.subr.bf16.mxu0 %v723
  %1042 = vmatpush1.bf16.msra.mxu0 %v722
  %1043 = vmatprep.mubr.bf16.mxu0 %v199
  %1044 = vmatmul.mubr.bf16.gmra.mrb[0].mxu0 %v198
  %v1045 = vpop.f32.mrb[0].mxu0
  %v1046 = vadd.f32 %v993, %v1045
  %v1047 = vpop.f32.mrb[0].mxu0
  %v1048 = vadd.f32 %v995, %v1047
  %v1049 = vpop.f32.mrb[0].mxu0
  %v1050 = vadd.f32 %v997, %v1049
  %v1051 = vpop.f32.mrb[0].mxu0
  %v1052 = vadd.f32 %v999, %v1051
  %1053 = vmatprep.mubr.bf16.mxu0 %v203
  %1054 = vmatmul.mubr.bf16.gmra.mrb[0].mxu0 %v202
  %v1055 = vpop.f32.mrb[0].mxu0
  %v1056 = vadd.f32 %v1003, %v1055
  %v1057 = vpop.f32.mrb[0].mxu0
  %v1058 = vadd.f32 %v1005, %v1057
  %v1059 = vpop.f32.mrb[0].mxu0
  %v1060 = vadd.f32 %v1007, %v1059
  %v1061 = vpop.f32.mrb[0].mxu0
  %v1062 = vadd.f32 %v1009, %v1061
  %1063 = vdwg.mxu0
  %v1064 = vmax.f32 %v940, 0.0
  %v1065 = vmax.f32 %v942, 0.0
  %v1066 = vmax.f32 %v1046, 0.0
  %v1067 = vmax.f32 %v1048, 0.0
  %v1068 = vmax.f32 %v944, 0.0
  %v1069 = vmax.f32 %v946, 0.0
  %v1070 = vmax.f32 %v1050, 0.0
  %v1071 = vmax.f32 %v1052, 0.0
  %v1072 = vmax.f32 %v950, 0.0
  %v1073 = vmax.f32 %v952, 0.0
  %v1074 = vmax.f32 %v1056, 0.0
  %v1075 = vmax.f32 %v1058, 0.0
  %v1076 = vmax.f32 %v954, 0.0
  %v1077 = vmax.f32 %v956, 0.0
  %v1078 = vmax.f32 %v1060, 0.0
  %v1079 = vmax.f32 %v1062, 0.0
  %v1080 = vpack.c.bf16 %v1068, %v1064
  %v1081 = vpack.c.bf16 %v1069, %v1065
  %v1082 = vpack.c.bf16 %v1070, %v1066
  %v1083 = vpack.c.bf16 %v1071, %v1067
  %v1084 = vpack.c.bf16 %v1076, %v1072
  %v1085 = vpack.c.bf16 %v1077, %v1073
  %v1086 = vpack.c.bf16 %v1078, %v1074
  %v1087 = vpack.c.bf16 %v1079, %v1075
  %v1096 = vunpack.c.l.b16 %v1080
  %v1097 = vunpack.c.l.b16 %v1081
  %v1098 = vunpack.c.l.b16 %v1082
  %v1099 = vunpack.c.l.b16 %v1083
  %v1100 = vunpack.c.h.b16 %v1080
  %v1101 = vunpack.c.h.b16 %v1081
  %v1102 = vunpack.c.h.b16 %v1082
  %v1103 = vunpack.c.h.b16 %v1083
  %v1104 = vunpack.c.l.b16 %v1084
  %v1105 = vunpack.c.l.b16 %v1085
  %v1106 = vunpack.c.l.b16 %v1086
  %v1107 = vunpack.c.l.b16 %v1087
  %v1108 = vunpack.c.h.b16 %v1084
  %v1109 = vunpack.c.h.b16 %v1085
  %v1110 = vunpack.c.h.b16 %v1086
  %v1111 = vunpack.c.h.b16 %v1087
  %v1112 = vpack.c.b16 %v1097, %v1096
  %v1113 = vpack.c.b16 %v1099, %v1098
  %v1114 = vpack.c.b16 %v1101, %v1100
  %v1115 = vpack.c.b16 %v1103, %v1102
  %v1116 = vpack.c.b16 %v1105, %v1104
  %v1117 = vpack.c.b16 %v1107, %v1106
  %v1118 = vpack.c.b16 %v1109, %v1108
  %v1119 = vpack.c.b16 %v1111, %v1110
  %1128 = vst [vmem:[%s3] sm:$0xff] %v1112
  %1129 = vst [vmem:[%s3 + $0x8] sm:$0xff] %v1113
  %1130 = vst [vmem:[%s3 + $0x10] sm:$0xff] %v1114
  %1131 = vst [vmem:[%s3 + $0x18] sm:$0xff] %v1115
  %1132 = vst [vmem:[%s3 + $0x20] sm:$0xff] %v1116
  %1133 = vst [vmem:[%s3 + $0x28] sm:$0xff] %v1117
  %1134 = vst [vmem:[%s3 + $0x30] sm:$0xff] %v1118
  %1135 = vst [vmem:[%s3 + $0x38] sm:$0xff] %v1119
  // Predicated region
  $region14: #{autoencoder_forward.11} parent=0 // pred_check
    _
  $region15: #{autoencoder_forward.11} parent=0 // pred_check_branch
    %1137 = sbr.rel (0) target = $region17
  $region16: #{autoencoder_forward.11} parent=0 // pred_region
    _
  $region17: #{autoencoder_forward.11} parent=0 // pred_fallthru
    _
  // Predicated region
  $region18: #{autoencoder_forward.11} parent=0 // pred_check
    _
  $region19: #{autoencoder_forward.11} parent=0 // pred_check_branch
    %1139 = sbr.rel (0) target = $region21
  $region20: #{autoencoder_forward.11} parent=0 // pred_region
    _
  $region21: #{autoencoder_forward.11} parent=0 // pred_fallthru
    _

// kernel: autoencoder_forward.10
$region0: #{autoencoder_forward.10}
  #allocation0 [shape = 'u32[]', space=smem, size = 0x4, offset = 0x4, fixed_abs, tag = 'smem constant byte address 0x4 - core index']
  #allocation1 [shape = 'u32[144,128]{1,0:T(1,128)}', space=vmem, size = 0x12000, scoped, tag = 'internal scratch']
  %s0 = inlined_call_operand.vmem [shape: bf16[2,2048], index: 0, kind: input, shape index: {}]
  %s1 = inlined_call_operand.vmem [shape: bf16[2048,2], index: 1, kind: input, shape index: {}]
  %s2 = inlined_call_operand.vmem [shape: f32[1,2], index: 2, kind: input, shape index: {}]
  %s3 = inlined_call_operand.vmem [shape: bf16[2,2048], index: 3, kind: input, shape index: {}]
  %s4 = inlined_call_operand.vmem [shape: f32[1,2048], index: 4, kind: input, shape index: {}]
  %s5 = inlined_call_operand.vmem [shape: bf16[2,2048], index: 5, kind: output, shape index: {}]
  %s6 = sld [smem:[#allocation0]]
  $region30: #{autoencoder_forward.10} parent=0
    _
  %s8 = ssub.s32 1, %s6
  %s9 = scalar_select 0, %s8, %s6
  // Predicated region
  $region2: #{autoencoder_forward.10} parent=0 // pred_check
    _
  $region3: #{autoencoder_forward.10} parent=0 // pred_check_branch
    %11 = sbr.rel (0) target = $region5
  $region4: #{autoencoder_forward.10} parent=0 // pred_region
    _
  $region5: #{autoencoder_forward.10} parent=0 // pred_fallthru
    _
  // Predicated region
  $region6: #{autoencoder_forward.10} parent=0 // pred_check
    _
  $region7: #{autoencoder_forward.10} parent=0 // pred_check_branch
    %13 = sbr.rel (0) target = $region9
  $region8: #{autoencoder_forward.10} parent=0 // pred_region
    _
  $region9: #{autoencoder_forward.10} parent=0 // pred_fallthru
    _
  // Predicated region
  $region10: #{autoencoder_forward.10} parent=0 // pred_check
    _
  $region11: #{autoencoder_forward.10} parent=0 // pred_check_branch
    %15 = sbr.rel (0) target = $region13
  $region12: #{autoencoder_forward.10} parent=0 // pred_region
    _
  $region13: #{autoencoder_forward.10} parent=0 // pred_fallthru
    _
  // Predicated region
  $region14: #{autoencoder_forward.10} parent=0 // pred_check
    _
  $region15: #{autoencoder_forward.10} parent=0 // pred_check_branch
    %17 = sbr.rel (0) target = $region17
  $region16: #{autoencoder_forward.10} parent=0 // pred_region
    _
  $region17: #{autoencoder_forward.10} parent=0 // pred_fallthru
    _
  // Predicated region
  $region18: #{autoencoder_forward.10} parent=0 // pred_check
    _
  $region19: #{autoencoder_forward.10} parent=0 // pred_check_branch
    %19 = sbr.rel (0) target = $region21
  $region20: #{autoencoder_forward.10} parent=0 // pred_region
    _
  $region21: #{autoencoder_forward.10} parent=0 // pred_fallthru
    _
  %v21 = vld [vmem:[%s0] sm:$0xff]
  %v22 = vld [vmem:[%s0 + $0x8] sm:$0xff]
  %v23 = vld [vmem:[%s1] sm:$0xf]
  %v24 = vld [vmem:[%s1 + $0x4] sm:$0xf]
  %v25 = vld [vmem:[%s1 + $0x8] sm:$0xf]
  %v26 = vld [vmem:[%s1 + $0xc] sm:$0xf]
  %v27 = vld [vmem:[%s1 + $0x10] sm:$0xf]
  %v28 = vld [vmem:[%s1 + $0x14] sm:$0xf]
  %v29 = vld [vmem:[%s1 + $0x18] sm:$0xf]
  %v30 = vld [vmem:[%s1 + $0x1c] sm:$0xf]
  %v31 = vld [vmem:[%s1 + $0x20] sm:$0xf]
  %v32 = vld [vmem:[%s1 + $0x24] sm:$0xf]
  %v33 = vld [vmem:[%s1 + $0x28] sm:$0xf]
  %v34 = vld [vmem:[%s1 + $0x2c] sm:$0xf]
  %v35 = vld [vmem:[%s1 + $0x30] sm:$0xf]
  %v36 = vld [vmem:[%s1 + $0x34] sm:$0xf]
  %v37 = vld [vmem:[%s1 + $0x38] sm:$0xf]
  %v38 = vld [vmem:[%s1 + $0x3c] sm:$0xf]
  %v39 = vld [vmem:[%s1 + $0x40] sm:$0xf]
  %v40 = vld [vmem:[%s1 + $0x44] sm:$0xf]
  %v41 = vld [vmem:[%s1 + $0x48] sm:$0xf]
  %v42 = vld [vmem:[%s1 + $0x4c] sm:$0xf]
  %v43 = vld [vmem:[%s1 + $0x50] sm:$0xf]
  %v44 = vld [vmem:[%s1 + $0x54] sm:$0xf]
  %v45 = vld [vmem:[%s1 + $0x58] sm:$0xf]
  %v46 = vld [vmem:[%s1 + $0x5c] sm:$0xf]
  %v47 = vld [vmem:[%s1 + $0x60] sm:$0xf]
  %v48 = vld [vmem:[%s1 + $0x64] sm:$0xf]
  %v49 = vld [vmem:[%s1 + $0x68] sm:$0xf]
  %v50 = vld [vmem:[%s1 + $0x6c] sm:$0xf]
  %v51 = vld [vmem:[%s1 + $0x70] sm:$0xf]
  %v52 = vld [vmem:[%s1 + $0x74] sm:$0xf]
  %v53 = vld [vmem:[%s1 + $0x78] sm:$0xf]
  %v54 = vld [vmem:[%s1 + $0x7c] sm:$0xf]
  %v55 = vld [vmem:[%s1 + $0x80] sm:$0xf]
  %v56 = vld [vmem:[%s1 + $0x84] sm:$0xf]
  %v57 = vld [vmem:[%s1 + $0x88] sm:$0xf]
  %v58 = vld [vmem:[%s1 + $0x8c] sm:$0xf]
  %v59 = vld [vmem:[%s1 + $0x90] sm:$0xf]
  %v60 = vld [vmem:[%s1 + $0x94] sm:$0xf]
  %v61 = vld [vmem:[%s1 + $0x98] sm:$0xf]
  %v62 = vld [vmem:[%s1 + $0x9c] sm:$0xf]
  %v63 = vld [vmem:[%s1 + $0xa0] sm:$0xf]
  %v64 = vld [vmem:[%s1 + $0xa4] sm:$0xf]
  %v65 = vld [vmem:[%s1 + $0xa8] sm:$0xf]
  %v66 = vld [vmem:[%s1 + $0xac] sm:$0xf]
  %v67 = vld [vmem:[%s1 + $0xb0] sm:$0xf]
  %v68 = vld [vmem:[%s1 + $0xb4] sm:$0xf]
  %v69 = vld [vmem:[%s1 + $0xb8] sm:$0xf]
  %v70 = vld [vmem:[%s1 + $0xbc] sm:$0xf]
  %v71 = vld [vmem:[%s1 + $0xc0] sm:$0xf]
  %v72 = vld [vmem:[%s1 + $0xc4] sm:$0xf]
  %v73 = vld [vmem:[%s1 + $0xc8] sm:$0xf]
  %v74 = vld [vmem:[%s1 + $0xcc] sm:$0xf]
  %v75 = vld [vmem:[%s1 + $0xd0] sm:$0xf]
  %v76 = vld [vmem:[%s1 + $0xd4] sm:$0xf]
  %v77 = vld [vmem:[%s1 + $0xd8] sm:$0xf]
  %v78 = vld [vmem:[%s1 + $0xdc] sm:$0xf]
  %v79 = vld [vmem:[%s1 + $0xe0] sm:$0xf]
  %v80 = vld [vmem:[%s1 + $0xe4] sm:$0xf]
  %v81 = vld [vmem:[%s1 + $0xe8] sm:$0xf]
  %v82 = vld [vmem:[%s1 + $0xec] sm:$0xf]
  %v83 = vld [vmem:[%s1 + $0xf0] sm:$0xf]
  %v84 = vld [vmem:[%s1 + $0xf4] sm:$0xf]
  %v85 = vld [vmem:[%s1 + $0xf8] sm:$0xf]
  %v86 = vld [vmem:[%s1 + $0xfc] sm:$0xf]
  %v87 = vld [vmem:[%s1 + $0x100] sm:$0xf]
  %v88 = vld [vmem:[%s1 + $0x104] sm:$0xf]
  %v89 = vld [vmem:[%s1 + $0x108] sm:$0xf]
  %v90 = vld [vmem:[%s1 + $0x10c] sm:$0xf]
  %v91 = vld [vmem:[%s1 + $0x110] sm:$0xf]
  %v92 = vld [vmem:[%s1 + $0x114] sm:$0xf]
  %v93 = vld [vmem:[%s1 + $0x118] sm:$0xf]
  %v94 = vld [vmem:[%s1 + $0x11c] sm:$0xf]
  %v95 = vld [vmem:[%s1 + $0x120] sm:$0xf]
  %v96 = vld [vmem:[%s1 + $0x124] sm:$0xf]
  %v97 = vld [vmem:[%s1 + $0x128] sm:$0xf]
  %v98 = vld [vmem:[%s1 + $0x12c] sm:$0xf]
  %v99 = vld [vmem:[%s1 + $0x130] sm:$0xf]
  %v100 = vld [vmem:[%s1 + $0x134] sm:$0xf]
  %v101 = vld [vmem:[%s1 + $0x138] sm:$0xf]
  %v102 = vld [vmem:[%s1 + $0x13c] sm:$0xf]
  %v103 = vld [vmem:[%s1 + $0x140] sm:$0xf]
  %v104 = vld [vmem:[%s1 + $0x144] sm:$0xf]
  %v105 = vld [vmem:[%s1 + $0x148] sm:$0xf]
  %v106 = vld [vmem:[%s1 + $0x14c] sm:$0xf]
  %v107 = vld [vmem:[%s1 + $0x150] sm:$0xf]
  %v108 = vld [vmem:[%s1 + $0x154] sm:$0xf]
  %v109 = vld [vmem:[%s1 + $0x158] sm:$0xf]
  %v110 = vld [vmem:[%s1 + $0x15c] sm:$0xf]
  %v111 = vld [vmem:[%s1 + $0x160] sm:$0xf]
  %v112 = vld [vmem:[%s1 + $0x164] sm:$0xf]
  %v113 = vld [vmem:[%s1 + $0x168] sm:$0xf]
  %v114 = vld [vmem:[%s1 + $0x16c] sm:$0xf]
  %v115 = vld [vmem:[%s1 + $0x170] sm:$0xf]
  %v116 = vld [vmem:[%s1 + $0x174] sm:$0xf]
  %v117 = vld [vmem:[%s1 + $0x178] sm:$0xf]
  %v118 = vld [vmem:[%s1 + $0x17c] sm:$0xf]
  %v119 = vld [vmem:[%s1 + $0x180] sm:$0xf]
  %v120 = vld [vmem:[%s1 + $0x184] sm:$0xf]
  %v121 = vld [vmem:[%s1 + $0x188] sm:$0xf]
  %v122 = vld [vmem:[%s1 + $0x18c] sm:$0xf]
  %v123 = vld [vmem:[%s1 + $0x190] sm:$0xf]
  %v124 = vld [vmem:[%s1 + $0x194] sm:$0xf]
  %v125 = vld [vmem:[%s1 + $0x198] sm:$0xf]
  %v126 = vld [vmem:[%s1 + $0x19c] sm:$0xf]
  %v127 = vld [vmem:[%s1 + $0x1a0] sm:$0xf]
  %v128 = vld [vmem:[%s1 + $0x1a4] sm:$0xf]
  %v129 = vld [vmem:[%s1 + $0x1a8] sm:$0xf]
  %v130 = vld [vmem:[%s1 + $0x1ac] sm:$0xf]
  %v131 = vld [vmem:[%s1 + $0x1b0] sm:$0xf]
  %v132 = vld [vmem:[%s1 + $0x1b4] sm:$0xf]
  %v133 = vld [vmem:[%s1 + $0x1b8] sm:$0xf]
  %v134 = vld [vmem:[%s1 + $0x1bc] sm:$0xf]
  %v135 = vld [vmem:[%s1 + $0x1c0] sm:$0xf]
  %v136 = vld [vmem:[%s1 + $0x1c4] sm:$0xf]
  %v137 = vld [vmem:[%s1 + $0x1c8] sm:$0xf]
  %v138 = vld [vmem:[%s1 + $0x1cc] sm:$0xf]
  %v139 = vld [vmem:[%s1 + $0x1d0] sm:$0xf]
  %v140 = vld [vmem:[%s1 + $0x1d4] sm:$0xf]
  %v141 = vld [vmem:[%s1 + $0x1d8] sm:$0xf]
  %v142 = vld [vmem:[%s1 + $0x1dc] sm:$0xf]
  %v143 = vld [vmem:[%s1 + $0x1e0] sm:$0xf]
  %v144 = vld [vmem:[%s1 + $0x1e4] sm:$0xf]
  %v145 = vld [vmem:[%s1 + $0x1e8] sm:$0xf]
  %v146 = vld [vmem:[%s1 + $0x1ec] sm:$0xf]
  %v147 = vld [vmem:[%s1 + $0x1f0] sm:$0xf]
  %v148 = vld [vmem:[%s1 + $0x1f4] sm:$0xf]
  %v149 = vld [vmem:[%s1 + $0x1f8] sm:$0xf]
  %v150 = vld [vmem:[%s1 + $0x1fc] sm:$0xf]
  %v151 = vld [vmem:[%s1 + $0x200] sm:$0xf]
  %v152 = vld [vmem:[%s1 + $0x204] sm:$0xf]
  %v153 = vld [vmem:[%s1 + $0x208] sm:$0xf]
  %v154 = vld [vmem:[%s1 + $0x20c] sm:$0xf]
  %v155 = vld [vmem:[%s1 + $0x210] sm:$0xf]
  %v156 = vld [vmem:[%s1 + $0x214] sm:$0xf]
  %v157 = vld [vmem:[%s1 + $0x218] sm:$0xf]
  %v158 = vld [vmem:[%s1 + $0x21c] sm:$0xf]
  %v159 = vld [vmem:[%s1 + $0x220] sm:$0xf]
  %v160 = vld [vmem:[%s1 + $0x224] sm:$0xf]
  %v161 = vld [vmem:[%s1 + $0x228] sm:$0xf]
  %v162 = vld [vmem:[%s1 + $0x22c] sm:$0xf]
  %v163 = vld [vmem:[%s1 + $0x230] sm:$0xf]
  %v164 = vld [vmem:[%s1 + $0x234] sm:$0xf]
  %v165 = vld [vmem:[%s1 + $0x238] sm:$0xf]
  %v166 = vld [vmem:[%s1 + $0x23c] sm:$0xf]
  %v167 = vld [vmem:[%s1 + $0x240] sm:$0xf]
  %v168 = vld [vmem:[%s1 + $0x244] sm:$0xf]
  %v169 = vld [vmem:[%s1 + $0x248] sm:$0xf]
  %v170 = vld [vmem:[%s1 + $0x24c] sm:$0xf]
  %v171 = vld [vmem:[%s1 + $0x250] sm:$0xf]
  %v172 = vld [vmem:[%s1 + $0x254] sm:$0xf]
  %v173 = vld [vmem:[%s1 + $0x258] sm:$0xf]
  %v174 = vld [vmem:[%s1 + $0x25c] sm:$0xf]
  %v175 = vld [vmem:[%s1 + $0x260] sm:$0xf]
  %v176 = vld [vmem:[%s1 + $0x264] sm:$0xf]
  %v177 = vld [vmem:[%s1 + $0x268] sm:$0xf]
  %v178 = vld [vmem:[%s1 + $0x26c] sm:$0xf]
  %v179 = vld [vmem:[%s1 + $0x270] sm:$0xf]
  %v180 = vld [vmem:[%s1 + $0x274] sm:$0xf]
  %v181 = vld [vmem:[%s1 + $0x278] sm:$0xf]
  %v182 = vld [vmem:[%s1 + $0x27c] sm:$0xf]
  %v183 = vld [vmem:[%s1 + $0x280] sm:$0xf]
  %v184 = vld [vmem:[%s1 + $0x284] sm:$0xf]
  %v185 = vld [vmem:[%s1 + $0x288] sm:$0xf]
  %v186 = vld [vmem:[%s1 + $0x28c] sm:$0xf]
  %v187 = vld [vmem:[%s1 + $0x290] sm:$0xf]
  %v188 = vld [vmem:[%s1 + $0x294] sm:$0xf]
  %v189 = vld [vmem:[%s1 + $0x298] sm:$0xf]
  %v190 = vld [vmem:[%s1 + $0x29c] sm:$0xf]
  %v191 = vld [vmem:[%s1 + $0x2a0] sm:$0xf]
  %v192 = vld [vmem:[%s1 + $0x2a4] sm:$0xf]
  %v193 = vld [vmem:[%s1 + $0x2a8] sm:$0xf]
  %v194 = vld [vmem:[%s1 + $0x2ac] sm:$0xf]
  %v195 = vld [vmem:[%s1 + $0x2b0] sm:$0xf]
  %v196 = vld [vmem:[%s1 + $0x2b4] sm:$0xf]
  %v197 = vld [vmem:[%s1 + $0x2b8] sm:$0xf]
  %v198 = vld [vmem:[%s1 + $0x2bc] sm:$0xf]
  %v199 = vld [vmem:[%s1 + $0x2c0] sm:$0xf]
  %v200 = vld [vmem:[%s1 + $0x2c4] sm:$0xf]
  %v201 = vld [vmem:[%s1 + $0x2c8] sm:$0xf]
  %v202 = vld [vmem:[%s1 + $0x2cc] sm:$0xf]
  %v203 = vld [vmem:[%s1 + $0x2d0] sm:$0xf]
  %v204 = vld [vmem:[%s1 + $0x2d4] sm:$0xf]
  %v205 = vld [vmem:[%s1 + $0x2d8] sm:$0xf]
  %v206 = vld [vmem:[%s1 + $0x2dc] sm:$0xf]
  %v207 = vld [vmem:[%s1 + $0x2e0] sm:$0xf]
  %v208 = vld [vmem:[%s1 + $0x2e4] sm:$0xf]
  %v209 = vld [vmem:[%s1 + $0x2e8] sm:$0xf]
  %v210 = vld [vmem:[%s1 + $0x2ec] sm:$0xf]
  %v211 = vld [vmem:[%s1 + $0x2f0] sm:$0xf]
  %v212 = vld [vmem:[%s1 + $0x2f4] sm:$0xf]
  %v213 = vld [vmem:[%s1 + $0x2f8] sm:$0xf]
  %v214 = vld [vmem:[%s1 + $0x2fc] sm:$0xf]
  %v215 = vld [vmem:[%s1 + $0x300] sm:$0xf]
  %v216 = vld [vmem:[%s1 + $0x304] sm:$0xf]
  %v217 = vld [vmem:[%s1 + $0x308] sm:$0xf]
  %v218 = vld [vmem:[%s1 + $0x30c] sm:$0xf]
  %v219 = vld [vmem:[%s1 + $0x310] sm:$0xf]
  %v220 = vld [vmem:[%s1 + $0x314] sm:$0xf]
  %v221 = vld [vmem:[%s1 + $0x318] sm:$0xf]
  %v222 = vld [vmem:[%s1 + $0x31c] sm:$0xf]
  %v223 = vld [vmem:[%s1 + $0x320] sm:$0xf]
  %v224 = vld [vmem:[%s1 + $0x324] sm:$0xf]
  %v225 = vld [vmem:[%s1 + $0x328] sm:$0xf]
  %v226 = vld [vmem:[%s1 + $0x32c] sm:$0xf]
  %v227 = vld [vmem:[%s1 + $0x330] sm:$0xf]
  %v228 = vld [vmem:[%s1 + $0x334] sm:$0xf]
  %v229 = vld [vmem:[%s1 + $0x338] sm:$0xf]
  %v230 = vld [vmem:[%s1 + $0x33c] sm:$0xf]
  %v231 = vld [vmem:[%s1 + $0x340] sm:$0xf]
  %v232 = vld [vmem:[%s1 + $0x344] sm:$0xf]
  %v233 = vld [vmem:[%s1 + $0x348] sm:$0xf]
  %v234 = vld [vmem:[%s1 + $0x34c] sm:$0xf]
  %v235 = vld [vmem:[%s1 + $0x350] sm:$0xf]
  %v236 = vld [vmem:[%s1 + $0x354] sm:$0xf]
  %v237 = vld [vmem:[%s1 + $0x358] sm:$0xf]
  %v238 = vld [vmem:[%s1 + $0x35c] sm:$0xf]
  %v239 = vld [vmem:[%s1 + $0x360] sm:$0xf]
  %v240 = vld [vmem:[%s1 + $0x364] sm:$0xf]
  %v241 = vld [vmem:[%s1 + $0x368] sm:$0xf]
  %v242 = vld [vmem:[%s1 + $0x36c] sm:$0xf]
  %v243 = vld [vmem:[%s1 + $0x370] sm:$0xf]
  %v244 = vld [vmem:[%s1 + $0x374] sm:$0xf]
  %v245 = vld [vmem:[%s1 + $0x378] sm:$0xf]
  %v246 = vld [vmem:[%s1 + $0x37c] sm:$0xf]
  %v247 = vld [vmem:[%s1 + $0x380] sm:$0xf]
  %v248 = vld [vmem:[%s1 + $0x384] sm:$0xf]
  %v249 = vld [vmem:[%s1 + $0x388] sm:$0xf]
  %v250 = vld [vmem:[%s1 + $0x38c] sm:$0xf]
  %v251 = vld [vmem:[%s1 + $0x390] sm:$0xf]
  %v252 = vld [vmem:[%s1 + $0x394] sm:$0xf]
  %v253 = vld [vmem:[%s1 + $0x398] sm:$0xf]
  %v254 = vld [vmem:[%s1 + $0x39c] sm:$0xf]
  %v255 = vld [vmem:[%s1 + $0x3a0] sm:$0xf]
  %v256 = vld [vmem:[%s1 + $0x3a4] sm:$0xf]
  %v257 = vld [vmem:[%s1 + $0x3a8] sm:$0xf]
  %v258 = vld [vmem:[%s1 + $0x3ac] sm:$0xf]
  %v259 = vld [vmem:[%s1 + $0x3b0] sm:$0xf]
  %v260 = vld [vmem:[%s1 + $0x3b4] sm:$0xf]
  %v261 = vld [vmem:[%s1 + $0x3b8] sm:$0xf]
  %v262 = vld [vmem:[%s1 + $0x3bc] sm:$0xf]
  %v263 = vld [vmem:[%s1 + $0x3c0] sm:$0xf]
  %v264 = vld [vmem:[%s1 + $0x3c4] sm:$0xf]
  %v265 = vld [vmem:[%s1 + $0x3c8] sm:$0xf]
  %v266 = vld [vmem:[%s1 + $0x3cc] sm:$0xf]
  %v267 = vld [vmem:[%s1 + $0x3d0] sm:$0xf]
  %v268 = vld [vmem:[%s1 + $0x3d4] sm:$0xf]
  %v269 = vld [vmem:[%s1 + $0x3d8] sm:$0xf]
  %v270 = vld [vmem:[%s1 + $0x3dc] sm:$0xf]
  %v271 = vld [vmem:[%s1 + $0x3e0] sm:$0xf]
  %v272 = vld [vmem:[%s1 + $0x3e4] sm:$0xf]
  %v273 = vld [vmem:[%s1 + $0x3e8] sm:$0xf]
  %v274 = vld [vmem:[%s1 + $0x3ec] sm:$0xf]
  %v275 = vld [vmem:[%s1 + $0x3f0] sm:$0xf]
  %v276 = vld [vmem:[%s1 + $0x3f4] sm:$0xf]
  %v277 = vld [vmem:[%s1 + $0x3f8] sm:$0xf]
  %v278 = vld [vmem:[%s1 + $0x3fc] sm:$0xf]
  %v279 = vld [vmem:[%s2] sm:$0x1]
  %v281 = vlaneseq
  %v282 = vshrl.u32 %v281, 7
  %v283 = vsub.s32 0, %v282
  %v284 = vrot.slane %v279, %v283
  %v288 = vcombine.high %v21, %v21
  %v290 = vunpack.c.l.s4 1966171168
  %v291 = vunpack.c.0.s8 %v290
  %v292 = vlaneseq
  %v293 = vshrl.u32 %v292, 7
  %v294 = vsub.s32 %v291, %v293
  %v295 = vrot.slane %v21, %v294
  %v297 = vunpack.c.l.s4 1966171168
  %v298 = vunpack.c.0.s8 %v297
  %v299 = vlaneseq
  %v300 = vshrl.u32 %v299, 7
  %v301 = vsub.s32 %v298, %v300
  %v302 = vrot.slane %v288, %v301
  %v303 = vcombine.high %v295, %v295
  %v304 = vcombine.high %v302, %v302
  %v306 = vunpack.c.l.s4 1966171168
  %v307 = vunpack.c.0.s8 %v306
  %v308 = vlaneseq
  %v309 = vshrl.u32 %v308, 7
  %v310 = vsub.s32 %v307, %v309
  %v311 = vrot.slane %v295, %v310
  %v313 = vunpack.c.l.s4 1966171168
  %v314 = vunpack.c.0.s8 %v313
  %v315 = vlaneseq
  %v316 = vshrl.u32 %v315, 7
  %v317 = vsub.s32 %v314, %v316
  %v318 = vrot.slane %v302, %v317
  %v320 = vunpack.c.l.s4 1966171168
  %v321 = vunpack.c.0.s8 %v320
  %v322 = vlaneseq
  %v323 = vshrl.u32 %v322, 7
  %v324 = vsub.s32 %v321, %v323
  %v325 = vrot.slane %v303, %v324
  %v327 = vunpack.c.l.s4 1966171168
  %v328 = vunpack.c.0.s8 %v327
  %v329 = vlaneseq
  %v330 = vshrl.u32 %v329, 7
  %v331 = vsub.s32 %v328, %v330
  %v332 = vrot.slane %v304, %v331
  %v333 = vcombine.high %v311, %v311
  %v334 = vcombine.high %v318, %v318
  %v335 = vcombine.high %v325, %v325
  %v336 = vcombine.high %v332, %v332
  %v337 = vcombine.high %v22, %v22
  %v339 = vunpack.c.l.s4 1966171168
  %v340 = vunpack.c.0.s8 %v339
  %v341 = vlaneseq
  %v342 = vshrl.u32 %v341, 7
  %v343 = vsub.s32 %v340, %v342
  %v344 = vrot.slane %v22, %v343
  %v346 = vunpack.c.l.s4 1966171168
  %v347 = vunpack.c.0.s8 %v346
  %v348 = vlaneseq
  %v349 = vshrl.u32 %v348, 7
  %v350 = vsub.s32 %v347, %v349
  %v351 = vrot.slane %v337, %v350
  %v352 = vcombine.high %v344, %v344
  %v353 = vcombine.high %v351, %v351
  %v355 = vunpack.c.l.s4 1966171168
  %v356 = vunpack.c.0.s8 %v355
  %v357 = vlaneseq
  %v358 = vshrl.u32 %v357, 7
  %v359 = vsub.s32 %v356, %v358
  %v360 = vrot.slane %v344, %v359
  %v362 = vunpack.c.l.s4 1966171168
  %v363 = vunpack.c.0.s8 %v362
  %v364 = vlaneseq
  %v365 = vshrl.u32 %v364, 7
  %v366 = vsub.s32 %v363, %v365
  %v367 = vrot.slane %v351, %v366
  %v369 = vunpack.c.l.s4 1966171168
  %v370 = vunpack.c.0.s8 %v369
  %v371 = vlaneseq
  %v372 = vshrl.u32 %v371, 7
  %v373 = vsub.s32 %v370, %v372
  %v374 = vrot.slane %v352, %v373
  %v376 = vunpack.c.l.s4 1966171168
  %v377 = vunpack.c.0.s8 %v376
  %v378 = vlaneseq
  %v379 = vshrl.u32 %v378, 7
  %v380 = vsub.s32 %v377, %v379
  %v381 = vrot.slane %v353, %v380
  %v382 = vcombine.high %v360, %v360
  %v383 = vcombine.high %v367, %v367
  %v384 = vcombine.high %v374, %v374
  %v385 = vcombine.high %v381, %v381
  %v658 = vunpack.c.l.b16 %v23
  %v659 = vunpack.c.l.b16 %v24
  %v660 = vunpack.c.l.b16 %v25
  %v661 = vunpack.c.l.b16 %v26
  %v662 = vunpack.c.l.b16 %v27
  %v663 = vunpack.c.l.b16 %v28
  %v664 = vunpack.c.l.b16 %v29
  %v665 = vunpack.c.l.b16 %v30
  %v666 = vunpack.c.l.b16 %v31
  %v667 = vunpack.c.l.b16 %v32
  %v668 = vunpack.c.l.b16 %v33
  %v669 = vunpack.c.l.b16 %v34
  %v670 = vunpack.c.l.b16 %v35
  %v671 = vunpack.c.l.b16 %v36
  %v672 = vunpack.c.l.b16 %v37
  %v673 = vunpack.c.l.b16 %v38
  %v674 = vunpack.c.l.b16 %v39
  %v675 = vunpack.c.l.b16 %v40
  %v676 = vunpack.c.l.b16 %v41
  %v677 = vunpack.c.l.b16 %v42
  %v678 = vunpack.c.l.b16 %v43
  %v679 = vunpack.c.l.b16 %v44
  %v680 = vunpack.c.l.b16 %v45
  %v681 = vunpack.c.l.b16 %v46
  %v682 = vunpack.c.l.b16 %v47
  %v683 = vunpack.c.l.b16 %v48
  %v684 = vunpack.c.l.b16 %v49
  %v685 = vunpack.c.l.b16 %v50
  %v686 = vunpack.c.l.b16 %v51
  %v687 = vunpack.c.l.b16 %v52
  %v688 = vunpack.c.l.b16 %v53
  %v689 = vunpack.c.l.b16 %v54
  %v690 = vunpack.c.l.b16 %v55
  %v691 = vunpack.c.l.b16 %v56
  %v692 = vunpack.c.l.b16 %v57
  %v693 = vunpack.c.l.b16 %v58
  %v694 = vunpack.c.l.b16 %v59
  %v695 = vunpack.c.l.b16 %v60
  %v696 = vunpack.c.l.b16 %v61
  %v697 = vunpack.c.l.b16 %v62
  %v698 = vunpack.c.l.b16 %v63
  %v699 = vunpack.c.l.b16 %v64
  %v700 = vunpack.c.l.b16 %v65
  %v701 = vunpack.c.l.b16 %v66
  %v702 = vunpack.c.l.b16 %v67
  %v703 = vunpack.c.l.b16 %v68
  %v704 = vunpack.c.l.b16 %v69
  %v705 = vunpack.c.l.b16 %v70
  %v706 = vunpack.c.l.b16 %v71
  %v707 = vunpack.c.l.b16 %v72
  %v708 = vunpack.c.l.b16 %v73
  %v709 = vunpack.c.l.b16 %v74
  %v710 = vunpack.c.l.b16 %v75
  %v711 = vunpack.c.l.b16 %v76
  %v712 = vunpack.c.l.b16 %v77
  %v713 = vunpack.c.l.b16 %v78
  %v714 = vunpack.c.l.b16 %v79
  %v715 = vunpack.c.l.b16 %v80
  %v716 = vunpack.c.l.b16 %v81
  %v717 = vunpack.c.l.b16 %v82
  %v718 = vunpack.c.l.b16 %v83
  %v719 = vunpack.c.l.b16 %v84
  %v720 = vunpack.c.l.b16 %v85
  %v721 = vunpack.c.l.b16 %v86
  %v722 = vunpack.c.l.b16 %v87
  %v723 = vunpack.c.l.b16 %v88
  %v724 = vunpack.c.l.b16 %v89
  %v725 = vunpack.c.l.b16 %v90
  %v726 = vunpack.c.l.b16 %v91
  %v727 = vunpack.c.l.b16 %v92
  %v728 = vunpack.c.l.b16 %v93
  %v729 = vunpack.c.l.b16 %v94
  %v730 = vunpack.c.l.b16 %v95
  %v731 = vunpack.c.l.b16 %v96
  %v732 = vunpack.c.l.b16 %v97
  %v733 = vunpack.c.l.b16 %v98
  %v734 = vunpack.c.l.b16 %v99
  %v735 = vunpack.c.l.b16 %v100
  %v736 = vunpack.c.l.b16 %v101
  %v737 = vunpack.c.l.b16 %v102
  %v738 = vunpack.c.l.b16 %v103
  %v739 = vunpack.c.l.b16 %v104
  %v740 = vunpack.c.l.b16 %v105
  %v741 = vunpack.c.l.b16 %v106
  %v742 = vunpack.c.l.b16 %v107
  %v743 = vunpack.c.l.b16 %v108
  %v744 = vunpack.c.l.b16 %v109
  %v745 = vunpack.c.l.b16 %v110
  %v746 = vunpack.c.l.b16 %v111
  %v747 = vunpack.c.l.b16 %v112
  %v748 = vunpack.c.l.b16 %v113
  %v749 = vunpack.c.l.b16 %v114
  %v750 = vunpack.c.l.b16 %v115
  %v751 = vunpack.c.l.b16 %v116
  %v752 = vunpack.c.l.b16 %v117
  %v753 = vunpack.c.l.b16 %v118
  %v754 = vunpack.c.l.b16 %v119
  %v755 = vunpack.c.l.b16 %v120
  %v756 = vunpack.c.l.b16 %v121
  %v757 = vunpack.c.l.b16 %v122
  %v758 = vunpack.c.l.b16 %v123
  %v759 = vunpack.c.l.b16 %v124
  %v760 = vunpack.c.l.b16 %v125
  %v761 = vunpack.c.l.b16 %v126
  %v762 = vunpack.c.l.b16 %v127
  %v763 = vunpack.c.l.b16 %v128
  %v764 = vunpack.c.l.b16 %v129
  %v765 = vunpack.c.l.b16 %v130
  %v766 = vunpack.c.l.b16 %v131
  %v767 = vunpack.c.l.b16 %v132
  %v768 = vunpack.c.l.b16 %v133
  %v769 = vunpack.c.l.b16 %v134
  %v770 = vunpack.c.l.b16 %v135
  %v771 = vunpack.c.l.b16 %v136
  %v772 = vunpack.c.l.b16 %v137
  %v773 = vunpack.c.l.b16 %v138
  %v774 = vunpack.c.l.b16 %v139
  %v775 = vunpack.c.l.b16 %v140
  %v776 = vunpack.c.l.b16 %v141
  %v777 = vunpack.c.l.b16 %v142
  %v778 = vunpack.c.l.b16 %v143
  %v779 = vunpack.c.l.b16 %v144
  %v780 = vunpack.c.l.b16 %v145
  %v781 = vunpack.c.l.b16 %v146
  %v782 = vunpack.c.l.b16 %v147
  %v783 = vunpack.c.l.b16 %v148
  %v784 = vunpack.c.l.b16 %v149
  %v785 = vunpack.c.l.b16 %v150
  %v786 = vunpack.c.l.b16 %v151
  %v787 = vunpack.c.l.b16 %v152
  %v788 = vunpack.c.l.b16 %v153
  %v789 = vunpack.c.l.b16 %v154
  %v790 = vunpack.c.l.b16 %v155
  %v791 = vunpack.c.l.b16 %v156
  %v792 = vunpack.c.l.b16 %v157
  %v793 = vunpack.c.l.b16 %v158
  %v794 = vunpack.c.l.b16 %v159
  %v795 = vunpack.c.l.b16 %v160
  %v796 = vunpack.c.l.b16 %v161
  %v797 = vunpack.c.l.b16 %v162
  %v798 = vunpack.c.l.b16 %v163
  %v799 = vunpack.c.l.b16 %v164
  %v800 = vunpack.c.l.b16 %v165
  %v801 = vunpack.c.l.b16 %v166
  %v802 = vunpack.c.l.b16 %v167
  %v803 = vunpack.c.l.b16 %v168
  %v804 = vunpack.c.l.b16 %v169
  %v805 = vunpack.c.l.b16 %v170
  %v806 = vunpack.c.l.b16 %v171
  %v807 = vunpack.c.l.b16 %v172
  %v808 = vunpack.c.l.b16 %v173
  %v809 = vunpack.c.l.b16 %v174
  %v810 = vunpack.c.l.b16 %v175
  %v811 = vunpack.c.l.b16 %v176
  %v812 = vunpack.c.l.b16 %v177
  %v813 = vunpack.c.l.b16 %v178
  %v814 = vunpack.c.l.b16 %v179
  %v815 = vunpack.c.l.b16 %v180
  %v816 = vunpack.c.l.b16 %v181
  %v817 = vunpack.c.l.b16 %v182
  %v818 = vunpack.c.l.b16 %v183
  %v819 = vunpack.c.l.b16 %v184
  %v820 = vunpack.c.l.b16 %v185
  %v821 = vunpack.c.l.b16 %v186
  %v822 = vunpack.c.l.b16 %v187
  %v823 = vunpack.c.l.b16 %v188
  %v824 = vunpack.c.l.b16 %v189
  %v825 = vunpack.c.l.b16 %v190
  %v826 = vunpack.c.l.b16 %v191
  %v827 = vunpack.c.l.b16 %v192
  %v828 = vunpack.c.l.b16 %v193
  %v829 = vunpack.c.l.b16 %v194
  %v830 = vunpack.c.l.b16 %v195
  %v831 = vunpack.c.l.b16 %v196
  %v832 = vunpack.c.l.b16 %v197
  %v833 = vunpack.c.l.b16 %v198
  %v834 = vunpack.c.l.b16 %v199
  %v835 = vunpack.c.l.b16 %v200
  %v836 = vunpack.c.l.b16 %v201
  %v837 = vunpack.c.l.b16 %v202
  %v838 = vunpack.c.l.b16 %v203
  %v839 = vunpack.c.l.b16 %v204
  %v840 = vunpack.c.l.b16 %v205
  %v841 = vunpack.c.l.b16 %v206
  %v842 = vunpack.c.l.b16 %v207
  %v843 = vunpack.c.l.b16 %v208
  %v844 = vunpack.c.l.b16 %v209
  %v845 = vunpack.c.l.b16 %v210
  %v846 = vunpack.c.l.b16 %v211
  %v847 = vunpack.c.l.b16 %v212
  %v848 = vunpack.c.l.b16 %v213
  %v849 = vunpack.c.l.b16 %v214
  %v850 = vunpack.c.l.b16 %v215
  %v851 = vunpack.c.l.b16 %v216
  %v852 = vunpack.c.l.b16 %v217
  %v853 = vunpack.c.l.b16 %v218
  %v854 = vunpack.c.l.b16 %v219
  %v855 = vunpack.c.l.b16 %v220
  %v856 = vunpack.c.l.b16 %v221
  %v857 = vunpack.c.l.b16 %v222
  %v858 = vunpack.c.l.b16 %v223
  %v859 = vunpack.c.l.b16 %v224
  %v860 = vunpack.c.l.b16 %v225
  %v861 = vunpack.c.l.b16 %v226
  %v862 = vunpack.c.l.b16 %v227
  %v863 = vunpack.c.l.b16 %v228
  %v864 = vunpack.c.l.b16 %v229
  %v865 = vunpack.c.l.b16 %v230
  %v866 = vunpack.c.l.b16 %v231
  %v867 = vunpack.c.l.b16 %v232
  %v868 = vunpack.c.l.b16 %v233
  %v869 = vunpack.c.l.b16 %v234
  %v870 = vunpack.c.l.b16 %v235
  %v871 = vunpack.c.l.b16 %v236
  %v872 = vunpack.c.l.b16 %v237
  %v873 = vunpack.c.l.b16 %v238
  %v874 = vunpack.c.l.b16 %v239
  %v875 = vunpack.c.l.b16 %v240
  %v876 = vunpack.c.l.b16 %v241
  %v877 = vunpack.c.l.b16 %v242
  %v878 = vunpack.c.l.b16 %v243
  %v879 = vunpack.c.l.b16 %v244
  %v880 = vunpack.c.l.b16 %v245
  %v881 = vunpack.c.l.b16 %v246
  %v882 = vunpack.c.l.b16 %v247
  %v883 = vunpack.c.l.b16 %v248
  %v884 = vunpack.c.l.b16 %v249
  %v885 = vunpack.c.l.b16 %v250
  %v886 = vunpack.c.l.b16 %v251
  %v887 = vunpack.c.l.b16 %v252
  %v888 = vunpack.c.l.b16 %v253
  %v889 = vunpack.c.l.b16 %v254
  %v890 = vunpack.c.l.b16 %v255
  %v891 = vunpack.c.l.b16 %v256
  %v892 = vunpack.c.l.b16 %v257
  %v893 = vunpack.c.l.b16 %v258
  %v894 = vunpack.c.l.b16 %v259
  %v895 = vunpack.c.l.b16 %v260
  %v896 = vunpack.c.l.b16 %v261
  %v897 = vunpack.c.l.b16 %v262
  %v898 = vunpack.c.l.b16 %v263
  %v899 = vunpack.c.l.b16 %v264
  %v900 = vunpack.c.l.b16 %v265
  %v901 = vunpack.c.l.b16 %v266
  %v902 = vunpack.c.l.b16 %v267
  %v903 = vunpack.c.l.b16 %v268
  %v904 = vunpack.c.l.b16 %v269
  %v905 = vunpack.c.l.b16 %v270
  %v906 = vunpack.c.l.b16 %v271
  %v907 = vunpack.c.l.b16 %v272
  %v908 = vunpack.c.l.b16 %v273
  %v909 = vunpack.c.l.b16 %v274
  %v910 = vunpack.c.l.b16 %v275
  %v911 = vunpack.c.l.b16 %v276
  %v912 = vunpack.c.l.b16 %v277
  %v913 = vunpack.c.l.b16 %v278
  %v914 = vpack.c.b16 %v659, %v658
  %v915 = vpack.c.b16 %v661, %v660
  %v916 = vpack.c.b16 %v663, %v662
  %v917 = vpack.c.b16 %v665, %v664
  %v918 = vpack.c.b16 %v667, %v666
  %v919 = vpack.c.b16 %v669, %v668
  %v920 = vpack.c.b16 %v671, %v670
  %v921 = vpack.c.b16 %v673, %v672
  %v922 = vpack.c.b16 %v675, %v674
  %v923 = vpack.c.b16 %v677, %v676
  %v924 = vpack.c.b16 %v679, %v678
  %v925 = vpack.c.b16 %v681, %v680
  %v926 = vpack.c.b16 %v683, %v682
  %v927 = vpack.c.b16 %v685, %v684
  %v928 = vpack.c.b16 %v687, %v686
  %v929 = vpack.c.b16 %v689, %v688
  %v930 = vpack.c.b16 %v691, %v690
  %v931 = vpack.c.b16 %v693, %v692
  %v932 = vpack.c.b16 %v695, %v694
  %v933 = vpack.c.b16 %v697, %v696
  %v934 = vpack.c.b16 %v699, %v698
  %v935 = vpack.c.b16 %v701, %v700
  %v936 = vpack.c.b16 %v703, %v702
  %v937 = vpack.c.b16 %v705, %v704
  %v938 = vpack.c.b16 %v707, %v706
  %v939 = vpack.c.b16 %v709, %v708
  %v940 = vpack.c.b16 %v711, %v710
  %v941 = vpack.c.b16 %v713, %v712
  %v942 = vpack.c.b16 %v715, %v714
  %v943 = vpack.c.b16 %v717, %v716
  %v944 = vpack.c.b16 %v719, %v718
  %v945 = vpack.c.b16 %v721, %v720
  %v946 = vpack.c.b16 %v723, %v722
  %v947 = vpack.c.b16 %v725, %v724
  %v948 = vpack.c.b16 %v727, %v726
  %v949 = vpack.c.b16 %v729, %v728
  %v950 = vpack.c.b16 %v731, %v730
  %v951 = vpack.c.b16 %v733, %v732
  %v952 = vpack.c.b16 %v735, %v734
  %v953 = vpack.c.b16 %v737, %v736
  %v954 = vpack.c.b16 %v739, %v738
  %v955 = vpack.c.b16 %v741, %v740
  %v956 = vpack.c.b16 %v743, %v742
  %v957 = vpack.c.b16 %v745, %v744
  %v958 = vpack.c.b16 %v747, %v746
  %v959 = vpack.c.b16 %v749, %v748
  %v960 = vpack.c.b16 %v751, %v750
  %v961 = vpack.c.b16 %v753, %v752
  %v962 = vpack.c.b16 %v755, %v754
  %v963 = vpack.c.b16 %v757, %v756
  %v964 = vpack.c.b16 %v759, %v758
  %v965 = vpack.c.b16 %v761, %v760
  %v966 = vpack.c.b16 %v763, %v762
  %v967 = vpack.c.b16 %v765, %v764
  %v968 = vpack.c.b16 %v767, %v766
  %v969 = vpack.c.b16 %v769, %v768
  %v970 = vpack.c.b16 %v771, %v770
  %v971 = vpack.c.b16 %v773, %v772
  %v972 = vpack.c.b16 %v775, %v774
  %v973 = vpack.c.b16 %v777, %v776
  %v974 = vpack.c.b16 %v779, %v778
  %v975 = vpack.c.b16 %v781, %v780
  %v976 = vpack.c.b16 %v783, %v782
  %v977 = vpack.c.b16 %v785, %v784
  %v978 = vpack.c.b16 %v787, %v786
  %v979 = vpack.c.b16 %v789, %v788
  %v980 = vpack.c.b16 %v791, %v790
  %v981 = vpack.c.b16 %v793, %v792
  %v982 = vpack.c.b16 %v795, %v794
  %v983 = vpack.c.b16 %v797, %v796
  %v984 = vpack.c.b16 %v799, %v798
  %v985 = vpack.c.b16 %v801, %v800
  %v986 = vpack.c.b16 %v803, %v802
  %v987 = vpack.c.b16 %v805, %v804
  %v988 = vpack.c.b16 %v807, %v806
  %v989 = vpack.c.b16 %v809, %v808
  %v990 = vpack.c.b16 %v811, %v810
  %v991 = vpack.c.b16 %v813, %v812
  %v992 = vpack.c.b16 %v815, %v814
  %v993 = vpack.c.b16 %v817, %v816
  %v994 = vpack.c.b16 %v819, %v818
  %v995 = vpack.c.b16 %v821, %v820
  %v996 = vpack.c.b16 %v823, %v822
  %v997 = vpack.c.b16 %v825, %v824
  %v998 = vpack.c.b16 %v827, %v826
  %v999 = vpack.c.b16 %v829, %v828
  %v1000 = vpack.c.b16 %v831, %v830
  %v1001 = vpack.c.b16 %v833, %v832
  %v1002 = vpack.c.b16 %v835, %v834
  %v1003 = vpack.c.b16 %v837, %v836
  %v1004 = vpack.c.b16 %v839, %v838
  %v1005 = vpack.c.b16 %v841, %v840
  %v1006 = vpack.c.b16 %v843, %v842
  %v1007 = vpack.c.b16 %v845, %v844
  %v1008 = vpack.c.b16 %v847, %v846
  %v1009 = vpack.c.b16 %v849, %v848
  %v1010 = vpack.c.b16 %v851, %v850
  %v1011 = vpack.c.b16 %v853, %v852
  %v1012 = vpack.c.b16 %v855, %v854
  %v1013 = vpack.c.b16 %v857, %v856
  %v1014 = vpack.c.b16 %v859, %v858
  %v1015 = vpack.c.b16 %v861, %v860
  %v1016 = vpack.c.b16 %v863, %v862
  %v1017 = vpack.c.b16 %v865, %v864
  %v1018 = vpack.c.b16 %v867, %v866
  %v1019 = vpack.c.b16 %v869, %v868
  %v1020 = vpack.c.b16 %v871, %v870
  %v1021 = vpack.c.b16 %v873, %v872
  %v1022 = vpack.c.b16 %v875, %v874
  %v1023 = vpack.c.b16 %v877, %v876
  %v1024 = vpack.c.b16 %v879, %v878
  %v1025 = vpack.c.b16 %v881, %v880
  %v1026 = vpack.c.b16 %v883, %v882
  %v1027 = vpack.c.b16 %v885, %v884
  %v1028 = vpack.c.b16 %v887, %v886
  %v1029 = vpack.c.b16 %v889, %v888
  %v1030 = vpack.c.b16 %v891, %v890
  %v1031 = vpack.c.b16 %v893, %v892
  %v1032 = vpack.c.b16 %v895, %v894
  %v1033 = vpack.c.b16 %v897, %v896
  %v1034 = vpack.c.b16 %v899, %v898
  %v1035 = vpack.c.b16 %v901, %v900
  %v1036 = vpack.c.b16 %v903, %v902
  %v1037 = vpack.c.b16 %v905, %v904
  %v1038 = vpack.c.b16 %v907, %v906
  %v1039 = vpack.c.b16 %v909, %v908
  %v1040 = vpack.c.b16 %v911, %v910
  %v1041 = vpack.c.b16 %v913, %v912
  %1170 = vmatprep.subr.bf16.mxu0 0
  %1171 = vmatpush1.bf16.msra.mxu0 %v914
  %1172 = vmatprep.subr.bf16.mxu0 0
  %1173 = vmatpush1.bf16.msra.mxu0 %v915
  %1174 = vmatprep.subr.bf16.mxu0 0
  %1175 = vmatpush1.bf16.msra.mxu0 %v916
  %1176 = vmatprep.subr.bf16.mxu0 0
  %1177 = vmatpush1.bf16.msra.mxu0 %v917
  %1178 = vmatprep.subr.bf16.mxu0 0
  %1179 = vmatpush1.bf16.msra.mxu0 %v918
  %1180 = vmatprep.subr.bf16.mxu0 0
  %1181 = vmatpush1.bf16.msra.mxu0 %v919
  %1182 = vmatprep.subr.bf16.mxu0 0
  %1183 = vmatpush1.bf16.msra.mxu0 %v920
  %1184 = vmatprep.subr.bf16.mxu0 0
  %1185 = vmatpush1.bf16.msra.mxu0 %v921
  %1186 = vmatprep.subr.bf16.mxu0 0
  %1187 = vmatpush1.bf16.msra.mxu0 %v922
  %1188 = vmatprep.subr.bf16.mxu0 0
  %1189 = vmatpush1.bf16.msra.mxu0 %v923
  %1190 = vmatprep.subr.bf16.mxu0 0
  %1191 = vmatpush1.bf16.msra.mxu0 %v924
  %1192 = vmatprep.subr.bf16.mxu0 0
  %1193 = vmatpush1.bf16.msra.mxu0 %v925
  %1194 = vmatprep.subr.bf16.mxu0 0
  %1195 = vmatpush1.bf16.msra.mxu0 %v926
  %1196 = vmatprep.subr.bf16.mxu0 0
  %1197 = vmatpush1.bf16.msra.mxu0 %v927
  %1198 = vmatprep.subr.bf16.mxu0 0
  %1199 = vmatpush1.bf16.msra.mxu0 %v928
  %1200 = vmatprep.subr.bf16.mxu0 0
  %1201 = vmatpush1.bf16.msra.mxu0 %v929
  %1202 = vmatprep.mubr.bf16.mxu0 %v325
  %1203 = vmatmul.mubr.bf16.gmra.mrb[0].mxu0 %v311
  %v1204 = vpop.f32.mrb[0].mxu0
  %v1205 = vadd.f32 %v284, %v1204
  %v1206 = vpop.f32.mrb[0].mxu0
  %v1207 = vpop.f32.mrb[0].mxu0
  %v1208 = vpop.f32.mrb[0].mxu0
  %1209 = vdwg.mxu0
  %1210 = vmatprep.subr.bf16.mxu0 0
  %1211 = vmatpush1.bf16.msra.mxu0 %v930
  %1212 = vmatprep.subr.bf16.mxu0 0
  %1213 = vmatpush1.bf16.msra.mxu0 %v931
  %1214 = vmatprep.subr.bf16.mxu0 0
  %1215 = vmatpush1.bf16.msra.mxu0 %v932
  %1216 = vmatprep.subr.bf16.mxu0 0
  %1217 = vmatpush1.bf16.msra.mxu0 %v933
  %1218 = vmatprep.subr.bf16.mxu0 0
  %1219 = vmatpush1.bf16.msra.mxu0 %v934
  %1220 = vmatprep.subr.bf16.mxu0 0
  %1221 = vmatpush1.bf16.msra.mxu0 %v935
  %1222 = vmatprep.subr.bf16.mxu0 0
  %1223 = vmatpush1.bf16.msra.mxu0 %v936
  %1224 = vmatprep.subr.bf16.mxu0 0
  %1225 = vmatpush1.bf16.msra.mxu0 %v937
  %1226 = vmatprep.subr.bf16.mxu0 0
  %1227 = vmatpush1.bf16.msra.mxu0 %v938
  %1228 = vmatprep.subr.bf16.mxu0 0
  %1229 = vmatpush1.bf16.msra.mxu0 %v939
  %1230 = vmatprep.subr.bf16.mxu0 0
  %1231 = vmatpush1.bf16.msra.mxu0 %v940
  %1232 = vmatprep.subr.bf16.mxu0 0
  %1233 = vmatpush1.bf16.msra.mxu0 %v941
  %1234 = vmatprep.subr.bf16.mxu0 0
  %1235 = vmatpush1.bf16.msra.mxu0 %v942
  %1236 = vmatprep.subr.bf16.mxu0 0
  %1237 = vmatpush1.bf16.msra.mxu0 %v943
  %1238 = vmatprep.subr.bf16.mxu0 0
  %1239 = vmatpush1.bf16.msra.mxu0 %v944
  %1240 = vmatprep.subr.bf16.mxu0 0
  %1241 = vmatpush1.bf16.msra.mxu0 %v945
  %1242 = vmatprep.mubr.bf16.mxu0 %v335
  %1243 = vmatmul.mubr.bf16.gmra.mrb[0].mxu0 %v333
  %v1244 = vpop.f32.mrb[0].mxu0
  %v1245 = vadd.f32 %v1205, %v1244
  %v1246 = vpop.f32.mrb[0].mxu0
  %v1247 = vpop.f32.mrb[0].mxu0
  %v1248 = vpop.f32.mrb[0].mxu0
  %1249 = vdwg.mxu0
  %1250 = vmatprep.subr.bf16.mxu0 0
  %1251 = vmatpush1.bf16.msra.mxu0 %v946
  %1252 = vmatprep.subr.bf16.mxu0 0
  %1253 = vmatpush1.bf16.msra.mxu0 %v947
  %1254 = vmatprep.subr.bf16.mxu0 0
  %1255 = vmatpush1.bf16.msra.mxu0 %v948
  %1256 = vmatprep.subr.bf16.mxu0 0
  %1257 = vmatpush1.bf16.msra.mxu0 %v949
  %1258 = vmatprep.subr.bf16.mxu0 0
  %1259 = vmatpush1.bf16.msra.mxu0 %v950
  %1260 = vmatprep.subr.bf16.mxu0 0
  %1261 = vmatpush1.bf16.msra.mxu0 %v951
  %1262 = vmatprep.subr.bf16.mxu0 0
  %1263 = vmatpush1.bf16.msra.mxu0 %v952
  %1264 = vmatprep.subr.bf16.mxu0 0
  %1265 = vmatpush1.bf16.msra.mxu0 %v953
  %1266 = vmatprep.subr.bf16.mxu0 0
  %1267 = vmatpush1.bf16.msra.mxu0 %v954
  %1268 = vmatprep.subr.bf16.mxu0 0
  %1269 = vmatpush1.bf16.msra.mxu0 %v955
  %1270 = vmatprep.subr.bf16.mxu0 0
  %1271 = vmatpush1.bf16.msra.mxu0 %v956
  %1272 = vmatprep.subr.bf16.mxu0 0
  %1273 = vmatpush1.bf16.msra.mxu0 %v957
  %1274 = vmatprep.subr.bf16.mxu0 0
  %1275 = vmatpush1.bf16.msra.mxu0 %v958
  %1276 = vmatprep.subr.bf16.mxu0 0
  %1277 = vmatpush1.bf16.msra.mxu0 %v959
  %1278 = vmatprep.subr.bf16.mxu0 0
  %1279 = vmatpush1.bf16.msra.mxu0 %v960
  %1280 = vmatprep.subr.bf16.mxu0 0
  %1281 = vmatpush1.bf16.msra.mxu0 %v961
  %1282 = vmatprep.mubr.bf16.mxu0 %v332
  %1283 = vmatmul.mubr.bf16.gmra.mrb[0].mxu0 %v318
  %v1284 = vpop.f32.mrb[0].mxu0
  %v1285 = vadd.f32 %v1245, %v1284
  %v1286 = vpop.f32.mrb[0].mxu0
  %v1287 = vpop.f32.mrb[0].mxu0
  %v1288 = vpop.f32.mrb[0].mxu0
  %1289 = vdwg.mxu0
  %1290 = vmatprep.subr.bf16.mxu0 0
  %1291 = vmatpush1.bf16.msra.mxu0 %v962
  %1292 = vmatprep.subr.bf16.mxu0 0
  %1293 = vmatpush1.bf16.msra.mxu0 %v963
  %1294 = vmatprep.subr.bf16.mxu0 0
  %1295 = vmatpush1.bf16.msra.mxu0 %v964
  %1296 = vmatprep.subr.bf16.mxu0 0
  %1297 = vmatpush1.bf16.msra.mxu0 %v965
  %1298 = vmatprep.subr.bf16.mxu0 0
  %1299 = vmatpush1.bf16.msra.mxu0 %v966
  %1300 = vmatprep.subr.bf16.mxu0 0
  %1301 = vmatpush1.bf16.msra.mxu0 %v967
  %1302 = vmatprep.subr.bf16.mxu0 0
  %1303 = vmatpush1.bf16.msra.mxu0 %v968
  %1304 = vmatprep.subr.bf16.mxu0 0
  %1305 = vmatpush1.bf16.msra.mxu0 %v969
  %1306 = vmatprep.subr.bf16.mxu0 0
  %1307 = vmatpush1.bf16.msra.mxu0 %v970
  %1308 = vmatprep.subr.bf16.mxu0 0
  %1309 = vmatpush1.bf16.msra.mxu0 %v971
  %1310 = vmatprep.subr.bf16.mxu0 0
  %1311 = vmatpush1.bf16.msra.mxu0 %v972
  %1312 = vmatprep.subr.bf16.mxu0 0
  %1313 = vmatpush1.bf16.msra.mxu0 %v973
  %1314 = vmatprep.subr.bf16.mxu0 0
  %1315 = vmatpush1.bf16.msra.mxu0 %v974
  %1316 = vmatprep.subr.bf16.mxu0 0
  %1317 = vmatpush1.bf16.msra.mxu0 %v975
  %1318 = vmatprep.subr.bf16.mxu0 0
  %1319 = vmatpush1.bf16.msra.mxu0 %v976
  %1320 = vmatprep.subr.bf16.mxu0 0
  %1321 = vmatpush1.bf16.msra.mxu0 %v977
  %1322 = vmatprep.mubr.bf16.mxu0 %v336
  %1323 = vmatmul.mubr.bf16.gmra.mrb[0].mxu0 %v334
  %v1324 = vpop.f32.mrb[0].mxu0
  %v1325 = vadd.f32 %v1285, %v1324
  %v1326 = vpop.f32.mrb[0].mxu0
  %v1327 = vpop.f32.mrb[0].mxu0
  %v1328 = vpop.f32.mrb[0].mxu0
  %1329 = vdwg.mxu0
  %1330 = vmatprep.subr.bf16.mxu0 0
  %1331 = vmatpush1.bf16.msra.mxu0 %v978
  %1332 = vmatprep.subr.bf16.mxu0 0
  %1333 = vmatpush1.bf16.msra.mxu0 %v979
  %1334 = vmatprep.subr.bf16.mxu0 0
  %1335 = vmatpush1.bf16.msra.mxu0 %v980
  %1336 = vmatprep.subr.bf16.mxu0 0
  %1337 = vmatpush1.bf16.msra.mxu0 %v981
  %1338 = vmatprep.subr.bf16.mxu0 0
  %1339 = vmatpush1.bf16.msra.mxu0 %v982
  %1340 = vmatprep.subr.bf16.mxu0 0
  %1341 = vmatpush1.bf16.msra.mxu0 %v983
  %1342 = vmatprep.subr.bf16.mxu0 0
  %1343 = vmatpush1.bf16.msra.mxu0 %v984
  %1344 = vmatprep.subr.bf16.mxu0 0
  %1345 = vmatpush1.bf16.msra.mxu0 %v985
  %1346 = vmatprep.subr.bf16.mxu0 0
  %1347 = vmatpush1.bf16.msra.mxu0 %v986
  %1348 = vmatprep.subr.bf16.mxu0 0
  %1349 = vmatpush1.bf16.msra.mxu0 %v987
  %1350 = vmatprep.subr.bf16.mxu0 0
  %1351 = vmatpush1.bf16.msra.mxu0 %v988
  %1352 = vmatprep.subr.bf16.mxu0 0
  %1353 = vmatpush1.bf16.msra.mxu0 %v989
  %1354 = vmatprep.subr.bf16.mxu0 0
  %1355 = vmatpush1.bf16.msra.mxu0 %v990
  %1356 = vmatprep.subr.bf16.mxu0 0
  %1357 = vmatpush1.bf16.msra.mxu0 %v991
  %1358 = vmatprep.subr.bf16.mxu0 0
  %1359 = vmatpush1.bf16.msra.mxu0 %v992
  %1360 = vmatprep.subr.bf16.mxu0 0
  %1361 = vmatpush1.bf16.msra.mxu0 %v993
  %1362 = vmatprep.mubr.bf16.mxu0 %v374
  %1363 = vmatmul.mubr.bf16.gmra.mrb[0].mxu0 %v360
  %v1364 = vpop.f32.mrb[0].mxu0
  %v1365 = vadd.f32 %v1325, %v1364
  %v1366 = vpop.f32.mrb[0].mxu0
  %v1367 = vpop.f32.mrb[0].mxu0
  %v1368 = vpop.f32.mrb[0].mxu0
  %1369 = vdwg.mxu0
  %1370 = vmatprep.subr.bf16.mxu0 0
  %1371 = vmatpush1.bf16.msra.mxu0 %v994
  %1372 = vmatprep.subr.bf16.mxu0 0
  %1373 = vmatpush1.bf16.msra.mxu0 %v995
  %1374 = vmatprep.subr.bf16.mxu0 0
  %1375 = vmatpush1.bf16.msra.mxu0 %v996
  %1376 = vmatprep.subr.bf16.mxu0 0
  %1377 = vmatpush1.bf16.msra.mxu0 %v997
  %1378 = vmatprep.subr.bf16.mxu0 0
  %1379 = vmatpush1.bf16.msra.mxu0 %v998
  %1380 = vmatprep.subr.bf16.mxu0 0
  %1381 = vmatpush1.bf16.msra.mxu0 %v999
  %1382 = vmatprep.subr.bf16.mxu0 0
  %1383 = vmatpush1.bf16.msra.mxu0 %v1000
  %1384 = vmatprep.subr.bf16.mxu0 0
  %1385 = vmatpush1.bf16.msra.mxu0 %v1001
  %1386 = vmatprep.subr.bf16.mxu0 0
  %1387 = vmatpush1.bf16.msra.mxu0 %v1002
  %1388 = vmatprep.subr.bf16.mxu0 0
  %1389 = vmatpush1.bf16.msra.mxu0 %v1003
  %1390 = vmatprep.subr.bf16.mxu0 0
  %1391 = vmatpush1.bf16.msra.mxu0 %v1004
  %1392 = vmatprep.subr.bf16.mxu0 0
  %1393 = vmatpush1.bf16.msra.mxu0 %v1005
  %1394 = vmatprep.subr.bf16.mxu0 0
  %1395 = vmatpush1.bf16.msra.mxu0 %v1006
  %1396 = vmatprep.subr.bf16.mxu0 0
  %1397 = vmatpush1.bf16.msra.mxu0 %v1007
  %1398 = vmatprep.subr.bf16.mxu0 0
  %1399 = vmatpush1.bf16.msra.mxu0 %v1008
  %1400 = vmatprep.subr.bf16.mxu0 0
  %1401 = vmatpush1.bf16.msra.mxu0 %v1009
  %1402 = vmatprep.mubr.bf16.mxu0 %v384
  %1403 = vmatmul.mubr.bf16.gmra.mrb[0].mxu0 %v382
  %v1404 = vpop.f32.mrb[0].mxu0
  %v1405 = vadd.f32 %v1365, %v1404
  %v1406 = vpop.f32.mrb[0].mxu0
  %v1407 = vpop.f32.mrb[0].mxu0
  %v1408 = vpop.f32.mrb[0].mxu0
  %1409 = vdwg.mxu0
  %1410 = vmatprep.subr.bf16.mxu0 0
  %1411 = vmatpush1.bf16.msra.mxu0 %v1010
  %1412 = vmatprep.subr.bf16.mxu0 0
  %1413 = vmatpush1.bf16.msra.mxu0 %v1011
  %1414 = vmatprep.subr.bf16.mxu0 0
  %1415 = vmatpush1.bf16.msra.mxu0 %v1012
  %1416 = vmatprep.subr.bf16.mxu0 0
  %1417 = vmatpush1.bf16.msra.mxu0 %v1013
  %1418 = vmatprep.subr.bf16.mxu0 0
  %1419 = vmatpush1.bf16.msra.mxu0 %v1014
  %1420 = vmatprep.subr.bf16.mxu0 0
  %1421 = vmatpush1.bf16.msra.mxu0 %v1015
  %1422 = vmatprep.subr.bf16.mxu0 0
  %1423 = vmatpush1.bf16.msra.mxu0 %v1016
  %1424 = vmatprep.subr.bf16.mxu0 0
  %1425 = vmatpush1.bf16.msra.mxu0 %v1017
  %1426 = vmatprep.subr.bf16.mxu0 0
  %1427 = vmatpush1.bf16.msra.mxu0 %v1018
  %1428 = vmatprep.subr.bf16.mxu0 0
  %1429 = vmatpush1.bf16.msra.mxu0 %v1019
  %1430 = vmatprep.subr.bf16.mxu0 0
  %1431 = vmatpush1.bf16.msra.mxu0 %v1020
  %1432 = vmatprep.subr.bf16.mxu0 0
  %1433 = vmatpush1.bf16.msra.mxu0 %v1021
  %1434 = vmatprep.subr.bf16.mxu0 0
  %1435 = vmatpush1.bf16.msra.mxu0 %v1022
  %1436 = vmatprep.subr.bf16.mxu0 0
  %1437 = vmatpush1.bf16.msra.mxu0 %v1023
  %1438 = vmatprep.subr.bf16.mxu0 0
  %1439 = vmatpush1.bf16.msra.mxu0 %v1024
  %1440 = vmatprep.subr.bf16.mxu0 0
  %1441 = vmatpush1.bf16.msra.mxu0 %v1025
  %1442 = vmatprep.mubr.bf16.mxu0 %v381
  %1443 = vmatmul.mubr.bf16.gmra.mrb[0].mxu0 %v367
  %v1444 = vpop.f32.mrb[0].mxu0
  %v1445 = vadd.f32 %v1405, %v1444
  %v1446 = vpop.f32.mrb[0].mxu0
  %v1447 = vpop.f32.mrb[0].mxu0
  %v1448 = vpop.f32.mrb[0].mxu0
  %1449 = vdwg.mxu0
  %1450 = vmatprep.subr.bf16.mxu0 0
  %1451 = vmatpush1.bf16.msra.mxu0 %v1026
  %1452 = vmatprep.subr.bf16.mxu0 0
  %1453 = vmatpush1.bf16.msra.mxu0 %v1027
  %1454 = vmatprep.subr.bf16.mxu0 0
  %1455 = vmatpush1.bf16.msra.mxu0 %v1028
  %1456 = vmatprep.subr.bf16.mxu0 0
  %1457 = vmatpush1.bf16.msra.mxu0 %v1029
  %1458 = vmatprep.subr.bf16.mxu0 0
  %1459 = vmatpush1.bf16.msra.mxu0 %v1030
  %1460 = vmatprep.subr.bf16.mxu0 0
  %1461 = vmatpush1.bf16.msra.mxu0 %v1031
  %1462 = vmatprep.subr.bf16.mxu0 0
  %1463 = vmatpush1.bf16.msra.mxu0 %v1032
  %1464 = vmatprep.subr.bf16.mxu0 0
  %1465 = vmatpush1.bf16.msra.mxu0 %v1033
  %1466 = vmatprep.subr.bf16.mxu0 0
  %1467 = vmatpush1.bf16.msra.mxu0 %v1034
  %1468 = vmatprep.subr.bf16.mxu0 0
  %1469 = vmatpush1.bf16.msra.mxu0 %v1035
  %1470 = vmatprep.subr.bf16.mxu0 0
  %1471 = vmatpush1.bf16.msra.mxu0 %v1036
  %1472 = vmatprep.subr.bf16.mxu0 0
  %1473 = vmatpush1.bf16.msra.mxu0 %v1037
  %1474 = vmatprep.subr.bf16.mxu0 0
  %1475 = vmatpush1.bf16.msra.mxu0 %v1038
  %1476 = vmatprep.subr.bf16.mxu0 0
  %1477 = vmatpush1.bf16.msra.mxu0 %v1039
  %1478 = vmatprep.subr.bf16.mxu0 0
  %1479 = vmatpush1.bf16.msra.mxu0 %v1040
  %1480 = vmatprep.subr.bf16.mxu0 0
  %1481 = vmatpush1.bf16.msra.mxu0 %v1041
  %1482 = vmatprep.mubr.bf16.mxu0 %v385
  %1483 = vmatmul.mubr.bf16.gmra.mrb[0].mxu0 %v383
  %v1484 = vpop.f32.mrb[0].mxu0
  %v1485 = vadd.f32 %v1445, %v1484
  %v1486 = vpop.f32.mrb[0].mxu0
  %v1487 = vpop.f32.mrb[0].mxu0
  %v1488 = vpop.f32.mrb[0].mxu0
  %1489 = vdwg.mxu0
  %v1490 = vpack.c.bf16 %v1485, %v1485
  %v1491 = vld [vmem:[%s3] sm:$0xff]
  %v1492 = vld [vmem:[%s3 + $0x8] sm:$0xff]
  %v1493 = vld [vmem:[%s4] sm:$0xff]
  %v1494 = vld [vmem:[%s4 + $0x8] sm:$0xff]
  %v1497 = vlaneseq
  %v1498 = vshrl.u32 %v1497, 7
  %v1499 = vsub.s32 0, %v1498
  %v1500 = vrot.slane %v1493, %v1499
  %v1501 = vlaneseq
  %v1502 = vshrl.u32 %v1501, 7
  %v1503 = vsub.s32 1, %v1502
  %v1504 = vrot.slane %v1493, %v1503
  %v1505 = vlaneseq
  %v1506 = vshrl.u32 %v1505, 7
  %v1507 = vsub.s32 2, %v1506
  %v1508 = vrot.slane %v1493, %v1507
  %v1509 = vlaneseq
  %v1510 = vshrl.u32 %v1509, 7
  %v1511 = vsub.s32 3, %v1510
  %v1512 = vrot.slane %v1493, %v1511
  %v1513 = vlaneseq
  %v1514 = vshrl.u32 %v1513, 7
  %v1515 = vsub.s32 4, %v1514
  %v1516 = vrot.slane %v1493, %v1515
  %v1517 = vlaneseq
  %v1518 = vshrl.u32 %v1517, 7
  %v1519 = vsub.s32 5, %v1518
  %v1520 = vrot.slane %v1493, %v1519
  %v1521 = vlaneseq
  %v1522 = vshrl.u32 %v1521, 7
  %v1523 = vsub.s32 6, %v1522
  %v1524 = vrot.slane %v1493, %v1523
  %v1525 = vlaneseq
  %v1526 = vshrl.u32 %v1525, 7
  %v1527 = vsub.s32 7, %v1526
  %v1528 = vrot.slane %v1493, %v1527
  %v1529 = vlaneseq
  %v1530 = vshrl.u32 %v1529, 7
  %v1531 = vsub.s32 0, %v1530
  %v1532 = vrot.slane %v1494, %v1531
  %v1533 = vlaneseq
  %v1534 = vshrl.u32 %v1533, 7
  %v1535 = vsub.s32 1, %v1534
  %v1536 = vrot.slane %v1494, %v1535
  %v1537 = vlaneseq
  %v1538 = vshrl.u32 %v1537, 7
  %v1539 = vsub.s32 2, %v1538
  %v1540 = vrot.slane %v1494, %v1539
  %v1541 = vlaneseq
  %v1542 = vshrl.u32 %v1541, 7
  %v1543 = vsub.s32 3, %v1542
  %v1544 = vrot.slane %v1494, %v1543
  %v1545 = vlaneseq
  %v1546 = vshrl.u32 %v1545, 7
  %v1547 = vsub.s32 4, %v1546
  %v1548 = vrot.slane %v1494, %v1547
  %v1549 = vlaneseq
  %v1550 = vshrl.u32 %v1549, 7
  %v1551 = vsub.s32 5, %v1550
  %v1552 = vrot.slane %v1494, %v1551
  %v1553 = vlaneseq
  %v1554 = vshrl.u32 %v1553, 7
  %v1555 = vsub.s32 6, %v1554
  %v1556 = vrot.slane %v1494, %v1555
  %v1557 = vlaneseq
  %v1558 = vshrl.u32 %v1557, 7
  %v1559 = vsub.s32 7, %v1558
  %v1560 = vrot.slane %v1494, %v1559
  %v1579 = vcombine.high %v1491, %v1491
  %v1581 = vunpack.c.l.s4 1966171168
  %v1582 = vunpack.c.0.s8 %v1581
  %v1583 = vlaneseq
  %v1584 = vshrl.u32 %v1583, 7
  %v1585 = vsub.s32 %v1582, %v1584
  %v1586 = vrot.slane %v1491, %v1585
  %v1588 = vunpack.c.l.s4 1966171168
  %v1589 = vunpack.c.0.s8 %v1588
  %v1590 = vlaneseq
  %v1591 = vshrl.u32 %v1590, 7
  %v1592 = vsub.s32 %v1589, %v1591
  %v1593 = vrot.slane %v1579, %v1592
  %v1594 = vcombine.high %v1586, %v1586
  %v1595 = vcombine.high %v1593, %v1593
  %v1597 = vunpack.c.l.s4 1966171168
  %v1598 = vunpack.c.0.s8 %v1597
  %v1599 = vlaneseq
  %v1600 = vshrl.u32 %v1599, 7
  %v1601 = vsub.s32 %v1598, %v1600
  %v1602 = vrot.slane %v1586, %v1601
  %v1604 = vunpack.c.l.s4 1966171168
  %v1605 = vunpack.c.0.s8 %v1604
  %v1606 = vlaneseq
  %v1607 = vshrl.u32 %v1606, 7
  %v1608 = vsub.s32 %v1605, %v1607
  %v1609 = vrot.slane %v1593, %v1608
  %v1611 = vunpack.c.l.s4 1966171168
  %v1612 = vunpack.c.0.s8 %v1611
  %v1613 = vlaneseq
  %v1614 = vshrl.u32 %v1613, 7
  %v1615 = vsub.s32 %v1612, %v1614
  %v1616 = vrot.slane %v1594, %v1615
  %v1618 = vunpack.c.l.s4 1966171168
  %v1619 = vunpack.c.0.s8 %v1618
  %v1620 = vlaneseq
  %v1621 = vshrl.u32 %v1620, 7
  %v1622 = vsub.s32 %v1619, %v1621
  %v1623 = vrot.slane %v1595, %v1622
  %v1624 = vcombine.high %v1602, %v1602
  %v1625 = vcombine.high %v1609, %v1609
  %v1626 = vcombine.high %v1616, %v1616
  %v1627 = vcombine.high %v1623, %v1623
  %v1628 = vcombine.high %v1492, %v1492
  %v1630 = vunpack.c.l.s4 1966171168
  %v1631 = vunpack.c.0.s8 %v1630
  %v1632 = vlaneseq
  %v1633 = vshrl.u32 %v1632, 7
  %v1634 = vsub.s32 %v1631, %v1633
  %v1635 = vrot.slane %v1492, %v1634
  %v1637 = vunpack.c.l.s4 1966171168
  %v1638 = vunpack.c.0.s8 %v1637
  %v1639 = vlaneseq
  %v1640 = vshrl.u32 %v1639, 7
  %v1641 = vsub.s32 %v1638, %v1640
  %v1642 = vrot.slane %v1628, %v1641
  %v1643 = vcombine.high %v1635, %v1635
  %v1644 = vcombine.high %v1642, %v1642
  %v1646 = vunpack.c.l.s4 1966171168
  %v1647 = vunpack.c.0.s8 %v1646
  %v1648 = vlaneseq
  %v1649 = vshrl.u32 %v1648, 7
  %v1650 = vsub.s32 %v1647, %v1649
  %v1651 = vrot.slane %v1635, %v1650
  %v1653 = vunpack.c.l.s4 1966171168
  %v1654 = vunpack.c.0.s8 %v1653
  %v1655 = vlaneseq
  %v1656 = vshrl.u32 %v1655, 7
  %v1657 = vsub.s32 %v1654, %v1656
  %v1658 = vrot.slane %v1642, %v1657
  %v1660 = vunpack.c.l.s4 1966171168
  %v1661 = vunpack.c.0.s8 %v1660
  %v1662 = vlaneseq
  %v1663 = vshrl.u32 %v1662, 7
  %v1664 = vsub.s32 %v1661, %v1663
  %v1665 = vrot.slane %v1643, %v1664
  %v1667 = vunpack.c.l.s4 1966171168
  %v1668 = vunpack.c.0.s8 %v1667
  %v1669 = vlaneseq
  %v1670 = vshrl.u32 %v1669, 7
  %v1671 = vsub.s32 %v1668, %v1670
  %v1672 = vrot.slane %v1644, %v1671
  %v1673 = vcombine.high %v1651, %v1651
  %v1674 = vcombine.high %v1658, %v1658
  %v1675 = vcombine.high %v1665, %v1665
  %v1676 = vcombine.high %v1672, %v1672
  %vm1677 = vcmask 15360
  %v1679 = vsel %vm1677, %v1490, 0
  %vm1681 = vcmask 1040384
  %v1683 = vsel %vm1681, %v1602, 0
  %v1686 = vsel %vm1681, %v1616, 0
  %v1689 = vsel %vm1681, %v1624, 0
  %v1692 = vsel %vm1681, %v1626, 0
  %v1695 = vsel %vm1681, %v1609, 0
  %v1698 = vsel %vm1681, %v1623, 0
  %v1701 = vsel %vm1681, %v1625, 0
  %v1704 = vsel %vm1681, %v1627, 0
  %v1707 = vsel %vm1681, %v1651, 0
  %v1710 = vsel %vm1681, %v1665, 0
  %v1713 = vsel %vm1681, %v1673, 0
  %v1716 = vsel %vm1681, %v1675, 0
  %v1719 = vsel %vm1681, %v1658, 0
  %v1722 = vsel %vm1681, %v1672, 0
  %v1725 = vsel %vm1681, %v1674, 0
  %v1728 = vsel %vm1681, %v1676, 0
  %1730 = vmatprep.subr.bf16.mxu0 %v1686
  %1731 = vmatpush1.bf16.msra.mxu0 %v1683
  %1732 = vmatprep.subr.bf16.mxu0 0
  %1733 = vmatpush1.bf16.msra.mxu0 0
  %1734 = vmatprep.subr.bf16.mxu0 0
  %1735 = vmatpush1.bf16.msra.mxu0 0
  %1736 = vmatprep.subr.bf16.mxu0 0
  %1737 = vmatpush1.bf16.msra.mxu0 0
  %1738 = vmatprep.subr.bf16.mxu0 0
  %1739 = vmatpush1.bf16.msra.mxu0 0
  %1740 = vmatprep.subr.bf16.mxu0 0
  %1741 = vmatpush1.bf16.msra.mxu0 0
  %1742 = vmatprep.subr.bf16.mxu0 0
  %1743 = vmatpush1.bf16.msra.mxu0 0
  %1744 = vmatprep.subr.bf16.mxu0 0
  %1745 = vmatpush1.bf16.msra.mxu0 0
  %1746 = vmatprep.subr.bf16.mxu0 0
  %1747 = vmatpush1.bf16.msra.mxu0 0
  %1748 = vmatprep.subr.bf16.mxu0 0
  %1749 = vmatpush1.bf16.msra.mxu0 0
  %1750 = vmatprep.subr.bf16.mxu0 0
  %1751 = vmatpush1.bf16.msra.mxu0 0
  %1752 = vmatprep.subr.bf16.mxu0 0
  %1753 = vmatpush1.bf16.msra.mxu0 0
  %1754 = vmatprep.subr.bf16.mxu0 0
  %1755 = vmatpush1.bf16.msra.mxu0 0
  %1756 = vmatprep.subr.bf16.mxu0 0
  %1757 = vmatpush1.bf16.msra.mxu0 0
  %1758 = vmatprep.subr.bf16.mxu0 0
  %1759 = vmatpush1.bf16.msra.mxu0 0
  %1760 = vmatprep.subr.bf16.mxu0 0
  %1761 = vmatpush1.bf16.msra.mxu0 0
  %1762 = vmatprep.mubr.bf16.mxu0 0
  %1763 = vmatmul.mubr.bf16.gmra.mrb[0].mxu0 %v1679
  %v1764 = vpop.f32.mrb[0].mxu0
  %v1765 = vadd.f32 %v1500, %v1764
  %v1766 = vpop.f32.mrb[0].mxu0
  %v1767 = vadd.f32 %v1504, %v1766
  %v1768 = vpop.f32.mrb[0].mxu0
  %v1769 = vpop.f32.mrb[0].mxu0
  %1770 = vdwg.mxu0
  %1771 = vmatprep.subr.bf16.mxu0 %v1692
  %1772 = vmatpush1.bf16.msra.mxu0 %v1689
  %1773 = vmatprep.subr.bf16.mxu0 0
  %1774 = vmatpush1.bf16.msra.mxu0 0
  %1775 = vmatprep.subr.bf16.mxu0 0
  %1776 = vmatpush1.bf16.msra.mxu0 0
  %1777 = vmatprep.subr.bf16.mxu0 0
  %1778 = vmatpush1.bf16.msra.mxu0 0
  %1779 = vmatprep.subr.bf16.mxu0 0
  %1780 = vmatpush1.bf16.msra.mxu0 0
  %1781 = vmatprep.subr.bf16.mxu0 0
  %1782 = vmatpush1.bf16.msra.mxu0 0
  %1783 = vmatprep.subr.bf16.mxu0 0
  %1784 = vmatpush1.bf16.msra.mxu0 0
  %1785 = vmatprep.subr.bf16.mxu0 0
  %1786 = vmatpush1.bf16.msra.mxu0 0
  %1787 = vmatprep.subr.bf16.mxu0 0
  %1788 = vmatpush1.bf16.msra.mxu0 0
  %1789 = vmatprep.subr.bf16.mxu0 0
  %1790 = vmatpush1.bf16.msra.mxu0 0
  %1791 = vmatprep.subr.bf16.mxu0 0
  %1792 = vmatpush1.bf16.msra.mxu0 0
  %1793 = vmatprep.subr.bf16.mxu0 0
  %1794 = vmatpush1.bf16.msra.mxu0 0
  %1795 = vmatprep.subr.bf16.mxu0 0
  %1796 = vmatpush1.bf16.msra.mxu0 0
  %1797 = vmatprep.subr.bf16.mxu0 0
  %1798 = vmatpush1.bf16.msra.mxu0 0
  %1799 = vmatprep.subr.bf16.mxu0 0
  %1800 = vmatpush1.bf16.msra.mxu0 0
  %1801 = vmatprep.subr.bf16.mxu0 0
  %1802 = vmatpush1.bf16.msra.mxu0 0
  %1803 = vmatprep.mubr.bf16.mxu0 0
  %1804 = vmatmul.mubr.bf16.gmra.mrb[0].mxu0 %v1679
  %v1805 = vpop.f32.mrb[0].mxu0
  %v1806 = vadd.f32 %v1508, %v1805
  %v1807 = vpop.f32.mrb[0].mxu0
  %v1808 = vadd.f32 %v1512, %v1807
  %v1809 = vpop.f32.mrb[0].mxu0
  %v1810 = vpop.f32.mrb[0].mxu0
  %1811 = vdwg.mxu0
  %1812 = vmatprep.subr.bf16.mxu0 %v1698
  %1813 = vmatpush1.bf16.msra.mxu0 %v1695
  %1814 = vmatprep.subr.bf16.mxu0 0
  %1815 = vmatpush1.bf16.msra.mxu0 0
  %1816 = vmatprep.subr.bf16.mxu0 0
  %1817 = vmatpush1.bf16.msra.mxu0 0
  %1818 = vmatprep.subr.bf16.mxu0 0
  %1819 = vmatpush1.bf16.msra.mxu0 0
  %1820 = vmatprep.subr.bf16.mxu0 0
  %1821 = vmatpush1.bf16.msra.mxu0 0
  %1822 = vmatprep.subr.bf16.mxu0 0
  %1823 = vmatpush1.bf16.msra.mxu0 0
  %1824 = vmatprep.subr.bf16.mxu0 0
  %1825 = vmatpush1.bf16.msra.mxu0 0
  %1826 = vmatprep.subr.bf16.mxu0 0
  %1827 = vmatpush1.bf16.msra.mxu0 0
  %1828 = vmatprep.subr.bf16.mxu0 0
  %1829 = vmatpush1.bf16.msra.mxu0 0
  %1830 = vmatprep.subr.bf16.mxu0 0
  %1831 = vmatpush1.bf16.msra.mxu0 0
  %1832 = vmatprep.subr.bf16.mxu0 0
  %1833 = vmatpush1.bf16.msra.mxu0 0
  %1834 = vmatprep.subr.bf16.mxu0 0
  %1835 = vmatpush1.bf16.msra.mxu0 0
  %1836 = vmatprep.subr.bf16.mxu0 0
  %1837 = vmatpush1.bf16.msra.mxu0 0
  %1838 = vmatprep.subr.bf16.mxu0 0
  %1839 = vmatpush1.bf16.msra.mxu0 0
  %1840 = vmatprep.subr.bf16.mxu0 0
  %1841 = vmatpush1.bf16.msra.mxu0 0
  %1842 = vmatprep.subr.bf16.mxu0 0
  %1843 = vmatpush1.bf16.msra.mxu0 0
  %1844 = vmatprep.mubr.bf16.mxu0 0
  %1845 = vmatmul.mubr.bf16.gmra.mrb[0].mxu0 %v1679
  %v1846 = vpop.f32.mrb[0].mxu0
  %v1847 = vadd.f32 %v1516, %v1846
  %v1848 = vpop.f32.mrb[0].mxu0
  %v1849 = vadd.f32 %v1520, %v1848
  %v1850 = vpop.f32.mrb[0].mxu0
  %v1851 = vpop.f32.mrb[0].mxu0
  %1852 = vdwg.mxu0
  %1853 = vmatprep.subr.bf16.mxu0 %v1704
  %1854 = vmatpush1.bf16.msra.mxu0 %v1701
  %1855 = vmatprep.subr.bf16.mxu0 0
  %1856 = vmatpush1.bf16.msra.mxu0 0
  %1857 = vmatprep.subr.bf16.mxu0 0
  %1858 = vmatpush1.bf16.msra.mxu0 0
  %1859 = vmatprep.subr.bf16.mxu0 0
  %1860 = vmatpush1.bf16.msra.mxu0 0
  %1861 = vmatprep.subr.bf16.mxu0 0
  %1862 = vmatpush1.bf16.msra.mxu0 0
  %1863 = vmatprep.subr.bf16.mxu0 0
  %1864 = vmatpush1.bf16.msra.mxu0 0
  %1865 = vmatprep.subr.bf16.mxu0 0
  %1866 = vmatpush1.bf16.msra.mxu0 0
  %1867 = vmatprep.subr.bf16.mxu0 0
  %1868 = vmatpush1.bf16.msra.mxu0 0
  %1869 = vmatprep.subr.bf16.mxu0 0
  %1870 = vmatpush1.bf16.msra.mxu0 0
  %1871 = vmatprep.subr.bf16.mxu0 0
  %1872 = vmatpush1.bf16.msra.mxu0 0
  %1873 = vmatprep.subr.bf16.mxu0 0
  %1874 = vmatpush1.bf16.msra.mxu0 0
  %1875 = vmatprep.subr.bf16.mxu0 0
  %1876 = vmatpush1.bf16.msra.mxu0 0
  %1877 = vmatprep.subr.bf16.mxu0 0
  %1878 = vmatpush1.bf16.msra.mxu0 0
  %1879 = vmatprep.subr.bf16.mxu0 0
  %1880 = vmatpush1.bf16.msra.mxu0 0
  %1881 = vmatprep.subr.bf16.mxu0 0
  %1882 = vmatpush1.bf16.msra.mxu0 0
  %1883 = vmatprep.subr.bf16.mxu0 0
  %1884 = vmatpush1.bf16.msra.mxu0 0
  %1885 = vmatprep.mubr.bf16.mxu0 0
  %1886 = vmatmul.mubr.bf16.gmra.mrb[0].mxu0 %v1679
  %v1887 = vpop.f32.mrb[0].mxu0
  %v1888 = vadd.f32 %v1524, %v1887
  %v1889 = vpop.f32.mrb[0].mxu0
  %v1890 = vadd.f32 %v1528, %v1889
  %v1891 = vpop.f32.mrb[0].mxu0
  %v1892 = vpop.f32.mrb[0].mxu0
  %1893 = vdwg.mxu0
  %1894 = vmatprep.subr.bf16.mxu0 %v1710
  %1895 = vmatpush1.bf16.msra.mxu0 %v1707
  %1896 = vmatprep.subr.bf16.mxu0 0
  %1897 = vmatpush1.bf16.msra.mxu0 0
  %1898 = vmatprep.subr.bf16.mxu0 0
  %1899 = vmatpush1.bf16.msra.mxu0 0
  %1900 = vmatprep.subr.bf16.mxu0 0
  %1901 = vmatpush1.bf16.msra.mxu0 0
  %1902 = vmatprep.subr.bf16.mxu0 0
  %1903 = vmatpush1.bf16.msra.mxu0 0
  %1904 = vmatprep.subr.bf16.mxu0 0
  %1905 = vmatpush1.bf16.msra.mxu0 0
  %1906 = vmatprep.subr.bf16.mxu0 0
  %1907 = vmatpush1.bf16.msra.mxu0 0
  %1908 = vmatprep.subr.bf16.mxu0 0
  %1909 = vmatpush1.bf16.msra.mxu0 0
  %1910 = vmatprep.subr.bf16.mxu0 0
  %1911 = vmatpush1.bf16.msra.mxu0 0
  %1912 = vmatprep.subr.bf16.mxu0 0
  %1913 = vmatpush1.bf16.msra.mxu0 0
  %1914 = vmatprep.subr.bf16.mxu0 0
  %1915 = vmatpush1.bf16.msra.mxu0 0
  %1916 = vmatprep.subr.bf16.mxu0 0
  %1917 = vmatpush1.bf16.msra.mxu0 0
  %1918 = vmatprep.subr.bf16.mxu0 0
  %1919 = vmatpush1.bf16.msra.mxu0 0
  %1920 = vmatprep.subr.bf16.mxu0 0
  %1921 = vmatpush1.bf16.msra.mxu0 0
  %1922 = vmatprep.subr.bf16.mxu0 0
  %1923 = vmatpush1.bf16.msra.mxu0 0
  %1924 = vmatprep.subr.bf16.mxu0 0
  %1925 = vmatpush1.bf16.msra.mxu0 0
  %1926 = vmatprep.mubr.bf16.mxu0 0
  %1927 = vmatmul.mubr.bf16.gmra.mrb[0].mxu0 %v1679
  %v1928 = vpop.f32.mrb[0].mxu0
  %v1929 = vadd.f32 %v1532, %v1928
  %v1930 = vpop.f32.mrb[0].mxu0
  %v1931 = vadd.f32 %v1536, %v1930
  %v1932 = vpop.f32.mrb[0].mxu0
  %v1933 = vpop.f32.mrb[0].mxu0
  %1934 = vdwg.mxu0
  %1935 = vmatprep.subr.bf16.mxu0 %v1716
  %1936 = vmatpush1.bf16.msra.mxu0 %v1713
  %1937 = vmatprep.subr.bf16.mxu0 0
  %1938 = vmatpush1.bf16.msra.mxu0 0
  %1939 = vmatprep.subr.bf16.mxu0 0
  %1940 = vmatpush1.bf16.msra.mxu0 0
  %1941 = vmatprep.subr.bf16.mxu0 0
  %1942 = vmatpush1.bf16.msra.mxu0 0
  %1943 = vmatprep.subr.bf16.mxu0 0
  %1944 = vmatpush1.bf16.msra.mxu0 0
  %1945 = vmatprep.subr.bf16.mxu0 0
  %1946 = vmatpush1.bf16.msra.mxu0 0
  %1947 = vmatprep.subr.bf16.mxu0 0
  %1948 = vmatpush1.bf16.msra.mxu0 0
  %1949 = vmatprep.subr.bf16.mxu0 0
  %1950 = vmatpush1.bf16.msra.mxu0 0
  %1951 = vmatprep.subr.bf16.mxu0 0
  %1952 = vmatpush1.bf16.msra.mxu0 0
  %1953 = vmatprep.subr.bf16.mxu0 0
  %1954 = vmatpush1.bf16.msra.mxu0 0
  %1955 = vmatprep.subr.bf16.mxu0 0
  %1956 = vmatpush1.bf16.msra.mxu0 0
  %1957 = vmatprep.subr.bf16.mxu0 0
  %1958 = vmatpush1.bf16.msra.mxu0 0
  %1959 = vmatprep.subr.bf16.mxu0 0
  %1960 = vmatpush1.bf16.msra.mxu0 0
  %1961 = vmatprep.subr.bf16.mxu0 0
  %1962 = vmatpush1.bf16.msra.mxu0 0
  %1963 = vmatprep.subr.bf16.mxu0 0
  %1964 = vmatpush1.bf16.msra.mxu0 0
  %1965 = vmatprep.subr.bf16.mxu0 0
  %1966 = vmatpush1.bf16.msra.mxu0 0
  %1967 = vmatprep.mubr.bf16.mxu0 0
  %1968 = vmatmul.mubr.bf16.gmra.mrb[0].mxu0 %v1679
  %v1969 = vpop.f32.mrb[0].mxu0
  %v1970 = vadd.f32 %v1540, %v1969
  %v1971 = vpop.f32.mrb[0].mxu0
  %v1972 = vadd.f32 %v1544, %v1971
  %v1973 = vpop.f32.mrb[0].mxu0
  %v1974 = vpop.f32.mrb[0].mxu0
  %1975 = vdwg.mxu0
  %1976 = vmatprep.subr.bf16.mxu0 %v1722
  %1977 = vmatpush1.bf16.msra.mxu0 %v1719
  %1978 = vmatprep.subr.bf16.mxu0 0
  %1979 = vmatpush1.bf16.msra.mxu0 0
  %1980 = vmatprep.subr.bf16.mxu0 0
  %1981 = vmatpush1.bf16.msra.mxu0 0
  %1982 = vmatprep.subr.bf16.mxu0 0
  %1983 = vmatpush1.bf16.msra.mxu0 0
  %1984 = vmatprep.subr.bf16.mxu0 0
  %1985 = vmatpush1.bf16.msra.mxu0 0
  %1986 = vmatprep.subr.bf16.mxu0 0
  %1987 = vmatpush1.bf16.msra.mxu0 0
  %1988 = vmatprep.subr.bf16.mxu0 0
  %1989 = vmatpush1.bf16.msra.mxu0 0
  %1990 = vmatprep.subr.bf16.mxu0 0
  %1991 = vmatpush1.bf16.msra.mxu0 0
  %1992 = vmatprep.subr.bf16.mxu0 0
  %1993 = vmatpush1.bf16.msra.mxu0 0
  %1994 = vmatprep.subr.bf16.mxu0 0
  %1995 = vmatpush1.bf16.msra.mxu0 0
  %1996 = vmatprep.subr.bf16.mxu0 0
  %1997 = vmatpush1.bf16.msra.mxu0 0
  %1998 = vmatprep.subr.bf16.mxu0 0
  %1999 = vmatpush1.bf16.msra.mxu0 0
  %2000 = vmatprep.subr.bf16.mxu0 0
  %2001 = vmatpush1.bf16.msra.mxu0 0
  %2002 = vmatprep.subr.bf16.mxu0 0
  %2003 = vmatpush1.bf16.msra.mxu0 0
  %2004 = vmatprep.subr.bf16.mxu0 0
  %2005 = vmatpush1.bf16.msra.mxu0 0
  %2006 = vmatprep.subr.bf16.mxu0 0
  %2007 = vmatpush1.bf16.msra.mxu0 0
  %2008 = vmatprep.mubr.bf16.mxu0 0
  %2009 = vmatmul.mubr.bf16.gmra.mrb[0].mxu0 %v1679
  %v2010 = vpop.f32.mrb[0].mxu0
  %v2011 = vadd.f32 %v1548, %v2010
  %v2012 = vpop.f32.mrb[0].mxu0
  %v2013 = vadd.f32 %v1552, %v2012
  %v2014 = vpop.f32.mrb[0].mxu0
  %v2015 = vpop.f32.mrb[0].mxu0
  %2016 = vdwg.mxu0
  %2017 = vmatprep.subr.bf16.mxu0 %v1728
  %2018 = vmatpush1.bf16.msra.mxu0 %v1725
  %2019 = vmatprep.subr.bf16.mxu0 0
  %2020 = vmatpush1.bf16.msra.mxu0 0
  %2021 = vmatprep.subr.bf16.mxu0 0
  %2022 = vmatpush1.bf16.msra.mxu0 0
  %2023 = vmatprep.subr.bf16.mxu0 0
  %2024 = vmatpush1.bf16.msra.mxu0 0
  %2025 = vmatprep.subr.bf16.mxu0 0
  %2026 = vmatpush1.bf16.msra.mxu0 0
  %2027 = vmatprep.subr.bf16.mxu0 0
  %2028 = vmatpush1.bf16.msra.mxu0 0
  %2029 = vmatprep.subr.bf16.mxu0 0
  %2030 = vmatpush1.bf16.msra.mxu0 0
  %2031 = vmatprep.subr.bf16.mxu0 0
  %2032 = vmatpush1.bf16.msra.mxu0 0
  %2033 = vmatprep.subr.bf16.mxu0 0
  %2034 = vmatpush1.bf16.msra.mxu0 0
  %2035 = vmatprep.subr.bf16.mxu0 0
  %2036 = vmatpush1.bf16.msra.mxu0 0
  %2037 = vmatprep.subr.bf16.mxu0 0
  %2038 = vmatpush1.bf16.msra.mxu0 0
  %2039 = vmatprep.subr.bf16.mxu0 0
  %2040 = vmatpush1.bf16.msra.mxu0 0
  %2041 = vmatprep.subr.bf16.mxu0 0
  %2042 = vmatpush1.bf16.msra.mxu0 0
  %2043 = vmatprep.subr.bf16.mxu0 0
  %2044 = vmatpush1.bf16.msra.mxu0 0
  %2045 = vmatprep.subr.bf16.mxu0 0
  %2046 = vmatpush1.bf16.msra.mxu0 0
  %2047 = vmatprep.subr.bf16.mxu0 0
  %2048 = vmatpush1.bf16.msra.mxu0 0
  %2049 = vmatprep.mubr.bf16.mxu0 0
  %2050 = vmatmul.mubr.bf16.gmra.mrb[0].mxu0 %v1679
  %v2051 = vpop.f32.mrb[0].mxu0
  %v2052 = vadd.f32 %v1556, %v2051
  %v2053 = vpop.f32.mrb[0].mxu0
  %v2054 = vadd.f32 %v1560, %v2053
  %v2055 = vpop.f32.mrb[0].mxu0
  %v2056 = vpop.f32.mrb[0].mxu0
  %2057 = vdwg.mxu0
  %v2058 = vpack.c.bf16 %v1765, %v1765
  %v2059 = vpack.c.bf16 %v1767, %v1767
  %v2060 = vpack.c.bf16 %v1806, %v1806
  %v2061 = vpack.c.bf16 %v1808, %v1808
  %v2062 = vpack.c.bf16 %v1847, %v1847
  %v2063 = vpack.c.bf16 %v1849, %v1849
  %v2064 = vpack.c.bf16 %v1888, %v1888
  %v2065 = vpack.c.bf16 %v1890, %v1890
  %v2066 = vpack.c.bf16 %v1929, %v1929
  %v2067 = vpack.c.bf16 %v1931, %v1931
  %v2068 = vpack.c.bf16 %v1970, %v1970
  %v2069 = vpack.c.bf16 %v1972, %v1972
  %v2070 = vpack.c.bf16 %v2011, %v2011
  %v2071 = vpack.c.bf16 %v2013, %v2013
  %v2072 = vpack.c.bf16 %v2052, %v2052
  %v2073 = vpack.c.bf16 %v2054, %v2054
  %v2090 = vcombine.low %v2058, %v2059
  %v2091 = vcombine.low %v2060, %v2061
  %v2092 = vcombine.low %v2062, %v2063
  %v2093 = vcombine.low %v2064, %v2065
  %v2095 = vunpack.c.l.s4 1966171168
  %v2096 = vunpack.c.0.s8 %v2095
  %v2097 = vlaneseq
  %v2098 = vshrl.u32 %v2097, 7
  %v2099 = vsub.s32 %v2096, %v2098
  %v2100 = vrot.slane %v2090, %v2099
  %v2102 = vunpack.c.l.s4 1966171168
  %v2103 = vunpack.c.0.s8 %v2102
  %v2104 = vlaneseq
  %v2105 = vshrl.u32 %v2104, 7
  %v2106 = vsub.s32 %v2103, %v2105
  %v2107 = vrot.slane %v2091, %v2106
  %v2109 = vunpack.c.l.s4 1966171168
  %v2110 = vunpack.c.0.s8 %v2109
  %v2111 = vlaneseq
  %v2112 = vshrl.u32 %v2111, 7
  %v2113 = vsub.s32 %v2110, %v2112
  %v2114 = vrot.slane %v2092, %v2113
  %v2116 = vunpack.c.l.s4 1966171168
  %v2117 = vunpack.c.0.s8 %v2116
  %v2118 = vlaneseq
  %v2119 = vshrl.u32 %v2118, 7
  %v2120 = vsub.s32 %v2117, %v2119
  %v2121 = vrot.slane %v2093, %v2120
  %v2122 = vcombine.low %v2100, %v2107
  %v2123 = vcombine.low %v2114, %v2121
  %v2125 = vunpack.c.l.s4 1966171168
  %v2126 = vunpack.c.0.s8 %v2125
  %v2127 = vlaneseq
  %v2128 = vshrl.u32 %v2127, 7
  %v2129 = vsub.s32 %v2126, %v2128
  %v2130 = vrot.slane %v2122, %v2129
  %v2132 = vunpack.c.l.s4 1966171168
  %v2133 = vunpack.c.0.s8 %v2132
  %v2134 = vlaneseq
  %v2135 = vshrl.u32 %v2134, 7
  %v2136 = vsub.s32 %v2133, %v2135
  %v2137 = vrot.slane %v2123, %v2136
  %v2138 = vcombine.low %v2130, %v2137
  %v2139 = vcombine.low %v2066, %v2067
  %v2140 = vcombine.low %v2068, %v2069
  %v2141 = vcombine.low %v2070, %v2071
  %v2142 = vcombine.low %v2072, %v2073
  %v2144 = vunpack.c.l.s4 1966171168
  %v2145 = vunpack.c.0.s8 %v2144
  %v2146 = vlaneseq
  %v2147 = vshrl.u32 %v2146, 7
  %v2148 = vsub.s32 %v2145, %v2147
  %v2149 = vrot.slane %v2139, %v2148
  %v2151 = vunpack.c.l.s4 1966171168
  %v2152 = vunpack.c.0.s8 %v2151
  %v2153 = vlaneseq
  %v2154 = vshrl.u32 %v2153, 7
  %v2155 = vsub.s32 %v2152, %v2154
  %v2156 = vrot.slane %v2140, %v2155
  %v2158 = vunpack.c.l.s4 1966171168
  %v2159 = vunpack.c.0.s8 %v2158
  %v2160 = vlaneseq
  %v2161 = vshrl.u32 %v2160, 7
  %v2162 = vsub.s32 %v2159, %v2161
  %v2163 = vrot.slane %v2141, %v2162
  %v2165 = vunpack.c.l.s4 1966171168
  %v2166 = vunpack.c.0.s8 %v2165
  %v2167 = vlaneseq
  %v2168 = vshrl.u32 %v2167, 7
  %v2169 = vsub.s32 %v2166, %v2168
  %v2170 = vrot.slane %v2142, %v2169
  %v2171 = vcombine.low %v2149, %v2156
  %v2172 = vcombine.low %v2163, %v2170
  %v2174 = vunpack.c.l.s4 1966171168
  %v2175 = vunpack.c.0.s8 %v2174
  %v2176 = vlaneseq
  %v2177 = vshrl.u32 %v2176, 7
  %v2178 = vsub.s32 %v2175, %v2177
  %v2179 = vrot.slane %v2171, %v2178
  %v2181 = vunpack.c.l.s4 1966171168
  %v2182 = vunpack.c.0.s8 %v2181
  %v2183 = vlaneseq
  %v2184 = vshrl.u32 %v2183, 7
  %v2185 = vsub.s32 %v2182, %v2184
  %v2186 = vrot.slane %v2172, %v2185
  %v2187 = vcombine.low %v2179, %v2186
  %2190 = vst [vmem:[%s5] sm:$0xff] %v2138
  %2191 = vst [vmem:[%s5 + $0x8] sm:$0xff] %v2187
  // Predicated region
  $region22: #{autoencoder_forward.10} parent=0 // pred_check
    _
  $region23: #{autoencoder_forward.10} parent=0 // pred_check_branch
    %2193 = sbr.rel (0) target = $region25
  $region24: #{autoencoder_forward.10} parent=0 // pred_region
    _
  $region25: #{autoencoder_forward.10} parent=0 // pred_fallthru
    _
  // Predicated region
  $region26: #{autoencoder_forward.10} parent=0 // pred_check
    _
  $region27: #{autoencoder_forward.10} parent=0 // pred_check_branch
    %2195 = sbr.rel (0) target = $region29
  $region28: #{autoencoder_forward.10} parent=0 // pred_region
    _
  $region29: #{autoencoder_forward.10} parent=0 // pred_fallthru
    _

// kernel: autoencoder_forward.12
$region0: #{autoencoder_forward.12}
  #allocation0 [shape = 'u32[]', space=smem, size = 0x4, offset = 0x4, fixed_abs, tag = 'smem constant byte address 0x4 - core index']
  #allocation1 [shape = 'u32[144,128]{1,0:T(1,128)}', space=vmem, size = 0x12000, scoped, tag = 'internal scratch']
  %s0 = inlined_call_operand.vmem [shape: bf16[128,512], index: 0, kind: input, shape index: {}]
  %s1 = inlined_call_operand.vmem [shape: bf16[512,256], index: 1, kind: input, shape index: {}]
  %s2 = inlined_call_operand.vmem [shape: f32[1,256], index: 2, kind: input, shape index: {}]
  %s3 = inlined_call_operand.vmem [shape: bf16[128,256], index: 3, kind: output, shape index: {}]
  %s4 = sld [smem:[#allocation0]]
  $region22: #{autoencoder_forward.12} parent=0
    _
  %s6 = ssub.s32 1, %s4
  %s7 = scalar_select 0, %s6, %s4
  // Predicated region
  $region2: #{autoencoder_forward.12} parent=0 // pred_check
    _
  $region3: #{autoencoder_forward.12} parent=0 // pred_check_branch
    %9 = sbr.rel (0) target = $region5
  $region4: #{autoencoder_forward.12} parent=0 // pred_region
    _
  $region5: #{autoencoder_forward.12} parent=0 // pred_fallthru
    _
  // Predicated region
  $region6: #{autoencoder_forward.12} parent=0 // pred_check
    _
  $region7: #{autoencoder_forward.12} parent=0 // pred_check_branch
    %11 = sbr.rel (0) target = $region9
  $region8: #{autoencoder_forward.12} parent=0 // pred_region
    _
  $region9: #{autoencoder_forward.12} parent=0 // pred_fallthru
    _
  // Predicated region
  $region10: #{autoencoder_forward.12} parent=0 // pred_check
    _
  $region11: #{autoencoder_forward.12} parent=0 // pred_check_branch
    %13 = sbr.rel (0) target = $region13
  $region12: #{autoencoder_forward.12} parent=0 // pred_region
    _
  $region13: #{autoencoder_forward.12} parent=0 // pred_fallthru
    _
  %v14 = vld [vmem:[%s0] sm:$0xff]
  %v15 = vld [vmem:[%s0 + $0x8] sm:$0xff]
  %v16 = vld [vmem:[%s0 + $0x10] sm:$0xff]
  %v17 = vld [vmem:[%s0 + $0x18] sm:$0xff]
  %v18 = vld [vmem:[%s0 + $0x20] sm:$0xff]
  %v19 = vld [vmem:[%s0 + $0x28] sm:$0xff]
  %v20 = vld [vmem:[%s0 + $0x30] sm:$0xff]
  %v21 = vld [vmem:[%s0 + $0x38] sm:$0xff]
  %v22 = vld [vmem:[%s0 + $0x40] sm:$0xff]
  %v23 = vld [vmem:[%s0 + $0x48] sm:$0xff]
  %v24 = vld [vmem:[%s0 + $0x50] sm:$0xff]
  %v25 = vld [vmem:[%s0 + $0x58] sm:$0xff]
  %v26 = vld [vmem:[%s0 + $0x60] sm:$0xff]
  %v27 = vld [vmem:[%s0 + $0x68] sm:$0xff]
  %v28 = vld [vmem:[%s0 + $0x70] sm:$0xff]
  %v29 = vld [vmem:[%s0 + $0x78] sm:$0xff]
  %v30 = vld [vmem:[%s0 + $0x80] sm:$0xff]
  %v31 = vld [vmem:[%s0 + $0x88] sm:$0xff]
  %v32 = vld [vmem:[%s0 + $0x90] sm:$0xff]
  %v33 = vld [vmem:[%s0 + $0x98] sm:$0xff]
  %v34 = vld [vmem:[%s0 + $0xa0] sm:$0xff]
  %v35 = vld [vmem:[%s0 + $0xa8] sm:$0xff]
  %v36 = vld [vmem:[%s0 + $0xb0] sm:$0xff]
  %v37 = vld [vmem:[%s0 + $0xb8] sm:$0xff]
  %v38 = vld [vmem:[%s0 + $0xc0] sm:$0xff]
  %v39 = vld [vmem:[%s0 + $0xc8] sm:$0xff]
  %v40 = vld [vmem:[%s0 + $0xd0] sm:$0xff]
  %v41 = vld [vmem:[%s0 + $0xd8] sm:$0xff]
  %v42 = vld [vmem:[%s0 + $0xe0] sm:$0xff]
  %v43 = vld [vmem:[%s0 + $0xe8] sm:$0xff]
  %v44 = vld [vmem:[%s0 + $0xf0] sm:$0xff]
  %v45 = vld [vmem:[%s0 + $0xf8] sm:$0xff]
  %v46 = vld [vmem:[%s1] sm:$0xff]
  %v47 = vld [vmem:[%s1 + $0x8] sm:$0xff]
  %v48 = vld [vmem:[%s1 + $0x10] sm:$0xff]
  %v49 = vld [vmem:[%s1 + $0x18] sm:$0xff]
  %v50 = vld [vmem:[%s1 + $0x20] sm:$0xff]
  %v51 = vld [vmem:[%s1 + $0x28] sm:$0xff]
  %v52 = vld [vmem:[%s1 + $0x30] sm:$0xff]
  %v53 = vld [vmem:[%s1 + $0x38] sm:$0xff]
  %v54 = vld [vmem:[%s1 + $0x40] sm:$0xff]
  %v55 = vld [vmem:[%s1 + $0x48] sm:$0xff]
  %v56 = vld [vmem:[%s1 + $0x50] sm:$0xff]
  %v57 = vld [vmem:[%s1 + $0x58] sm:$0xff]
  %v58 = vld [vmem:[%s1 + $0x60] sm:$0xff]
  %v59 = vld [vmem:[%s1 + $0x68] sm:$0xff]
  %v60 = vld [vmem:[%s1 + $0x70] sm:$0xff]
  %v61 = vld [vmem:[%s1 + $0x78] sm:$0xff]
  %v62 = vld [vmem:[%s1 + $0x80] sm:$0xff]
  %v63 = vld [vmem:[%s1 + $0x88] sm:$0xff]
  %v64 = vld [vmem:[%s1 + $0x90] sm:$0xff]
  %v65 = vld [vmem:[%s1 + $0x98] sm:$0xff]
  %v66 = vld [vmem:[%s1 + $0xa0] sm:$0xff]
  %v67 = vld [vmem:[%s1 + $0xa8] sm:$0xff]
  %v68 = vld [vmem:[%s1 + $0xb0] sm:$0xff]
  %v69 = vld [vmem:[%s1 + $0xb8] sm:$0xff]
  %v70 = vld [vmem:[%s1 + $0xc0] sm:$0xff]
  %v71 = vld [vmem:[%s1 + $0xc8] sm:$0xff]
  %v72 = vld [vmem:[%s1 + $0xd0] sm:$0xff]
  %v73 = vld [vmem:[%s1 + $0xd8] sm:$0xff]
  %v74 = vld [vmem:[%s1 + $0xe0] sm:$0xff]
  %v75 = vld [vmem:[%s1 + $0xe8] sm:$0xff]
  %v76 = vld [vmem:[%s1 + $0xf0] sm:$0xff]
  %v77 = vld [vmem:[%s1 + $0xf8] sm:$0xff]
  %v78 = vld [vmem:[%s1 + $0x100] sm:$0xff]
  %v79 = vld [vmem:[%s1 + $0x108] sm:$0xff]
  %v80 = vld [vmem:[%s1 + $0x110] sm:$0xff]
  %v81 = vld [vmem:[%s1 + $0x118] sm:$0xff]
  %v82 = vld [vmem:[%s1 + $0x120] sm:$0xff]
  %v83 = vld [vmem:[%s1 + $0x128] sm:$0xff]
  %v84 = vld [vmem:[%s1 + $0x130] sm:$0xff]
  %v85 = vld [vmem:[%s1 + $0x138] sm:$0xff]
  %v86 = vld [vmem:[%s1 + $0x140] sm:$0xff]
  %v87 = vld [vmem:[%s1 + $0x148] sm:$0xff]
  %v88 = vld [vmem:[%s1 + $0x150] sm:$0xff]
  %v89 = vld [vmem:[%s1 + $0x158] sm:$0xff]
  %v90 = vld [vmem:[%s1 + $0x160] sm:$0xff]
  %v91 = vld [vmem:[%s1 + $0x168] sm:$0xff]
  %v92 = vld [vmem:[%s1 + $0x170] sm:$0xff]
  %v93 = vld [vmem:[%s1 + $0x178] sm:$0xff]
  %v94 = vld [vmem:[%s1 + $0x180] sm:$0xff]
  %v95 = vld [vmem:[%s1 + $0x188] sm:$0xff]
  %v96 = vld [vmem:[%s1 + $0x190] sm:$0xff]
  %v97 = vld [vmem:[%s1 + $0x198] sm:$0xff]
  %v98 = vld [vmem:[%s1 + $0x1a0] sm:$0xff]
  %v99 = vld [vmem:[%s1 + $0x1a8] sm:$0xff]
  %v100 = vld [vmem:[%s1 + $0x1b0] sm:$0xff]
  %v101 = vld [vmem:[%s1 + $0x1b8] sm:$0xff]
  %v102 = vld [vmem:[%s1 + $0x1c0] sm:$0xff]
  %v103 = vld [vmem:[%s1 + $0x1c8] sm:$0xff]
  %v104 = vld [vmem:[%s1 + $0x1d0] sm:$0xff]
  %v105 = vld [vmem:[%s1 + $0x1d8] sm:$0xff]
  %v106 = vld [vmem:[%s1 + $0x1e0] sm:$0xff]
  %v107 = vld [vmem:[%s1 + $0x1e8] sm:$0xff]
  %v108 = vld [vmem:[%s1 + $0x1f0] sm:$0xff]
  %v109 = vld [vmem:[%s1 + $0x1f8] sm:$0xff]
  %v110 = vld [vmem:[%s2] sm:$0x3]
  %v112 = vlaneseq
  %v113 = vshrl.u32 %v112, 7
  %v114 = vsub.s32 0, %v113
  %v115 = vrot.slane %v110, %v114
  %v116 = vlaneseq
  %v117 = vshrl.u32 %v116, 7
  %v118 = vsub.s32 1, %v117
  %v119 = vrot.slane %v110, %v118
  %v154 = vunpack.c.l.b16 %v14
  %v155 = vunpack.c.h.b16 %v14
  %v156 = vunpack.c.l.b16 %v15
  %v157 = vunpack.c.h.b16 %v15
  %v158 = vunpack.c.l.b16 %v16
  %v159 = vunpack.c.h.b16 %v16
  %v160 = vunpack.c.l.b16 %v17
  %v161 = vunpack.c.h.b16 %v17
  %v162 = vunpack.c.l.b16 %v18
  %v163 = vunpack.c.h.b16 %v18
  %v164 = vunpack.c.l.b16 %v19
  %v165 = vunpack.c.h.b16 %v19
  %v166 = vunpack.c.l.b16 %v20
  %v167 = vunpack.c.h.b16 %v20
  %v168 = vunpack.c.l.b16 %v21
  %v169 = vunpack.c.h.b16 %v21
  %v170 = vunpack.c.l.b16 %v22
  %v171 = vunpack.c.h.b16 %v22
  %v172 = vunpack.c.l.b16 %v23
  %v173 = vunpack.c.h.b16 %v23
  %v174 = vunpack.c.l.b16 %v24
  %v175 = vunpack.c.h.b16 %v24
  %v176 = vunpack.c.l.b16 %v25
  %v177 = vunpack.c.h.b16 %v25
  %v178 = vunpack.c.l.b16 %v26
  %v179 = vunpack.c.h.b16 %v26
  %v180 = vunpack.c.l.b16 %v27
  %v181 = vunpack.c.h.b16 %v27
  %v182 = vunpack.c.l.b16 %v28
  %v183 = vunpack.c.h.b16 %v28
  %v184 = vunpack.c.l.b16 %v29
  %v185 = vunpack.c.h.b16 %v29
  %v186 = vunpack.c.l.b16 %v30
  %v187 = vunpack.c.h.b16 %v30
  %v188 = vunpack.c.l.b16 %v31
  %v189 = vunpack.c.h.b16 %v31
  %v190 = vunpack.c.l.b16 %v32
  %v191 = vunpack.c.h.b16 %v32
  %v192 = vunpack.c.l.b16 %v33
  %v193 = vunpack.c.h.b16 %v33
  %v194 = vunpack.c.l.b16 %v34
  %v195 = vunpack.c.h.b16 %v34
  %v196 = vunpack.c.l.b16 %v35
  %v197 = vunpack.c.h.b16 %v35
  %v198 = vunpack.c.l.b16 %v36
  %v199 = vunpack.c.h.b16 %v36
  %v200 = vunpack.c.l.b16 %v37
  %v201 = vunpack.c.h.b16 %v37
  %v202 = vunpack.c.l.b16 %v38
  %v203 = vunpack.c.h.b16 %v38
  %v204 = vunpack.c.l.b16 %v39
  %v205 = vunpack.c.h.b16 %v39
  %v206 = vunpack.c.l.b16 %v40
  %v207 = vunpack.c.h.b16 %v40
  %v208 = vunpack.c.l.b16 %v41
  %v209 = vunpack.c.h.b16 %v41
  %v210 = vunpack.c.l.b16 %v42
  %v211 = vunpack.c.h.b16 %v42
  %v212 = vunpack.c.l.b16 %v43
  %v213 = vunpack.c.h.b16 %v43
  %v214 = vunpack.c.l.b16 %v44
  %v215 = vunpack.c.h.b16 %v44
  %v216 = vunpack.c.l.b16 %v45
  %v217 = vunpack.c.h.b16 %v45
  %v218 = vpack.c.b16 %v158, %v154
  %v219 = vpack.c.b16 %v159, %v155
  %v220 = vpack.c.b16 %v160, %v156
  %v221 = vpack.c.b16 %v161, %v157
  %v222 = vpack.c.b16 %v166, %v162
  %v223 = vpack.c.b16 %v167, %v163
  %v224 = vpack.c.b16 %v168, %v164
  %v225 = vpack.c.b16 %v169, %v165
  %v226 = vpack.c.b16 %v174, %v170
  %v227 = vpack.c.b16 %v175, %v171
  %v228 = vpack.c.b16 %v176, %v172
  %v229 = vpack.c.b16 %v177, %v173
  %v230 = vpack.c.b16 %v182, %v178
  %v231 = vpack.c.b16 %v183, %v179
  %v232 = vpack.c.b16 %v184, %v180
  %v233 = vpack.c.b16 %v185, %v181
  %v234 = vpack.c.b16 %v190, %v186
  %v235 = vpack.c.b16 %v191, %v187
  %v236 = vpack.c.b16 %v192, %v188
  %v237 = vpack.c.b16 %v193, %v189
  %v238 = vpack.c.b16 %v198, %v194
  %v239 = vpack.c.b16 %v199, %v195
  %v240 = vpack.c.b16 %v200, %v196
  %v241 = vpack.c.b16 %v201, %v197
  %v242 = vpack.c.b16 %v206, %v202
  %v243 = vpack.c.b16 %v207, %v203
  %v244 = vpack.c.b16 %v208, %v204
  %v245 = vpack.c.b16 %v209, %v205
  %v246 = vpack.c.b16 %v214, %v210
  %v247 = vpack.c.b16 %v215, %v211
  %v248 = vpack.c.b16 %v216, %v212
  %v249 = vpack.c.b16 %v217, %v213
  %v346 = vunpack.c.l.b16 %v46
  %v347 = vunpack.c.h.b16 %v46
  %v348 = vunpack.c.l.b16 %v47
  %v349 = vunpack.c.h.b16 %v47
  %v350 = vunpack.c.l.b16 %v48
  %v351 = vunpack.c.h.b16 %v48
  %v352 = vunpack.c.l.b16 %v49
  %v353 = vunpack.c.h.b16 %v49
  %v354 = vunpack.c.l.b16 %v50
  %v355 = vunpack.c.h.b16 %v50
  %v356 = vunpack.c.l.b16 %v51
  %v357 = vunpack.c.h.b16 %v51
  %v358 = vunpack.c.l.b16 %v52
  %v359 = vunpack.c.h.b16 %v52
  %v360 = vunpack.c.l.b16 %v53
  %v361 = vunpack.c.h.b16 %v53
  %v362 = vunpack.c.l.b16 %v54
  %v363 = vunpack.c.h.b16 %v54
  %v364 = vunpack.c.l.b16 %v55
  %v365 = vunpack.c.h.b16 %v55
  %v366 = vunpack.c.l.b16 %v56
  %v367 = vunpack.c.h.b16 %v56
  %v368 = vunpack.c.l.b16 %v57
  %v369 = vunpack.c.h.b16 %v57
  %v370 = vunpack.c.l.b16 %v58
  %v371 = vunpack.c.h.b16 %v58
  %v372 = vunpack.c.l.b16 %v59
  %v373 = vunpack.c.h.b16 %v59
  %v374 = vunpack.c.l.b16 %v60
  %v375 = vunpack.c.h.b16 %v60
  %v376 = vunpack.c.l.b16 %v61
  %v377 = vunpack.c.h.b16 %v61
  %v378 = vunpack.c.l.b16 %v62
  %v379 = vunpack.c.h.b16 %v62
  %v380 = vunpack.c.l.b16 %v63
  %v381 = vunpack.c.h.b16 %v63
  %v382 = vunpack.c.l.b16 %v64
  %v383 = vunpack.c.h.b16 %v64
  %v384 = vunpack.c.l.b16 %v65
  %v385 = vunpack.c.h.b16 %v65
  %v386 = vunpack.c.l.b16 %v66
  %v387 = vunpack.c.h.b16 %v66
  %v388 = vunpack.c.l.b16 %v67
  %v389 = vunpack.c.h.b16 %v67
  %v390 = vunpack.c.l.b16 %v68
  %v391 = vunpack.c.h.b16 %v68
  %v392 = vunpack.c.l.b16 %v69
  %v393 = vunpack.c.h.b16 %v69
  %v394 = vunpack.c.l.b16 %v70
  %v395 = vunpack.c.h.b16 %v70
  %v396 = vunpack.c.l.b16 %v71
  %v397 = vunpack.c.h.b16 %v71
  %v398 = vunpack.c.l.b16 %v72
  %v399 = vunpack.c.h.b16 %v72
  %v400 = vunpack.c.l.b16 %v73
  %v401 = vunpack.c.h.b16 %v73
  %v402 = vunpack.c.l.b16 %v74
  %v403 = vunpack.c.h.b16 %v74
  %v404 = vunpack.c.l.b16 %v75
  %v405 = vunpack.c.h.b16 %v75
  %v406 = vunpack.c.l.b16 %v76
  %v407 = vunpack.c.h.b16 %v76
  %v408 = vunpack.c.l.b16 %v77
  %v409 = vunpack.c.h.b16 %v77
  %v410 = vunpack.c.l.b16 %v78
  %v411 = vunpack.c.h.b16 %v78
  %v412 = vunpack.c.l.b16 %v79
  %v413 = vunpack.c.h.b16 %v79
  %v414 = vunpack.c.l.b16 %v80
  %v415 = vunpack.c.h.b16 %v80
  %v416 = vunpack.c.l.b16 %v81
  %v417 = vunpack.c.h.b16 %v81
  %v418 = vunpack.c.l.b16 %v82
  %v419 = vunpack.c.h.b16 %v82
  %v420 = vunpack.c.l.b16 %v83
  %v421 = vunpack.c.h.b16 %v83
  %v422 = vunpack.c.l.b16 %v84
  %v423 = vunpack.c.h.b16 %v84
  %v424 = vunpack.c.l.b16 %v85
  %v425 = vunpack.c.h.b16 %v85
  %v426 = vunpack.c.l.b16 %v86
  %v427 = vunpack.c.h.b16 %v86
  %v428 = vunpack.c.l.b16 %v87
  %v429 = vunpack.c.h.b16 %v87
  %v430 = vunpack.c.l.b16 %v88
  %v431 = vunpack.c.h.b16 %v88
  %v432 = vunpack.c.l.b16 %v89
  %v433 = vunpack.c.h.b16 %v89
  %v434 = vunpack.c.l.b16 %v90
  %v435 = vunpack.c.h.b16 %v90
  %v436 = vunpack.c.l.b16 %v91
  %v437 = vunpack.c.h.b16 %v91
  %v438 = vunpack.c.l.b16 %v92
  %v439 = vunpack.c.h.b16 %v92
  %v440 = vunpack.c.l.b16 %v93
  %v441 = vunpack.c.h.b16 %v93
  %v442 = vunpack.c.l.b16 %v94
  %v443 = vunpack.c.h.b16 %v94
  %v444 = vunpack.c.l.b16 %v95
  %v445 = vunpack.c.h.b16 %v95
  %v446 = vunpack.c.l.b16 %v96
  %v447 = vunpack.c.h.b16 %v96
  %v448 = vunpack.c.l.b16 %v97
  %v449 = vunpack.c.h.b16 %v97
  %v450 = vunpack.c.l.b16 %v98
  %v451 = vunpack.c.h.b16 %v98
  %v452 = vunpack.c.l.b16 %v99
  %v453 = vunpack.c.h.b16 %v99
  %v454 = vunpack.c.l.b16 %v100
  %v455 = vunpack.c.h.b16 %v100
  %v456 = vunpack.c.l.b16 %v101
  %v457 = vunpack.c.h.b16 %v101
  %v458 = vunpack.c.l.b16 %v102
  %v459 = vunpack.c.h.b16 %v102
  %v460 = vunpack.c.l.b16 %v103
  %v461 = vunpack.c.h.b16 %v103
  %v462 = vunpack.c.l.b16 %v104
  %v463 = vunpack.c.h.b16 %v104
  %v464 = vunpack.c.l.b16 %v105
  %v465 = vunpack.c.h.b16 %v105
  %v466 = vunpack.c.l.b16 %v106
  %v467 = vunpack.c.h.b16 %v106
  %v468 = vunpack.c.l.b16 %v107
  %v469 = vunpack.c.h.b16 %v107
  %v470 = vunpack.c.l.b16 %v108
  %v471 = vunpack.c.h.b16 %v108
  %v472 = vunpack.c.l.b16 %v109
  %v473 = vunpack.c.h.b16 %v109
  %v474 = vpack.c.b16 %v348, %v346
  %v475 = vpack.c.b16 %v349, %v347
  %v476 = vpack.c.b16 %v352, %v350
  %v477 = vpack.c.b16 %v353, %v351
  %v478 = vpack.c.b16 %v356, %v354
  %v479 = vpack.c.b16 %v357, %v355
  %v480 = vpack.c.b16 %v360, %v358
  %v481 = vpack.c.b16 %v361, %v359
  %v482 = vpack.c.b16 %v364, %v362
  %v483 = vpack.c.b16 %v365, %v363
  %v484 = vpack.c.b16 %v368, %v366
  %v485 = vpack.c.b16 %v369, %v367
  %v486 = vpack.c.b16 %v372, %v370
  %v487 = vpack.c.b16 %v373, %v371
  %v488 = vpack.c.b16 %v376, %v374
  %v489 = vpack.c.b16 %v377, %v375
  %v490 = vpack.c.b16 %v380, %v378
  %v491 = vpack.c.b16 %v381, %v379
  %v492 = vpack.c.b16 %v384, %v382
  %v493 = vpack.c.b16 %v385, %v383
  %v494 = vpack.c.b16 %v388, %v386
  %v495 = vpack.c.b16 %v389, %v387
  %v496 = vpack.c.b16 %v392, %v390
  %v497 = vpack.c.b16 %v393, %v391
  %v498 = vpack.c.b16 %v396, %v394
  %v499 = vpack.c.b16 %v397, %v395
  %v500 = vpack.c.b16 %v400, %v398
  %v501 = vpack.c.b16 %v401, %v399
  %v502 = vpack.c.b16 %v404, %v402
  %v503 = vpack.c.b16 %v405, %v403
  %v504 = vpack.c.b16 %v408, %v406
  %v505 = vpack.c.b16 %v409, %v407
  %v506 = vpack.c.b16 %v412, %v410
  %v507 = vpack.c.b16 %v413, %v411
  %v508 = vpack.c.b16 %v416, %v414
  %v509 = vpack.c.b16 %v417, %v415
  %v510 = vpack.c.b16 %v420, %v418
  %v511 = vpack.c.b16 %v421, %v419
  %v512 = vpack.c.b16 %v424, %v422
  %v513 = vpack.c.b16 %v425, %v423
  %v514 = vpack.c.b16 %v428, %v426
  %v515 = vpack.c.b16 %v429, %v427
  %v516 = vpack.c.b16 %v432, %v430
  %v517 = vpack.c.b16 %v433, %v431
  %v518 = vpack.c.b16 %v436, %v434
  %v519 = vpack.c.b16 %v437, %v435
  %v520 = vpack.c.b16 %v440, %v438
  %v521 = vpack.c.b16 %v441, %v439
  %v522 = vpack.c.b16 %v444, %v442
  %v523 = vpack.c.b16 %v445, %v443
  %v524 = vpack.c.b16 %v448, %v446
  %v525 = vpack.c.b16 %v449, %v447
  %v526 = vpack.c.b16 %v452, %v450
  %v527 = vpack.c.b16 %v453, %v451
  %v528 = vpack.c.b16 %v456, %v454
  %v529 = vpack.c.b16 %v457, %v455
  %v530 = vpack.c.b16 %v460, %v458
  %v531 = vpack.c.b16 %v461, %v459
  %v532 = vpack.c.b16 %v464, %v462
  %v533 = vpack.c.b16 %v465, %v463
  %v534 = vpack.c.b16 %v468, %v466
  %v535 = vpack.c.b16 %v469, %v467
  %v536 = vpack.c.b16 %v472, %v470
  %v537 = vpack.c.b16 %v473, %v471
  %602 = vmatprep.subr.bf16.mxu0 %v475
  %603 = vmatpush1.bf16.msra.mxu0 %v474
  %604 = vmatprep.subr.bf16.mxu0 %v477
  %605 = vmatpush1.bf16.msra.mxu0 %v476
  %606 = vmatprep.subr.bf16.mxu0 %v479
  %607 = vmatpush1.bf16.msra.mxu0 %v478
  %608 = vmatprep.subr.bf16.mxu0 %v481
  %609 = vmatpush1.bf16.msra.mxu0 %v480
  %610 = vmatprep.subr.bf16.mxu0 %v483
  %611 = vmatpush1.bf16.msra.mxu0 %v482
  %612 = vmatprep.subr.bf16.mxu0 %v485
  %613 = vmatpush1.bf16.msra.mxu0 %v484
  %614 = vmatprep.subr.bf16.mxu0 %v487
  %615 = vmatpush1.bf16.msra.mxu0 %v486
  %616 = vmatprep.subr.bf16.mxu0 %v489
  %617 = vmatpush1.bf16.msra.mxu0 %v488
  %618 = vmatprep.subr.bf16.mxu0 %v491
  %619 = vmatpush1.bf16.msra.mxu0 %v490
  %620 = vmatprep.subr.bf16.mxu0 %v493
  %621 = vmatpush1.bf16.msra.mxu0 %v492
  %622 = vmatprep.subr.bf16.mxu0 %v495
  %623 = vmatpush1.bf16.msra.mxu0 %v494
  %624 = vmatprep.subr.bf16.mxu0 %v497
  %625 = vmatpush1.bf16.msra.mxu0 %v496
  %626 = vmatprep.subr.bf16.mxu0 %v499
  %627 = vmatpush1.bf16.msra.mxu0 %v498
  %628 = vmatprep.subr.bf16.mxu0 %v501
  %629 = vmatpush1.bf16.msra.mxu0 %v500
  %630 = vmatprep.subr.bf16.mxu0 %v503
  %631 = vmatpush1.bf16.msra.mxu0 %v502
  %632 = vmatprep.subr.bf16.mxu0 %v505
  %633 = vmatpush1.bf16.msra.mxu0 %v504
  %634 = vmatprep.mubr.bf16.mxu0 %v219
  %635 = vmatmul.mubr.bf16.gmra.mrb[0].mxu0 %v218
  %v636 = vpop.f32.mrb[0].mxu0
  %v637 = vadd.f32 %v115, %v636
  %v638 = vpop.f32.mrb[0].mxu0
  %v639 = vadd.f32 %v119, %v638
  %v640 = vpop.f32.mrb[0].mxu0
  %v641 = vadd.f32 %v115, %v640
  %v642 = vpop.f32.mrb[0].mxu0
  %v643 = vadd.f32 %v119, %v642
  %644 = vmatprep.mubr.bf16.mxu0 %v223
  %645 = vmatmul.mubr.bf16.gmra.mrb[0].mxu0 %v222
  %v646 = vpop.f32.mrb[0].mxu0
  %v647 = vadd.f32 %v115, %v646
  %v648 = vpop.f32.mrb[0].mxu0
  %v649 = vadd.f32 %v119, %v648
  %v650 = vpop.f32.mrb[0].mxu0
  %v651 = vadd.f32 %v115, %v650
  %v652 = vpop.f32.mrb[0].mxu0
  %v653 = vadd.f32 %v119, %v652
  %654 = vmatprep.mubr.bf16.mxu0 %v227
  %655 = vmatmul.mubr.bf16.gmra.mrb[0].mxu0 %v226
  %v656 = vpop.f32.mrb[0].mxu0
  %v657 = vadd.f32 %v115, %v656
  %v658 = vpop.f32.mrb[0].mxu0
  %v659 = vadd.f32 %v119, %v658
  %v660 = vpop.f32.mrb[0].mxu0
  %v661 = vadd.f32 %v115, %v660
  %v662 = vpop.f32.mrb[0].mxu0
  %v663 = vadd.f32 %v119, %v662
  %664 = vmatprep.mubr.bf16.mxu0 %v231
  %665 = vmatmul.mubr.bf16.gmra.mrb[0].mxu0 %v230
  %v666 = vpop.f32.mrb[0].mxu0
  %v667 = vadd.f32 %v115, %v666
  %v668 = vpop.f32.mrb[0].mxu0
  %v669 = vadd.f32 %v119, %v668
  %v670 = vpop.f32.mrb[0].mxu0
  %v671 = vadd.f32 %v115, %v670
  %v672 = vpop.f32.mrb[0].mxu0
  %v673 = vadd.f32 %v119, %v672
  %674 = vmatprep.mubr.bf16.mxu0 %v235
  %675 = vmatmul.mubr.bf16.gmra.mrb[0].mxu0 %v234
  %v676 = vpop.f32.mrb[0].mxu0
  %v677 = vadd.f32 %v115, %v676
  %v678 = vpop.f32.mrb[0].mxu0
  %v679 = vadd.f32 %v119, %v678
  %v680 = vpop.f32.mrb[0].mxu0
  %v681 = vadd.f32 %v115, %v680
  %v682 = vpop.f32.mrb[0].mxu0
  %v683 = vadd.f32 %v119, %v682
  %684 = vmatprep.mubr.bf16.mxu0 %v239
  %685 = vmatmul.mubr.bf16.gmra.mrb[0].mxu0 %v238
  %v686 = vpop.f32.mrb[0].mxu0
  %v687 = vadd.f32 %v115, %v686
  %v688 = vpop.f32.mrb[0].mxu0
  %v689 = vadd.f32 %v119, %v688
  %v690 = vpop.f32.mrb[0].mxu0
  %v691 = vadd.f32 %v115, %v690
  %v692 = vpop.f32.mrb[0].mxu0
  %v693 = vadd.f32 %v119, %v692
  %694 = vmatprep.mubr.bf16.mxu0 %v243
  %695 = vmatmul.mubr.bf16.gmra.mrb[0].mxu0 %v242
  %v696 = vpop.f32.mrb[0].mxu0
  %v697 = vadd.f32 %v115, %v696
  %v698 = vpop.f32.mrb[0].mxu0
  %v699 = vadd.f32 %v119, %v698
  %v700 = vpop.f32.mrb[0].mxu0
  %v701 = vadd.f32 %v115, %v700
  %v702 = vpop.f32.mrb[0].mxu0
  %v703 = vadd.f32 %v119, %v702
  %704 = vmatprep.mubr.bf16.mxu0 %v247
  %705 = vmatmul.mubr.bf16.gmra.mrb[0].mxu0 %v246
  %v706 = vpop.f32.mrb[0].mxu0
  %v707 = vadd.f32 %v115, %v706
  %v708 = vpop.f32.mrb[0].mxu0
  %v709 = vadd.f32 %v119, %v708
  %v710 = vpop.f32.mrb[0].mxu0
  %v711 = vadd.f32 %v115, %v710
  %v712 = vpop.f32.mrb[0].mxu0
  %v713 = vadd.f32 %v119, %v712
  %714 = vdwg.mxu0
  %715 = vmatprep.subr.bf16.mxu0 %v507
  %716 = vmatpush1.bf16.msra.mxu0 %v506
  %717 = vmatprep.subr.bf16.mxu0 %v509
  %718 = vmatpush1.bf16.msra.mxu0 %v508
  %719 = vmatprep.subr.bf16.mxu0 %v511
  %720 = vmatpush1.bf16.msra.mxu0 %v510
  %721 = vmatprep.subr.bf16.mxu0 %v513
  %722 = vmatpush1.bf16.msra.mxu0 %v512
  %723 = vmatprep.subr.bf16.mxu0 %v515
  %724 = vmatpush1.bf16.msra.mxu0 %v514
  %725 = vmatprep.subr.bf16.mxu0 %v517
  %726 = vmatpush1.bf16.msra.mxu0 %v516
  %727 = vmatprep.subr.bf16.mxu0 %v519
  %728 = vmatpush1.bf16.msra.mxu0 %v518
  %729 = vmatprep.subr.bf16.mxu0 %v521
  %730 = vmatpush1.bf16.msra.mxu0 %v520
  %731 = vmatprep.subr.bf16.mxu0 %v523
  %732 = vmatpush1.bf16.msra.mxu0 %v522
  %733 = vmatprep.subr.bf16.mxu0 %v525
  %734 = vmatpush1.bf16.msra.mxu0 %v524
  %735 = vmatprep.subr.bf16.mxu0 %v527
  %736 = vmatpush1.bf16.msra.mxu0 %v526
  %737 = vmatprep.subr.bf16.mxu0 %v529
  %738 = vmatpush1.bf16.msra.mxu0 %v528
  %739 = vmatprep.subr.bf16.mxu0 %v531
  %740 = vmatpush1.bf16.msra.mxu0 %v530
  %741 = vmatprep.subr.bf16.mxu0 %v533
  %742 = vmatpush1.bf16.msra.mxu0 %v532
  %743 = vmatprep.subr.bf16.mxu0 %v535
  %744 = vmatpush1.bf16.msra.mxu0 %v534
  %745 = vmatprep.subr.bf16.mxu0 %v537
  %746 = vmatpush1.bf16.msra.mxu0 %v536
  %747 = vmatprep.mubr.bf16.mxu0 %v221
  %748 = vmatmul.mubr.bf16.gmra.mrb[0].mxu0 %v220
  %v749 = vpop.f32.mrb[0].mxu0
  %v750 = vadd.f32 %v637, %v749
  %v751 = vpop.f32.mrb[0].mxu0
  %v752 = vadd.f32 %v639, %v751
  %v753 = vpop.f32.mrb[0].mxu0
  %v754 = vadd.f32 %v641, %v753
  %v755 = vpop.f32.mrb[0].mxu0
  %v756 = vadd.f32 %v643, %v755
  %757 = vmatprep.mubr.bf16.mxu0 %v225
  %758 = vmatmul.mubr.bf16.gmra.mrb[0].mxu0 %v224
  %v759 = vpop.f32.mrb[0].mxu0
  %v760 = vadd.f32 %v647, %v759
  %v761 = vpop.f32.mrb[0].mxu0
  %v762 = vadd.f32 %v649, %v761
  %v763 = vpop.f32.mrb[0].mxu0
  %v764 = vadd.f32 %v651, %v763
  %v765 = vpop.f32.mrb[0].mxu0
  %v766 = vadd.f32 %v653, %v765
  %767 = vmatprep.mubr.bf16.mxu0 %v229
  %768 = vmatmul.mubr.bf16.gmra.mrb[0].mxu0 %v228
  %v769 = vpop.f32.mrb[0].mxu0
  %v770 = vadd.f32 %v657, %v769
  %v771 = vpop.f32.mrb[0].mxu0
  %v772 = vadd.f32 %v659, %v771
  %v773 = vpop.f32.mrb[0].mxu0
  %v774 = vadd.f32 %v661, %v773
  %v775 = vpop.f32.mrb[0].mxu0
  %v776 = vadd.f32 %v663, %v775
  %777 = vmatprep.mubr.bf16.mxu0 %v233
  %778 = vmatmul.mubr.bf16.gmra.mrb[0].mxu0 %v232
  %v779 = vpop.f32.mrb[0].mxu0
  %v780 = vadd.f32 %v667, %v779
  %v781 = vpop.f32.mrb[0].mxu0
  %v782 = vadd.f32 %v669, %v781
  %v783 = vpop.f32.mrb[0].mxu0
  %v784 = vadd.f32 %v671, %v783
  %v785 = vpop.f32.mrb[0].mxu0
  %v786 = vadd.f32 %v673, %v785
  %787 = vmatprep.mubr.bf16.mxu0 %v237
  %788 = vmatmul.mubr.bf16.gmra.mrb[0].mxu0 %v236
  %v789 = vpop.f32.mrb[0].mxu0
  %v790 = vadd.f32 %v677, %v789
  %v791 = vpop.f32.mrb[0].mxu0
  %v792 = vadd.f32 %v679, %v791
  %v793 = vpop.f32.mrb[0].mxu0
  %v794 = vadd.f32 %v681, %v793
  %v795 = vpop.f32.mrb[0].mxu0
  %v796 = vadd.f32 %v683, %v795
  %797 = vmatprep.mubr.bf16.mxu0 %v241
  %798 = vmatmul.mubr.bf16.gmra.mrb[0].mxu0 %v240
  %v799 = vpop.f32.mrb[0].mxu0
  %v800 = vadd.f32 %v687, %v799
  %v801 = vpop.f32.mrb[0].mxu0
  %v802 = vadd.f32 %v689, %v801
  %v803 = vpop.f32.mrb[0].mxu0
  %v804 = vadd.f32 %v691, %v803
  %v805 = vpop.f32.mrb[0].mxu0
  %v806 = vadd.f32 %v693, %v805
  %807 = vmatprep.mubr.bf16.mxu0 %v245
  %808 = vmatmul.mubr.bf16.gmra.mrb[0].mxu0 %v244
  %v809 = vpop.f32.mrb[0].mxu0
  %v810 = vadd.f32 %v697, %v809
  %v811 = vpop.f32.mrb[0].mxu0
  %v812 = vadd.f32 %v699, %v811
  %v813 = vpop.f32.mrb[0].mxu0
  %v814 = vadd.f32 %v701, %v813
  %v815 = vpop.f32.mrb[0].mxu0
  %v816 = vadd.f32 %v703, %v815
  %817 = vmatprep.mubr.bf16.mxu0 %v249
  %818 = vmatmul.mubr.bf16.gmra.mrb[0].mxu0 %v248
  %v819 = vpop.f32.mrb[0].mxu0
  %v820 = vadd.f32 %v707, %v819
  %v821 = vpop.f32.mrb[0].mxu0
  %v822 = vadd.f32 %v709, %v821
  %v823 = vpop.f32.mrb[0].mxu0
  %v824 = vadd.f32 %v711, %v823
  %v825 = vpop.f32.mrb[0].mxu0
  %v826 = vadd.f32 %v713, %v825
  %827 = vdwg.mxu0
  %v828 = vmax.f32 %v750, 0.0
  %v829 = vmax.f32 %v752, 0.0
  %v830 = vmax.f32 %v754, 0.0
  %v831 = vmax.f32 %v756, 0.0
  %v832 = vmax.f32 %v760, 0.0
  %v833 = vmax.f32 %v762, 0.0
  %v834 = vmax.f32 %v764, 0.0
  %v835 = vmax.f32 %v766, 0.0
  %v836 = vmax.f32 %v770, 0.0
  %v837 = vmax.f32 %v772, 0.0
  %v838 = vmax.f32 %v774, 0.0
  %v839 = vmax.f32 %v776, 0.0
  %v840 = vmax.f32 %v780, 0.0
  %v841 = vmax.f32 %v782, 0.0
  %v842 = vmax.f32 %v784, 0.0
  %v843 = vmax.f32 %v786, 0.0
  %v844 = vmax.f32 %v790, 0.0
  %v845 = vmax.f32 %v792, 0.0
  %v846 = vmax.f32 %v794, 0.0
  %v847 = vmax.f32 %v796, 0.0
  %v848 = vmax.f32 %v800, 0.0
  %v849 = vmax.f32 %v802, 0.0
  %v850 = vmax.f32 %v804, 0.0
  %v851 = vmax.f32 %v806, 0.0
  %v852 = vmax.f32 %v810, 0.0
  %v853 = vmax.f32 %v812, 0.0
  %v854 = vmax.f32 %v814, 0.0
  %v855 = vmax.f32 %v816, 0.0
  %v856 = vmax.f32 %v820, 0.0
  %v857 = vmax.f32 %v822, 0.0
  %v858 = vmax.f32 %v824, 0.0
  %v859 = vmax.f32 %v826, 0.0
  %v860 = vpack.c.bf16 %v830, %v828
  %v861 = vpack.c.bf16 %v831, %v829
  %v862 = vpack.c.bf16 %v834, %v832
  %v863 = vpack.c.bf16 %v835, %v833
  %v864 = vpack.c.bf16 %v838, %v836
  %v865 = vpack.c.bf16 %v839, %v837
  %v866 = vpack.c.bf16 %v842, %v840
  %v867 = vpack.c.bf16 %v843, %v841
  %v868 = vpack.c.bf16 %v846, %v844
  %v869 = vpack.c.bf16 %v847, %v845
  %v870 = vpack.c.bf16 %v850, %v848
  %v871 = vpack.c.bf16 %v851, %v849
  %v872 = vpack.c.bf16 %v854, %v852
  %v873 = vpack.c.bf16 %v855, %v853
  %v874 = vpack.c.bf16 %v858, %v856
  %v875 = vpack.c.bf16 %v859, %v857
  %v892 = vunpack.c.l.b16 %v860
  %v893 = vunpack.c.l.b16 %v861
  %v894 = vunpack.c.h.b16 %v860
  %v895 = vunpack.c.h.b16 %v861
  %v896 = vunpack.c.l.b16 %v862
  %v897 = vunpack.c.l.b16 %v863
  %v898 = vunpack.c.h.b16 %v862
  %v899 = vunpack.c.h.b16 %v863
  %v900 = vunpack.c.l.b16 %v864
  %v901 = vunpack.c.l.b16 %v865
  %v902 = vunpack.c.h.b16 %v864
  %v903 = vunpack.c.h.b16 %v865
  %v904 = vunpack.c.l.b16 %v866
  %v905 = vunpack.c.l.b16 %v867
  %v906 = vunpack.c.h.b16 %v866
  %v907 = vunpack.c.h.b16 %v867
  %v908 = vunpack.c.l.b16 %v868
  %v909 = vunpack.c.l.b16 %v869
  %v910 = vunpack.c.h.b16 %v868
  %v911 = vunpack.c.h.b16 %v869
  %v912 = vunpack.c.l.b16 %v870
  %v913 = vunpack.c.l.b16 %v871
  %v914 = vunpack.c.h.b16 %v870
  %v915 = vunpack.c.h.b16 %v871
  %v916 = vunpack.c.l.b16 %v872
  %v917 = vunpack.c.l.b16 %v873
  %v918 = vunpack.c.h.b16 %v872
  %v919 = vunpack.c.h.b16 %v873
  %v920 = vunpack.c.l.b16 %v874
  %v921 = vunpack.c.l.b16 %v875
  %v922 = vunpack.c.h.b16 %v874
  %v923 = vunpack.c.h.b16 %v875
  %v924 = vpack.c.b16 %v893, %v892
  %v925 = vpack.c.b16 %v895, %v894
  %v926 = vpack.c.b16 %v897, %v896
  %v927 = vpack.c.b16 %v899, %v898
  %v928 = vpack.c.b16 %v901, %v900
  %v929 = vpack.c.b16 %v903, %v902
  %v930 = vpack.c.b16 %v905, %v904
  %v931 = vpack.c.b16 %v907, %v906
  %v932 = vpack.c.b16 %v909, %v908
  %v933 = vpack.c.b16 %v911, %v910
  %v934 = vpack.c.b16 %v913, %v912
  %v935 = vpack.c.b16 %v915, %v914
  %v936 = vpack.c.b16 %v917, %v916
  %v937 = vpack.c.b16 %v919, %v918
  %v938 = vpack.c.b16 %v921, %v920
  %v939 = vpack.c.b16 %v923, %v922
  %956 = vst [vmem:[%s3] sm:$0xff] %v924
  %957 = vst [vmem:[%s3 + $0x8] sm:$0xff] %v925
  %958 = vst [vmem:[%s3 + $0x10] sm:$0xff] %v926
  %959 = vst [vmem:[%s3 + $0x18] sm:$0xff] %v927
  %960 = vst [vmem:[%s3 + $0x20] sm:$0xff] %v928
  %961 = vst [vmem:[%s3 + $0x28] sm:$0xff] %v929
  %962 = vst [vmem:[%s3 + $0x30] sm:$0xff] %v930
  %963 = vst [vmem:[%s3 + $0x38] sm:$0xff] %v931
  %964 = vst [vmem:[%s3 + $0x40] sm:$0xff] %v932
  %965 = vst [vmem:[%s3 + $0x48] sm:$0xff] %v933
  %966 = vst [vmem:[%s3 + $0x50] sm:$0xff] %v934
  %967 = vst [vmem:[%s3 + $0x58] sm:$0xff] %v935
  %968 = vst [vmem:[%s3 + $0x60] sm:$0xff] %v936
  %969 = vst [vmem:[%s3 + $0x68] sm:$0xff] %v937
  %970 = vst [vmem:[%s3 + $0x70] sm:$0xff] %v938
  %971 = vst [vmem:[%s3 + $0x78] sm:$0xff] %v939
  // Predicated region
  $region14: #{autoencoder_forward.12} parent=0 // pred_check
    _
  $region15: #{autoencoder_forward.12} parent=0 // pred_check_branch
    %973 = sbr.rel (0) target = $region17
  $region16: #{autoencoder_forward.12} parent=0 // pred_region
    _
  $region17: #{autoencoder_forward.12} parent=0 // pred_fallthru
    _
  // Predicated region
  $region18: #{autoencoder_forward.12} parent=0 // pred_check
    _
  $region19: #{autoencoder_forward.12} parent=0 // pred_check_branch
    %975 = sbr.rel (0) target = $region21
  $region20: #{autoencoder_forward.12} parent=0 // pred_region
    _
  $region21: #{autoencoder_forward.12} parent=0 // pred_fallthru
    _

// kernel: autoencoder_forward.13
$region0: #{autoencoder_forward.13}
  #allocation0 [shape = 'u32[]', space=smem, size = 0x4, offset = 0x4, fixed_abs, tag = 'smem constant byte address 0x4 - core index']
  #allocation1 [shape = 'u32[144,128]{1,0:T(1,128)}', space=vmem, size = 0x12000, scoped, tag = 'internal scratch']
  %s0 = inlined_call_operand.vmem [shape: bf16[512,256], index: 0, kind: input, shape index: {}]
  %s1 = inlined_call_operand.vmem [shape: bf16[256,128], index: 1, kind: input, shape index: {}]
  %s2 = inlined_call_operand.vmem [shape: f32[1,128], index: 2, kind: input, shape index: {}]
  %s3 = inlined_call_operand.vmem [shape: bf16[128,4], index: 3, kind: input, shape index: {}]
  %s4 = inlined_call_operand.vmem [shape: f32[1,4], index: 4, kind: input, shape index: {}]
  %s5 = inlined_call_operand.vmem [shape: f32[512,4], index: 5, kind: output, shape index: {}]
  %s6 = sld [smem:[#allocation0]]
  $region53: #{autoencoder_forward.13} parent=0
    _
  %s8 = ssub.s32 1, %s6
  %s9 = scalar_select 0, %s8, %s6
  loop: start=0, step=1, limit=4
  $region2: #{autoencoder_forward.13} parent=0 // loop_pre_header
    _
  $region3: #{autoencoder_forward.13} parent=0 // loop_header
    %s11 = sphi 0, %s15
    %p12 = scmp.ge.s32.totalorder %s11, 4
    %s21 = sphi 0, %s23
    %s24 = sphi 0, %s21
    %s25 = sphi 0, %s24
    %s41 = sphi 0, %s25
    %s45 = sphi 0, %s45
    %s47 = sphi 0, %s45
    %s48 = sphi 0, %s47
    %s62 = sphi 0, %s48
    %s66 = sphi 0, %s66
    %s68 = sphi 0, %s66
    %s69 = sphi 0, %s68
    %s83 = sphi 0, %s69
    %s87 = sphi 0, %s87
    %s89 = sphi 0, %s87
    %s90 = sphi 0, %s89
    %s104 = sphi 0, %s90
    %s108 = sphi 0, %s108
    %s110 = sphi 0, %s108
    %s111 = sphi 0, %s110
    %s125 = sphi 0, %s111
    %s131 = sphi 0, %s133
    %s134 = sphi 0, %s131
    %s135 = sphi 0, %s134
    %s151 = sphi 0, %s135
  $region4: #{autoencoder_forward.13} parent=0 // loop_header_branch
    %14 = sbr.rel (%p12) target = $region8
  $region5: #{autoencoder_forward.13} parent=0 // loop_body
    %s16 = ssub.s32 %s11, 1
    %s17 = ssub.s32 %s11, 2
    %s18 = sadd.s32 %s11, 1
    %s19 = ssub.s32 %s11, %s18
    %p20 = scmp.eq.s32.totalorder %s19, 0
    %s22 = sadd.s32 %s21, 1
    %s23 = scalar_select %p20, %s21, %s22
    %p26 = pneg %p20
    %p27 = scmp.eq.s32.totalorder %s11, 1
    %p28 = por %p26, %p27
    %p29 = scmp.ne.s32.totalorder %s21, %s24
    %p30 = scmp.eq.s32.totalorder %s11, 0
    %p31 = por %p29, %p30
    %p32 = scmp.ne.s32.totalorder %s21, %s24
    %p33 = scmp.eq.s32.totalorder %s16, 1
    %p34 = por %p32, %p33
    %p35 = scmp.ne.s32.totalorder %s24, %s25
    %p36 = scmp.eq.s32.totalorder %s16, 0
    %p37 = por %p35, %p36
    %p38 = scmp.ne.s32.totalorder %s24, %s25
    %p39 = scmp.eq.s32.totalorder %s17, 1
    %p40 = por %p38, %p39
    %p42 = scmp.ne.s32.totalorder %s25, %s41
    %p43 = scmp.eq.s32.totalorder %s17, 0
    %p44 = por %p42, %p43
    %s46 = sadd.s32 %s45, 1
    %p49 = scmp.eq.s32.totalorder %s11, 1
    %p50 = scmp.ne.s32.totalorder %s45, %s47
    %p51 = scmp.eq.s32.totalorder %s11, 0
    %p52 = por %p50, %p51
    %p53 = scmp.ne.s32.totalorder %s45, %s47
    %p54 = scmp.eq.s32.totalorder %s16, 1
    %p55 = por %p53, %p54
    %p56 = scmp.ne.s32.totalorder %s47, %s48
    %p57 = scmp.eq.s32.totalorder %s16, 0
    %p58 = por %p56, %p57
    %p59 = scmp.ne.s32.totalorder %s47, %s48
    %p60 = scmp.eq.s32.totalorder %s17, 1
    %p61 = por %p59, %p60
    %p63 = scmp.ne.s32.totalorder %s48, %s62
    %p64 = scmp.eq.s32.totalorder %s17, 0
    %p65 = por %p63, %p64
    %s67 = sadd.s32 %s66, 1
    %p70 = scmp.eq.s32.totalorder %s11, 1
    %p71 = scmp.ne.s32.totalorder %s66, %s68
    %p72 = scmp.eq.s32.totalorder %s11, 0
    %p73 = por %p71, %p72
    %p74 = scmp.ne.s32.totalorder %s66, %s68
    %p75 = scmp.eq.s32.totalorder %s16, 1
    %p76 = por %p74, %p75
    %p77 = scmp.ne.s32.totalorder %s68, %s69
    %p78 = scmp.eq.s32.totalorder %s16, 0
    %p79 = por %p77, %p78
    %p80 = scmp.ne.s32.totalorder %s68, %s69
    %p81 = scmp.eq.s32.totalorder %s17, 1
    %p82 = por %p80, %p81
    %p84 = scmp.ne.s32.totalorder %s69, %s83
    %p85 = scmp.eq.s32.totalorder %s17, 0
    %p86 = por %p84, %p85
    %s88 = sadd.s32 %s87, 1
    %p91 = scmp.eq.s32.totalorder %s11, 1
    %p92 = scmp.ne.s32.totalorder %s87, %s89
    %p93 = scmp.eq.s32.totalorder %s11, 0
    %p94 = por %p92, %p93
    %p95 = scmp.ne.s32.totalorder %s87, %s89
    %p96 = scmp.eq.s32.totalorder %s16, 1
    %p97 = por %p95, %p96
    %p98 = scmp.ne.s32.totalorder %s89, %s90
    %p99 = scmp.eq.s32.totalorder %s16, 0
    %p100 = por %p98, %p99
    %p101 = scmp.ne.s32.totalorder %s89, %s90
    %p102 = scmp.eq.s32.totalorder %s17, 1
    %p103 = por %p101, %p102
    %p105 = scmp.ne.s32.totalorder %s90, %s104
    %p106 = scmp.eq.s32.totalorder %s17, 0
    %p107 = por %p105, %p106
    %s109 = sadd.s32 %s108, 1
    %p112 = scmp.eq.s32.totalorder %s11, 1
    %p113 = scmp.ne.s32.totalorder %s108, %s110
    %p114 = scmp.eq.s32.totalorder %s11, 0
    %p115 = por %p113, %p114
    %p116 = scmp.ne.s32.totalorder %s108, %s110
    %p117 = scmp.eq.s32.totalorder %s16, 1
    %p118 = por %p116, %p117
    %p119 = scmp.ne.s32.totalorder %s110, %s111
    %p120 = scmp.eq.s32.totalorder %s16, 0
    %p121 = por %p119, %p120
    %p122 = scmp.ne.s32.totalorder %s110, %s111
    %p123 = scmp.eq.s32.totalorder %s17, 1
    %p124 = por %p122, %p123
    %p126 = scmp.ne.s32.totalorder %s111, %s125
    %p127 = scmp.eq.s32.totalorder %s17, 0
    %p128 = por %p126, %p127
    %s129 = ssub.s32 %s11, %s18
    %p130 = scmp.eq.s32.totalorder %s129, 0
    %s132 = sadd.s32 %s131, 1
    %s133 = scalar_select %p130, %s131, %s132
    %p136 = pneg %p130
    %p137 = scmp.eq.s32.totalorder %s11, 1
    %p138 = por %p136, %p137
    %p139 = scmp.ne.s32.totalorder %s131, %s134
    %p140 = scmp.eq.s32.totalorder %s11, 0
    %p141 = por %p139, %p140
    %p142 = scmp.ne.s32.totalorder %s131, %s134
    %p143 = scmp.eq.s32.totalorder %s16, 1
    %p144 = por %p142, %p143
    %p145 = scmp.ne.s32.totalorder %s134, %s135
    %p146 = scmp.eq.s32.totalorder %s16, 0
    %p147 = por %p145, %p146
    %p148 = scmp.ne.s32.totalorder %s134, %s135
    %p149 = scmp.eq.s32.totalorder %s17, 1
    %p150 = por %p148, %p149
    %p152 = scmp.ne.s32.totalorder %s135, %s151
    %p153 = scmp.eq.s32.totalorder %s17, 0
    %p154 = por %p152, %p153
    %p155 = scmp.le.s32.totalorder 1, %s11
    %p156 = scmp.lt.s32.totalorder %s11, 3
    %p157 = pnand %p155, %p156
    %p158 = pneg %p157
    // Predicated region
    $region9: #{autoencoder_forward.13} parent=5 // pred_check
      _
    $region10: #{autoencoder_forward.13} parent=5 // pred_check_branch
      %160 = sbr.rel (%p157) target = $region12
    $region11: #{autoencoder_forward.13} parent=5 // pred_region
      %s161 = ssub.s32 %s11, 1
      // Predicated region
      $region13: #{autoencoder_forward.13} parent=11 // pred_check
        %p162 = pneg %p58
      $region14: #{autoencoder_forward.13} parent=11 // pred_check_branch
        %164 = sbr.rel (%p162) target = $region16
      $region15: #{autoencoder_forward.13} parent=11 // pred_region
        _
      $region16: #{autoencoder_forward.13} parent=11 // pred_fallthru
        _
      // Predicated region
      $region17: #{autoencoder_forward.13} parent=11 // pred_check
        %p165 = pneg %p79
      $region18: #{autoencoder_forward.13} parent=11 // pred_check_branch
        %167 = sbr.rel (%p165) target = $region20
      $region19: #{autoencoder_forward.13} parent=11 // pred_region
        _
      $region20: #{autoencoder_forward.13} parent=11 // pred_fallthru
        _
      // Predicated region
      $region21: #{autoencoder_forward.13} parent=11 // pred_check
        %p168 = pneg %p100
      $region22: #{autoencoder_forward.13} parent=11 // pred_check_branch
        %170 = sbr.rel (%p168) target = $region24
      $region23: #{autoencoder_forward.13} parent=11 // pred_region
        _
      $region24: #{autoencoder_forward.13} parent=11 // pred_fallthru
        _
      // Predicated region
      $region25: #{autoencoder_forward.13} parent=11 // pred_check
        %p171 = pneg %p121
      $region26: #{autoencoder_forward.13} parent=11 // pred_check_branch
        %173 = sbr.rel (%p171) target = $region28
      $region27: #{autoencoder_forward.13} parent=11 // pred_region
        _
      $region28: #{autoencoder_forward.13} parent=11 // pred_fallthru
        _
    $region12: #{autoencoder_forward.13} parent=5 // pred_fallthru
      _
    %p174 = scmp.lt.s32.totalorder %s11, 2
    // Predicated region
    $region29: #{autoencoder_forward.13} parent=5 // pred_check
      %p175 = pneg %p174
    $region30: #{autoencoder_forward.13} parent=5 // pred_check_branch
      %177 = sbr.rel (%p175) target = $region32
    $region31: #{autoencoder_forward.13} parent=5 // pred_region
      // Predicated region
      $region33: #{autoencoder_forward.13} parent=31 // pred_check
        %p178 = pneg %p31
      $region34: #{autoencoder_forward.13} parent=31 // pred_check_branch
        %180 = sbr.rel (%p178) target = $region36
      $region35: #{autoencoder_forward.13} parent=31 // pred_region
        %s181 = smul.u32 32, %s11
        %p182 = scmp.lt.s32.totalorder %s181, 63
        %s183 = scalar_select %p182, %s181, 63
        %s184 = smul.addr %s183, 2
        %s185 = smul.addr %s184, 4
        %s186 = scalar_lea.vmem %s0, %s185
        %s187 = smul.u32 32, %s11
      $region36: #{autoencoder_forward.13} parent=31 // pred_fallthru
        _
    $region32: #{autoencoder_forward.13} parent=5 // pred_fallthru
      _
    %p188 = scmp.le.s32.totalorder 1, %s11
    %p189 = scmp.lt.s32.totalorder %s11, 3
    %p190 = pnand %p188, %p189
    %p191 = pneg %p190
    // Predicated region
    $region37: #{autoencoder_forward.13} parent=5 // pred_check
      _
    $region38: #{autoencoder_forward.13} parent=5 // pred_check_branch
      %193 = sbr.rel (%p190) target = $region40
    $region39: #{autoencoder_forward.13} parent=5 // pred_region
      %s194 = ssub.s32 %s11, 1
      %s195 = smul.u32 32, %s16
      %p196 = scmp.lt.s32.totalorder %s195, 63
      %s197 = scalar_select %p196, %s195, 63
      %s198 = smul.addr %s197, 2
      %s199 = smul.addr %s198, 4
      %s200 = scalar_lea.vmem %s0, %s199
      %p201 = pneg %p37
      %p202 = pneg %p34
      %p203 = pneg %p58
      %p204 = pneg %p55
      %p205 = pneg %p79
      %p206 = pneg %p76
      %p207 = pneg %p100
      %p208 = pneg %p97
      %p209 = pneg %p121
      %p210 = pneg %p118
      %p211 = pneg %p147
      %p212 = pneg %p144
      %s213 = smul.u32 32, %s16
      %p214 = scmp.lt.s32.totalorder %s213, 63
      %s215 = scalar_select %p214, %s213, 63
      %s216 = smul.addr %s215, 8
      %s217 = scalar_lea.vmem %s5, %s216
      %s218 = smul.u32 32, %s16
      %p219 = scmp.lt.s32.totalorder %s218, 63
      %s220 = scalar_select %p219, %s218, 63
      %s221 = smul.addr %s220, 2
      %s222 = smul.addr %s221, 4
      %s223 = scalar_lea.vmem %s0, %s222
      %s224 = smul.u32 32, %s16
      %s225 = smul.u32 32, %s16
      %p226 = scmp.lt.s32.totalorder %s225, 63
      %s227 = scalar_select %p226, %s225, 63
      %s228 = smul.addr %s227, 8
      %s229 = scalar_lea.vmem %s5, %s228
      %s230 = smul.u32 32, %s16
      %v232 = vld [vmem:[%s223] sm:$0xff]
      %v233 = vld [vmem:[%s223 + $0x8] sm:$0xff]
      %v234 = vld [vmem:[%s223 + $0x10] sm:$0xff]
      %v235 = vld [vmem:[%s223 + $0x18] sm:$0xff]
      %v236 = vld [vmem:[%s223 + $0x20] sm:$0xff]
      %v237 = vld [vmem:[%s223 + $0x28] sm:$0xff]
      %v238 = vld [vmem:[%s223 + $0x30] sm:$0xff]
      %v239 = vld [vmem:[%s223 + $0x38] sm:$0xff]
      %v240 = vld [vmem:[%s223 + $0x40] sm:$0xff]
      %v241 = vld [vmem:[%s223 + $0x48] sm:$0xff]
      %v242 = vld [vmem:[%s223 + $0x50] sm:$0xff]
      %v243 = vld [vmem:[%s223 + $0x58] sm:$0xff]
      %v244 = vld [vmem:[%s223 + $0x60] sm:$0xff]
      %v245 = vld [vmem:[%s223 + $0x68] sm:$0xff]
      %v246 = vld [vmem:[%s223 + $0x70] sm:$0xff]
      %v247 = vld [vmem:[%s223 + $0x78] sm:$0xff]
      %v248 = vld [vmem:[%s223 + $0x80] sm:$0xff]
      %v249 = vld [vmem:[%s223 + $0x88] sm:$0xff]
      %v250 = vld [vmem:[%s223 + $0x90] sm:$0xff]
      %v251 = vld [vmem:[%s223 + $0x98] sm:$0xff]
      %v252 = vld [vmem:[%s223 + $0xa0] sm:$0xff]
      %v253 = vld [vmem:[%s223 + $0xa8] sm:$0xff]
      %v254 = vld [vmem:[%s223 + $0xb0] sm:$0xff]
      %v255 = vld [vmem:[%s223 + $0xb8] sm:$0xff]
      %v256 = vld [vmem:[%s223 + $0xc0] sm:$0xff]
      %v257 = vld [vmem:[%s223 + $0xc8] sm:$0xff]
      %v258 = vld [vmem:[%s223 + $0xd0] sm:$0xff]
      %v259 = vld [vmem:[%s223 + $0xd8] sm:$0xff]
      %v260 = vld [vmem:[%s223 + $0xe0] sm:$0xff]
      %v261 = vld [vmem:[%s223 + $0xe8] sm:$0xff]
      %v262 = vld [vmem:[%s223 + $0xf0] sm:$0xff]
      %v263 = vld [vmem:[%s223 + $0xf8] sm:$0xff]
      %v264 = vld [vmem:[%s1] sm:$0xf]
      %v265 = vld [vmem:[%s1 + $0x4] sm:$0xf]
      %v266 = vld [vmem:[%s1 + $0x8] sm:$0xf]
      %v267 = vld [vmem:[%s1 + $0xc] sm:$0xf]
      %v268 = vld [vmem:[%s1 + $0x10] sm:$0xf]
      %v269 = vld [vmem:[%s1 + $0x14] sm:$0xf]
      %v270 = vld [vmem:[%s1 + $0x18] sm:$0xf]
      %v271 = vld [vmem:[%s1 + $0x1c] sm:$0xf]
      %v272 = vld [vmem:[%s1 + $0x20] sm:$0xf]
      %v273 = vld [vmem:[%s1 + $0x24] sm:$0xf]
      %v274 = vld [vmem:[%s1 + $0x28] sm:$0xf]
      %v275 = vld [vmem:[%s1 + $0x2c] sm:$0xf]
      %v276 = vld [vmem:[%s1 + $0x30] sm:$0xf]
      %v277 = vld [vmem:[%s1 + $0x34] sm:$0xf]
      %v278 = vld [vmem:[%s1 + $0x38] sm:$0xf]
      %v279 = vld [vmem:[%s1 + $0x3c] sm:$0xf]
      %v280 = vld [vmem:[%s1 + $0x40] sm:$0xf]
      %v281 = vld [vmem:[%s1 + $0x44] sm:$0xf]
      %v282 = vld [vmem:[%s1 + $0x48] sm:$0xf]
      %v283 = vld [vmem:[%s1 + $0x4c] sm:$0xf]
      %v284 = vld [vmem:[%s1 + $0x50] sm:$0xf]
      %v285 = vld [vmem:[%s1 + $0x54] sm:$0xf]
      %v286 = vld [vmem:[%s1 + $0x58] sm:$0xf]
      %v287 = vld [vmem:[%s1 + $0x5c] sm:$0xf]
      %v288 = vld [vmem:[%s1 + $0x60] sm:$0xf]
      %v289 = vld [vmem:[%s1 + $0x64] sm:$0xf]
      %v290 = vld [vmem:[%s1 + $0x68] sm:$0xf]
      %v291 = vld [vmem:[%s1 + $0x6c] sm:$0xf]
      %v292 = vld [vmem:[%s1 + $0x70] sm:$0xf]
      %v293 = vld [vmem:[%s1 + $0x74] sm:$0xf]
      %v294 = vld [vmem:[%s1 + $0x78] sm:$0xf]
      %v295 = vld [vmem:[%s1 + $0x7c] sm:$0xf]
      %v296 = vld [vmem:[%s2] sm:$0x1]
      %v298 = vlaneseq
      %v299 = vshrl.u32 %v298, 7
      %v300 = vsub.s32 0, %v299
      %v301 = vrot.slane %v296, %v300
      %v335 = vunpack.c.l.b16 %v232
      %v336 = vunpack.c.h.b16 %v232
      %v337 = vunpack.c.l.b16 %v233
      %v338 = vunpack.c.h.b16 %v233
      %v339 = vunpack.c.l.b16 %v234
      %v340 = vunpack.c.h.b16 %v234
      %v341 = vunpack.c.l.b16 %v235
      %v342 = vunpack.c.h.b16 %v235
      %v343 = vunpack.c.l.b16 %v236
      %v344 = vunpack.c.h.b16 %v236
      %v345 = vunpack.c.l.b16 %v237
      %v346 = vunpack.c.h.b16 %v237
      %v347 = vunpack.c.l.b16 %v238
      %v348 = vunpack.c.h.b16 %v238
      %v349 = vunpack.c.l.b16 %v239
      %v350 = vunpack.c.h.b16 %v239
      %v351 = vunpack.c.l.b16 %v240
      %v352 = vunpack.c.h.b16 %v240
      %v353 = vunpack.c.l.b16 %v241
      %v354 = vunpack.c.h.b16 %v241
      %v355 = vunpack.c.l.b16 %v242
      %v356 = vunpack.c.h.b16 %v242
      %v357 = vunpack.c.l.b16 %v243
      %v358 = vunpack.c.h.b16 %v243
      %v359 = vunpack.c.l.b16 %v244
      %v360 = vunpack.c.h.b16 %v244
      %v361 = vunpack.c.l.b16 %v245
      %v362 = vunpack.c.h.b16 %v245
      %v363 = vunpack.c.l.b16 %v246
      %v364 = vunpack.c.h.b16 %v246
      %v365 = vunpack.c.l.b16 %v247
      %v366 = vunpack.c.h.b16 %v247
      %v367 = vunpack.c.l.b16 %v248
      %v368 = vunpack.c.h.b16 %v248
      %v369 = vunpack.c.l.b16 %v249
      %v370 = vunpack.c.h.b16 %v249
      %v371 = vunpack.c.l.b16 %v250
      %v372 = vunpack.c.h.b16 %v250
      %v373 = vunpack.c.l.b16 %v251
      %v374 = vunpack.c.h.b16 %v251
      %v375 = vunpack.c.l.b16 %v252
      %v376 = vunpack.c.h.b16 %v252
      %v377 = vunpack.c.l.b16 %v253
      %v378 = vunpack.c.h.b16 %v253
      %v379 = vunpack.c.l.b16 %v254
      %v380 = vunpack.c.h.b16 %v254
      %v381 = vunpack.c.l.b16 %v255
      %v382 = vunpack.c.h.b16 %v255
      %v383 = vunpack.c.l.b16 %v256
      %v384 = vunpack.c.h.b16 %v256
      %v385 = vunpack.c.l.b16 %v257
      %v386 = vunpack.c.h.b16 %v257
      %v387 = vunpack.c.l.b16 %v258
      %v388 = vunpack.c.h.b16 %v258
      %v389 = vunpack.c.l.b16 %v259
      %v390 = vunpack.c.h.b16 %v259
      %v391 = vunpack.c.l.b16 %v260
      %v392 = vunpack.c.h.b16 %v260
      %v393 = vunpack.c.l.b16 %v261
      %v394 = vunpack.c.h.b16 %v261
      %v395 = vunpack.c.l.b16 %v262
      %v396 = vunpack.c.h.b16 %v262
      %v397 = vunpack.c.l.b16 %v263
      %v398 = vunpack.c.h.b16 %v263
      %v399 = vpack.c.b16 %v337, %v335
      %v400 = vpack.c.b16 %v338, %v336
      %v401 = vpack.c.b16 %v341, %v339
      %v402 = vpack.c.b16 %v342, %v340
      %v403 = vpack.c.b16 %v345, %v343
      %v404 = vpack.c.b16 %v346, %v344
      %v405 = vpack.c.b16 %v349, %v347
      %v406 = vpack.c.b16 %v350, %v348
      %v407 = vpack.c.b16 %v353, %v351
      %v408 = vpack.c.b16 %v354, %v352
      %v409 = vpack.c.b16 %v357, %v355
      %v410 = vpack.c.b16 %v358, %v356
      %v411 = vpack.c.b16 %v361, %v359
      %v412 = vpack.c.b16 %v362, %v360
      %v413 = vpack.c.b16 %v365, %v363
      %v414 = vpack.c.b16 %v366, %v364
      %v415 = vpack.c.b16 %v369, %v367
      %v416 = vpack.c.b16 %v370, %v368
      %v417 = vpack.c.b16 %v373, %v371
      %v418 = vpack.c.b16 %v374, %v372
      %v419 = vpack.c.b16 %v377, %v375
      %v420 = vpack.c.b16 %v378, %v376
      %v421 = vpack.c.b16 %v381, %v379
      %v422 = vpack.c.b16 %v382, %v380
      %v423 = vpack.c.b16 %v385, %v383
      %v424 = vpack.c.b16 %v386, %v384
      %v425 = vpack.c.b16 %v389, %v387
      %v426 = vpack.c.b16 %v390, %v388
      %v427 = vpack.c.b16 %v393, %v391
      %v428 = vpack.c.b16 %v394, %v392
      %v429 = vpack.c.b16 %v397, %v395
      %v430 = vpack.c.b16 %v398, %v396
      %v495 = vunpack.c.l.b16 %v264
      %v496 = vunpack.c.l.b16 %v265
      %v497 = vunpack.c.l.b16 %v266
      %v498 = vunpack.c.l.b16 %v267
      %v499 = vunpack.c.l.b16 %v268
      %v500 = vunpack.c.l.b16 %v269
      %v501 = vunpack.c.l.b16 %v270
      %v502 = vunpack.c.l.b16 %v271
      %v503 = vunpack.c.l.b16 %v272
      %v504 = vunpack.c.l.b16 %v273
      %v505 = vunpack.c.l.b16 %v274
      %v506 = vunpack.c.l.b16 %v275
      %v507 = vunpack.c.l.b16 %v276
      %v508 = vunpack.c.l.b16 %v277
      %v509 = vunpack.c.l.b16 %v278
      %v510 = vunpack.c.l.b16 %v279
      %v511 = vunpack.c.l.b16 %v280
      %v512 = vunpack.c.l.b16 %v281
      %v513 = vunpack.c.l.b16 %v282
      %v514 = vunpack.c.l.b16 %v283
      %v515 = vunpack.c.l.b16 %v284
      %v516 = vunpack.c.l.b16 %v285
      %v517 = vunpack.c.l.b16 %v286
      %v518 = vunpack.c.l.b16 %v287
      %v519 = vunpack.c.l.b16 %v288
      %v520 = vunpack.c.l.b16 %v289
      %v521 = vunpack.c.l.b16 %v290
      %v522 = vunpack.c.l.b16 %v291
      %v523 = vunpack.c.l.b16 %v292
      %v524 = vunpack.c.l.b16 %v293
      %v525 = vunpack.c.l.b16 %v294
      %v526 = vunpack.c.l.b16 %v295
      %v527 = vpack.c.b16 %v496, %v495
      %v528 = vpack.c.b16 %v498, %v497
      %v529 = vpack.c.b16 %v500, %v499
      %v530 = vpack.c.b16 %v502, %v501
      %v531 = vpack.c.b16 %v504, %v503
      %v532 = vpack.c.b16 %v506, %v505
      %v533 = vpack.c.b16 %v508, %v507
      %v534 = vpack.c.b16 %v510, %v509
      %v535 = vpack.c.b16 %v512, %v511
      %v536 = vpack.c.b16 %v514, %v513
      %v537 = vpack.c.b16 %v516, %v515
      %v538 = vpack.c.b16 %v518, %v517
      %v539 = vpack.c.b16 %v520, %v519
      %v540 = vpack.c.b16 %v522, %v521
      %v541 = vpack.c.b16 %v524, %v523
      %v542 = vpack.c.b16 %v526, %v525
      %559 = vmatprep.subr.bf16.mxu0 0
      %560 = vmatpush1.bf16.msra.mxu0 %v527
      %561 = vmatprep.subr.bf16.mxu0 0
      %562 = vmatpush1.bf16.msra.mxu0 %v528
      %563 = vmatprep.subr.bf16.mxu0 0
      %564 = vmatpush1.bf16.msra.mxu0 %v529
      %565 = vmatprep.subr.bf16.mxu0 0
      %566 = vmatpush1.bf16.msra.mxu0 %v530
      %567 = vmatprep.subr.bf16.mxu0 0
      %568 = vmatpush1.bf16.msra.mxu0 %v531
      %569 = vmatprep.subr.bf16.mxu0 0
      %570 = vmatpush1.bf16.msra.mxu0 %v532
      %571 = vmatprep.subr.bf16.mxu0 0
      %572 = vmatpush1.bf16.msra.mxu0 %v533
      %573 = vmatprep.subr.bf16.mxu0 0
      %574 = vmatpush1.bf16.msra.mxu0 %v534
      %575 = vmatprep.subr.bf16.mxu0 0
      %576 = vmatpush1.bf16.msra.mxu0 %v535
      %577 = vmatprep.subr.bf16.mxu0 0
      %578 = vmatpush1.bf16.msra.mxu0 %v536
      %579 = vmatprep.subr.bf16.mxu0 0
      %580 = vmatpush1.bf16.msra.mxu0 %v537
      %581 = vmatprep.subr.bf16.mxu0 0
      %582 = vmatpush1.bf16.msra.mxu0 %v538
      %583 = vmatprep.subr.bf16.mxu0 0
      %584 = vmatpush1.bf16.msra.mxu0 %v539
      %585 = vmatprep.subr.bf16.mxu0 0
      %586 = vmatpush1.bf16.msra.mxu0 %v540
      %587 = vmatprep.subr.bf16.mxu0 0
      %588 = vmatpush1.bf16.msra.mxu0 %v541
      %589 = vmatprep.subr.bf16.mxu0 0
      %590 = vmatpush1.bf16.msra.mxu0 %v542
      %591 = vmatprep.mubr.bf16.mxu0 %v400
      %592 = vmatmul.mubr.bf16.gmra.mrb[0].mxu0 %v399
      %v593 = vpop.f32.mrb[0].mxu0
      %v594 = vadd.f32 %v301, %v593
      %v595 = vpop.f32.mrb[0].mxu0
      %v596 = vpop.f32.mrb[0].mxu0
      %v597 = vadd.f32 %v301, %v596
      %v598 = vpop.f32.mrb[0].mxu0
      %599 = vmatprep.mubr.bf16.mxu0 %v402
      %600 = vmatmul.mubr.bf16.gmra.mrb[0].mxu0 %v401
      %v601 = vpop.f32.mrb[0].mxu0
      %v602 = vadd.f32 %v301, %v601
      %v603 = vpop.f32.mrb[0].mxu0
      %v604 = vpop.f32.mrb[0].mxu0
      %v605 = vadd.f32 %v301, %v604
      %v606 = vpop.f32.mrb[0].mxu0
      %607 = vmatprep.mubr.bf16.mxu0 %v404
      %608 = vmatmul.mubr.bf16.gmra.mrb[0].mxu0 %v403
      %v609 = vpop.f32.mrb[0].mxu0
      %v610 = vadd.f32 %v301, %v609
      %v611 = vpop.f32.mrb[0].mxu0
      %v612 = vpop.f32.mrb[0].mxu0
      %v613 = vadd.f32 %v301, %v612
      %v614 = vpop.f32.mrb[0].mxu0
      %615 = vmatprep.mubr.bf16.mxu0 %v406
      %616 = vmatmul.mubr.bf16.gmra.mrb[0].mxu0 %v405
      %v617 = vpop.f32.mrb[0].mxu0
      %v618 = vadd.f32 %v301, %v617
      %v619 = vpop.f32.mrb[0].mxu0
      %v620 = vpop.f32.mrb[0].mxu0
      %v621 = vadd.f32 %v301, %v620
      %v622 = vpop.f32.mrb[0].mxu0
      %623 = vmatprep.mubr.bf16.mxu0 %v408
      %624 = vmatmul.mubr.bf16.gmra.mrb[0].mxu0 %v407
      %v625 = vpop.f32.mrb[0].mxu0
      %v626 = vadd.f32 %v301, %v625
      %v627 = vpop.f32.mrb[0].mxu0
      %v628 = vpop.f32.mrb[0].mxu0
      %v629 = vadd.f32 %v301, %v628
      %v630 = vpop.f32.mrb[0].mxu0
      %631 = vmatprep.mubr.bf16.mxu0 %v410
      %632 = vmatmul.mubr.bf16.gmra.mrb[0].mxu0 %v409
      %v633 = vpop.f32.mrb[0].mxu0
      %v634 = vadd.f32 %v301, %v633
      %v635 = vpop.f32.mrb[0].mxu0
      %v636 = vpop.f32.mrb[0].mxu0
      %v637 = vadd.f32 %v301, %v636
      %v638 = vpop.f32.mrb[0].mxu0
      %639 = vmatprep.mubr.bf16.mxu0 %v412
      %640 = vmatmul.mubr.bf16.gmra.mrb[0].mxu0 %v411
      %v641 = vpop.f32.mrb[0].mxu0
      %v642 = vadd.f32 %v301, %v641
      %v643 = vpop.f32.mrb[0].mxu0
      %v644 = vpop.f32.mrb[0].mxu0
      %v645 = vadd.f32 %v301, %v644
      %v646 = vpop.f32.mrb[0].mxu0
      %647 = vmatprep.mubr.bf16.mxu0 %v414
      %648 = vmatmul.mubr.bf16.gmra.mrb[0].mxu0 %v413
      %v649 = vpop.f32.mrb[0].mxu0
      %v650 = vadd.f32 %v301, %v649
      %v651 = vpop.f32.mrb[0].mxu0
      %v652 = vpop.f32.mrb[0].mxu0
      %v653 = vadd.f32 %v301, %v652
      %v654 = vpop.f32.mrb[0].mxu0
      %655 = vmatprep.mubr.bf16.mxu0 %v416
      %656 = vmatmul.mubr.bf16.gmra.mrb[0].mxu0 %v415
      %v657 = vpop.f32.mrb[0].mxu0
      %v658 = vadd.f32 %v301, %v657
      %v659 = vpop.f32.mrb[0].mxu0
      %v660 = vpop.f32.mrb[0].mxu0
      %v661 = vadd.f32 %v301, %v660
      %v662 = vpop.f32.mrb[0].mxu0
      %663 = vmatprep.mubr.bf16.mxu0 %v418
      %664 = vmatmul.mubr.bf16.gmra.mrb[0].mxu0 %v417
      %v665 = vpop.f32.mrb[0].mxu0
      %v666 = vadd.f32 %v301, %v665
      %v667 = vpop.f32.mrb[0].mxu0
      %v668 = vpop.f32.mrb[0].mxu0
      %v669 = vadd.f32 %v301, %v668
      %v670 = vpop.f32.mrb[0].mxu0
      %671 = vmatprep.mubr.bf16.mxu0 %v420
      %672 = vmatmul.mubr.bf16.gmra.mrb[0].mxu0 %v419
      %v673 = vpop.f32.mrb[0].mxu0
      %v674 = vadd.f32 %v301, %v673
      %v675 = vpop.f32.mrb[0].mxu0
      %v676 = vpop.f32.mrb[0].mxu0
      %v677 = vadd.f32 %v301, %v676
      %v678 = vpop.f32.mrb[0].mxu0
      %679 = vmatprep.mubr.bf16.mxu0 %v422
      %680 = vmatmul.mubr.bf16.gmra.mrb[0].mxu0 %v421
      %v681 = vpop.f32.mrb[0].mxu0
      %v682 = vadd.f32 %v301, %v681
      %v683 = vpop.f32.mrb[0].mxu0
      %v684 = vpop.f32.mrb[0].mxu0
      %v685 = vadd.f32 %v301, %v684
      %v686 = vpop.f32.mrb[0].mxu0
      %687 = vmatprep.mubr.bf16.mxu0 %v424
      %688 = vmatmul.mubr.bf16.gmra.mrb[0].mxu0 %v423
      %v689 = vpop.f32.mrb[0].mxu0
      %v690 = vadd.f32 %v301, %v689
      %v691 = vpop.f32.mrb[0].mxu0
      %v692 = vpop.f32.mrb[0].mxu0
      %v693 = vadd.f32 %v301, %v692
      %v694 = vpop.f32.mrb[0].mxu0
      %695 = vmatprep.mubr.bf16.mxu0 %v426
      %696 = vmatmul.mubr.bf16.gmra.mrb[0].mxu0 %v425
      %v697 = vpop.f32.mrb[0].mxu0
      %v698 = vadd.f32 %v301, %v697
      %v699 = vpop.f32.mrb[0].mxu0
      %v700 = vpop.f32.mrb[0].mxu0
      %v701 = vadd.f32 %v301, %v700
      %v702 = vpop.f32.mrb[0].mxu0
      %703 = vmatprep.mubr.bf16.mxu0 %v428
      %704 = vmatmul.mubr.bf16.gmra.mrb[0].mxu0 %v427
      %v705 = vpop.f32.mrb[0].mxu0
      %v706 = vadd.f32 %v301, %v705
      %v707 = vpop.f32.mrb[0].mxu0
      %v708 = vpop.f32.mrb[0].mxu0
      %v709 = vadd.f32 %v301, %v708
      %v710 = vpop.f32.mrb[0].mxu0
      %711 = vmatprep.mubr.bf16.mxu0 %v430
      %712 = vmatmul.mubr.bf16.gmra.mrb[0].mxu0 %v429
      %v713 = vpop.f32.mrb[0].mxu0
      %v714 = vadd.f32 %v301, %v713
      %v715 = vpop.f32.mrb[0].mxu0
      %v716 = vpop.f32.mrb[0].mxu0
      %v717 = vadd.f32 %v301, %v716
      %v718 = vpop.f32.mrb[0].mxu0
      %719 = vdwg.mxu0
      %v720 = vmax.f32 %v594, 0.0
      %v721 = vmax.f32 %v597, 0.0
      %v722 = vmax.f32 %v602, 0.0
      %v723 = vmax.f32 %v605, 0.0
      %v724 = vmax.f32 %v610, 0.0
      %v725 = vmax.f32 %v613, 0.0
      %v726 = vmax.f32 %v618, 0.0
      %v727 = vmax.f32 %v621, 0.0
      %v728 = vmax.f32 %v626, 0.0
      %v729 = vmax.f32 %v629, 0.0
      %v730 = vmax.f32 %v634, 0.0
      %v731 = vmax.f32 %v637, 0.0
      %v732 = vmax.f32 %v642, 0.0
      %v733 = vmax.f32 %v645, 0.0
      %v734 = vmax.f32 %v650, 0.0
      %v735 = vmax.f32 %v653, 0.0
      %v736 = vmax.f32 %v658, 0.0
      %v737 = vmax.f32 %v661, 0.0
      %v738 = vmax.f32 %v666, 0.0
      %v739 = vmax.f32 %v669, 0.0
      %v740 = vmax.f32 %v674, 0.0
      %v741 = vmax.f32 %v677, 0.0
      %v742 = vmax.f32 %v682, 0.0
      %v743 = vmax.f32 %v685, 0.0
      %v744 = vmax.f32 %v690, 0.0
      %v745 = vmax.f32 %v693, 0.0
      %v746 = vmax.f32 %v698, 0.0
      %v747 = vmax.f32 %v701, 0.0
      %v748 = vmax.f32 %v706, 0.0
      %v749 = vmax.f32 %v709, 0.0
      %v750 = vmax.f32 %v714, 0.0
      %v751 = vmax.f32 %v717, 0.0
      %v752 = vpack.c.bf16 %v721, %v720
      %v753 = vpack.c.bf16 %v723, %v722
      %v754 = vpack.c.bf16 %v725, %v724
      %v755 = vpack.c.bf16 %v727, %v726
      %v756 = vpack.c.bf16 %v729, %v728
      %v757 = vpack.c.bf16 %v731, %v730
      %v758 = vpack.c.bf16 %v733, %v732
      %v759 = vpack.c.bf16 %v735, %v734
      %v760 = vpack.c.bf16 %v737, %v736
      %v761 = vpack.c.bf16 %v739, %v738
      %v762 = vpack.c.bf16 %v741, %v740
      %v763 = vpack.c.bf16 %v743, %v742
      %v764 = vpack.c.bf16 %v745, %v744
      %v765 = vpack.c.bf16 %v747, %v746
      %v766 = vpack.c.bf16 %v749, %v748
      %v767 = vpack.c.bf16 %v751, %v750
      %v768 = vld [vmem:[%s3] sm:$0xf]
      %v769 = vld [vmem:[%s3 + $0x4] sm:$0xf]
      %v770 = vld [vmem:[%s3 + $0x8] sm:$0xf]
      %v771 = vld [vmem:[%s3 + $0xc] sm:$0xf]
      %v772 = vld [vmem:[%s3 + $0x10] sm:$0xf]
      %v773 = vld [vmem:[%s3 + $0x14] sm:$0xf]
      %v774 = vld [vmem:[%s3 + $0x18] sm:$0xf]
      %v775 = vld [vmem:[%s3 + $0x1c] sm:$0xf]
      %v776 = vld [vmem:[%s3 + $0x20] sm:$0xf]
      %v777 = vld [vmem:[%s3 + $0x24] sm:$0xf]
      %v778 = vld [vmem:[%s3 + $0x28] sm:$0xf]
      %v779 = vld [vmem:[%s3 + $0x2c] sm:$0xf]
      %v780 = vld [vmem:[%s3 + $0x30] sm:$0xf]
      %v781 = vld [vmem:[%s3 + $0x34] sm:$0xf]
      %v782 = vld [vmem:[%s3 + $0x38] sm:$0xf]
      %v783 = vld [vmem:[%s3 + $0x3c] sm:$0xf]
      %v784 = vld [vmem:[%s4] sm:$0x1]
      %v786 = vlaneseq
      %v787 = vshrl.u32 %v786, 7
      %v788 = vsub.s32 0, %v787
      %v789 = vrot.slane %v784, %v788
      %v807 = vunpack.c.l.b16 %v768
      %v808 = vunpack.c.l.b16 %v769
      %v809 = vunpack.c.l.b16 %v770
      %v810 = vunpack.c.l.b16 %v771
      %v811 = vunpack.c.l.b16 %v772
      %v812 = vunpack.c.l.b16 %v773
      %v813 = vunpack.c.l.b16 %v774
      %v814 = vunpack.c.l.b16 %v775
      %v815 = vunpack.c.l.b16 %v776
      %v816 = vunpack.c.l.b16 %v777
      %v817 = vunpack.c.l.b16 %v778
      %v818 = vunpack.c.l.b16 %v779
      %v819 = vunpack.c.l.b16 %v780
      %v820 = vunpack.c.l.b16 %v781
      %v821 = vunpack.c.l.b16 %v782
      %v822 = vunpack.c.l.b16 %v783
      %v823 = vpack.c.b16 %v808, %v807
      %v824 = vpack.c.b16 %v810, %v809
      %v825 = vpack.c.b16 %v812, %v811
      %v826 = vpack.c.b16 %v814, %v813
      %v827 = vpack.c.b16 %v816, %v815
      %v828 = vpack.c.b16 %v818, %v817
      %v829 = vpack.c.b16 %v820, %v819
      %v830 = vpack.c.b16 %v822, %v821
      %839 = vmatprep.subr.bf16.mxu0 0
      %840 = vmatpush1.bf16.msra.mxu0 %v823
      %841 = vmatprep.subr.bf16.mxu0 0
      %842 = vmatpush1.bf16.msra.mxu0 %v824
      %843 = vmatprep.subr.bf16.mxu0 0
      %844 = vmatpush1.bf16.msra.mxu0 %v825
      %845 = vmatprep.subr.bf16.mxu0 0
      %846 = vmatpush1.bf16.msra.mxu0 %v826
      %847 = vmatprep.subr.bf16.mxu0 0
      %848 = vmatpush1.bf16.msra.mxu0 %v827
      %849 = vmatprep.subr.bf16.mxu0 0
      %850 = vmatpush1.bf16.msra.mxu0 %v828
      %851 = vmatprep.subr.bf16.mxu0 0
      %852 = vmatpush1.bf16.msra.mxu0 %v829
      %853 = vmatprep.subr.bf16.mxu0 0
      %854 = vmatpush1.bf16.msra.mxu0 %v830
      %855 = vmatprep.subr.bf16.mxu0 0
      %856 = vmatpush1.bf16.msra.mxu0 0
      %857 = vmatprep.subr.bf16.mxu0 0
      %858 = vmatpush1.bf16.msra.mxu0 0
      %859 = vmatprep.subr.bf16.mxu0 0
      %860 = vmatpush1.bf16.msra.mxu0 0
      %861 = vmatprep.subr.bf16.mxu0 0
      %862 = vmatpush1.bf16.msra.mxu0 0
      %863 = vmatprep.subr.bf16.mxu0 0
      %864 = vmatpush1.bf16.msra.mxu0 0
      %865 = vmatprep.subr.bf16.mxu0 0
      %866 = vmatpush1.bf16.msra.mxu0 0
      %867 = vmatprep.subr.bf16.mxu0 0
      %868 = vmatpush1.bf16.msra.mxu0 0
      %869 = vmatprep.subr.bf16.mxu0 0
      %870 = vmatpush1.bf16.msra.mxu0 0
      %871 = vmatprep.mubr.bf16.mxu0 0
      %872 = vmatmul.mubr.bf16.gmra.mrb[0].mxu0 %v752
      %v873 = vpop.f32.mrb[0].mxu0
      %v874 = vadd.f32 %v789, %v873
      %v875 = vpop.f32.mrb[0].mxu0
      %v876 = vpop.f32.mrb[0].mxu0
      %v877 = vadd.f32 %v789, %v876
      %v878 = vpop.f32.mrb[0].mxu0
      %879 = vmatprep.mubr.bf16.mxu0 0
      %880 = vmatmul.mubr.bf16.gmra.mrb[0].mxu0 %v753
      %v881 = vpop.f32.mrb[0].mxu0
      %v882 = vadd.f32 %v789, %v881
      %v883 = vpop.f32.mrb[0].mxu0
      %v884 = vpop.f32.mrb[0].mxu0
      %v885 = vadd.f32 %v789, %v884
      %v886 = vpop.f32.mrb[0].mxu0
      %887 = vmatprep.mubr.bf16.mxu0 0
      %888 = vmatmul.mubr.bf16.gmra.mrb[0].mxu0 %v754
      %v889 = vpop.f32.mrb[0].mxu0
      %v890 = vadd.f32 %v789, %v889
      %v891 = vpop.f32.mrb[0].mxu0
      %v892 = vpop.f32.mrb[0].mxu0
      %v893 = vadd.f32 %v789, %v892
      %v894 = vpop.f32.mrb[0].mxu0
      %895 = vmatprep.mubr.bf16.mxu0 0
      %896 = vmatmul.mubr.bf16.gmra.mrb[0].mxu0 %v755
      %v897 = vpop.f32.mrb[0].mxu0
      %v898 = vadd.f32 %v789, %v897
      %v899 = vpop.f32.mrb[0].mxu0
      %v900 = vpop.f32.mrb[0].mxu0
      %v901 = vadd.f32 %v789, %v900
      %v902 = vpop.f32.mrb[0].mxu0
      %903 = vmatprep.mubr.bf16.mxu0 0
      %904 = vmatmul.mubr.bf16.gmra.mrb[0].mxu0 %v756
      %v905 = vpop.f32.mrb[0].mxu0
      %v906 = vadd.f32 %v789, %v905
      %v907 = vpop.f32.mrb[0].mxu0
      %v908 = vpop.f32.mrb[0].mxu0
      %v909 = vadd.f32 %v789, %v908
      %v910 = vpop.f32.mrb[0].mxu0
      %911 = vmatprep.mubr.bf16.mxu0 0
      %912 = vmatmul.mubr.bf16.gmra.mrb[0].mxu0 %v757
      %v913 = vpop.f32.mrb[0].mxu0
      %v914 = vadd.f32 %v789, %v913
      %v915 = vpop.f32.mrb[0].mxu0
      %v916 = vpop.f32.mrb[0].mxu0
      %v917 = vadd.f32 %v789, %v916
      %v918 = vpop.f32.mrb[0].mxu0
      %919 = vmatprep.mubr.bf16.mxu0 0
      %920 = vmatmul.mubr.bf16.gmra.mrb[0].mxu0 %v758
      %v921 = vpop.f32.mrb[0].mxu0
      %v922 = vadd.f32 %v789, %v921
      %v923 = vpop.f32.mrb[0].mxu0
      %v924 = vpop.f32.mrb[0].mxu0
      %v925 = vadd.f32 %v789, %v924
      %v926 = vpop.f32.mrb[0].mxu0
      %927 = vmatprep.mubr.bf16.mxu0 0
      %928 = vmatmul.mubr.bf16.gmra.mrb[0].mxu0 %v759
      %v929 = vpop.f32.mrb[0].mxu0
      %v930 = vadd.f32 %v789, %v929
      %v931 = vpop.f32.mrb[0].mxu0
      %v932 = vpop.f32.mrb[0].mxu0
      %v933 = vadd.f32 %v789, %v932
      %v934 = vpop.f32.mrb[0].mxu0
      %935 = vmatprep.mubr.bf16.mxu0 0
      %936 = vmatmul.mubr.bf16.gmra.mrb[0].mxu0 %v760
      %v937 = vpop.f32.mrb[0].mxu0
      %v938 = vadd.f32 %v789, %v937
      %v939 = vpop.f32.mrb[0].mxu0
      %v940 = vpop.f32.mrb[0].mxu0
      %v941 = vadd.f32 %v789, %v940
      %v942 = vpop.f32.mrb[0].mxu0
      %943 = vmatprep.mubr.bf16.mxu0 0
      %944 = vmatmul.mubr.bf16.gmra.mrb[0].mxu0 %v761
      %v945 = vpop.f32.mrb[0].mxu0
      %v946 = vadd.f32 %v789, %v945
      %v947 = vpop.f32.mrb[0].mxu0
      %v948 = vpop.f32.mrb[0].mxu0
      %v949 = vadd.f32 %v789, %v948
      %v950 = vpop.f32.mrb[0].mxu0
      %951 = vmatprep.mubr.bf16.mxu0 0
      %952 = vmatmul.mubr.bf16.gmra.mrb[0].mxu0 %v762
      %v953 = vpop.f32.mrb[0].mxu0
      %v954 = vadd.f32 %v789, %v953
      %v955 = vpop.f32.mrb[0].mxu0
      %v956 = vpop.f32.mrb[0].mxu0
      %v957 = vadd.f32 %v789, %v956
      %v958 = vpop.f32.mrb[0].mxu0
      %959 = vmatprep.mubr.bf16.mxu0 0
      %960 = vmatmul.mubr.bf16.gmra.mrb[0].mxu0 %v763
      %v961 = vpop.f32.mrb[0].mxu0
      %v962 = vadd.f32 %v789, %v961
      %v963 = vpop.f32.mrb[0].mxu0
      %v964 = vpop.f32.mrb[0].mxu0
      %v965 = vadd.f32 %v789, %v964
      %v966 = vpop.f32.mrb[0].mxu0
      %967 = vmatprep.mubr.bf16.mxu0 0
      %968 = vmatmul.mubr.bf16.gmra.mrb[0].mxu0 %v764
      %v969 = vpop.f32.mrb[0].mxu0
      %v970 = vadd.f32 %v789, %v969
      %v971 = vpop.f32.mrb[0].mxu0
      %v972 = vpop.f32.mrb[0].mxu0
      %v973 = vadd.f32 %v789, %v972
      %v974 = vpop.f32.mrb[0].mxu0
      %975 = vmatprep.mubr.bf16.mxu0 0
      %976 = vmatmul.mubr.bf16.gmra.mrb[0].mxu0 %v765
      %v977 = vpop.f32.mrb[0].mxu0
      %v978 = vadd.f32 %v789, %v977
      %v979 = vpop.f32.mrb[0].mxu0
      %v980 = vpop.f32.mrb[0].mxu0
      %v981 = vadd.f32 %v789, %v980
      %v982 = vpop.f32.mrb[0].mxu0
      %983 = vmatprep.mubr.bf16.mxu0 0
      %984 = vmatmul.mubr.bf16.gmra.mrb[0].mxu0 %v766
      %v985 = vpop.f32.mrb[0].mxu0
      %v986 = vadd.f32 %v789, %v985
      %v987 = vpop.f32.mrb[0].mxu0
      %v988 = vpop.f32.mrb[0].mxu0
      %v989 = vadd.f32 %v789, %v988
      %v990 = vpop.f32.mrb[0].mxu0
      %991 = vmatprep.mubr.bf16.mxu0 0
      %992 = vmatmul.mubr.bf16.gmra.mrb[0].mxu0 %v767
      %v993 = vpop.f32.mrb[0].mxu0
      %v994 = vadd.f32 %v789, %v993
      %v995 = vpop.f32.mrb[0].mxu0
      %v996 = vpop.f32.mrb[0].mxu0
      %v997 = vadd.f32 %v789, %v996
      %v998 = vpop.f32.mrb[0].mxu0
      %999 = vdwg.mxu0
      %v1000 = vxor.u32 %v874, 2147483648
      %v1001 = vxor.u32 %v877, 2147483648
      %v1002 = vxor.u32 %v882, 2147483648
      %v1003 = vxor.u32 %v885, 2147483648
      %v1004 = vxor.u32 %v890, 2147483648
      %v1005 = vxor.u32 %v893, 2147483648
      %v1006 = vxor.u32 %v898, 2147483648
      %v1007 = vxor.u32 %v901, 2147483648
      %v1008 = vxor.u32 %v906, 2147483648
      %v1009 = vxor.u32 %v909, 2147483648
      %v1010 = vxor.u32 %v914, 2147483648
      %v1011 = vxor.u32 %v917, 2147483648
      %v1012 = vxor.u32 %v922, 2147483648
      %v1013 = vxor.u32 %v925, 2147483648
      %v1014 = vxor.u32 %v930, 2147483648
      %v1015 = vxor.u32 %v933, 2147483648
      %v1016 = vxor.u32 %v938, 2147483648
      %v1017 = vxor.u32 %v941, 2147483648
      %v1018 = vxor.u32 %v946, 2147483648
      %v1019 = vxor.u32 %v949, 2147483648
      %v1020 = vxor.u32 %v954, 2147483648
      %v1021 = vxor.u32 %v957, 2147483648
      %v1022 = vxor.u32 %v962, 2147483648
      %v1023 = vxor.u32 %v965, 2147483648
      %v1024 = vxor.u32 %v970, 2147483648
      %v1025 = vxor.u32 %v973, 2147483648
      %v1026 = vxor.u32 %v978, 2147483648
      %v1027 = vxor.u32 %v981, 2147483648
      %v1028 = vxor.u32 %v986, 2147483648
      %v1029 = vxor.u32 %v989, 2147483648
      %v1030 = vxor.u32 %v994, 2147483648
      %v1031 = vxor.u32 %v997, 2147483648
      %v1032 = vmul.f32 %v1000, 1.442695
      %v1033 = vpow.pop %v1032
      %v1034 = vmul.f32 %v1001, 1.442695
      %v1035 = vpow.pop %v1034
      %v1036 = vmul.f32 %v1002, 1.442695
      %v1037 = vpow.pop %v1036
      %v1038 = vmul.f32 %v1003, 1.442695
      %v1039 = vpow.pop %v1038
      %v1040 = vmul.f32 %v1004, 1.442695
      %v1041 = vpow.pop %v1040
      %v1042 = vmul.f32 %v1005, 1.442695
      %v1043 = vpow.pop %v1042
      %v1044 = vmul.f32 %v1006, 1.442695
      %v1045 = vpow.pop %v1044
      %v1046 = vmul.f32 %v1007, 1.442695
      %v1047 = vpow.pop %v1046
      %v1048 = vmul.f32 %v1008, 1.442695
      %v1049 = vpow.pop %v1048
      %v1050 = vmul.f32 %v1009, 1.442695
      %v1051 = vpow.pop %v1050
      %v1052 = vmul.f32 %v1010, 1.442695
      %v1053 = vpow.pop %v1052
      %v1054 = vmul.f32 %v1011, 1.442695
      %v1055 = vpow.pop %v1054
      %v1056 = vmul.f32 %v1012, 1.442695
      %v1057 = vpow.pop %v1056
      %v1058 = vmul.f32 %v1013, 1.442695
      %v1059 = vpow.pop %v1058
      %v1060 = vmul.f32 %v1014, 1.442695
      %v1061 = vpow.pop %v1060
      %v1062 = vmul.f32 %v1015, 1.442695
      %v1063 = vpow.pop %v1062
      %v1064 = vmul.f32 %v1016, 1.442695
      %v1065 = vpow.pop %v1064
      %v1066 = vmul.f32 %v1017, 1.442695
      %v1067 = vpow.pop %v1066
      %v1068 = vmul.f32 %v1018, 1.442695
      %v1069 = vpow.pop %v1068
      %v1070 = vmul.f32 %v1019, 1.442695
      %v1071 = vpow.pop %v1070
      %v1072 = vmul.f32 %v1020, 1.442695
      %v1073 = vpow.pop %v1072
      %v1074 = vmul.f32 %v1021, 1.442695
      %v1075 = vpow.pop %v1074
      %v1076 = vmul.f32 %v1022, 1.442695
      %v1077 = vpow.pop %v1076
      %v1078 = vmul.f32 %v1023, 1.442695
      %v1079 = vpow.pop %v1078
      %v1080 = vmul.f32 %v1024, 1.442695
      %v1081 = vpow.pop %v1080
      %v1082 = vmul.f32 %v1025, 1.442695
      %v1083 = vpow.pop %v1082
      %v1084 = vmul.f32 %v1026, 1.442695
      %v1085 = vpow.pop %v1084
      %v1086 = vmul.f32 %v1027, 1.442695
      %v1087 = vpow.pop %v1086
      %v1088 = vmul.f32 %v1028, 1.442695
      %v1089 = vpow.pop %v1088
      %v1090 = vmul.f32 %v1029, 1.442695
      %v1091 = vpow.pop %v1090
      %v1092 = vmul.f32 %v1030, 1.442695
      %v1093 = vpow.pop %v1092
      %v1094 = vmul.f32 %v1031, 1.442695
      %v1095 = vpow.pop %v1094
      %v1096 = vadd.f32 %v1033, 1.0
      %v1097 = vadd.f32 %v1035, 1.0
      %v1098 = vadd.f32 %v1037, 1.0
      %v1099 = vadd.f32 %v1039, 1.0
      %v1100 = vadd.f32 %v1041, 1.0
      %v1101 = vadd.f32 %v1043, 1.0
      %v1102 = vadd.f32 %v1045, 1.0
      %v1103 = vadd.f32 %v1047, 1.0
      %v1104 = vadd.f32 %v1049, 1.0
      %v1105 = vadd.f32 %v1051, 1.0
      %v1106 = vadd.f32 %v1053, 1.0
      %v1107 = vadd.f32 %v1055, 1.0
      %v1108 = vadd.f32 %v1057, 1.0
      %v1109 = vadd.f32 %v1059, 1.0
      %v1110 = vadd.f32 %v1061, 1.0
      %v1111 = vadd.f32 %v1063, 1.0
      %v1112 = vadd.f32 %v1065, 1.0
      %v1113 = vadd.f32 %v1067, 1.0
      %v1114 = vadd.f32 %v1069, 1.0
      %v1115 = vadd.f32 %v1071, 1.0
      %v1116 = vadd.f32 %v1073, 1.0
      %v1117 = vadd.f32 %v1075, 1.0
      %v1118 = vadd.f32 %v1077, 1.0
      %v1119 = vadd.f32 %v1079, 1.0
      %v1120 = vadd.f32 %v1081, 1.0
      %v1121 = vadd.f32 %v1083, 1.0
      %v1122 = vadd.f32 %v1085, 1.0
      %v1123 = vadd.f32 %v1087, 1.0
      %v1124 = vadd.f32 %v1089, 1.0
      %v1125 = vadd.f32 %v1091, 1.0
      %v1126 = vadd.f32 %v1093, 1.0
      %v1127 = vadd.f32 %v1095, 1.0
      %v1128 = vrcp.pop %v1096
      %v1129 = vmul.f32 1.0, %v1128
      %v1130 = vrcp.pop %v1097
      %v1131 = vmul.f32 1.0, %v1130
      %v1132 = vrcp.pop %v1098
      %v1133 = vmul.f32 1.0, %v1132
      %v1134 = vrcp.pop %v1099
      %v1135 = vmul.f32 1.0, %v1134
      %v1136 = vrcp.pop %v1100
      %v1137 = vmul.f32 1.0, %v1136
      %v1138 = vrcp.pop %v1101
      %v1139 = vmul.f32 1.0, %v1138
      %v1140 = vrcp.pop %v1102
      %v1141 = vmul.f32 1.0, %v1140
      %v1142 = vrcp.pop %v1103
      %v1143 = vmul.f32 1.0, %v1142
      %v1144 = vrcp.pop %v1104
      %v1145 = vmul.f32 1.0, %v1144
      %v1146 = vrcp.pop %v1105
      %v1147 = vmul.f32 1.0, %v1146
      %v1148 = vrcp.pop %v1106
      %v1149 = vmul.f32 1.0, %v1148
      %v1150 = vrcp.pop %v1107
      %v1151 = vmul.f32 1.0, %v1150
      %v1152 = vrcp.pop %v1108
      %v1153 = vmul.f32 1.0, %v1152
      %v1154 = vrcp.pop %v1109
      %v1155 = vmul.f32 1.0, %v1154
      %v1156 = vrcp.pop %v1110
      %v1157 = vmul.f32 1.0, %v1156
      %v1158 = vrcp.pop %v1111
      %v1159 = vmul.f32 1.0, %v1158
      %v1160 = vrcp.pop %v1112
      %v1161 = vmul.f32 1.0, %v1160
      %v1162 = vrcp.pop %v1113
      %v1163 = vmul.f32 1.0, %v1162
      %v1164 = vrcp.pop %v1114
      %v1165 = vmul.f32 1.0, %v1164
      %v1166 = vrcp.pop %v1115
      %v1167 = vmul.f32 1.0, %v1166
      %v1168 = vrcp.pop %v1116
      %v1169 = vmul.f32 1.0, %v1168
      %v1170 = vrcp.pop %v1117
      %v1171 = vmul.f32 1.0, %v1170
      %v1172 = vrcp.pop %v1118
      %v1173 = vmul.f32 1.0, %v1172
      %v1174 = vrcp.pop %v1119
      %v1175 = vmul.f32 1.0, %v1174
      %v1176 = vrcp.pop %v1120
      %v1177 = vmul.f32 1.0, %v1176
      %v1178 = vrcp.pop %v1121
      %v1179 = vmul.f32 1.0, %v1178
      %v1180 = vrcp.pop %v1122
      %v1181 = vmul.f32 1.0, %v1180
      %v1182 = vrcp.pop %v1123
      %v1183 = vmul.f32 1.0, %v1182
      %v1184 = vrcp.pop %v1124
      %v1185 = vmul.f32 1.0, %v1184
      %v1186 = vrcp.pop %v1125
      %v1187 = vmul.f32 1.0, %v1186
      %v1188 = vrcp.pop %v1126
      %v1189 = vmul.f32 1.0, %v1188
      %v1190 = vrcp.pop %v1127
      %v1191 = vmul.f32 1.0, %v1190
      %vm1192 = vcmask 31744
      %1193 = vst.msk [vmem:[%s229] sm:$0xff] %vm1192, %v1129
      %1194 = vst.msk [vmem:[%s229 + $0x8] sm:$0xff] %vm1192, %v1131
      %1195 = vst.msk [vmem:[%s229 + $0x10] sm:$0xff] %vm1192, %v1133
      %1196 = vst.msk [vmem:[%s229 + $0x18] sm:$0xff] %vm1192, %v1135
      %1197 = vst.msk [vmem:[%s229 + $0x20] sm:$0xff] %vm1192, %v1137
      %1198 = vst.msk [vmem:[%s229 + $0x28] sm:$0xff] %vm1192, %v1139
      %1199 = vst.msk [vmem:[%s229 + $0x30] sm:$0xff] %vm1192, %v1141
      %1200 = vst.msk [vmem:[%s229 + $0x38] sm:$0xff] %vm1192, %v1143
      %1201 = vst.msk [vmem:[%s229 + $0x40] sm:$0xff] %vm1192, %v1145
      %1202 = vst.msk [vmem:[%s229 + $0x48] sm:$0xff] %vm1192, %v1147
      %1203 = vst.msk [vmem:[%s229 + $0x50] sm:$0xff] %vm1192, %v1149
      %1204 = vst.msk [vmem:[%s229 + $0x58] sm:$0xff] %vm1192, %v1151
      %1205 = vst.msk [vmem:[%s229 + $0x60] sm:$0xff] %vm1192, %v1153
      %1206 = vst.msk [vmem:[%s229 + $0x68] sm:$0xff] %vm1192, %v1155
      %1207 = vst.msk [vmem:[%s229 + $0x70] sm:$0xff] %vm1192, %v1157
      %1208 = vst.msk [vmem:[%s229 + $0x78] sm:$0xff] %vm1192, %v1159
      %1209 = vst.msk [vmem:[%s229 + $0x80] sm:$0xff] %vm1192, %v1161
      %1210 = vst.msk [vmem:[%s229 + $0x88] sm:$0xff] %vm1192, %v1163
      %1211 = vst.msk [vmem:[%s229 + $0x90] sm:$0xff] %vm1192, %v1165
      %1212 = vst.msk [vmem:[%s229 + $0x98] sm:$0xff] %vm1192, %v1167
      %1213 = vst.msk [vmem:[%s229 + $0xa0] sm:$0xff] %vm1192, %v1169
      %1214 = vst.msk [vmem:[%s229 + $0xa8] sm:$0xff] %vm1192, %v1171
      %1215 = vst.msk [vmem:[%s229 + $0xb0] sm:$0xff] %vm1192, %v1173
      %1216 = vst.msk [vmem:[%s229 + $0xb8] sm:$0xff] %vm1192, %v1175
      %1217 = vst.msk [vmem:[%s229 + $0xc0] sm:$0xff] %vm1192, %v1177
      %1218 = vst.msk [vmem:[%s229 + $0xc8] sm:$0xff] %vm1192, %v1179
      %1219 = vst.msk [vmem:[%s229 + $0xd0] sm:$0xff] %vm1192, %v1181
      %1220 = vst.msk [vmem:[%s229 + $0xd8] sm:$0xff] %vm1192, %v1183
      %1221 = vst.msk [vmem:[%s229 + $0xe0] sm:$0xff] %vm1192, %v1185
      %1222 = vst.msk [vmem:[%s229 + $0xe8] sm:$0xff] %vm1192, %v1187
      %1223 = vst.msk [vmem:[%s229 + $0xf0] sm:$0xff] %vm1192, %v1189
      %1224 = vst.msk [vmem:[%s229 + $0xf8] sm:$0xff] %vm1192, %v1191
      %s1225 = smul.u32 32, %s16
      %p1226 = scmp.lt.s32.totalorder %s1225, 63
      %s1227 = scalar_select %p1226, %s1225, 63
      %s1228 = smul.addr %s1227, 8
      %s1229 = scalar_lea.vmem %s5, %s1228
      // Predicated region
      $region41: #{autoencoder_forward.13} parent=39 // pred_check
        %p1230 = pneg %p144
      $region42: #{autoencoder_forward.13} parent=39 // pred_check_branch
        %1232 = sbr.rel (%p1230) target = $region44
      $region43: #{autoencoder_forward.13} parent=39 // pred_region
        %s1233 = smul.u32 32, %s16
      $region44: #{autoencoder_forward.13} parent=39 // pred_fallthru
        _
    $region40: #{autoencoder_forward.13} parent=5 // pred_fallthru
      _
    %p1234 = scmp.le.s32.totalorder 2, %s11
    // Predicated region
    $region45: #{autoencoder_forward.13} parent=5 // pred_check
      %p1235 = pneg %p1234
    $region46: #{autoencoder_forward.13} parent=5 // pred_check_branch
      %1237 = sbr.rel (%p1235) target = $region48
    $region47: #{autoencoder_forward.13} parent=5 // pred_region
      %s1238 = ssub.s32 %s11, 2
      // Predicated region
      $region49: #{autoencoder_forward.13} parent=47 // pred_check
        %p1239 = pneg %p150
      $region50: #{autoencoder_forward.13} parent=47 // pred_check_branch
        %1241 = sbr.rel (%p1239) target = $region52
      $region51: #{autoencoder_forward.13} parent=47 // pred_region
        %s1242 = smul.u32 32, %s17
        %p1243 = scmp.lt.s32.totalorder %s1242, 63
        %s1244 = scalar_select %p1243, %s1242, 63
        %s1245 = smul.addr %s1244, 8
        %s1246 = scalar_lea.vmem %s5, %s1245
      $region52: #{autoencoder_forward.13} parent=47 // pred_fallthru
        _
    $region48: #{autoencoder_forward.13} parent=5 // pred_fallthru
      _
  $region6: #{autoencoder_forward.13} parent=0 // loop_footer
    %s15 = sadd.s32 1, %s11
  $region7: #{autoencoder_forward.13} parent=0 // loop_footer_branch
    %10 = sbr.rel target = $region3
  $region8: #{autoencoder_forward.13} parent=0 // loop_exit
    _

</llo_original>
